<compile_context>
chip_gen: v7x
topology: tpu7x:2x2x1
jax: 0.10.0
libtpu: 0.0.40
codegen_flags: <defaults>
</compile_context>

<pallas_src>
import jax
import jax.numpy as jnp
import numpy as np
from jax.experimental import pallas as pl
from jax.experimental.pallas import tpu as pltpu

LANES = 128          # padded channel width -> lane-dense blocks
TM_CAP = 512         # max rows per matmul tile (fits default scoped VMEM)


def _round_up(x, m):
    return (x + m - 1) // m * m


def _tile_rows(m):
    # multiple of 16 keeps bf16 blocks aligned to the native (16, 128) tile
    return min(TM_CAP, _round_up(m, 16))


# --------------------------------------------------------------------------
# Pallas kernels
# --------------------------------------------------------------------------
def _conv_relu_pool_kernel(p_ref, w_ref, b_ref, o_ref):
    """p: (4, TM, K) bf16 corner patches, w: (K, 128) bf16, b: (1, 128) f32.

    out[m, :] = relu(max_corner(p[corner, m] @ w) + b)  == conv+ReLU+maxpool.
    (bias add & ReLU commute with the max since both are monotonic.)
    """
    w = w_ref[...]
    z = jnp.dot(p_ref[0], w, preferred_element_type=jnp.float32)
    for c in range(1, 4):
        z = jnp.maximum(z, jnp.dot(p_ref[c], w,
                                   preferred_element_type=jnp.float32))
    o_ref[...] = jnp.maximum(z + b_ref[...], 0.0).astype(o_ref.dtype)


def _mlp_kernel(x_ref, w1_ref, b1_ref, w2_ref, b2_ref, o_ref):
    """out = relu(x @ w1 + b1) @ w2 + b2 ; bf16 matmuls, f32 accumulate."""
    h = jnp.dot(x_ref[...], w1_ref[...], preferred_element_type=jnp.float32)
    h = jnp.maximum(h + b1_ref[...], 0.0).astype(jnp.bfloat16)
    o = jnp.dot(h, w2_ref[...], preferred_element_type=jnp.float32)
    o_ref[...] = (o + b2_ref[...]).astype(o_ref.dtype)


# --------------------------------------------------------------------------
# Glue: pooled-corner patch extraction (shifted NHWC views, no 5-D transpose)
# --------------------------------------------------------------------------
def _pooled_corner_patches(x_nhwc):
    """3x3 SAME patches for the 4 corners of each 2x2 pool window.

    x: (N, H, W, C) -> (4, N*(H//2)*(W//2), 9*C) bf16.
    Row order (n, ph, pw); feature order (kh, kw, cin) — matches prep_params.
    """
    N, H, W, C = x_nhwc.shape
    Hp, Wp = H // 2, W // 2
    xp = jnp.pad(x_nhwc, ((0, 0), (1, 2), (1, 2), (0, 0)))
    corners = []
    for s in range(2):            # pool-window row offset
        for t in range(2):        # pool-window col offset
            feats = [xp[:, i + s:i + s + H:2, j + t:j + t + W:2, :]
                     for i in range(3) for j in range(3)]
            sub = jnp.concatenate(feats, axis=-1)            # (N, Hp, Wp, 9C)
            corners.append(sub.reshape(N * Hp * Wp, 9 * C))
    return jnp.stack(corners, axis=0).astype(jnp.bfloat16)   # (4, M, 9C)


# --------------------------------------------------------------------------
# Pallas wrappers
# --------------------------------------------------------------------------
def conv3x3_relu_pool(x_nhwc, w_mat, b_mat):
    """Fused 3x3 SAME conv + bias + ReLU + 2x2/2 maxpool. NHWC in, NHWC out."""
    N, H, W, C = x_nhwc.shape
    Hp, Wp = H // 2, W // 2
    K = 9 * C
    # TODO(synk): window extraction stays as plain-JAX glue; a fully in-kernel
    # version would gather the shifted windows via manual DMA instead.
    patches = _pooled_corner_patches(x_nhwc)                 # (4, M, K)
    M = N * Hp * Wp
    tm = _tile_rows(M)
    Mp = _round_up(M, tm)
    if Mp != M:
        patches = jnp.pad(patches, ((0, 0), (0, Mp - M), (0, 0)))
    out = pl.pallas_call(
        _conv_relu_pool_kernel,
        out_shape=jax.ShapeDtypeStruct((Mp, LANES), jnp.bfloat16),
        grid=(Mp // tm,),
        in_specs=[
            pl.BlockSpec((4, tm, K), lambda i: (0, i, 0)),
            pl.BlockSpec((K, LANES), lambda i: (0, 0)),
            pl.BlockSpec((1, LANES), lambda i: (0, 0)),
        ],
        out_specs=pl.BlockSpec((tm, LANES), lambda i: (i, 0)),
        compiler_params=pltpu.CompilerParams(
            dimension_semantics=("parallel",)),
    )(patches, w_mat, b_mat)
    return out[:M].reshape(N, Hp, Wp, LANES)


def mlp_head(flat, w1, b1, w2, b2):
    """Fused fc1 + ReLU + fc2. flat: (M, 3136) bf16 -> (M, 10) f32."""
    M, K = flat.shape
    tm = _tile_rows(M)
    Mp = _round_up(M, tm)
    if Mp != M:
        flat = jnp.pad(flat, ((0, Mp - M), (0, 0)))
    out = pl.pallas_call(
        _mlp_kernel,
        out_shape=jax.ShapeDtypeStruct((Mp, LANES), jnp.float32),
        grid=(Mp // tm,),
        in_specs=[
            pl.BlockSpec((tm, K), lambda i: (i, 0)),
            pl.BlockSpec((K, LANES), lambda i: (0, 0)),
            pl.BlockSpec((1, LANES), lambda i: (0, 0)),
            pl.BlockSpec((LANES, LANES), lambda i: (0, 0)),
            pl.BlockSpec((1, LANES), lambda i: (0, 0)),
        ],
        out_specs=pl.BlockSpec((tm, LANES), lambda i: (i, 0)),
        compiler_params=pltpu.CompilerParams(
            dimension_semantics=("parallel",)),
    )(flat, w1, b1, w2, b2)
    return out[:M, :10]


# --------------------------------------------------------------------------
# Parameters (torch layout) and one-time kernel-layout prep
# --------------------------------------------------------------------------
def init_params(key):
    ks = jax.random.split(key, 8)

    def u(k, shape, fan_in):
        bound = 1.0 / np.sqrt(fan_in)
        return jax.random.uniform(k, shape, jnp.float32, -bound, bound)

    return {
        "conv1_w": u(ks[0], (32, 1, 3, 3), 1 * 9),
        "conv1_b": u(ks[1], (32,), 1 * 9),
        "conv2_w": u(ks[2], (64, 32, 3, 3), 32 * 9),
        "conv2_b": u(ks[3], (64,), 32 * 9),
        "fc1_w": u(ks[4], (128, 64 * 7 * 7), 64 * 7 * 7),
        "fc1_b": u(ks[5], (128,), 64 * 7 * 7),
        "fc2_w": u(ks[6], (10, 128), 128),
        "fc2_b": u(ks[7], (10,), 128),
    }


def prep_params(p):
    """One-time re-layout: pre-transposed, channel-padded, bf16 weights."""
    def conv_w(w, cin_pad):
        oc, c, kh, kw = w.shape
        wt = jnp.transpose(w, (2, 3, 1, 0))                  # (kh, kw, cin, oc)
        wt = jnp.pad(wt, ((0, 0), (0, 0), (0, cin_pad - c), (0, LANES - oc)))
        return wt.reshape(kh * kw * cin_pad, LANES).astype(jnp.bfloat16)

    def pad_bias(b):
        return jnp.pad(b, (0, LANES - b.shape[0]))[None, :].astype(jnp.float32)

    # fc1 rows reordered from torch's (c, h, w) flatten to our (h, w, c) flatten
    fc1_w = jnp.transpose(p["fc1_w"].reshape(128, 64, 7, 7), (2, 3, 1, 0))
    return {
        "conv1_w": conv_w(p["conv1_w"], 1),                  # (9, 128)
        "conv1_b": pad_bias(p["conv1_b"]),                   # (1, 128)
        "conv2_w": conv_w(p["conv2_w"], LANES),              # (1152, 128)
        "conv2_b": pad_bias(p["conv2_b"]),                   # (1, 128)
        "fc1_w": fc1_w.reshape(64 * 7 * 7, LANES).astype(jnp.bfloat16),
        "fc1_b": p["fc1_b"][None, :].astype(jnp.float32),
        "fc2_w": jnp.pad(p["fc2_w"].T,
                         ((0, 0), (0, LANES - 10))).astype(jnp.bfloat16),
        "fc2_b": jnp.pad(p["fc2_b"], (0, LANES - 10))[None, :].astype(jnp.float32),
    }


# --------------------------------------------------------------------------
# Forward pass (Pallas) and pure-JAX reference
# --------------------------------------------------------------------------
def cnn_forward(x_nchw, kp):
    N = x_nchw.shape[0]
    x = jnp.transpose(x_nchw, (0, 2, 3, 1))                      # NHWC, C=1
    y = conv3x3_relu_pool(x, kp["conv1_w"], kp["conv1_b"])       # (N,14,14,128)
    y = conv3x3_relu_pool(y, kp["conv2_w"], kp["conv2_b"])       # (N, 7, 7,128)
    flat = y[..., :64].reshape(N, 64 * 7 * 7)                    # (h, w, c) order
    return mlp_head(flat, kp["fc1_w"], kp["fc1_b"], kp["fc2_w"], kp["fc2_b"])


def cnn_reference(x, p):
    dn = ("NCHW", "OIHW", "NCHW")
    y = jax.lax.conv_general_dilated(x, p["conv1_w"], (1, 1), "SAME",
                                     dimension_numbers=dn)
    y = jax.nn.relu(y + p["conv1_b"][None, :, None, None])
    y = jax.lax.reduce_window(y, -jnp.inf, jax.lax.max,
                              (1, 1, 2, 2), (1, 1, 2, 2), "VALID")
    y = jax.lax.conv_general_dilated(y, p["conv2_w"], (1, 1), "SAME",
                                     dimension_numbers=dn)
    y = jax.nn.relu(y + p["conv2_b"][None, :, None, None])
    y = jax.lax.reduce_window(y, -jnp.inf, jax.lax.max,
                              (1, 1, 2, 2), (1, 1, 2, 2), "VALID")
    flat = y.reshape(x.shape[0], -1)
    h = jax.nn.relu(flat @ p["fc1_w"].T + p["fc1_b"])
    return h @ p["fc2_w"].T + p["fc2_b"]


# --------------------------------------------------------------------------
if __name__ == "__main__":
    key = jax.random.PRNGKey(0)
    pkey, xkey = jax.random.split(key)
    params = init_params(pkey)
    kparams = prep_params(params)     # one-time weight re-layout

    # MNIST-shaped input implied by fc1 = Linear(64*7*7, 128): (N, 1, 28, 28)
    x = jax.random.normal(xkey, (2, 1, 28, 28), dtype=jnp.float32)

    fwd = jax.jit(cnn_forward)
    out = jax.block_until_ready(fwd(x, kparams))
    ref = jax.block_until_ready(cnn_reference(x, params))

    assert out.shape == (2, 10), out.shape
    np.testing.assert_allclose(np.asarray(out), np.asarray(ref),
                               rtol=1e-2, atol=1e-2)
    print("KERNEL_OK")
</pallas_src>

<mosaic_0001>
module attributes {stable_mosaic.version = 11 : i64} {
  func.func @_conv_relu_pool_kernel(%arg0: i32, %arg1: memref<4x400x9xbf16, #tpu.memory_space<vmem>>, %arg2: memref<9x128xbf16, #tpu.memory_space<vmem>>, %arg3: memref<1x128xf32, #tpu.memory_space<vmem>>, %arg4: memref<400x128xbf16, #tpu.memory_space<vmem>>) attributes {dimension_semantics = [#tpu.dimension_semantics<parallel>], iteration_bounds = array<i64: 1>, scalar_prefetch = 0 : i64, scratch_operands = 0 : i64, tpu.core_type = #tpu.core_type<tc>, window_params = [{transform_indices = @transform_0, window_bounds = array<i64: 4, 400, 9>}, {pipeline_mode = #tpu.pipeline_mode<synchronous>, transform_indices = @transform_1, window_bounds = array<i64: 9, 128>}, {pipeline_mode = #tpu.pipeline_mode<synchronous>, transform_indices = @transform_2, window_bounds = array<i64: 1, 128>}, {transform_indices = @transform_3, window_bounds = array<i64: 400, 128>}]} {
    %c0 = arith.constant 0 : index
    %c0_0 = arith.constant 0 : index
    %0 = vector.load %arg2[%c0, %c0_0] : memref<9x128xbf16, #tpu.memory_space<vmem>>, vector<9x128xbf16>
    %c0_1 = arith.constant 0 : index
    %c0_2 = arith.constant 0 : index
    %c0_3 = arith.constant 0 : index
    %1 = vector.load %arg1[%c0_1, %c0_2, %c0_3] : memref<4x400x9xbf16, #tpu.memory_space<vmem>>, vector<1x400x9xbf16>
    %2 = vector.shape_cast %1 : vector<1x400x9xbf16> to vector<400x9xbf16>
    %cst = arith.constant dense<0.000000e+00> : vector<400x128xf32>
    %3 = tpu.matmul %2, %0, %cst {dimension_numbers = #tpu.dot_dimension_numbers<[1], [0], [0], [1], [0, 0, 1, 1], [], []>} : vector<400x9xbf16>, vector<9x128xbf16>, vector<400x128xf32> -> vector<400x128xf32>
    %c1 = arith.constant 1 : index
    %c0_4 = arith.constant 0 : index
    %c0_5 = arith.constant 0 : index
    %4 = vector.load %arg1[%c1, %c0_4, %c0_5] : memref<4x400x9xbf16, #tpu.memory_space<vmem>>, vector<1x400x9xbf16>
    %5 = vector.shape_cast %4 : vector<1x400x9xbf16> to vector<400x9xbf16>
    %cst_6 = arith.constant dense<0.000000e+00> : vector<400x128xf32>
    %6 = tpu.matmul %5, %0, %cst_6 {dimension_numbers = #tpu.dot_dimension_numbers<[1], [0], [0], [1], [0, 0, 1, 1], [], []>} : vector<400x9xbf16>, vector<9x128xbf16>, vector<400x128xf32> -> vector<400x128xf32>
    %7 = arith.maximumf %3, %6 : vector<400x128xf32>
    %c2 = arith.constant 2 : index
    %c0_7 = arith.constant 0 : index
    %c0_8 = arith.constant 0 : index
    %8 = vector.load %arg1[%c2, %c0_7, %c0_8] : memref<4x400x9xbf16, #tpu.memory_space<vmem>>, vector<1x400x9xbf16>
    %9 = vector.shape_cast %8 : vector<1x400x9xbf16> to vector<400x9xbf16>
    %cst_9 = arith.constant dense<0.000000e+00> : vector<400x128xf32>
    %10 = tpu.matmul %9, %0, %cst_9 {dimension_numbers = #tpu.dot_dimension_numbers<[1], [0], [0], [1], [0, 0, 1, 1], [], []>} : vector<400x9xbf16>, vector<9x128xbf16>, vector<400x128xf32> -> vector<400x128xf32>
    %11 = arith.maximumf %7, %10 : vector<400x128xf32>
    %c3 = arith.constant 3 : index
    %c0_10 = arith.constant 0 : index
    %c0_11 = arith.constant 0 : index
    %12 = vector.load %arg1[%c3, %c0_10, %c0_11] : memref<4x400x9xbf16, #tpu.memory_space<vmem>>, vector<1x400x9xbf16>
    %13 = vector.shape_cast %12 : vector<1x400x9xbf16> to vector<400x9xbf16>
    %cst_12 = arith.constant dense<0.000000e+00> : vector<400x128xf32>
    %14 = tpu.matmul %13, %0, %cst_12 {dimension_numbers = #tpu.dot_dimension_numbers<[1], [0], [0], [1], [0, 0, 1, 1], [], []>} : vector<400x9xbf16>, vector<9x128xbf16>, vector<400x128xf32> -> vector<400x128xf32>
    %15 = arith.maximumf %11, %14 : vector<400x128xf32>
    %c0_13 = arith.constant 0 : index
    %c0_14 = arith.constant 0 : index
    %16 = vector.load %arg3[%c0_13, %c0_14] : memref<1x128xf32, #tpu.memory_space<vmem>>, vector<1x128xf32>
    %17 = vector.broadcast %16 : vector<1x128xf32> to vector<400x128xf32>
    %18 = arith.addf %15, %17 : vector<400x128xf32>
    %cst_15 = arith.constant 0.000000e+00 : f32
    %19 = vector.broadcast %cst_15 : f32 to vector<400x128xf32>
    %20 = arith.maximumf %18, %19 : vector<400x128xf32>
    %21 = arith.truncf %20 : vector<400x128xf32> to vector<400x128xbf16>
    %c0_16 = arith.constant 0 : index
    %c0_17 = arith.constant 0 : index
    %22 = vector.load %arg4[%c0_16, %c0_17] : memref<400x128xbf16, #tpu.memory_space<vmem>>, vector<400x128xbf16>
    tpu.vector_store %arg4[%c0_16, %c0_17], %21 {strides = array<i32>} : memref<400x128xbf16, #tpu.memory_space<vmem>>, vector<400x128xbf16>,
    return
  }
  func.func @transform_0(%arg0: i32) -> (i32, i32, i32) {
    %c0_i32 = arith.constant 0 : i32
    %c0_i32_0 = arith.constant 0 : i32
    %c0_i32_1 = arith.constant 0 : i32
    return %c0_i32, %arg0, %c0_i32_0 : i32, i32, i32
  }
  func.func @transform_1(%arg0: i32) -> (i32, i32) {
    %c0_i32 = arith.constant 0 : i32
    %c0_i32_0 = arith.constant 0 : i32
    %c0_i32_1 = arith.constant 0 : i32
    return %c0_i32, %c0_i32_0 : i32, i32
  }
  func.func @transform_2(%arg0: i32) -> (i32, i32) {
    %c0_i32 = arith.constant 0 : i32
    %c0_i32_0 = arith.constant 0 : i32
    %c0_i32_1 = arith.constant 0 : i32
    return %c0_i32, %c0_i32_0 : i32, i32
  }
  func.func @transform_3(%arg0: i32) -> (i32, i32) {
    %c0_i32 = arith.constant 0 : i32
    %c0_i32_0 = arith.constant 0 : i32
    return %arg0, %c0_i32 : i32, i32
  }
}

module attributes {stable_mosaic.version = 11 : i64} {
  func.func @_conv_relu_pool_kernel(%arg0: i32, %arg1: memref<4x112x1152xbf16, #tpu.memory_space<vmem>>, %arg2: memref<1152x128xbf16, #tpu.memory_space<vmem>>, %arg3: memref<1x128xf32, #tpu.memory_space<vmem>>, %arg4: memref<112x128xbf16, #tpu.memory_space<vmem>>) attributes {dimension_semantics = [#tpu.dimension_semantics<parallel>], iteration_bounds = array<i64: 1>, scalar_prefetch = 0 : i64, scratch_operands = 0 : i64, tpu.core_type = #tpu.core_type<tc>, window_params = [{transform_indices = @transform_0, window_bounds = array<i64: 4, 112, 1152>}, {pipeline_mode = #tpu.pipeline_mode<synchronous>, transform_indices = @transform_1, window_bounds = array<i64: 1152, 128>}, {pipeline_mode = #tpu.pipeline_mode<synchronous>, transform_indices = @transform_2, window_bounds = array<i64: 1, 128>}, {transform_indices = @transform_3, window_bounds = array<i64: 112, 128>}]} {
    %c0 = arith.constant 0 : index
    %c0_0 = arith.constant 0 : index
    %0 = vector.load %arg2[%c0, %c0_0] : memref<1152x128xbf16, #tpu.memory_space<vmem>>, vector<1152x128xbf16>
    %c0_1 = arith.constant 0 : index
    %c0_2 = arith.constant 0 : index
    %c0_3 = arith.constant 0 : index
    %1 = vector.load %arg1[%c0_1, %c0_2, %c0_3] : memref<4x112x1152xbf16, #tpu.memory_space<vmem>>, vector<1x112x1152xbf16>
    %2 = vector.shape_cast %1 : vector<1x112x1152xbf16> to vector<112x1152xbf16>
    %cst = arith.constant dense<0.000000e+00> : vector<112x128xf32>
    %3 = tpu.matmul %2, %0, %cst {dimension_numbers = #tpu.dot_dimension_numbers<[1], [0], [0], [1], [0, 0, 1, 1], [], []>} : vector<112x1152xbf16>, vector<1152x128xbf16>, vector<112x128xf32> -> vector<112x128xf32>
    %c1 = arith.constant 1 : index
    %c0_4 = arith.constant 0 : index
    %c0_5 = arith.constant 0 : index
    %4 = vector.load %arg1[%c1, %c0_4, %c0_5] : memref<4x112x1152xbf16, #tpu.memory_space<vmem>>, vector<1x112x1152xbf16>
    %5 = vector.shape_cast %4 : vector<1x112x1152xbf16> to vector<112x1152xbf16>
    %cst_6 = arith.constant dense<0.000000e+00> : vector<112x128xf32>
    %6 = tpu.matmul %5, %0, %cst_6 {dimension_numbers = #tpu.dot_dimension_numbers<[1], [0], [0], [1], [0, 0, 1, 1], [], []>} : vector<112x1152xbf16>, vector<1152x128xbf16>, vector<112x128xf32> -> vector<112x128xf32>
    %7 = arith.maximumf %3, %6 : vector<112x128xf32>
    %c2 = arith.constant 2 : index
    %c0_7 = arith.constant 0 : index
    %c0_8 = arith.constant 0 : index
    %8 = vector.load %arg1[%c2, %c0_7, %c0_8] : memref<4x112x1152xbf16, #tpu.memory_space<vmem>>, vector<1x112x1152xbf16>
    %9 = vector.shape_cast %8 : vector<1x112x1152xbf16> to vector<112x1152xbf16>
    %cst_9 = arith.constant dense<0.000000e+00> : vector<112x128xf32>
    %10 = tpu.matmul %9, %0, %cst_9 {dimension_numbers = #tpu.dot_dimension_numbers<[1], [0], [0], [1], [0, 0, 1, 1], [], []>} : vector<112x1152xbf16>, vector<1152x128xbf16>, vector<112x128xf32> -> vector<112x128xf32>
    %11 = arith.maximumf %7, %10 : vector<112x128xf32>
    %c3 = arith.constant 3 : index
    %c0_10 = arith.constant 0 : index
    %c0_11 = arith.constant 0 : index
    %12 = vector.load %arg1[%c3, %c0_10, %c0_11] : memref<4x112x1152xbf16, #tpu.memory_space<vmem>>, vector<1x112x1152xbf16>
    %13 = vector.shape_cast %12 : vector<1x112x1152xbf16> to vector<112x1152xbf16>
    %cst_12 = arith.constant dense<0.000000e+00> : vector<112x128xf32>
    %14 = tpu.matmul %13, %0, %cst_12 {dimension_numbers = #tpu.dot_dimension_numbers<[1], [0], [0], [1], [0, 0, 1, 1], [], []>} : vector<112x1152xbf16>, vector<1152x128xbf16>, vector<112x128xf32> -> vector<112x128xf32>
    %15 = arith.maximumf %11, %14 : vector<112x128xf32>
    %c0_13 = arith.constant 0 : index
    %c0_14 = arith.constant 0 : index
    %16 = vector.load %arg3[%c0_13, %c0_14] : memref<1x128xf32, #tpu.memory_space<vmem>>, vector<1x128xf32>
    %17 = vector.broadcast %16 : vector<1x128xf32> to vector<112x128xf32>
    %18 = arith.addf %15, %17 : vector<112x128xf32>
    %cst_15 = arith.constant 0.000000e+00 : f32
    %19 = vector.broadcast %cst_15 : f32 to vector<112x128xf32>
    %20 = arith.maximumf %18, %19 : vector<112x128xf32>
    %21 = arith.truncf %20 : vector<112x128xf32> to vector<112x128xbf16>
    %c0_16 = arith.constant 0 : index
    %c0_17 = arith.constant 0 : index
    %22 = vector.load %arg4[%c0_16, %c0_17] : memref<112x128xbf16, #tpu.memory_space<vmem>>, vector<112x128xbf16>
    tpu.vector_store %arg4[%c0_16, %c0_17], %21 {strides = array<i32>} : memref<112x128xbf16, #tpu.memory_space<vmem>>, vector<112x128xbf16>,
    return
  }
  func.func @transform_0(%arg0: i32) -> (i32, i32, i32) {
    %c0_i32 = arith.constant 0 : i32
    %c0_i32_0 = arith.constant 0 : i32
    %c0_i32_1 = arith.constant 0 : i32
    return %c0_i32, %arg0, %c0_i32_0 : i32, i32, i32
  }
  func.func @transform_1(%arg0: i32) -> (i32, i32) {
    %c0_i32 = arith.constant 0 : i32
    %c0_i32_0 = arith.constant 0 : i32
    %c0_i32_1 = arith.constant 0 : i32
    return %c0_i32, %c0_i32_0 : i32, i32
  }
  func.func @transform_2(%arg0: i32) -> (i32, i32) {
    %c0_i32 = arith.constant 0 : i32
    %c0_i32_0 = arith.constant 0 : i32
    %c0_i32_1 = arith.constant 0 : i32
    return %c0_i32, %c0_i32_0 : i32, i32
  }
  func.func @transform_3(%arg0: i32) -> (i32, i32) {
    %c0_i32 = arith.constant 0 : i32
    %c0_i32_0 = arith.constant 0 : i32
    return %arg0, %c0_i32 : i32, i32
  }
}

module attributes {stable_mosaic.version = 11 : i64} {
  func.func @_mlp_kernel(%arg0: i32, %arg1: memref<16x3136xbf16, #tpu.memory_space<vmem>>, %arg2: memref<3136x128xbf16, #tpu.memory_space<vmem>>, %arg3: memref<1x128xf32, #tpu.memory_space<vmem>>, %arg4: memref<128x128xbf16, #tpu.memory_space<vmem>>, %arg5: memref<1x128xf32, #tpu.memory_space<vmem>>, %arg6: memref<16x128xf32, #tpu.memory_space<vmem>>) attributes {dimension_semantics = [#tpu.dimension_semantics<parallel>], iteration_bounds = array<i64: 1>, scalar_prefetch = 0 : i64, scratch_operands = 0 : i64, tpu.core_type = #tpu.core_type<tc>, window_params = [{transform_indices = @transform_0, window_bounds = array<i64: 16, 3136>}, {pipeline_mode = #tpu.pipeline_mode<synchronous>, transform_indices = @transform_1, window_bounds = array<i64: 3136, 128>}, {pipeline_mode = #tpu.pipeline_mode<synchronous>, transform_indices = @transform_2, window_bounds = array<i64: 1, 128>}, {pipeline_mode = #tpu.pipeline_mode<synchronous>, transform_indices = @transform_3, window_bounds = array<i64: 128, 128>}, {pipeline_mode = #tpu.pipeline_mode<synchronous>, transform_indices = @transform_4, window_bounds = array<i64: 1, 128>}, {transform_indices = @transform_5, window_bounds = array<i64: 16, 128>}]} {
    %c0 = arith.constant 0 : index
    %c0_0 = arith.constant 0 : index
    %0 = vector.load %arg1[%c0, %c0_0] : memref<16x3136xbf16, #tpu.memory_space<vmem>>, vector<16x3136xbf16>
    %c0_1 = arith.constant 0 : index
    %c0_2 = arith.constant 0 : index
    %1 = vector.load %arg2[%c0_1, %c0_2] : memref<3136x128xbf16, #tpu.memory_space<vmem>>, vector<3136x128xbf16>
    %cst = arith.constant dense<0.000000e+00> : vector<16x128xf32>
    %2 = tpu.matmul %0, %1, %cst {dimension_numbers = #tpu.dot_dimension_numbers<[1], [0], [0], [1], [0, 0, 1, 1], [], []>} : vector<16x3136xbf16>, vector<3136x128xbf16>, vector<16x128xf32> -> vector<16x128xf32>
    %c0_3 = arith.constant 0 : index
    %c0_4 = arith.constant 0 : index
    %3 = vector.load %arg3[%c0_3, %c0_4] : memref<1x128xf32, #tpu.memory_space<vmem>>, vector<1x128xf32>
    %4 = vector.broadcast %3 : vector<1x128xf32> to vector<16x128xf32>
    %5 = arith.addf %2, %4 : vector<16x128xf32>
    %cst_5 = arith.constant 0.000000e+00 : f32
    %6 = vector.broadcast %cst_5 : f32 to vector<16x128xf32>
    %7 = arith.maximumf %5, %6 : vector<16x128xf32>
    %8 = arith.truncf %7 : vector<16x128xf32> to vector<16x128xbf16>
    %c0_6 = arith.constant 0 : index
    %c0_7 = arith.constant 0 : index
    %9 = vector.load %arg4[%c0_6, %c0_7] : memref<128x128xbf16, #tpu.memory_space<vmem>>, vector<128x128xbf16>
    %cst_8 = arith.constant dense<0.000000e+00> : vector<16x128xf32>
    %10 = tpu.matmul %8, %9, %cst_8 {dimension_numbers = #tpu.dot_dimension_numbers<[1], [0], [0], [1], [0, 0, 1, 1], [], []>} : vector<16x128xbf16>, vector<128x128xbf16>, vector<16x128xf32> -> vector<16x128xf32>
    %c0_9 = arith.constant 0 : index
    %c0_10 = arith.constant 0 : index
    %11 = vector.load %arg5[%c0_9, %c0_10] : memref<1x128xf32, #tpu.memory_space<vmem>>, vector<1x128xf32>
    %12 = vector.broadcast %11 : vector<1x128xf32> to vector<16x128xf32>
    %13 = arith.addf %10, %12 : vector<16x128xf32>
    %c0_11 = arith.constant 0 : index
    %c0_12 = arith.constant 0 : index
    %14 = vector.load %arg6[%c0_11, %c0_12] : memref<16x128xf32, #tpu.memory_space<vmem>>, vector<16x128xf32>
    tpu.vector_store %arg6[%c0_11, %c0_12], %13 {strides = array<i32>} : memref<16x128xf32, #tpu.memory_space<vmem>>, vector<16x128xf32>,
    return
  }
  func.func @transform_0(%arg0: i32) -> (i32, i32) {
    %c0_i32 = arith.constant 0 : i32
    %c0_i32_0 = arith.constant 0 : i32
    return %arg0, %c0_i32 : i32, i32
  }
  func.func @transform_1(%arg0: i32) -> (i32, i32) {
    %c0_i32 = arith.constant 0 : i32
    %c0_i32_0 = arith.constant 0 : i32
    %c0_i32_1 = arith.constant 0 : i32
    return %c0_i32, %c0_i32_0 : i32, i32
  }
  func.func @transform_2(%arg0: i32) -> (i32, i32) {
    %c0_i32 = arith.constant 0 : i32
    %c0_i32_0 = arith.constant 0 : i32
    %c0_i32_1 = arith.constant 0 : i32
    return %c0_i32, %c0_i32_0 : i32, i32
  }
  func.func @transform_3(%arg0: i32) -> (i32, i32) {
    %c0_i32 = arith.constant 0 : i32
    %c0_i32_0 = arith.constant 0 : i32
    %c0_i32_1 = arith.constant 0 : i32
    return %c0_i32, %c0_i32_0 : i32, i32
  }
  func.func @transform_4(%arg0: i32) -> (i32, i32) {
    %c0_i32 = arith.constant 0 : i32
    %c0_i32_0 = arith.constant 0 : i32
    %c0_i32_1 = arith.constant 0 : i32
    return %c0_i32, %c0_i32_0 : i32, i32
  }
  func.func @transform_5(%arg0: i32) -> (i32, i32) {
    %c0_i32 = arith.constant 0 : i32
    %c0_i32_0 = arith.constant 0 : i32
    return %arg0, %c0_i32 : i32, i32
  }
}

</mosaic_0001>

<llo_original>
// kernel: cnn_forward.3
$region0: #{cnn_forward.3}
  #allocation0 [shape = 'u32[]', space=smem, size = 0x4, offset = 0x4, fixed_abs, tag = 'smem constant byte address 0x4 - core index']
  #allocation1 [shape = 'u32[144,128]{1,0:T(1,128)}', space=vmem, size = 0x12000, scoped, tag = 'internal scratch']
  %s0 = inlined_call_operand.vmem [shape: bf16[4,400,9], index: 0, kind: input, shape index: {}]
  %s1 = inlined_call_operand.vmem [shape: bf16[9,128], index: 1, kind: input, shape index: {}]
  %s2 = inlined_call_operand.vmem [shape: f32[1,128], index: 2, kind: input, shape index: {}]
  %s3 = inlined_call_operand.vmem [shape: bf16[400,128], index: 3, kind: output, shape index: {}]
  %s4 = sld [smem:[#allocation0]]
  $region22: #{cnn_forward.3} parent=0
    _
  %s6 = ssub.s32 1, %s4
  %s7 = scalar_select 0, %s6, %s4
  // Predicated region
  $region2: #{cnn_forward.3} parent=0 // pred_check
    _
  $region3: #{cnn_forward.3} parent=0 // pred_check_branch
    %9 = sbr.rel (0) target = $region5
  $region4: #{cnn_forward.3} parent=0 // pred_region
    _
  $region5: #{cnn_forward.3} parent=0 // pred_fallthru
    _
  // Predicated region
  $region6: #{cnn_forward.3} parent=0 // pred_check
    _
  $region7: #{cnn_forward.3} parent=0 // pred_check_branch
    %11 = sbr.rel (0) target = $region9
  $region8: #{cnn_forward.3} parent=0 // pred_region
    _
  $region9: #{cnn_forward.3} parent=0 // pred_fallthru
    _
  // Predicated region
  $region10: #{cnn_forward.3} parent=0 // pred_check
    _
  $region11: #{cnn_forward.3} parent=0 // pred_check_branch
    %13 = sbr.rel (0) target = $region13
  $region12: #{cnn_forward.3} parent=0 // pred_region
    _
  $region13: #{cnn_forward.3} parent=0 // pred_fallthru
    _
  %v15 = vld [vmem:[%s1] sm:$0xf]
  %v16 = vld [vmem:[%s1 + $0x4] sm:$0x1]
  %v17 = vld [vmem:[%s0] sm:$0xf]
  %v18 = vld [vmem:[%s0 + $0x4] sm:$0xf]
  %v19 = vld [vmem:[%s0 + $0x8] sm:$0xf]
  %v20 = vld [vmem:[%s0 + $0xc] sm:$0xf]
  %v21 = vld [vmem:[%s0 + $0x10] sm:$0xf]
  %v22 = vld [vmem:[%s0 + $0x14] sm:$0xf]
  %v23 = vld [vmem:[%s0 + $0x18] sm:$0xf]
  %v24 = vld [vmem:[%s0 + $0x1c] sm:$0xf]
  %v25 = vld [vmem:[%s0 + $0x20] sm:$0xf]
  %v26 = vld [vmem:[%s0 + $0x24] sm:$0xf]
  %v27 = vld [vmem:[%s0 + $0x28] sm:$0xf]
  %v28 = vld [vmem:[%s0 + $0x2c] sm:$0xf]
  %v29 = vld [vmem:[%s0 + $0x30] sm:$0xf]
  %v30 = vld [vmem:[%s0 + $0x34] sm:$0xf]
  %v31 = vld [vmem:[%s0 + $0x38] sm:$0xf]
  %v32 = vld [vmem:[%s0 + $0x3c] sm:$0xf]
  %v33 = vld [vmem:[%s0 + $0x40] sm:$0xf]
  %v34 = vld [vmem:[%s0 + $0x44] sm:$0xf]
  %v35 = vld [vmem:[%s0 + $0x48] sm:$0xf]
  %v36 = vld [vmem:[%s0 + $0x4c] sm:$0xf]
  %v37 = vld [vmem:[%s0 + $0x50] sm:$0xf]
  %v38 = vld [vmem:[%s0 + $0x54] sm:$0xf]
  %v39 = vld [vmem:[%s0 + $0x58] sm:$0xf]
  %v40 = vld [vmem:[%s0 + $0x5c] sm:$0xf]
  %v41 = vld [vmem:[%s0 + $0x60] sm:$0xf]
  %v42 = vld [vmem:[%s0 + $0x64] sm:$0xf]
  %v43 = vld [vmem:[%s0 + $0x68] sm:$0xf]
  %v44 = vld [vmem:[%s0 + $0x6c] sm:$0xf]
  %v45 = vld [vmem:[%s0 + $0x70] sm:$0xf]
  %v46 = vld [vmem:[%s0 + $0x74] sm:$0xf]
  %v47 = vld [vmem:[%s0 + $0x78] sm:$0xf]
  %v48 = vld [vmem:[%s0 + $0x7c] sm:$0xf]
  %v49 = vld [vmem:[%s0 + $0x80] sm:$0xf]
  %v50 = vld [vmem:[%s0 + $0x84] sm:$0xf]
  %v51 = vld [vmem:[%s0 + $0x88] sm:$0xf]
  %v52 = vld [vmem:[%s0 + $0x8c] sm:$0xf]
  %v53 = vld [vmem:[%s0 + $0x90] sm:$0xf]
  %v54 = vld [vmem:[%s0 + $0x94] sm:$0xf]
  %v55 = vld [vmem:[%s0 + $0x98] sm:$0xf]
  %v56 = vld [vmem:[%s0 + $0x9c] sm:$0xf]
  %v57 = vld [vmem:[%s0 + $0xa0] sm:$0xf]
  %v58 = vld [vmem:[%s0 + $0xa4] sm:$0xf]
  %v59 = vld [vmem:[%s0 + $0xa8] sm:$0xf]
  %v60 = vld [vmem:[%s0 + $0xac] sm:$0xf]
  %v61 = vld [vmem:[%s0 + $0xb0] sm:$0xf]
  %v62 = vld [vmem:[%s0 + $0xb4] sm:$0xf]
  %v63 = vld [vmem:[%s0 + $0xb8] sm:$0xf]
  %v64 = vld [vmem:[%s0 + $0xbc] sm:$0xf]
  %v65 = vld [vmem:[%s0 + $0xc0] sm:$0xf]
  %v66 = vld [vmem:[%s0 + $0xc4] sm:$0xf]
  %v117 = vunpack.c.l.b16 %v17
  %v118 = vunpack.c.l.b16 %v18
  %v119 = vunpack.c.l.b16 %v19
  %v120 = vunpack.c.l.b16 %v20
  %v121 = vunpack.c.l.b16 %v21
  %v122 = vunpack.c.l.b16 %v22
  %v123 = vunpack.c.l.b16 %v23
  %v124 = vunpack.c.l.b16 %v24
  %v125 = vunpack.c.l.b16 %v25
  %v126 = vunpack.c.l.b16 %v26
  %v127 = vunpack.c.l.b16 %v27
  %v128 = vunpack.c.l.b16 %v28
  %v129 = vunpack.c.l.b16 %v29
  %v130 = vunpack.c.l.b16 %v30
  %v131 = vunpack.c.l.b16 %v31
  %v132 = vunpack.c.l.b16 %v32
  %v133 = vunpack.c.l.b16 %v33
  %v134 = vunpack.c.l.b16 %v34
  %v135 = vunpack.c.l.b16 %v35
  %v136 = vunpack.c.l.b16 %v36
  %v137 = vunpack.c.l.b16 %v37
  %v138 = vunpack.c.l.b16 %v38
  %v139 = vunpack.c.l.b16 %v39
  %v140 = vunpack.c.l.b16 %v40
  %v141 = vunpack.c.l.b16 %v41
  %v142 = vunpack.c.l.b16 %v42
  %v143 = vunpack.c.l.b16 %v43
  %v144 = vunpack.c.l.b16 %v44
  %v145 = vunpack.c.l.b16 %v45
  %v146 = vunpack.c.l.b16 %v46
  %v147 = vunpack.c.l.b16 %v47
  %v148 = vunpack.c.l.b16 %v48
  %v149 = vunpack.c.l.b16 %v49
  %v150 = vunpack.c.l.b16 %v50
  %v151 = vunpack.c.l.b16 %v51
  %v152 = vunpack.c.l.b16 %v52
  %v153 = vunpack.c.l.b16 %v53
  %v154 = vunpack.c.l.b16 %v54
  %v155 = vunpack.c.l.b16 %v55
  %v156 = vunpack.c.l.b16 %v56
  %v157 = vunpack.c.l.b16 %v57
  %v158 = vunpack.c.l.b16 %v58
  %v159 = vunpack.c.l.b16 %v59
  %v160 = vunpack.c.l.b16 %v60
  %v161 = vunpack.c.l.b16 %v61
  %v162 = vunpack.c.l.b16 %v62
  %v163 = vunpack.c.l.b16 %v63
  %v164 = vunpack.c.l.b16 %v64
  %v165 = vunpack.c.l.b16 %v65
  %v166 = vunpack.c.l.b16 %v66
  %v167 = vpack.c.b16 %v118, %v117
  %v168 = vpack.c.b16 %v120, %v119
  %v169 = vpack.c.b16 %v122, %v121
  %v170 = vpack.c.b16 %v124, %v123
  %v171 = vpack.c.b16 %v126, %v125
  %v172 = vpack.c.b16 %v128, %v127
  %v173 = vpack.c.b16 %v130, %v129
  %v174 = vpack.c.b16 %v132, %v131
  %v175 = vpack.c.b16 %v134, %v133
  %v176 = vpack.c.b16 %v136, %v135
  %v177 = vpack.c.b16 %v138, %v137
  %v178 = vpack.c.b16 %v140, %v139
  %v179 = vpack.c.b16 %v142, %v141
  %v180 = vpack.c.b16 %v144, %v143
  %v181 = vpack.c.b16 %v146, %v145
  %v182 = vpack.c.b16 %v148, %v147
  %v183 = vpack.c.b16 %v150, %v149
  %v184 = vpack.c.b16 %v152, %v151
  %v185 = vpack.c.b16 %v154, %v153
  %v186 = vpack.c.b16 %v156, %v155
  %v187 = vpack.c.b16 %v158, %v157
  %v188 = vpack.c.b16 %v160, %v159
  %v189 = vpack.c.b16 %v162, %v161
  %v190 = vpack.c.b16 %v164, %v163
  %v191 = vpack.c.b16 %v166, %v165
  %v194 = vunpack.c.l.b16 %v15
  %v195 = vunpack.c.l.b16 %v16
  %v196 = vpack.c.b16 %v195, %v194
  %vm197 = vcmask 72704
  %v199 = vsel %vm197, %v167, 0
  %v202 = vsel %vm197, %v168, 0
  %v205 = vsel %vm197, %v169, 0
  %v208 = vsel %vm197, %v170, 0
  %v211 = vsel %vm197, %v171, 0
  %v214 = vsel %vm197, %v172, 0
  %v217 = vsel %vm197, %v173, 0
  %v220 = vsel %vm197, %v174, 0
  %v223 = vsel %vm197, %v175, 0
  %v226 = vsel %vm197, %v176, 0
  %v229 = vsel %vm197, %v177, 0
  %v232 = vsel %vm197, %v178, 0
  %v235 = vsel %vm197, %v179, 0
  %v238 = vsel %vm197, %v180, 0
  %v241 = vsel %vm197, %v181, 0
  %v244 = vsel %vm197, %v182, 0
  %v247 = vsel %vm197, %v183, 0
  %v250 = vsel %vm197, %v184, 0
  %v253 = vsel %vm197, %v185, 0
  %v256 = vsel %vm197, %v186, 0
  %v259 = vsel %vm197, %v187, 0
  %v262 = vsel %vm197, %v188, 0
  %v265 = vsel %vm197, %v189, 0
  %v268 = vsel %vm197, %v190, 0
  %v271 = vsel %vm197, %v191, 0
  %vm273 = vcmask 1043456
  %vm274 = vcmask 1044480
  %v275 = vsel %vm273, 4294967295, 65535
  %v276 = vsel %vm274, %v275, 0
  %v278 = vand.u32 %v196, %v276
  %280 = vmatprep.subr.bf16.mxu0 0
  %281 = vmatpush1.bf16.msra.mxu0 %v278
  %282 = vmatprep.subr.bf16.mxu0 0
  %283 = vmatpush1.bf16.msra.mxu0 0
  %284 = vmatprep.subr.bf16.mxu0 0
  %285 = vmatpush1.bf16.msra.mxu0 0
  %286 = vmatprep.subr.bf16.mxu0 0
  %287 = vmatpush1.bf16.msra.mxu0 0
  %288 = vmatprep.subr.bf16.mxu0 0
  %289 = vmatpush1.bf16.msra.mxu0 0
  %290 = vmatprep.subr.bf16.mxu0 0
  %291 = vmatpush1.bf16.msra.mxu0 0
  %292 = vmatprep.subr.bf16.mxu0 0
  %293 = vmatpush1.bf16.msra.mxu0 0
  %294 = vmatprep.subr.bf16.mxu0 0
  %295 = vmatpush1.bf16.msra.mxu0 0
  %296 = vmatprep.subr.bf16.mxu0 0
  %297 = vmatpush1.bf16.msra.mxu0 0
  %298 = vmatprep.subr.bf16.mxu0 0
  %299 = vmatpush1.bf16.msra.mxu0 0
  %300 = vmatprep.subr.bf16.mxu0 0
  %301 = vmatpush1.bf16.msra.mxu0 0
  %302 = vmatprep.subr.bf16.mxu0 0
  %303 = vmatpush1.bf16.msra.mxu0 0
  %304 = vmatprep.subr.bf16.mxu0 0
  %305 = vmatpush1.bf16.msra.mxu0 0
  %306 = vmatprep.subr.bf16.mxu0 0
  %307 = vmatpush1.bf16.msra.mxu0 0
  %308 = vmatprep.subr.bf16.mxu0 0
  %309 = vmatpush1.bf16.msra.mxu0 0
  %310 = vmatprep.subr.bf16.mxu0 0
  %311 = vmatpush1.bf16.msra.mxu0 0
  %312 = vmatprep.mubr.bf16.mxu0 0
  %313 = vmatmul.mubr.bf16.gmra.mrb[0].mxu0 %v199
  %v314 = vpop.f32.mrb[0].mxu0
  %v315 = vadd.f32 0.0, %v314
  %v316 = vpop.f32.mrb[0].mxu0
  %v317 = vpop.f32.mrb[0].mxu0
  %v318 = vadd.f32 0.0, %v317
  %v319 = vpop.f32.mrb[0].mxu0
  %320 = vmatprep.mubr.bf16.mxu0 0
  %321 = vmatmul.mubr.bf16.gmra.mrb[0].mxu0 %v202
  %v322 = vpop.f32.mrb[0].mxu0
  %v323 = vadd.f32 0.0, %v322
  %v324 = vpop.f32.mrb[0].mxu0
  %v325 = vpop.f32.mrb[0].mxu0
  %v326 = vadd.f32 0.0, %v325
  %v327 = vpop.f32.mrb[0].mxu0
  %328 = vmatprep.mubr.bf16.mxu0 0
  %329 = vmatmul.mubr.bf16.gmra.mrb[0].mxu0 %v205
  %v330 = vpop.f32.mrb[0].mxu0
  %v331 = vadd.f32 0.0, %v330
  %v332 = vpop.f32.mrb[0].mxu0
  %v333 = vpop.f32.mrb[0].mxu0
  %v334 = vadd.f32 0.0, %v333
  %v335 = vpop.f32.mrb[0].mxu0
  %336 = vmatprep.mubr.bf16.mxu0 0
  %337 = vmatmul.mubr.bf16.gmra.mrb[0].mxu0 %v208
  %v338 = vpop.f32.mrb[0].mxu0
  %v339 = vadd.f32 0.0, %v338
  %v340 = vpop.f32.mrb[0].mxu0
  %v341 = vpop.f32.mrb[0].mxu0
  %v342 = vadd.f32 0.0, %v341
  %v343 = vpop.f32.mrb[0].mxu0
  %344 = vmatprep.mubr.bf16.mxu0 0
  %345 = vmatmul.mubr.bf16.gmra.mrb[0].mxu0 %v211
  %v346 = vpop.f32.mrb[0].mxu0
  %v347 = vadd.f32 0.0, %v346
  %v348 = vpop.f32.mrb[0].mxu0
  %v349 = vpop.f32.mrb[0].mxu0
  %v350 = vadd.f32 0.0, %v349
  %v351 = vpop.f32.mrb[0].mxu0
  %352 = vmatprep.mubr.bf16.mxu0 0
  %353 = vmatmul.mubr.bf16.gmra.mrb[0].mxu0 %v214
  %v354 = vpop.f32.mrb[0].mxu0
  %v355 = vadd.f32 0.0, %v354
  %v356 = vpop.f32.mrb[0].mxu0
  %v357 = vpop.f32.mrb[0].mxu0
  %v358 = vadd.f32 0.0, %v357
  %v359 = vpop.f32.mrb[0].mxu0
  %360 = vmatprep.mubr.bf16.mxu0 0
  %361 = vmatmul.mubr.bf16.gmra.mrb[0].mxu0 %v217
  %v362 = vpop.f32.mrb[0].mxu0
  %v363 = vadd.f32 0.0, %v362
  %v364 = vpop.f32.mrb[0].mxu0
  %v365 = vpop.f32.mrb[0].mxu0
  %v366 = vadd.f32 0.0, %v365
  %v367 = vpop.f32.mrb[0].mxu0
  %368 = vmatprep.mubr.bf16.mxu0 0
  %369 = vmatmul.mubr.bf16.gmra.mrb[0].mxu0 %v220
  %v370 = vpop.f32.mrb[0].mxu0
  %v371 = vadd.f32 0.0, %v370
  %v372 = vpop.f32.mrb[0].mxu0
  %v373 = vpop.f32.mrb[0].mxu0
  %v374 = vadd.f32 0.0, %v373
  %v375 = vpop.f32.mrb[0].mxu0
  %376 = vmatprep.mubr.bf16.mxu0 0
  %377 = vmatmul.mubr.bf16.gmra.mrb[0].mxu0 %v223
  %v378 = vpop.f32.mrb[0].mxu0
  %v379 = vadd.f32 0.0, %v378
  %v380 = vpop.f32.mrb[0].mxu0
  %v381 = vpop.f32.mrb[0].mxu0
  %v382 = vadd.f32 0.0, %v381
  %v383 = vpop.f32.mrb[0].mxu0
  %384 = vmatprep.mubr.bf16.mxu0 0
  %385 = vmatmul.mubr.bf16.gmra.mrb[0].mxu0 %v226
  %v386 = vpop.f32.mrb[0].mxu0
  %v387 = vadd.f32 0.0, %v386
  %v388 = vpop.f32.mrb[0].mxu0
  %v389 = vpop.f32.mrb[0].mxu0
  %v390 = vadd.f32 0.0, %v389
  %v391 = vpop.f32.mrb[0].mxu0
  %392 = vmatprep.mubr.bf16.mxu0 0
  %393 = vmatmul.mubr.bf16.gmra.mrb[0].mxu0 %v229
  %v394 = vpop.f32.mrb[0].mxu0
  %v395 = vadd.f32 0.0, %v394
  %v396 = vpop.f32.mrb[0].mxu0
  %v397 = vpop.f32.mrb[0].mxu0
  %v398 = vadd.f32 0.0, %v397
  %v399 = vpop.f32.mrb[0].mxu0
  %400 = vmatprep.mubr.bf16.mxu0 0
  %401 = vmatmul.mubr.bf16.gmra.mrb[0].mxu0 %v232
  %v402 = vpop.f32.mrb[0].mxu0
  %v403 = vadd.f32 0.0, %v402
  %v404 = vpop.f32.mrb[0].mxu0
  %v405 = vpop.f32.mrb[0].mxu0
  %v406 = vadd.f32 0.0, %v405
  %v407 = vpop.f32.mrb[0].mxu0
  %408 = vmatprep.mubr.bf16.mxu0 0
  %409 = vmatmul.mubr.bf16.gmra.mrb[0].mxu0 %v235
  %v410 = vpop.f32.mrb[0].mxu0
  %v411 = vadd.f32 0.0, %v410
  %v412 = vpop.f32.mrb[0].mxu0
  %v413 = vpop.f32.mrb[0].mxu0
  %v414 = vadd.f32 0.0, %v413
  %v415 = vpop.f32.mrb[0].mxu0
  %416 = vmatprep.mubr.bf16.mxu0 0
  %417 = vmatmul.mubr.bf16.gmra.mrb[0].mxu0 %v238
  %v418 = vpop.f32.mrb[0].mxu0
  %v419 = vadd.f32 0.0, %v418
  %v420 = vpop.f32.mrb[0].mxu0
  %v421 = vpop.f32.mrb[0].mxu0
  %v422 = vadd.f32 0.0, %v421
  %v423 = vpop.f32.mrb[0].mxu0
  %424 = vmatprep.mubr.bf16.mxu0 0
  %425 = vmatmul.mubr.bf16.gmra.mrb[0].mxu0 %v241
  %v426 = vpop.f32.mrb[0].mxu0
  %v427 = vadd.f32 0.0, %v426
  %v428 = vpop.f32.mrb[0].mxu0
  %v429 = vpop.f32.mrb[0].mxu0
  %v430 = vadd.f32 0.0, %v429
  %v431 = vpop.f32.mrb[0].mxu0
  %432 = vmatprep.mubr.bf16.mxu0 0
  %433 = vmatmul.mubr.bf16.gmra.mrb[0].mxu0 %v244
  %v434 = vpop.f32.mrb[0].mxu0
  %v435 = vadd.f32 0.0, %v434
  %v436 = vpop.f32.mrb[0].mxu0
  %v437 = vpop.f32.mrb[0].mxu0
  %v438 = vadd.f32 0.0, %v437
  %v439 = vpop.f32.mrb[0].mxu0
  %440 = vmatprep.mubr.bf16.mxu0 0
  %441 = vmatmul.mubr.bf16.gmra.mrb[0].mxu0 %v247
  %v442 = vpop.f32.mrb[0].mxu0
  %v443 = vadd.f32 0.0, %v442
  %v444 = vpop.f32.mrb[0].mxu0
  %v445 = vpop.f32.mrb[0].mxu0
  %v446 = vadd.f32 0.0, %v445
  %v447 = vpop.f32.mrb[0].mxu0
  %448 = vmatprep.mubr.bf16.mxu0 0
  %449 = vmatmul.mubr.bf16.gmra.mrb[0].mxu0 %v250
  %v450 = vpop.f32.mrb[0].mxu0
  %v451 = vadd.f32 0.0, %v450
  %v452 = vpop.f32.mrb[0].mxu0
  %v453 = vpop.f32.mrb[0].mxu0
  %v454 = vadd.f32 0.0, %v453
  %v455 = vpop.f32.mrb[0].mxu0
  %456 = vmatprep.mubr.bf16.mxu0 0
  %457 = vmatmul.mubr.bf16.gmra.mrb[0].mxu0 %v253
  %v458 = vpop.f32.mrb[0].mxu0
  %v459 = vadd.f32 0.0, %v458
  %v460 = vpop.f32.mrb[0].mxu0
  %v461 = vpop.f32.mrb[0].mxu0
  %v462 = vadd.f32 0.0, %v461
  %v463 = vpop.f32.mrb[0].mxu0
  %464 = vmatprep.mubr.bf16.mxu0 0
  %465 = vmatmul.mubr.bf16.gmra.mrb[0].mxu0 %v256
  %v466 = vpop.f32.mrb[0].mxu0
  %v467 = vadd.f32 0.0, %v466
  %v468 = vpop.f32.mrb[0].mxu0
  %v469 = vpop.f32.mrb[0].mxu0
  %v470 = vadd.f32 0.0, %v469
  %v471 = vpop.f32.mrb[0].mxu0
  %472 = vmatprep.mubr.bf16.mxu0 0
  %473 = vmatmul.mubr.bf16.gmra.mrb[0].mxu0 %v259
  %v474 = vpop.f32.mrb[0].mxu0
  %v475 = vadd.f32 0.0, %v474
  %v476 = vpop.f32.mrb[0].mxu0
  %v477 = vpop.f32.mrb[0].mxu0
  %v478 = vadd.f32 0.0, %v477
  %v479 = vpop.f32.mrb[0].mxu0
  %480 = vmatprep.mubr.bf16.mxu0 0
  %481 = vmatmul.mubr.bf16.gmra.mrb[0].mxu0 %v262
  %v482 = vpop.f32.mrb[0].mxu0
  %v483 = vadd.f32 0.0, %v482
  %v484 = vpop.f32.mrb[0].mxu0
  %v485 = vpop.f32.mrb[0].mxu0
  %v486 = vadd.f32 0.0, %v485
  %v487 = vpop.f32.mrb[0].mxu0
  %488 = vmatprep.mubr.bf16.mxu0 0
  %489 = vmatmul.mubr.bf16.gmra.mrb[0].mxu0 %v265
  %v490 = vpop.f32.mrb[0].mxu0
  %v491 = vadd.f32 0.0, %v490
  %v492 = vpop.f32.mrb[0].mxu0
  %v493 = vpop.f32.mrb[0].mxu0
  %v494 = vadd.f32 0.0, %v493
  %v495 = vpop.f32.mrb[0].mxu0
  %496 = vmatprep.mubr.bf16.mxu0 0
  %497 = vmatmul.mubr.bf16.gmra.mrb[0].mxu0 %v268
  %v498 = vpop.f32.mrb[0].mxu0
  %v499 = vadd.f32 0.0, %v498
  %v500 = vpop.f32.mrb[0].mxu0
  %v501 = vpop.f32.mrb[0].mxu0
  %v502 = vadd.f32 0.0, %v501
  %v503 = vpop.f32.mrb[0].mxu0
  %504 = vmatprep.mubr.bf16.mxu0 0
  %505 = vmatmul.mubr.bf16.gmra.mrb[0].mxu0 %v271
  %v506 = vpop.f32.mrb[0].mxu0
  %v507 = vadd.f32 0.0, %v506
  %v508 = vpop.f32.mrb[0].mxu0
  %v509 = vpop.f32.mrb[0].mxu0
  %v510 = vadd.f32 0.0, %v509
  %v511 = vpop.f32.mrb[0].mxu0
  %512 = vdwg.mxu0
  %s513 = scalar_lea.vmem %s0, 200
  %v514 = vld [vmem:[%s513] sm:$0xf]
  %v515 = vld [vmem:[%s513 + $0x4] sm:$0xf]
  %v516 = vld [vmem:[%s513 + $0x8] sm:$0xf]
  %v517 = vld [vmem:[%s513 + $0xc] sm:$0xf]
  %v518 = vld [vmem:[%s513 + $0x10] sm:$0xf]
  %v519 = vld [vmem:[%s513 + $0x14] sm:$0xf]
  %v520 = vld [vmem:[%s513 + $0x18] sm:$0xf]
  %v521 = vld [vmem:[%s513 + $0x1c] sm:$0xf]
  %v522 = vld [vmem:[%s513 + $0x20] sm:$0xf]
  %v523 = vld [vmem:[%s513 + $0x24] sm:$0xf]
  %v524 = vld [vmem:[%s513 + $0x28] sm:$0xf]
  %v525 = vld [vmem:[%s513 + $0x2c] sm:$0xf]
  %v526 = vld [vmem:[%s513 + $0x30] sm:$0xf]
  %v527 = vld [vmem:[%s513 + $0x34] sm:$0xf]
  %v528 = vld [vmem:[%s513 + $0x38] sm:$0xf]
  %v529 = vld [vmem:[%s513 + $0x3c] sm:$0xf]
  %v530 = vld [vmem:[%s513 + $0x40] sm:$0xf]
  %v531 = vld [vmem:[%s513 + $0x44] sm:$0xf]
  %v532 = vld [vmem:[%s513 + $0x48] sm:$0xf]
  %v533 = vld [vmem:[%s513 + $0x4c] sm:$0xf]
  %v534 = vld [vmem:[%s513 + $0x50] sm:$0xf]
  %v535 = vld [vmem:[%s513 + $0x54] sm:$0xf]
  %v536 = vld [vmem:[%s513 + $0x58] sm:$0xf]
  %v537 = vld [vmem:[%s513 + $0x5c] sm:$0xf]
  %v538 = vld [vmem:[%s513 + $0x60] sm:$0xf]
  %v539 = vld [vmem:[%s513 + $0x64] sm:$0xf]
  %v540 = vld [vmem:[%s513 + $0x68] sm:$0xf]
  %v541 = vld [vmem:[%s513 + $0x6c] sm:$0xf]
  %v542 = vld [vmem:[%s513 + $0x70] sm:$0xf]
  %v543 = vld [vmem:[%s513 + $0x74] sm:$0xf]
  %v544 = vld [vmem:[%s513 + $0x78] sm:$0xf]
  %v545 = vld [vmem:[%s513 + $0x7c] sm:$0xf]
  %v546 = vld [vmem:[%s513 + $0x80] sm:$0xf]
  %v547 = vld [vmem:[%s513 + $0x84] sm:$0xf]
  %v548 = vld [vmem:[%s513 + $0x88] sm:$0xf]
  %v549 = vld [vmem:[%s513 + $0x8c] sm:$0xf]
  %v550 = vld [vmem:[%s513 + $0x90] sm:$0xf]
  %v551 = vld [vmem:[%s513 + $0x94] sm:$0xf]
  %v552 = vld [vmem:[%s513 + $0x98] sm:$0xf]
  %v553 = vld [vmem:[%s513 + $0x9c] sm:$0xf]
  %v554 = vld [vmem:[%s513 + $0xa0] sm:$0xf]
  %v555 = vld [vmem:[%s513 + $0xa4] sm:$0xf]
  %v556 = vld [vmem:[%s513 + $0xa8] sm:$0xf]
  %v557 = vld [vmem:[%s513 + $0xac] sm:$0xf]
  %v558 = vld [vmem:[%s513 + $0xb0] sm:$0xf]
  %v559 = vld [vmem:[%s513 + $0xb4] sm:$0xf]
  %v560 = vld [vmem:[%s513 + $0xb8] sm:$0xf]
  %v561 = vld [vmem:[%s513 + $0xbc] sm:$0xf]
  %v562 = vld [vmem:[%s513 + $0xc0] sm:$0xf]
  %v563 = vld [vmem:[%s513 + $0xc4] sm:$0xf]
  %v614 = vunpack.c.l.b16 %v514
  %v615 = vunpack.c.l.b16 %v515
  %v616 = vunpack.c.l.b16 %v516
  %v617 = vunpack.c.l.b16 %v517
  %v618 = vunpack.c.l.b16 %v518
  %v619 = vunpack.c.l.b16 %v519
  %v620 = vunpack.c.l.b16 %v520
  %v621 = vunpack.c.l.b16 %v521
  %v622 = vunpack.c.l.b16 %v522
  %v623 = vunpack.c.l.b16 %v523
  %v624 = vunpack.c.l.b16 %v524
  %v625 = vunpack.c.l.b16 %v525
  %v626 = vunpack.c.l.b16 %v526
  %v627 = vunpack.c.l.b16 %v527
  %v628 = vunpack.c.l.b16 %v528
  %v629 = vunpack.c.l.b16 %v529
  %v630 = vunpack.c.l.b16 %v530
  %v631 = vunpack.c.l.b16 %v531
  %v632 = vunpack.c.l.b16 %v532
  %v633 = vunpack.c.l.b16 %v533
  %v634 = vunpack.c.l.b16 %v534
  %v635 = vunpack.c.l.b16 %v535
  %v636 = vunpack.c.l.b16 %v536
  %v637 = vunpack.c.l.b16 %v537
  %v638 = vunpack.c.l.b16 %v538
  %v639 = vunpack.c.l.b16 %v539
  %v640 = vunpack.c.l.b16 %v540
  %v641 = vunpack.c.l.b16 %v541
  %v642 = vunpack.c.l.b16 %v542
  %v643 = vunpack.c.l.b16 %v543
  %v644 = vunpack.c.l.b16 %v544
  %v645 = vunpack.c.l.b16 %v545
  %v646 = vunpack.c.l.b16 %v546
  %v647 = vunpack.c.l.b16 %v547
  %v648 = vunpack.c.l.b16 %v548
  %v649 = vunpack.c.l.b16 %v549
  %v650 = vunpack.c.l.b16 %v550
  %v651 = vunpack.c.l.b16 %v551
  %v652 = vunpack.c.l.b16 %v552
  %v653 = vunpack.c.l.b16 %v553
  %v654 = vunpack.c.l.b16 %v554
  %v655 = vunpack.c.l.b16 %v555
  %v656 = vunpack.c.l.b16 %v556
  %v657 = vunpack.c.l.b16 %v557
  %v658 = vunpack.c.l.b16 %v558
  %v659 = vunpack.c.l.b16 %v559
  %v660 = vunpack.c.l.b16 %v560
  %v661 = vunpack.c.l.b16 %v561
  %v662 = vunpack.c.l.b16 %v562
  %v663 = vunpack.c.l.b16 %v563
  %v664 = vpack.c.b16 %v615, %v614
  %v665 = vpack.c.b16 %v617, %v616
  %v666 = vpack.c.b16 %v619, %v618
  %v667 = vpack.c.b16 %v621, %v620
  %v668 = vpack.c.b16 %v623, %v622
  %v669 = vpack.c.b16 %v625, %v624
  %v670 = vpack.c.b16 %v627, %v626
  %v671 = vpack.c.b16 %v629, %v628
  %v672 = vpack.c.b16 %v631, %v630
  %v673 = vpack.c.b16 %v633, %v632
  %v674 = vpack.c.b16 %v635, %v634
  %v675 = vpack.c.b16 %v637, %v636
  %v676 = vpack.c.b16 %v639, %v638
  %v677 = vpack.c.b16 %v641, %v640
  %v678 = vpack.c.b16 %v643, %v642
  %v679 = vpack.c.b16 %v645, %v644
  %v680 = vpack.c.b16 %v647, %v646
  %v681 = vpack.c.b16 %v649, %v648
  %v682 = vpack.c.b16 %v651, %v650
  %v683 = vpack.c.b16 %v653, %v652
  %v684 = vpack.c.b16 %v655, %v654
  %v685 = vpack.c.b16 %v657, %v656
  %v686 = vpack.c.b16 %v659, %v658
  %v687 = vpack.c.b16 %v661, %v660
  %v688 = vpack.c.b16 %v663, %v662
  %v690 = vsel %vm197, %v664, 0
  %v693 = vsel %vm197, %v665, 0
  %v696 = vsel %vm197, %v666, 0
  %v699 = vsel %vm197, %v667, 0
  %v702 = vsel %vm197, %v668, 0
  %v705 = vsel %vm197, %v669, 0
  %v708 = vsel %vm197, %v670, 0
  %v711 = vsel %vm197, %v671, 0
  %v714 = vsel %vm197, %v672, 0
  %v717 = vsel %vm197, %v673, 0
  %v720 = vsel %vm197, %v674, 0
  %v723 = vsel %vm197, %v675, 0
  %v726 = vsel %vm197, %v676, 0
  %v729 = vsel %vm197, %v677, 0
  %v732 = vsel %vm197, %v678, 0
  %v735 = vsel %vm197, %v679, 0
  %v738 = vsel %vm197, %v680, 0
  %v741 = vsel %vm197, %v681, 0
  %v744 = vsel %vm197, %v682, 0
  %v747 = vsel %vm197, %v683, 0
  %v750 = vsel %vm197, %v684, 0
  %v753 = vsel %vm197, %v685, 0
  %v756 = vsel %vm197, %v686, 0
  %v759 = vsel %vm197, %v687, 0
  %v762 = vsel %vm197, %v688, 0
  %764 = vmatprep.subr.bf16.mxu0 0
  %765 = vmatpush1.bf16.msra.mxu0 %v278
  %766 = vmatprep.subr.bf16.mxu0 0
  %767 = vmatpush1.bf16.msra.mxu0 0
  %768 = vmatprep.subr.bf16.mxu0 0
  %769 = vmatpush1.bf16.msra.mxu0 0
  %770 = vmatprep.subr.bf16.mxu0 0
  %771 = vmatpush1.bf16.msra.mxu0 0
  %772 = vmatprep.subr.bf16.mxu0 0
  %773 = vmatpush1.bf16.msra.mxu0 0
  %774 = vmatprep.subr.bf16.mxu0 0
  %775 = vmatpush1.bf16.msra.mxu0 0
  %776 = vmatprep.subr.bf16.mxu0 0
  %777 = vmatpush1.bf16.msra.mxu0 0
  %778 = vmatprep.subr.bf16.mxu0 0
  %779 = vmatpush1.bf16.msra.mxu0 0
  %780 = vmatprep.subr.bf16.mxu0 0
  %781 = vmatpush1.bf16.msra.mxu0 0
  %782 = vmatprep.subr.bf16.mxu0 0
  %783 = vmatpush1.bf16.msra.mxu0 0
  %784 = vmatprep.subr.bf16.mxu0 0
  %785 = vmatpush1.bf16.msra.mxu0 0
  %786 = vmatprep.subr.bf16.mxu0 0
  %787 = vmatpush1.bf16.msra.mxu0 0
  %788 = vmatprep.subr.bf16.mxu0 0
  %789 = vmatpush1.bf16.msra.mxu0 0
  %790 = vmatprep.subr.bf16.mxu0 0
  %791 = vmatpush1.bf16.msra.mxu0 0
  %792 = vmatprep.subr.bf16.mxu0 0
  %793 = vmatpush1.bf16.msra.mxu0 0
  %794 = vmatprep.subr.bf16.mxu0 0
  %795 = vmatpush1.bf16.msra.mxu0 0
  %796 = vmatprep.mubr.bf16.mxu0 0
  %797 = vmatmul.mubr.bf16.gmra.mrb[0].mxu0 %v690
  %v798 = vpop.f32.mrb[0].mxu0
  %v799 = vadd.f32 0.0, %v798
  %v800 = vpop.f32.mrb[0].mxu0
  %v801 = vpop.f32.mrb[0].mxu0
  %v802 = vadd.f32 0.0, %v801
  %v803 = vpop.f32.mrb[0].mxu0
  %804 = vmatprep.mubr.bf16.mxu0 0
  %805 = vmatmul.mubr.bf16.gmra.mrb[0].mxu0 %v693
  %v806 = vpop.f32.mrb[0].mxu0
  %v807 = vadd.f32 0.0, %v806
  %v808 = vpop.f32.mrb[0].mxu0
  %v809 = vpop.f32.mrb[0].mxu0
  %v810 = vadd.f32 0.0, %v809
  %v811 = vpop.f32.mrb[0].mxu0
  %812 = vmatprep.mubr.bf16.mxu0 0
  %813 = vmatmul.mubr.bf16.gmra.mrb[0].mxu0 %v696
  %v814 = vpop.f32.mrb[0].mxu0
  %v815 = vadd.f32 0.0, %v814
  %v816 = vpop.f32.mrb[0].mxu0
  %v817 = vpop.f32.mrb[0].mxu0
  %v818 = vadd.f32 0.0, %v817
  %v819 = vpop.f32.mrb[0].mxu0
  %820 = vmatprep.mubr.bf16.mxu0 0
  %821 = vmatmul.mubr.bf16.gmra.mrb[0].mxu0 %v699
  %v822 = vpop.f32.mrb[0].mxu0
  %v823 = vadd.f32 0.0, %v822
  %v824 = vpop.f32.mrb[0].mxu0
  %v825 = vpop.f32.mrb[0].mxu0
  %v826 = vadd.f32 0.0, %v825
  %v827 = vpop.f32.mrb[0].mxu0
  %828 = vmatprep.mubr.bf16.mxu0 0
  %829 = vmatmul.mubr.bf16.gmra.mrb[0].mxu0 %v702
  %v830 = vpop.f32.mrb[0].mxu0
  %v831 = vadd.f32 0.0, %v830
  %v832 = vpop.f32.mrb[0].mxu0
  %v833 = vpop.f32.mrb[0].mxu0
  %v834 = vadd.f32 0.0, %v833
  %v835 = vpop.f32.mrb[0].mxu0
  %836 = vmatprep.mubr.bf16.mxu0 0
  %837 = vmatmul.mubr.bf16.gmra.mrb[0].mxu0 %v705
  %v838 = vpop.f32.mrb[0].mxu0
  %v839 = vadd.f32 0.0, %v838
  %v840 = vpop.f32.mrb[0].mxu0
  %v841 = vpop.f32.mrb[0].mxu0
  %v842 = vadd.f32 0.0, %v841
  %v843 = vpop.f32.mrb[0].mxu0
  %844 = vmatprep.mubr.bf16.mxu0 0
  %845 = vmatmul.mubr.bf16.gmra.mrb[0].mxu0 %v708
  %v846 = vpop.f32.mrb[0].mxu0
  %v847 = vadd.f32 0.0, %v846
  %v848 = vpop.f32.mrb[0].mxu0
  %v849 = vpop.f32.mrb[0].mxu0
  %v850 = vadd.f32 0.0, %v849
  %v851 = vpop.f32.mrb[0].mxu0
  %852 = vmatprep.mubr.bf16.mxu0 0
  %853 = vmatmul.mubr.bf16.gmra.mrb[0].mxu0 %v711
  %v854 = vpop.f32.mrb[0].mxu0
  %v855 = vadd.f32 0.0, %v854
  %v856 = vpop.f32.mrb[0].mxu0
  %v857 = vpop.f32.mrb[0].mxu0
  %v858 = vadd.f32 0.0, %v857
  %v859 = vpop.f32.mrb[0].mxu0
  %860 = vmatprep.mubr.bf16.mxu0 0
  %861 = vmatmul.mubr.bf16.gmra.mrb[0].mxu0 %v714
  %v862 = vpop.f32.mrb[0].mxu0
  %v863 = vadd.f32 0.0, %v862
  %v864 = vpop.f32.mrb[0].mxu0
  %v865 = vpop.f32.mrb[0].mxu0
  %v866 = vadd.f32 0.0, %v865
  %v867 = vpop.f32.mrb[0].mxu0
  %868 = vmatprep.mubr.bf16.mxu0 0
  %869 = vmatmul.mubr.bf16.gmra.mrb[0].mxu0 %v717
  %v870 = vpop.f32.mrb[0].mxu0
  %v871 = vadd.f32 0.0, %v870
  %v872 = vpop.f32.mrb[0].mxu0
  %v873 = vpop.f32.mrb[0].mxu0
  %v874 = vadd.f32 0.0, %v873
  %v875 = vpop.f32.mrb[0].mxu0
  %876 = vmatprep.mubr.bf16.mxu0 0
  %877 = vmatmul.mubr.bf16.gmra.mrb[0].mxu0 %v720
  %v878 = vpop.f32.mrb[0].mxu0
  %v879 = vadd.f32 0.0, %v878
  %v880 = vpop.f32.mrb[0].mxu0
  %v881 = vpop.f32.mrb[0].mxu0
  %v882 = vadd.f32 0.0, %v881
  %v883 = vpop.f32.mrb[0].mxu0
  %884 = vmatprep.mubr.bf16.mxu0 0
  %885 = vmatmul.mubr.bf16.gmra.mrb[0].mxu0 %v723
  %v886 = vpop.f32.mrb[0].mxu0
  %v887 = vadd.f32 0.0, %v886
  %v888 = vpop.f32.mrb[0].mxu0
  %v889 = vpop.f32.mrb[0].mxu0
  %v890 = vadd.f32 0.0, %v889
  %v891 = vpop.f32.mrb[0].mxu0
  %892 = vmatprep.mubr.bf16.mxu0 0
  %893 = vmatmul.mubr.bf16.gmra.mrb[0].mxu0 %v726
  %v894 = vpop.f32.mrb[0].mxu0
  %v895 = vadd.f32 0.0, %v894
  %v896 = vpop.f32.mrb[0].mxu0
  %v897 = vpop.f32.mrb[0].mxu0
  %v898 = vadd.f32 0.0, %v897
  %v899 = vpop.f32.mrb[0].mxu0
  %900 = vmatprep.mubr.bf16.mxu0 0
  %901 = vmatmul.mubr.bf16.gmra.mrb[0].mxu0 %v729
  %v902 = vpop.f32.mrb[0].mxu0
  %v903 = vadd.f32 0.0, %v902
  %v904 = vpop.f32.mrb[0].mxu0
  %v905 = vpop.f32.mrb[0].mxu0
  %v906 = vadd.f32 0.0, %v905
  %v907 = vpop.f32.mrb[0].mxu0
  %908 = vmatprep.mubr.bf16.mxu0 0
  %909 = vmatmul.mubr.bf16.gmra.mrb[0].mxu0 %v732
  %v910 = vpop.f32.mrb[0].mxu0
  %v911 = vadd.f32 0.0, %v910
  %v912 = vpop.f32.mrb[0].mxu0
  %v913 = vpop.f32.mrb[0].mxu0
  %v914 = vadd.f32 0.0, %v913
  %v915 = vpop.f32.mrb[0].mxu0
  %916 = vmatprep.mubr.bf16.mxu0 0
  %917 = vmatmul.mubr.bf16.gmra.mrb[0].mxu0 %v735
  %v918 = vpop.f32.mrb[0].mxu0
  %v919 = vadd.f32 0.0, %v918
  %v920 = vpop.f32.mrb[0].mxu0
  %v921 = vpop.f32.mrb[0].mxu0
  %v922 = vadd.f32 0.0, %v921
  %v923 = vpop.f32.mrb[0].mxu0
  %924 = vmatprep.mubr.bf16.mxu0 0
  %925 = vmatmul.mubr.bf16.gmra.mrb[0].mxu0 %v738
  %v926 = vpop.f32.mrb[0].mxu0
  %v927 = vadd.f32 0.0, %v926
  %v928 = vpop.f32.mrb[0].mxu0
  %v929 = vpop.f32.mrb[0].mxu0
  %v930 = vadd.f32 0.0, %v929
  %v931 = vpop.f32.mrb[0].mxu0
  %932 = vmatprep.mubr.bf16.mxu0 0
  %933 = vmatmul.mubr.bf16.gmra.mrb[0].mxu0 %v741
  %v934 = vpop.f32.mrb[0].mxu0
  %v935 = vadd.f32 0.0, %v934
  %v936 = vpop.f32.mrb[0].mxu0
  %v937 = vpop.f32.mrb[0].mxu0
  %v938 = vadd.f32 0.0, %v937
  %v939 = vpop.f32.mrb[0].mxu0
  %940 = vmatprep.mubr.bf16.mxu0 0
  %941 = vmatmul.mubr.bf16.gmra.mrb[0].mxu0 %v744
  %v942 = vpop.f32.mrb[0].mxu0
  %v943 = vadd.f32 0.0, %v942
  %v944 = vpop.f32.mrb[0].mxu0
  %v945 = vpop.f32.mrb[0].mxu0
  %v946 = vadd.f32 0.0, %v945
  %v947 = vpop.f32.mrb[0].mxu0
  %948 = vmatprep.mubr.bf16.mxu0 0
  %949 = vmatmul.mubr.bf16.gmra.mrb[0].mxu0 %v747
  %v950 = vpop.f32.mrb[0].mxu0
  %v951 = vadd.f32 0.0, %v950
  %v952 = vpop.f32.mrb[0].mxu0
  %v953 = vpop.f32.mrb[0].mxu0
  %v954 = vadd.f32 0.0, %v953
  %v955 = vpop.f32.mrb[0].mxu0
  %956 = vmatprep.mubr.bf16.mxu0 0
  %957 = vmatmul.mubr.bf16.gmra.mrb[0].mxu0 %v750
  %v958 = vpop.f32.mrb[0].mxu0
  %v959 = vadd.f32 0.0, %v958
  %v960 = vpop.f32.mrb[0].mxu0
  %v961 = vpop.f32.mrb[0].mxu0
  %v962 = vadd.f32 0.0, %v961
  %v963 = vpop.f32.mrb[0].mxu0
  %964 = vmatprep.mubr.bf16.mxu0 0
  %965 = vmatmul.mubr.bf16.gmra.mrb[0].mxu0 %v753
  %v966 = vpop.f32.mrb[0].mxu0
  %v967 = vadd.f32 0.0, %v966
  %v968 = vpop.f32.mrb[0].mxu0
  %v969 = vpop.f32.mrb[0].mxu0
  %v970 = vadd.f32 0.0, %v969
  %v971 = vpop.f32.mrb[0].mxu0
  %972 = vmatprep.mubr.bf16.mxu0 0
  %973 = vmatmul.mubr.bf16.gmra.mrb[0].mxu0 %v756
  %v974 = vpop.f32.mrb[0].mxu0
  %v975 = vadd.f32 0.0, %v974
  %v976 = vpop.f32.mrb[0].mxu0
  %v977 = vpop.f32.mrb[0].mxu0
  %v978 = vadd.f32 0.0, %v977
  %v979 = vpop.f32.mrb[0].mxu0
  %980 = vmatprep.mubr.bf16.mxu0 0
  %981 = vmatmul.mubr.bf16.gmra.mrb[0].mxu0 %v759
  %v982 = vpop.f32.mrb[0].mxu0
  %v983 = vadd.f32 0.0, %v982
  %v984 = vpop.f32.mrb[0].mxu0
  %v985 = vpop.f32.mrb[0].mxu0
  %v986 = vadd.f32 0.0, %v985
  %v987 = vpop.f32.mrb[0].mxu0
  %988 = vmatprep.mubr.bf16.mxu0 0
  %989 = vmatmul.mubr.bf16.gmra.mrb[0].mxu0 %v762
  %v990 = vpop.f32.mrb[0].mxu0
  %v991 = vadd.f32 0.0, %v990
  %v992 = vpop.f32.mrb[0].mxu0
  %v993 = vpop.f32.mrb[0].mxu0
  %v994 = vadd.f32 0.0, %v993
  %v995 = vpop.f32.mrb[0].mxu0
  %996 = vdwg.mxu0
  %v997 = vmax.f32 %v315, %v799
  %v998 = vmax.f32 %v318, %v802
  %v999 = vmax.f32 %v323, %v807
  %v1000 = vmax.f32 %v326, %v810
  %v1001 = vmax.f32 %v331, %v815
  %v1002 = vmax.f32 %v334, %v818
  %v1003 = vmax.f32 %v339, %v823
  %v1004 = vmax.f32 %v342, %v826
  %v1005 = vmax.f32 %v347, %v831
  %v1006 = vmax.f32 %v350, %v834
  %v1007 = vmax.f32 %v355, %v839
  %v1008 = vmax.f32 %v358, %v842
  %v1009 = vmax.f32 %v363, %v847
  %v1010 = vmax.f32 %v366, %v850
  %v1011 = vmax.f32 %v371, %v855
  %v1012 = vmax.f32 %v374, %v858
  %v1013 = vmax.f32 %v379, %v863
  %v1014 = vmax.f32 %v382, %v866
  %v1015 = vmax.f32 %v387, %v871
  %v1016 = vmax.f32 %v390, %v874
  %v1017 = vmax.f32 %v395, %v879
  %v1018 = vmax.f32 %v398, %v882
  %v1019 = vmax.f32 %v403, %v887
  %v1020 = vmax.f32 %v406, %v890
  %v1021 = vmax.f32 %v411, %v895
  %v1022 = vmax.f32 %v414, %v898
  %v1023 = vmax.f32 %v419, %v903
  %v1024 = vmax.f32 %v422, %v906
  %v1025 = vmax.f32 %v427, %v911
  %v1026 = vmax.f32 %v430, %v914
  %v1027 = vmax.f32 %v435, %v919
  %v1028 = vmax.f32 %v438, %v922
  %v1029 = vmax.f32 %v443, %v927
  %v1030 = vmax.f32 %v446, %v930
  %v1031 = vmax.f32 %v451, %v935
  %v1032 = vmax.f32 %v454, %v938
  %v1033 = vmax.f32 %v459, %v943
  %v1034 = vmax.f32 %v462, %v946
  %v1035 = vmax.f32 %v467, %v951
  %v1036 = vmax.f32 %v470, %v954
  %v1037 = vmax.f32 %v475, %v959
  %v1038 = vmax.f32 %v478, %v962
  %v1039 = vmax.f32 %v483, %v967
  %v1040 = vmax.f32 %v486, %v970
  %v1041 = vmax.f32 %v491, %v975
  %v1042 = vmax.f32 %v494, %v978
  %v1043 = vmax.f32 %v499, %v983
  %v1044 = vmax.f32 %v502, %v986
  %v1045 = vmax.f32 %v507, %v991
  %v1046 = vmax.f32 %v510, %v994
  %s1047 = scalar_lea.vmem %s0, 400
  %v1048 = vld [vmem:[%s1047] sm:$0xf]
  %v1049 = vld [vmem:[%s1047 + $0x4] sm:$0xf]
  %v1050 = vld [vmem:[%s1047 + $0x8] sm:$0xf]
  %v1051 = vld [vmem:[%s1047 + $0xc] sm:$0xf]
  %v1052 = vld [vmem:[%s1047 + $0x10] sm:$0xf]
  %v1053 = vld [vmem:[%s1047 + $0x14] sm:$0xf]
  %v1054 = vld [vmem:[%s1047 + $0x18] sm:$0xf]
  %v1055 = vld [vmem:[%s1047 + $0x1c] sm:$0xf]
  %v1056 = vld [vmem:[%s1047 + $0x20] sm:$0xf]
  %v1057 = vld [vmem:[%s1047 + $0x24] sm:$0xf]
  %v1058 = vld [vmem:[%s1047 + $0x28] sm:$0xf]
  %v1059 = vld [vmem:[%s1047 + $0x2c] sm:$0xf]
  %v1060 = vld [vmem:[%s1047 + $0x30] sm:$0xf]
  %v1061 = vld [vmem:[%s1047 + $0x34] sm:$0xf]
  %v1062 = vld [vmem:[%s1047 + $0x38] sm:$0xf]
  %v1063 = vld [vmem:[%s1047 + $0x3c] sm:$0xf]
  %v1064 = vld [vmem:[%s1047 + $0x40] sm:$0xf]
  %v1065 = vld [vmem:[%s1047 + $0x44] sm:$0xf]
  %v1066 = vld [vmem:[%s1047 + $0x48] sm:$0xf]
  %v1067 = vld [vmem:[%s1047 + $0x4c] sm:$0xf]
  %v1068 = vld [vmem:[%s1047 + $0x50] sm:$0xf]
  %v1069 = vld [vmem:[%s1047 + $0x54] sm:$0xf]
  %v1070 = vld [vmem:[%s1047 + $0x58] sm:$0xf]
  %v1071 = vld [vmem:[%s1047 + $0x5c] sm:$0xf]
  %v1072 = vld [vmem:[%s1047 + $0x60] sm:$0xf]
  %v1073 = vld [vmem:[%s1047 + $0x64] sm:$0xf]
  %v1074 = vld [vmem:[%s1047 + $0x68] sm:$0xf]
  %v1075 = vld [vmem:[%s1047 + $0x6c] sm:$0xf]
  %v1076 = vld [vmem:[%s1047 + $0x70] sm:$0xf]
  %v1077 = vld [vmem:[%s1047 + $0x74] sm:$0xf]
  %v1078 = vld [vmem:[%s1047 + $0x78] sm:$0xf]
  %v1079 = vld [vmem:[%s1047 + $0x7c] sm:$0xf]
  %v1080 = vld [vmem:[%s1047 + $0x80] sm:$0xf]
  %v1081 = vld [vmem:[%s1047 + $0x84] sm:$0xf]
  %v1082 = vld [vmem:[%s1047 + $0x88] sm:$0xf]
  %v1083 = vld [vmem:[%s1047 + $0x8c] sm:$0xf]
  %v1084 = vld [vmem:[%s1047 + $0x90] sm:$0xf]
  %v1085 = vld [vmem:[%s1047 + $0x94] sm:$0xf]
  %v1086 = vld [vmem:[%s1047 + $0x98] sm:$0xf]
  %v1087 = vld [vmem:[%s1047 + $0x9c] sm:$0xf]
  %v1088 = vld [vmem:[%s1047 + $0xa0] sm:$0xf]
  %v1089 = vld [vmem:[%s1047 + $0xa4] sm:$0xf]
  %v1090 = vld [vmem:[%s1047 + $0xa8] sm:$0xf]
  %v1091 = vld [vmem:[%s1047 + $0xac] sm:$0xf]
  %v1092 = vld [vmem:[%s1047 + $0xb0] sm:$0xf]
  %v1093 = vld [vmem:[%s1047 + $0xb4] sm:$0xf]
  %v1094 = vld [vmem:[%s1047 + $0xb8] sm:$0xf]
  %v1095 = vld [vmem:[%s1047 + $0xbc] sm:$0xf]
  %v1096 = vld [vmem:[%s1047 + $0xc0] sm:$0xf]
  %v1097 = vld [vmem:[%s1047 + $0xc4] sm:$0xf]
  %v1148 = vunpack.c.l.b16 %v1048
  %v1149 = vunpack.c.l.b16 %v1049
  %v1150 = vunpack.c.l.b16 %v1050
  %v1151 = vunpack.c.l.b16 %v1051
  %v1152 = vunpack.c.l.b16 %v1052
  %v1153 = vunpack.c.l.b16 %v1053
  %v1154 = vunpack.c.l.b16 %v1054
  %v1155 = vunpack.c.l.b16 %v1055
  %v1156 = vunpack.c.l.b16 %v1056
  %v1157 = vunpack.c.l.b16 %v1057
  %v1158 = vunpack.c.l.b16 %v1058
  %v1159 = vunpack.c.l.b16 %v1059
  %v1160 = vunpack.c.l.b16 %v1060
  %v1161 = vunpack.c.l.b16 %v1061
  %v1162 = vunpack.c.l.b16 %v1062
  %v1163 = vunpack.c.l.b16 %v1063
  %v1164 = vunpack.c.l.b16 %v1064
  %v1165 = vunpack.c.l.b16 %v1065
  %v1166 = vunpack.c.l.b16 %v1066
  %v1167 = vunpack.c.l.b16 %v1067
  %v1168 = vunpack.c.l.b16 %v1068
  %v1169 = vunpack.c.l.b16 %v1069
  %v1170 = vunpack.c.l.b16 %v1070
  %v1171 = vunpack.c.l.b16 %v1071
  %v1172 = vunpack.c.l.b16 %v1072
  %v1173 = vunpack.c.l.b16 %v1073
  %v1174 = vunpack.c.l.b16 %v1074
  %v1175 = vunpack.c.l.b16 %v1075
  %v1176 = vunpack.c.l.b16 %v1076
  %v1177 = vunpack.c.l.b16 %v1077
  %v1178 = vunpack.c.l.b16 %v1078
  %v1179 = vunpack.c.l.b16 %v1079
  %v1180 = vunpack.c.l.b16 %v1080
  %v1181 = vunpack.c.l.b16 %v1081
  %v1182 = vunpack.c.l.b16 %v1082
  %v1183 = vunpack.c.l.b16 %v1083
  %v1184 = vunpack.c.l.b16 %v1084
  %v1185 = vunpack.c.l.b16 %v1085
  %v1186 = vunpack.c.l.b16 %v1086
  %v1187 = vunpack.c.l.b16 %v1087
  %v1188 = vunpack.c.l.b16 %v1088
  %v1189 = vunpack.c.l.b16 %v1089
  %v1190 = vunpack.c.l.b16 %v1090
  %v1191 = vunpack.c.l.b16 %v1091
  %v1192 = vunpack.c.l.b16 %v1092
  %v1193 = vunpack.c.l.b16 %v1093
  %v1194 = vunpack.c.l.b16 %v1094
  %v1195 = vunpack.c.l.b16 %v1095
  %v1196 = vunpack.c.l.b16 %v1096
  %v1197 = vunpack.c.l.b16 %v1097
  %v1198 = vpack.c.b16 %v1149, %v1148
  %v1199 = vpack.c.b16 %v1151, %v1150
  %v1200 = vpack.c.b16 %v1153, %v1152
  %v1201 = vpack.c.b16 %v1155, %v1154
  %v1202 = vpack.c.b16 %v1157, %v1156
  %v1203 = vpack.c.b16 %v1159, %v1158
  %v1204 = vpack.c.b16 %v1161, %v1160
  %v1205 = vpack.c.b16 %v1163, %v1162
  %v1206 = vpack.c.b16 %v1165, %v1164
  %v1207 = vpack.c.b16 %v1167, %v1166
  %v1208 = vpack.c.b16 %v1169, %v1168
  %v1209 = vpack.c.b16 %v1171, %v1170
  %v1210 = vpack.c.b16 %v1173, %v1172
  %v1211 = vpack.c.b16 %v1175, %v1174
  %v1212 = vpack.c.b16 %v1177, %v1176
  %v1213 = vpack.c.b16 %v1179, %v1178
  %v1214 = vpack.c.b16 %v1181, %v1180
  %v1215 = vpack.c.b16 %v1183, %v1182
  %v1216 = vpack.c.b16 %v1185, %v1184
  %v1217 = vpack.c.b16 %v1187, %v1186
  %v1218 = vpack.c.b16 %v1189, %v1188
  %v1219 = vpack.c.b16 %v1191, %v1190
  %v1220 = vpack.c.b16 %v1193, %v1192
  %v1221 = vpack.c.b16 %v1195, %v1194
  %v1222 = vpack.c.b16 %v1197, %v1196
  %v1224 = vsel %vm197, %v1198, 0
  %v1227 = vsel %vm197, %v1199, 0
  %v1230 = vsel %vm197, %v1200, 0
  %v1233 = vsel %vm197, %v1201, 0
  %v1236 = vsel %vm197, %v1202, 0
  %v1239 = vsel %vm197, %v1203, 0
  %v1242 = vsel %vm197, %v1204, 0
  %v1245 = vsel %vm197, %v1205, 0
  %v1248 = vsel %vm197, %v1206, 0
  %v1251 = vsel %vm197, %v1207, 0
  %v1254 = vsel %vm197, %v1208, 0
  %v1257 = vsel %vm197, %v1209, 0
  %v1260 = vsel %vm197, %v1210, 0
  %v1263 = vsel %vm197, %v1211, 0
  %v1266 = vsel %vm197, %v1212, 0
  %v1269 = vsel %vm197, %v1213, 0
  %v1272 = vsel %vm197, %v1214, 0
  %v1275 = vsel %vm197, %v1215, 0
  %v1278 = vsel %vm197, %v1216, 0
  %v1281 = vsel %vm197, %v1217, 0
  %v1284 = vsel %vm197, %v1218, 0
  %v1287 = vsel %vm197, %v1219, 0
  %v1290 = vsel %vm197, %v1220, 0
  %v1293 = vsel %vm197, %v1221, 0
  %v1296 = vsel %vm197, %v1222, 0
  %1298 = vmatprep.subr.bf16.mxu0 0
  %1299 = vmatpush1.bf16.msra.mxu0 %v278
  %1300 = vmatprep.subr.bf16.mxu0 0
  %1301 = vmatpush1.bf16.msra.mxu0 0
  %1302 = vmatprep.subr.bf16.mxu0 0
  %1303 = vmatpush1.bf16.msra.mxu0 0
  %1304 = vmatprep.subr.bf16.mxu0 0
  %1305 = vmatpush1.bf16.msra.mxu0 0
  %1306 = vmatprep.subr.bf16.mxu0 0
  %1307 = vmatpush1.bf16.msra.mxu0 0
  %1308 = vmatprep.subr.bf16.mxu0 0
  %1309 = vmatpush1.bf16.msra.mxu0 0
  %1310 = vmatprep.subr.bf16.mxu0 0
  %1311 = vmatpush1.bf16.msra.mxu0 0
  %1312 = vmatprep.subr.bf16.mxu0 0
  %1313 = vmatpush1.bf16.msra.mxu0 0
  %1314 = vmatprep.subr.bf16.mxu0 0
  %1315 = vmatpush1.bf16.msra.mxu0 0
  %1316 = vmatprep.subr.bf16.mxu0 0
  %1317 = vmatpush1.bf16.msra.mxu0 0
  %1318 = vmatprep.subr.bf16.mxu0 0
  %1319 = vmatpush1.bf16.msra.mxu0 0
  %1320 = vmatprep.subr.bf16.mxu0 0
  %1321 = vmatpush1.bf16.msra.mxu0 0
  %1322 = vmatprep.subr.bf16.mxu0 0
  %1323 = vmatpush1.bf16.msra.mxu0 0
  %1324 = vmatprep.subr.bf16.mxu0 0
  %1325 = vmatpush1.bf16.msra.mxu0 0
  %1326 = vmatprep.subr.bf16.mxu0 0
  %1327 = vmatpush1.bf16.msra.mxu0 0
  %1328 = vmatprep.subr.bf16.mxu0 0
  %1329 = vmatpush1.bf16.msra.mxu0 0
  %1330 = vmatprep.mubr.bf16.mxu0 0
  %1331 = vmatmul.mubr.bf16.gmra.mrb[0].mxu0 %v1224
  %v1332 = vpop.f32.mrb[0].mxu0
  %v1333 = vadd.f32 0.0, %v1332
  %v1334 = vpop.f32.mrb[0].mxu0
  %v1335 = vpop.f32.mrb[0].mxu0
  %v1336 = vadd.f32 0.0, %v1335
  %v1337 = vpop.f32.mrb[0].mxu0
  %1338 = vmatprep.mubr.bf16.mxu0 0
  %1339 = vmatmul.mubr.bf16.gmra.mrb[0].mxu0 %v1227
  %v1340 = vpop.f32.mrb[0].mxu0
  %v1341 = vadd.f32 0.0, %v1340
  %v1342 = vpop.f32.mrb[0].mxu0
  %v1343 = vpop.f32.mrb[0].mxu0
  %v1344 = vadd.f32 0.0, %v1343
  %v1345 = vpop.f32.mrb[0].mxu0
  %1346 = vmatprep.mubr.bf16.mxu0 0
  %1347 = vmatmul.mubr.bf16.gmra.mrb[0].mxu0 %v1230
  %v1348 = vpop.f32.mrb[0].mxu0
  %v1349 = vadd.f32 0.0, %v1348
  %v1350 = vpop.f32.mrb[0].mxu0
  %v1351 = vpop.f32.mrb[0].mxu0
  %v1352 = vadd.f32 0.0, %v1351
  %v1353 = vpop.f32.mrb[0].mxu0
  %1354 = vmatprep.mubr.bf16.mxu0 0
  %1355 = vmatmul.mubr.bf16.gmra.mrb[0].mxu0 %v1233
  %v1356 = vpop.f32.mrb[0].mxu0
  %v1357 = vadd.f32 0.0, %v1356
  %v1358 = vpop.f32.mrb[0].mxu0
  %v1359 = vpop.f32.mrb[0].mxu0
  %v1360 = vadd.f32 0.0, %v1359
  %v1361 = vpop.f32.mrb[0].mxu0
  %1362 = vmatprep.mubr.bf16.mxu0 0
  %1363 = vmatmul.mubr.bf16.gmra.mrb[0].mxu0 %v1236
  %v1364 = vpop.f32.mrb[0].mxu0
  %v1365 = vadd.f32 0.0, %v1364
  %v1366 = vpop.f32.mrb[0].mxu0
  %v1367 = vpop.f32.mrb[0].mxu0
  %v1368 = vadd.f32 0.0, %v1367
  %v1369 = vpop.f32.mrb[0].mxu0
  %1370 = vmatprep.mubr.bf16.mxu0 0
  %1371 = vmatmul.mubr.bf16.gmra.mrb[0].mxu0 %v1239
  %v1372 = vpop.f32.mrb[0].mxu0
  %v1373 = vadd.f32 0.0, %v1372
  %v1374 = vpop.f32.mrb[0].mxu0
  %v1375 = vpop.f32.mrb[0].mxu0
  %v1376 = vadd.f32 0.0, %v1375
  %v1377 = vpop.f32.mrb[0].mxu0
  %1378 = vmatprep.mubr.bf16.mxu0 0
  %1379 = vmatmul.mubr.bf16.gmra.mrb[0].mxu0 %v1242
  %v1380 = vpop.f32.mrb[0].mxu0
  %v1381 = vadd.f32 0.0, %v1380
  %v1382 = vpop.f32.mrb[0].mxu0
  %v1383 = vpop.f32.mrb[0].mxu0
  %v1384 = vadd.f32 0.0, %v1383
  %v1385 = vpop.f32.mrb[0].mxu0
  %1386 = vmatprep.mubr.bf16.mxu0 0
  %1387 = vmatmul.mubr.bf16.gmra.mrb[0].mxu0 %v1245
  %v1388 = vpop.f32.mrb[0].mxu0
  %v1389 = vadd.f32 0.0, %v1388
  %v1390 = vpop.f32.mrb[0].mxu0
  %v1391 = vpop.f32.mrb[0].mxu0
  %v1392 = vadd.f32 0.0, %v1391
  %v1393 = vpop.f32.mrb[0].mxu0
  %1394 = vmatprep.mubr.bf16.mxu0 0
  %1395 = vmatmul.mubr.bf16.gmra.mrb[0].mxu0 %v1248
  %v1396 = vpop.f32.mrb[0].mxu0
  %v1397 = vadd.f32 0.0, %v1396
  %v1398 = vpop.f32.mrb[0].mxu0
  %v1399 = vpop.f32.mrb[0].mxu0
  %v1400 = vadd.f32 0.0, %v1399
  %v1401 = vpop.f32.mrb[0].mxu0
  %1402 = vmatprep.mubr.bf16.mxu0 0
  %1403 = vmatmul.mubr.bf16.gmra.mrb[0].mxu0 %v1251
  %v1404 = vpop.f32.mrb[0].mxu0
  %v1405 = vadd.f32 0.0, %v1404
  %v1406 = vpop.f32.mrb[0].mxu0
  %v1407 = vpop.f32.mrb[0].mxu0
  %v1408 = vadd.f32 0.0, %v1407
  %v1409 = vpop.f32.mrb[0].mxu0
  %1410 = vmatprep.mubr.bf16.mxu0 0
  %1411 = vmatmul.mubr.bf16.gmra.mrb[0].mxu0 %v1254
  %v1412 = vpop.f32.mrb[0].mxu0
  %v1413 = vadd.f32 0.0, %v1412
  %v1414 = vpop.f32.mrb[0].mxu0
  %v1415 = vpop.f32.mrb[0].mxu0
  %v1416 = vadd.f32 0.0, %v1415
  %v1417 = vpop.f32.mrb[0].mxu0
  %1418 = vmatprep.mubr.bf16.mxu0 0
  %1419 = vmatmul.mubr.bf16.gmra.mrb[0].mxu0 %v1257
  %v1420 = vpop.f32.mrb[0].mxu0
  %v1421 = vadd.f32 0.0, %v1420
  %v1422 = vpop.f32.mrb[0].mxu0
  %v1423 = vpop.f32.mrb[0].mxu0
  %v1424 = vadd.f32 0.0, %v1423
  %v1425 = vpop.f32.mrb[0].mxu0
  %1426 = vmatprep.mubr.bf16.mxu0 0
  %1427 = vmatmul.mubr.bf16.gmra.mrb[0].mxu0 %v1260
  %v1428 = vpop.f32.mrb[0].mxu0
  %v1429 = vadd.f32 0.0, %v1428
  %v1430 = vpop.f32.mrb[0].mxu0
  %v1431 = vpop.f32.mrb[0].mxu0
  %v1432 = vadd.f32 0.0, %v1431
  %v1433 = vpop.f32.mrb[0].mxu0
  %1434 = vmatprep.mubr.bf16.mxu0 0
  %1435 = vmatmul.mubr.bf16.gmra.mrb[0].mxu0 %v1263
  %v1436 = vpop.f32.mrb[0].mxu0
  %v1437 = vadd.f32 0.0, %v1436
  %v1438 = vpop.f32.mrb[0].mxu0
  %v1439 = vpop.f32.mrb[0].mxu0
  %v1440 = vadd.f32 0.0, %v1439
  %v1441 = vpop.f32.mrb[0].mxu0
  %1442 = vmatprep.mubr.bf16.mxu0 0
  %1443 = vmatmul.mubr.bf16.gmra.mrb[0].mxu0 %v1266
  %v1444 = vpop.f32.mrb[0].mxu0
  %v1445 = vadd.f32 0.0, %v1444
  %v1446 = vpop.f32.mrb[0].mxu0
  %v1447 = vpop.f32.mrb[0].mxu0
  %v1448 = vadd.f32 0.0, %v1447
  %v1449 = vpop.f32.mrb[0].mxu0
  %1450 = vmatprep.mubr.bf16.mxu0 0
  %1451 = vmatmul.mubr.bf16.gmra.mrb[0].mxu0 %v1269
  %v1452 = vpop.f32.mrb[0].mxu0
  %v1453 = vadd.f32 0.0, %v1452
  %v1454 = vpop.f32.mrb[0].mxu0
  %v1455 = vpop.f32.mrb[0].mxu0
  %v1456 = vadd.f32 0.0, %v1455
  %v1457 = vpop.f32.mrb[0].mxu0
  %1458 = vmatprep.mubr.bf16.mxu0 0
  %1459 = vmatmul.mubr.bf16.gmra.mrb[0].mxu0 %v1272
  %v1460 = vpop.f32.mrb[0].mxu0
  %v1461 = vadd.f32 0.0, %v1460
  %v1462 = vpop.f32.mrb[0].mxu0
  %v1463 = vpop.f32.mrb[0].mxu0
  %v1464 = vadd.f32 0.0, %v1463
  %v1465 = vpop.f32.mrb[0].mxu0
  %1466 = vmatprep.mubr.bf16.mxu0 0
  %1467 = vmatmul.mubr.bf16.gmra.mrb[0].mxu0 %v1275
  %v1468 = vpop.f32.mrb[0].mxu0
  %v1469 = vadd.f32 0.0, %v1468
  %v1470 = vpop.f32.mrb[0].mxu0
  %v1471 = vpop.f32.mrb[0].mxu0
  %v1472 = vadd.f32 0.0, %v1471
  %v1473 = vpop.f32.mrb[0].mxu0
  %1474 = vmatprep.mubr.bf16.mxu0 0
  %1475 = vmatmul.mubr.bf16.gmra.mrb[0].mxu0 %v1278
  %v1476 = vpop.f32.mrb[0].mxu0
  %v1477 = vadd.f32 0.0, %v1476
  %v1478 = vpop.f32.mrb[0].mxu0
  %v1479 = vpop.f32.mrb[0].mxu0
  %v1480 = vadd.f32 0.0, %v1479
  %v1481 = vpop.f32.mrb[0].mxu0
  %1482 = vmatprep.mubr.bf16.mxu0 0
  %1483 = vmatmul.mubr.bf16.gmra.mrb[0].mxu0 %v1281
  %v1484 = vpop.f32.mrb[0].mxu0
  %v1485 = vadd.f32 0.0, %v1484
  %v1486 = vpop.f32.mrb[0].mxu0
  %v1487 = vpop.f32.mrb[0].mxu0
  %v1488 = vadd.f32 0.0, %v1487
  %v1489 = vpop.f32.mrb[0].mxu0
  %1490 = vmatprep.mubr.bf16.mxu0 0
  %1491 = vmatmul.mubr.bf16.gmra.mrb[0].mxu0 %v1284
  %v1492 = vpop.f32.mrb[0].mxu0
  %v1493 = vadd.f32 0.0, %v1492
  %v1494 = vpop.f32.mrb[0].mxu0
  %v1495 = vpop.f32.mrb[0].mxu0
  %v1496 = vadd.f32 0.0, %v1495
  %v1497 = vpop.f32.mrb[0].mxu0
  %1498 = vmatprep.mubr.bf16.mxu0 0
  %1499 = vmatmul.mubr.bf16.gmra.mrb[0].mxu0 %v1287
  %v1500 = vpop.f32.mrb[0].mxu0
  %v1501 = vadd.f32 0.0, %v1500
  %v1502 = vpop.f32.mrb[0].mxu0
  %v1503 = vpop.f32.mrb[0].mxu0
  %v1504 = vadd.f32 0.0, %v1503
  %v1505 = vpop.f32.mrb[0].mxu0
  %1506 = vmatprep.mubr.bf16.mxu0 0
  %1507 = vmatmul.mubr.bf16.gmra.mrb[0].mxu0 %v1290
  %v1508 = vpop.f32.mrb[0].mxu0
  %v1509 = vadd.f32 0.0, %v1508
  %v1510 = vpop.f32.mrb[0].mxu0
  %v1511 = vpop.f32.mrb[0].mxu0
  %v1512 = vadd.f32 0.0, %v1511
  %v1513 = vpop.f32.mrb[0].mxu0
  %1514 = vmatprep.mubr.bf16.mxu0 0
  %1515 = vmatmul.mubr.bf16.gmra.mrb[0].mxu0 %v1293
  %v1516 = vpop.f32.mrb[0].mxu0
  %v1517 = vadd.f32 0.0, %v1516
  %v1518 = vpop.f32.mrb[0].mxu0
  %v1519 = vpop.f32.mrb[0].mxu0
  %v1520 = vadd.f32 0.0, %v1519
  %v1521 = vpop.f32.mrb[0].mxu0
  %1522 = vmatprep.mubr.bf16.mxu0 0
  %1523 = vmatmul.mubr.bf16.gmra.mrb[0].mxu0 %v1296
  %v1524 = vpop.f32.mrb[0].mxu0
  %v1525 = vadd.f32 0.0, %v1524
  %v1526 = vpop.f32.mrb[0].mxu0
  %v1527 = vpop.f32.mrb[0].mxu0
  %v1528 = vadd.f32 0.0, %v1527
  %v1529 = vpop.f32.mrb[0].mxu0
  %1530 = vdwg.mxu0
  %v1531 = vmax.f32 %v997, %v1333
  %v1532 = vmax.f32 %v998, %v1336
  %v1533 = vmax.f32 %v999, %v1341
  %v1534 = vmax.f32 %v1000, %v1344
  %v1535 = vmax.f32 %v1001, %v1349
  %v1536 = vmax.f32 %v1002, %v1352
  %v1537 = vmax.f32 %v1003, %v1357
  %v1538 = vmax.f32 %v1004, %v1360
  %v1539 = vmax.f32 %v1005, %v1365
  %v1540 = vmax.f32 %v1006, %v1368
  %v1541 = vmax.f32 %v1007, %v1373
  %v1542 = vmax.f32 %v1008, %v1376
  %v1543 = vmax.f32 %v1009, %v1381
  %v1544 = vmax.f32 %v1010, %v1384
  %v1545 = vmax.f32 %v1011, %v1389
  %v1546 = vmax.f32 %v1012, %v1392
  %v1547 = vmax.f32 %v1013, %v1397
  %v1548 = vmax.f32 %v1014, %v1400
  %v1549 = vmax.f32 %v1015, %v1405
  %v1550 = vmax.f32 %v1016, %v1408
  %v1551 = vmax.f32 %v1017, %v1413
  %v1552 = vmax.f32 %v1018, %v1416
  %v1553 = vmax.f32 %v1019, %v1421
  %v1554 = vmax.f32 %v1020, %v1424
  %v1555 = vmax.f32 %v1021, %v1429
  %v1556 = vmax.f32 %v1022, %v1432
  %v1557 = vmax.f32 %v1023, %v1437
  %v1558 = vmax.f32 %v1024, %v1440
  %v1559 = vmax.f32 %v1025, %v1445
  %v1560 = vmax.f32 %v1026, %v1448
  %v1561 = vmax.f32 %v1027, %v1453
  %v1562 = vmax.f32 %v1028, %v1456
  %v1563 = vmax.f32 %v1029, %v1461
  %v1564 = vmax.f32 %v1030, %v1464
  %v1565 = vmax.f32 %v1031, %v1469
  %v1566 = vmax.f32 %v1032, %v1472
  %v1567 = vmax.f32 %v1033, %v1477
  %v1568 = vmax.f32 %v1034, %v1480
  %v1569 = vmax.f32 %v1035, %v1485
  %v1570 = vmax.f32 %v1036, %v1488
  %v1571 = vmax.f32 %v1037, %v1493
  %v1572 = vmax.f32 %v1038, %v1496
  %v1573 = vmax.f32 %v1039, %v1501
  %v1574 = vmax.f32 %v1040, %v1504
  %v1575 = vmax.f32 %v1041, %v1509
  %v1576 = vmax.f32 %v1042, %v1512
  %v1577 = vmax.f32 %v1043, %v1517
  %v1578 = vmax.f32 %v1044, %v1520
  %v1579 = vmax.f32 %v1045, %v1525
  %v1580 = vmax.f32 %v1046, %v1528
  %s1581 = scalar_lea.vmem %s0, 600
  %v1582 = vld [vmem:[%s1581] sm:$0xf]
  %v1583 = vld [vmem:[%s1581 + $0x4] sm:$0xf]
  %v1584 = vld [vmem:[%s1581 + $0x8] sm:$0xf]
  %v1585 = vld [vmem:[%s1581 + $0xc] sm:$0xf]
  %v1586 = vld [vmem:[%s1581 + $0x10] sm:$0xf]
  %v1587 = vld [vmem:[%s1581 + $0x14] sm:$0xf]
  %v1588 = vld [vmem:[%s1581 + $0x18] sm:$0xf]
  %v1589 = vld [vmem:[%s1581 + $0x1c] sm:$0xf]
  %v1590 = vld [vmem:[%s1581 + $0x20] sm:$0xf]
  %v1591 = vld [vmem:[%s1581 + $0x24] sm:$0xf]
  %v1592 = vld [vmem:[%s1581 + $0x28] sm:$0xf]
  %v1593 = vld [vmem:[%s1581 + $0x2c] sm:$0xf]
  %v1594 = vld [vmem:[%s1581 + $0x30] sm:$0xf]
  %v1595 = vld [vmem:[%s1581 + $0x34] sm:$0xf]
  %v1596 = vld [vmem:[%s1581 + $0x38] sm:$0xf]
  %v1597 = vld [vmem:[%s1581 + $0x3c] sm:$0xf]
  %v1598 = vld [vmem:[%s1581 + $0x40] sm:$0xf]
  %v1599 = vld [vmem:[%s1581 + $0x44] sm:$0xf]
  %v1600 = vld [vmem:[%s1581 + $0x48] sm:$0xf]
  %v1601 = vld [vmem:[%s1581 + $0x4c] sm:$0xf]
  %v1602 = vld [vmem:[%s1581 + $0x50] sm:$0xf]
  %v1603 = vld [vmem:[%s1581 + $0x54] sm:$0xf]
  %v1604 = vld [vmem:[%s1581 + $0x58] sm:$0xf]
  %v1605 = vld [vmem:[%s1581 + $0x5c] sm:$0xf]
  %v1606 = vld [vmem:[%s1581 + $0x60] sm:$0xf]
  %v1607 = vld [vmem:[%s1581 + $0x64] sm:$0xf]
  %v1608 = vld [vmem:[%s1581 + $0x68] sm:$0xf]
  %v1609 = vld [vmem:[%s1581 + $0x6c] sm:$0xf]
  %v1610 = vld [vmem:[%s1581 + $0x70] sm:$0xf]
  %v1611 = vld [vmem:[%s1581 + $0x74] sm:$0xf]
  %v1612 = vld [vmem:[%s1581 + $0x78] sm:$0xf]
  %v1613 = vld [vmem:[%s1581 + $0x7c] sm:$0xf]
  %v1614 = vld [vmem:[%s1581 + $0x80] sm:$0xf]
  %v1615 = vld [vmem:[%s1581 + $0x84] sm:$0xf]
  %v1616 = vld [vmem:[%s1581 + $0x88] sm:$0xf]
  %v1617 = vld [vmem:[%s1581 + $0x8c] sm:$0xf]
  %v1618 = vld [vmem:[%s1581 + $0x90] sm:$0xf]
  %v1619 = vld [vmem:[%s1581 + $0x94] sm:$0xf]
  %v1620 = vld [vmem:[%s1581 + $0x98] sm:$0xf]
  %v1621 = vld [vmem:[%s1581 + $0x9c] sm:$0xf]
  %v1622 = vld [vmem:[%s1581 + $0xa0] sm:$0xf]
  %v1623 = vld [vmem:[%s1581 + $0xa4] sm:$0xf]
  %v1624 = vld [vmem:[%s1581 + $0xa8] sm:$0xf]
  %v1625 = vld [vmem:[%s1581 + $0xac] sm:$0xf]
  %v1626 = vld [vmem:[%s1581 + $0xb0] sm:$0xf]
  %v1627 = vld [vmem:[%s1581 + $0xb4] sm:$0xf]
  %v1628 = vld [vmem:[%s1581 + $0xb8] sm:$0xf]
  %v1629 = vld [vmem:[%s1581 + $0xbc] sm:$0xf]
  %v1630 = vld [vmem:[%s1581 + $0xc0] sm:$0xf]
  %v1631 = vld [vmem:[%s1581 + $0xc4] sm:$0xf]
  %v1682 = vunpack.c.l.b16 %v1582
  %v1683 = vunpack.c.l.b16 %v1583
  %v1684 = vunpack.c.l.b16 %v1584
  %v1685 = vunpack.c.l.b16 %v1585
  %v1686 = vunpack.c.l.b16 %v1586
  %v1687 = vunpack.c.l.b16 %v1587
  %v1688 = vunpack.c.l.b16 %v1588
  %v1689 = vunpack.c.l.b16 %v1589
  %v1690 = vunpack.c.l.b16 %v1590
  %v1691 = vunpack.c.l.b16 %v1591
  %v1692 = vunpack.c.l.b16 %v1592
  %v1693 = vunpack.c.l.b16 %v1593
  %v1694 = vunpack.c.l.b16 %v1594
  %v1695 = vunpack.c.l.b16 %v1595
  %v1696 = vunpack.c.l.b16 %v1596
  %v1697 = vunpack.c.l.b16 %v1597
  %v1698 = vunpack.c.l.b16 %v1598
  %v1699 = vunpack.c.l.b16 %v1599
  %v1700 = vunpack.c.l.b16 %v1600
  %v1701 = vunpack.c.l.b16 %v1601
  %v1702 = vunpack.c.l.b16 %v1602
  %v1703 = vunpack.c.l.b16 %v1603
  %v1704 = vunpack.c.l.b16 %v1604
  %v1705 = vunpack.c.l.b16 %v1605
  %v1706 = vunpack.c.l.b16 %v1606
  %v1707 = vunpack.c.l.b16 %v1607
  %v1708 = vunpack.c.l.b16 %v1608
  %v1709 = vunpack.c.l.b16 %v1609
  %v1710 = vunpack.c.l.b16 %v1610
  %v1711 = vunpack.c.l.b16 %v1611
  %v1712 = vunpack.c.l.b16 %v1612
  %v1713 = vunpack.c.l.b16 %v1613
  %v1714 = vunpack.c.l.b16 %v1614
  %v1715 = vunpack.c.l.b16 %v1615
  %v1716 = vunpack.c.l.b16 %v1616
  %v1717 = vunpack.c.l.b16 %v1617
  %v1718 = vunpack.c.l.b16 %v1618
  %v1719 = vunpack.c.l.b16 %v1619
  %v1720 = vunpack.c.l.b16 %v1620
  %v1721 = vunpack.c.l.b16 %v1621
  %v1722 = vunpack.c.l.b16 %v1622
  %v1723 = vunpack.c.l.b16 %v1623
  %v1724 = vunpack.c.l.b16 %v1624
  %v1725 = vunpack.c.l.b16 %v1625
  %v1726 = vunpack.c.l.b16 %v1626
  %v1727 = vunpack.c.l.b16 %v1627
  %v1728 = vunpack.c.l.b16 %v1628
  %v1729 = vunpack.c.l.b16 %v1629
  %v1730 = vunpack.c.l.b16 %v1630
  %v1731 = vunpack.c.l.b16 %v1631
  %v1732 = vpack.c.b16 %v1683, %v1682
  %v1733 = vpack.c.b16 %v1685, %v1684
  %v1734 = vpack.c.b16 %v1687, %v1686
  %v1735 = vpack.c.b16 %v1689, %v1688
  %v1736 = vpack.c.b16 %v1691, %v1690
  %v1737 = vpack.c.b16 %v1693, %v1692
  %v1738 = vpack.c.b16 %v1695, %v1694
  %v1739 = vpack.c.b16 %v1697, %v1696
  %v1740 = vpack.c.b16 %v1699, %v1698
  %v1741 = vpack.c.b16 %v1701, %v1700
  %v1742 = vpack.c.b16 %v1703, %v1702
  %v1743 = vpack.c.b16 %v1705, %v1704
  %v1744 = vpack.c.b16 %v1707, %v1706
  %v1745 = vpack.c.b16 %v1709, %v1708
  %v1746 = vpack.c.b16 %v1711, %v1710
  %v1747 = vpack.c.b16 %v1713, %v1712
  %v1748 = vpack.c.b16 %v1715, %v1714
  %v1749 = vpack.c.b16 %v1717, %v1716
  %v1750 = vpack.c.b16 %v1719, %v1718
  %v1751 = vpack.c.b16 %v1721, %v1720
  %v1752 = vpack.c.b16 %v1723, %v1722
  %v1753 = vpack.c.b16 %v1725, %v1724
  %v1754 = vpack.c.b16 %v1727, %v1726
  %v1755 = vpack.c.b16 %v1729, %v1728
  %v1756 = vpack.c.b16 %v1731, %v1730
  %v1758 = vsel %vm197, %v1732, 0
  %v1761 = vsel %vm197, %v1733, 0
  %v1764 = vsel %vm197, %v1734, 0
  %v1767 = vsel %vm197, %v1735, 0
  %v1770 = vsel %vm197, %v1736, 0
  %v1773 = vsel %vm197, %v1737, 0
  %v1776 = vsel %vm197, %v1738, 0
  %v1779 = vsel %vm197, %v1739, 0
  %v1782 = vsel %vm197, %v1740, 0
  %v1785 = vsel %vm197, %v1741, 0
  %v1788 = vsel %vm197, %v1742, 0
  %v1791 = vsel %vm197, %v1743, 0
  %v1794 = vsel %vm197, %v1744, 0
  %v1797 = vsel %vm197, %v1745, 0
  %v1800 = vsel %vm197, %v1746, 0
  %v1803 = vsel %vm197, %v1747, 0
  %v1806 = vsel %vm197, %v1748, 0
  %v1809 = vsel %vm197, %v1749, 0
  %v1812 = vsel %vm197, %v1750, 0
  %v1815 = vsel %vm197, %v1751, 0
  %v1818 = vsel %vm197, %v1752, 0
  %v1821 = vsel %vm197, %v1753, 0
  %v1824 = vsel %vm197, %v1754, 0
  %v1827 = vsel %vm197, %v1755, 0
  %v1830 = vsel %vm197, %v1756, 0
  %1832 = vmatprep.subr.bf16.mxu0 0
  %1833 = vmatpush1.bf16.msra.mxu0 %v278
  %1834 = vmatprep.subr.bf16.mxu0 0
  %1835 = vmatpush1.bf16.msra.mxu0 0
  %1836 = vmatprep.subr.bf16.mxu0 0
  %1837 = vmatpush1.bf16.msra.mxu0 0
  %1838 = vmatprep.subr.bf16.mxu0 0
  %1839 = vmatpush1.bf16.msra.mxu0 0
  %1840 = vmatprep.subr.bf16.mxu0 0
  %1841 = vmatpush1.bf16.msra.mxu0 0
  %1842 = vmatprep.subr.bf16.mxu0 0
  %1843 = vmatpush1.bf16.msra.mxu0 0
  %1844 = vmatprep.subr.bf16.mxu0 0
  %1845 = vmatpush1.bf16.msra.mxu0 0
  %1846 = vmatprep.subr.bf16.mxu0 0
  %1847 = vmatpush1.bf16.msra.mxu0 0
  %1848 = vmatprep.subr.bf16.mxu0 0
  %1849 = vmatpush1.bf16.msra.mxu0 0
  %1850 = vmatprep.subr.bf16.mxu0 0
  %1851 = vmatpush1.bf16.msra.mxu0 0
  %1852 = vmatprep.subr.bf16.mxu0 0
  %1853 = vmatpush1.bf16.msra.mxu0 0
  %1854 = vmatprep.subr.bf16.mxu0 0
  %1855 = vmatpush1.bf16.msra.mxu0 0
  %1856 = vmatprep.subr.bf16.mxu0 0
  %1857 = vmatpush1.bf16.msra.mxu0 0
  %1858 = vmatprep.subr.bf16.mxu0 0
  %1859 = vmatpush1.bf16.msra.mxu0 0
  %1860 = vmatprep.subr.bf16.mxu0 0
  %1861 = vmatpush1.bf16.msra.mxu0 0
  %1862 = vmatprep.subr.bf16.mxu0 0
  %1863 = vmatpush1.bf16.msra.mxu0 0
  %1864 = vmatprep.mubr.bf16.mxu0 0
  %1865 = vmatmul.mubr.bf16.gmra.mrb[0].mxu0 %v1758
  %v1866 = vpop.f32.mrb[0].mxu0
  %v1867 = vadd.f32 0.0, %v1866
  %v1868 = vpop.f32.mrb[0].mxu0
  %v1869 = vpop.f32.mrb[0].mxu0
  %v1870 = vadd.f32 0.0, %v1869
  %v1871 = vpop.f32.mrb[0].mxu0
  %1872 = vmatprep.mubr.bf16.mxu0 0
  %1873 = vmatmul.mubr.bf16.gmra.mrb[0].mxu0 %v1761
  %v1874 = vpop.f32.mrb[0].mxu0
  %v1875 = vadd.f32 0.0, %v1874
  %v1876 = vpop.f32.mrb[0].mxu0
  %v1877 = vpop.f32.mrb[0].mxu0
  %v1878 = vadd.f32 0.0, %v1877
  %v1879 = vpop.f32.mrb[0].mxu0
  %1880 = vmatprep.mubr.bf16.mxu0 0
  %1881 = vmatmul.mubr.bf16.gmra.mrb[0].mxu0 %v1764
  %v1882 = vpop.f32.mrb[0].mxu0
  %v1883 = vadd.f32 0.0, %v1882
  %v1884 = vpop.f32.mrb[0].mxu0
  %v1885 = vpop.f32.mrb[0].mxu0
  %v1886 = vadd.f32 0.0, %v1885
  %v1887 = vpop.f32.mrb[0].mxu0
  %1888 = vmatprep.mubr.bf16.mxu0 0
  %1889 = vmatmul.mubr.bf16.gmra.mrb[0].mxu0 %v1767
  %v1890 = vpop.f32.mrb[0].mxu0
  %v1891 = vadd.f32 0.0, %v1890
  %v1892 = vpop.f32.mrb[0].mxu0
  %v1893 = vpop.f32.mrb[0].mxu0
  %v1894 = vadd.f32 0.0, %v1893
  %v1895 = vpop.f32.mrb[0].mxu0
  %1896 = vmatprep.mubr.bf16.mxu0 0
  %1897 = vmatmul.mubr.bf16.gmra.mrb[0].mxu0 %v1770
  %v1898 = vpop.f32.mrb[0].mxu0
  %v1899 = vadd.f32 0.0, %v1898
  %v1900 = vpop.f32.mrb[0].mxu0
  %v1901 = vpop.f32.mrb[0].mxu0
  %v1902 = vadd.f32 0.0, %v1901
  %v1903 = vpop.f32.mrb[0].mxu0
  %1904 = vmatprep.mubr.bf16.mxu0 0
  %1905 = vmatmul.mubr.bf16.gmra.mrb[0].mxu0 %v1773
  %v1906 = vpop.f32.mrb[0].mxu0
  %v1907 = vadd.f32 0.0, %v1906
  %v1908 = vpop.f32.mrb[0].mxu0
  %v1909 = vpop.f32.mrb[0].mxu0
  %v1910 = vadd.f32 0.0, %v1909
  %v1911 = vpop.f32.mrb[0].mxu0
  %1912 = vmatprep.mubr.bf16.mxu0 0
  %1913 = vmatmul.mubr.bf16.gmra.mrb[0].mxu0 %v1776
  %v1914 = vpop.f32.mrb[0].mxu0
  %v1915 = vadd.f32 0.0, %v1914
  %v1916 = vpop.f32.mrb[0].mxu0
  %v1917 = vpop.f32.mrb[0].mxu0
  %v1918 = vadd.f32 0.0, %v1917
  %v1919 = vpop.f32.mrb[0].mxu0
  %1920 = vmatprep.mubr.bf16.mxu0 0
  %1921 = vmatmul.mubr.bf16.gmra.mrb[0].mxu0 %v1779
  %v1922 = vpop.f32.mrb[0].mxu0
  %v1923 = vadd.f32 0.0, %v1922
  %v1924 = vpop.f32.mrb[0].mxu0
  %v1925 = vpop.f32.mrb[0].mxu0
  %v1926 = vadd.f32 0.0, %v1925
  %v1927 = vpop.f32.mrb[0].mxu0
  %1928 = vmatprep.mubr.bf16.mxu0 0
  %1929 = vmatmul.mubr.bf16.gmra.mrb[0].mxu0 %v1782
  %v1930 = vpop.f32.mrb[0].mxu0
  %v1931 = vadd.f32 0.0, %v1930
  %v1932 = vpop.f32.mrb[0].mxu0
  %v1933 = vpop.f32.mrb[0].mxu0
  %v1934 = vadd.f32 0.0, %v1933
  %v1935 = vpop.f32.mrb[0].mxu0
  %1936 = vmatprep.mubr.bf16.mxu0 0
  %1937 = vmatmul.mubr.bf16.gmra.mrb[0].mxu0 %v1785
  %v1938 = vpop.f32.mrb[0].mxu0
  %v1939 = vadd.f32 0.0, %v1938
  %v1940 = vpop.f32.mrb[0].mxu0
  %v1941 = vpop.f32.mrb[0].mxu0
  %v1942 = vadd.f32 0.0, %v1941
  %v1943 = vpop.f32.mrb[0].mxu0
  %1944 = vmatprep.mubr.bf16.mxu0 0
  %1945 = vmatmul.mubr.bf16.gmra.mrb[0].mxu0 %v1788
  %v1946 = vpop.f32.mrb[0].mxu0
  %v1947 = vadd.f32 0.0, %v1946
  %v1948 = vpop.f32.mrb[0].mxu0
  %v1949 = vpop.f32.mrb[0].mxu0
  %v1950 = vadd.f32 0.0, %v1949
  %v1951 = vpop.f32.mrb[0].mxu0
  %1952 = vmatprep.mubr.bf16.mxu0 0
  %1953 = vmatmul.mubr.bf16.gmra.mrb[0].mxu0 %v1791
  %v1954 = vpop.f32.mrb[0].mxu0
  %v1955 = vadd.f32 0.0, %v1954
  %v1956 = vpop.f32.mrb[0].mxu0
  %v1957 = vpop.f32.mrb[0].mxu0
  %v1958 = vadd.f32 0.0, %v1957
  %v1959 = vpop.f32.mrb[0].mxu0
  %1960 = vmatprep.mubr.bf16.mxu0 0
  %1961 = vmatmul.mubr.bf16.gmra.mrb[0].mxu0 %v1794
  %v1962 = vpop.f32.mrb[0].mxu0
  %v1963 = vadd.f32 0.0, %v1962
  %v1964 = vpop.f32.mrb[0].mxu0
  %v1965 = vpop.f32.mrb[0].mxu0
  %v1966 = vadd.f32 0.0, %v1965
  %v1967 = vpop.f32.mrb[0].mxu0
  %1968 = vmatprep.mubr.bf16.mxu0 0
  %1969 = vmatmul.mubr.bf16.gmra.mrb[0].mxu0 %v1797
  %v1970 = vpop.f32.mrb[0].mxu0
  %v1971 = vadd.f32 0.0, %v1970
  %v1972 = vpop.f32.mrb[0].mxu0
  %v1973 = vpop.f32.mrb[0].mxu0
  %v1974 = vadd.f32 0.0, %v1973
  %v1975 = vpop.f32.mrb[0].mxu0
  %1976 = vmatprep.mubr.bf16.mxu0 0
  %1977 = vmatmul.mubr.bf16.gmra.mrb[0].mxu0 %v1800
  %v1978 = vpop.f32.mrb[0].mxu0
  %v1979 = vadd.f32 0.0, %v1978
  %v1980 = vpop.f32.mrb[0].mxu0
  %v1981 = vpop.f32.mrb[0].mxu0
  %v1982 = vadd.f32 0.0, %v1981
  %v1983 = vpop.f32.mrb[0].mxu0
  %1984 = vmatprep.mubr.bf16.mxu0 0
  %1985 = vmatmul.mubr.bf16.gmra.mrb[0].mxu0 %v1803
  %v1986 = vpop.f32.mrb[0].mxu0
  %v1987 = vadd.f32 0.0, %v1986
  %v1988 = vpop.f32.mrb[0].mxu0
  %v1989 = vpop.f32.mrb[0].mxu0
  %v1990 = vadd.f32 0.0, %v1989
  %v1991 = vpop.f32.mrb[0].mxu0
  %1992 = vmatprep.mubr.bf16.mxu0 0
  %1993 = vmatmul.mubr.bf16.gmra.mrb[0].mxu0 %v1806
  %v1994 = vpop.f32.mrb[0].mxu0
  %v1995 = vadd.f32 0.0, %v1994
  %v1996 = vpop.f32.mrb[0].mxu0
  %v1997 = vpop.f32.mrb[0].mxu0
  %v1998 = vadd.f32 0.0, %v1997
  %v1999 = vpop.f32.mrb[0].mxu0
  %2000 = vmatprep.mubr.bf16.mxu0 0
  %2001 = vmatmul.mubr.bf16.gmra.mrb[0].mxu0 %v1809
  %v2002 = vpop.f32.mrb[0].mxu0
  %v2003 = vadd.f32 0.0, %v2002
  %v2004 = vpop.f32.mrb[0].mxu0
  %v2005 = vpop.f32.mrb[0].mxu0
  %v2006 = vadd.f32 0.0, %v2005
  %v2007 = vpop.f32.mrb[0].mxu0
  %2008 = vmatprep.mubr.bf16.mxu0 0
  %2009 = vmatmul.mubr.bf16.gmra.mrb[0].mxu0 %v1812
  %v2010 = vpop.f32.mrb[0].mxu0
  %v2011 = vadd.f32 0.0, %v2010
  %v2012 = vpop.f32.mrb[0].mxu0
  %v2013 = vpop.f32.mrb[0].mxu0
  %v2014 = vadd.f32 0.0, %v2013
  %v2015 = vpop.f32.mrb[0].mxu0
  %2016 = vmatprep.mubr.bf16.mxu0 0
  %2017 = vmatmul.mubr.bf16.gmra.mrb[0].mxu0 %v1815
  %v2018 = vpop.f32.mrb[0].mxu0
  %v2019 = vadd.f32 0.0, %v2018
  %v2020 = vpop.f32.mrb[0].mxu0
  %v2021 = vpop.f32.mrb[0].mxu0
  %v2022 = vadd.f32 0.0, %v2021
  %v2023 = vpop.f32.mrb[0].mxu0
  %2024 = vmatprep.mubr.bf16.mxu0 0
  %2025 = vmatmul.mubr.bf16.gmra.mrb[0].mxu0 %v1818
  %v2026 = vpop.f32.mrb[0].mxu0
  %v2027 = vadd.f32 0.0, %v2026
  %v2028 = vpop.f32.mrb[0].mxu0
  %v2029 = vpop.f32.mrb[0].mxu0
  %v2030 = vadd.f32 0.0, %v2029
  %v2031 = vpop.f32.mrb[0].mxu0
  %2032 = vmatprep.mubr.bf16.mxu0 0
  %2033 = vmatmul.mubr.bf16.gmra.mrb[0].mxu0 %v1821
  %v2034 = vpop.f32.mrb[0].mxu0
  %v2035 = vadd.f32 0.0, %v2034
  %v2036 = vpop.f32.mrb[0].mxu0
  %v2037 = vpop.f32.mrb[0].mxu0
  %v2038 = vadd.f32 0.0, %v2037
  %v2039 = vpop.f32.mrb[0].mxu0
  %2040 = vmatprep.mubr.bf16.mxu0 0
  %2041 = vmatmul.mubr.bf16.gmra.mrb[0].mxu0 %v1824
  %v2042 = vpop.f32.mrb[0].mxu0
  %v2043 = vadd.f32 0.0, %v2042
  %v2044 = vpop.f32.mrb[0].mxu0
  %v2045 = vpop.f32.mrb[0].mxu0
  %v2046 = vadd.f32 0.0, %v2045
  %v2047 = vpop.f32.mrb[0].mxu0
  %2048 = vmatprep.mubr.bf16.mxu0 0
  %2049 = vmatmul.mubr.bf16.gmra.mrb[0].mxu0 %v1827
  %v2050 = vpop.f32.mrb[0].mxu0
  %v2051 = vadd.f32 0.0, %v2050
  %v2052 = vpop.f32.mrb[0].mxu0
  %v2053 = vpop.f32.mrb[0].mxu0
  %v2054 = vadd.f32 0.0, %v2053
  %v2055 = vpop.f32.mrb[0].mxu0
  %2056 = vmatprep.mubr.bf16.mxu0 0
  %2057 = vmatmul.mubr.bf16.gmra.mrb[0].mxu0 %v1830
  %v2058 = vpop.f32.mrb[0].mxu0
  %v2059 = vadd.f32 0.0, %v2058
  %v2060 = vpop.f32.mrb[0].mxu0
  %v2061 = vpop.f32.mrb[0].mxu0
  %v2062 = vadd.f32 0.0, %v2061
  %v2063 = vpop.f32.mrb[0].mxu0
  %2064 = vdwg.mxu0
  %v2065 = vmax.f32 %v1531, %v1867
  %v2066 = vmax.f32 %v1532, %v1870
  %v2067 = vmax.f32 %v1533, %v1875
  %v2068 = vmax.f32 %v1534, %v1878
  %v2069 = vmax.f32 %v1535, %v1883
  %v2070 = vmax.f32 %v1536, %v1886
  %v2071 = vmax.f32 %v1537, %v1891
  %v2072 = vmax.f32 %v1538, %v1894
  %v2073 = vmax.f32 %v1539, %v1899
  %v2074 = vmax.f32 %v1540, %v1902
  %v2075 = vmax.f32 %v1541, %v1907
  %v2076 = vmax.f32 %v1542, %v1910
  %v2077 = vmax.f32 %v1543, %v1915
  %v2078 = vmax.f32 %v1544, %v1918
  %v2079 = vmax.f32 %v1545, %v1923
  %v2080 = vmax.f32 %v1546, %v1926
  %v2081 = vmax.f32 %v1547, %v1931
  %v2082 = vmax.f32 %v1548, %v1934
  %v2083 = vmax.f32 %v1549, %v1939
  %v2084 = vmax.f32 %v1550, %v1942
  %v2085 = vmax.f32 %v1551, %v1947
  %v2086 = vmax.f32 %v1552, %v1950
  %v2087 = vmax.f32 %v1553, %v1955
  %v2088 = vmax.f32 %v1554, %v1958
  %v2089 = vmax.f32 %v1555, %v1963
  %v2090 = vmax.f32 %v1556, %v1966
  %v2091 = vmax.f32 %v1557, %v1971
  %v2092 = vmax.f32 %v1558, %v1974
  %v2093 = vmax.f32 %v1559, %v1979
  %v2094 = vmax.f32 %v1560, %v1982
  %v2095 = vmax.f32 %v1561, %v1987
  %v2096 = vmax.f32 %v1562, %v1990
  %v2097 = vmax.f32 %v1563, %v1995
  %v2098 = vmax.f32 %v1564, %v1998
  %v2099 = vmax.f32 %v1565, %v2003
  %v2100 = vmax.f32 %v1566, %v2006
  %v2101 = vmax.f32 %v1567, %v2011
  %v2102 = vmax.f32 %v1568, %v2014
  %v2103 = vmax.f32 %v1569, %v2019
  %v2104 = vmax.f32 %v1570, %v2022
  %v2105 = vmax.f32 %v1571, %v2027
  %v2106 = vmax.f32 %v1572, %v2030
  %v2107 = vmax.f32 %v1573, %v2035
  %v2108 = vmax.f32 %v1574, %v2038
  %v2109 = vmax.f32 %v1575, %v2043
  %v2110 = vmax.f32 %v1576, %v2046
  %v2111 = vmax.f32 %v1577, %v2051
  %v2112 = vmax.f32 %v1578, %v2054
  %v2113 = vmax.f32 %v1579, %v2059
  %v2114 = vmax.f32 %v1580, %v2062
  %v2115 = vld [vmem:[%s2] sm:$0x1]
  %v2117 = vlaneseq
  %v2118 = vshrl.u32 %v2117, 7
  %v2119 = vsub.s32 0, %v2118
  %v2120 = vrot.slane %v2115, %v2119
  %v2122 = vadd.f32 %v2065, %v2120
  %v2123 = vadd.f32 %v2066, %v2120
  %v2124 = vadd.f32 %v2067, %v2120
  %v2125 = vadd.f32 %v2068, %v2120
  %v2126 = vadd.f32 %v2069, %v2120
  %v2127 = vadd.f32 %v2070, %v2120
  %v2128 = vadd.f32 %v2071, %v2120
  %v2129 = vadd.f32 %v2072, %v2120
  %v2130 = vadd.f32 %v2073, %v2120
  %v2131 = vadd.f32 %v2074, %v2120
  %v2132 = vadd.f32 %v2075, %v2120
  %v2133 = vadd.f32 %v2076, %v2120
  %v2134 = vadd.f32 %v2077, %v2120
  %v2135 = vadd.f32 %v2078, %v2120
  %v2136 = vadd.f32 %v2079, %v2120
  %v2137 = vadd.f32 %v2080, %v2120
  %v2138 = vadd.f32 %v2081, %v2120
  %v2139 = vadd.f32 %v2082, %v2120
  %v2140 = vadd.f32 %v2083, %v2120
  %v2141 = vadd.f32 %v2084, %v2120
  %v2142 = vadd.f32 %v2085, %v2120
  %v2143 = vadd.f32 %v2086, %v2120
  %v2144 = vadd.f32 %v2087, %v2120
  %v2145 = vadd.f32 %v2088, %v2120
  %v2146 = vadd.f32 %v2089, %v2120
  %v2147 = vadd.f32 %v2090, %v2120
  %v2148 = vadd.f32 %v2091, %v2120
  %v2149 = vadd.f32 %v2092, %v2120
  %v2150 = vadd.f32 %v2093, %v2120
  %v2151 = vadd.f32 %v2094, %v2120
  %v2152 = vadd.f32 %v2095, %v2120
  %v2153 = vadd.f32 %v2096, %v2120
  %v2154 = vadd.f32 %v2097, %v2120
  %v2155 = vadd.f32 %v2098, %v2120
  %v2156 = vadd.f32 %v2099, %v2120
  %v2157 = vadd.f32 %v2100, %v2120
  %v2158 = vadd.f32 %v2101, %v2120
  %v2159 = vadd.f32 %v2102, %v2120
  %v2160 = vadd.f32 %v2103, %v2120
  %v2161 = vadd.f32 %v2104, %v2120
  %v2162 = vadd.f32 %v2105, %v2120
  %v2163 = vadd.f32 %v2106, %v2120
  %v2164 = vadd.f32 %v2107, %v2120
  %v2165 = vadd.f32 %v2108, %v2120
  %v2166 = vadd.f32 %v2109, %v2120
  %v2167 = vadd.f32 %v2110, %v2120
  %v2168 = vadd.f32 %v2111, %v2120
  %v2169 = vadd.f32 %v2112, %v2120
  %v2170 = vadd.f32 %v2113, %v2120
  %v2171 = vadd.f32 %v2114, %v2120
  %v2172 = vmax.f32 %v2122, 0.0
  %v2173 = vmax.f32 %v2123, 0.0
  %v2174 = vmax.f32 %v2124, 0.0
  %v2175 = vmax.f32 %v2125, 0.0
  %v2176 = vmax.f32 %v2126, 0.0
  %v2177 = vmax.f32 %v2127, 0.0
  %v2178 = vmax.f32 %v2128, 0.0
  %v2179 = vmax.f32 %v2129, 0.0
  %v2180 = vmax.f32 %v2130, 0.0
  %v2181 = vmax.f32 %v2131, 0.0
  %v2182 = vmax.f32 %v2132, 0.0
  %v2183 = vmax.f32 %v2133, 0.0
  %v2184 = vmax.f32 %v2134, 0.0
  %v2185 = vmax.f32 %v2135, 0.0
  %v2186 = vmax.f32 %v2136, 0.0
  %v2187 = vmax.f32 %v2137, 0.0
  %v2188 = vmax.f32 %v2138, 0.0
  %v2189 = vmax.f32 %v2139, 0.0
  %v2190 = vmax.f32 %v2140, 0.0
  %v2191 = vmax.f32 %v2141, 0.0
  %v2192 = vmax.f32 %v2142, 0.0
  %v2193 = vmax.f32 %v2143, 0.0
  %v2194 = vmax.f32 %v2144, 0.0
  %v2195 = vmax.f32 %v2145, 0.0
  %v2196 = vmax.f32 %v2146, 0.0
  %v2197 = vmax.f32 %v2147, 0.0
  %v2198 = vmax.f32 %v2148, 0.0
  %v2199 = vmax.f32 %v2149, 0.0
  %v2200 = vmax.f32 %v2150, 0.0
  %v2201 = vmax.f32 %v2151, 0.0
  %v2202 = vmax.f32 %v2152, 0.0
  %v2203 = vmax.f32 %v2153, 0.0
  %v2204 = vmax.f32 %v2154, 0.0
  %v2205 = vmax.f32 %v2155, 0.0
  %v2206 = vmax.f32 %v2156, 0.0
  %v2207 = vmax.f32 %v2157, 0.0
  %v2208 = vmax.f32 %v2158, 0.0
  %v2209 = vmax.f32 %v2159, 0.0
  %v2210 = vmax.f32 %v2160, 0.0
  %v2211 = vmax.f32 %v2161, 0.0
  %v2212 = vmax.f32 %v2162, 0.0
  %v2213 = vmax.f32 %v2163, 0.0
  %v2214 = vmax.f32 %v2164, 0.0
  %v2215 = vmax.f32 %v2165, 0.0
  %v2216 = vmax.f32 %v2166, 0.0
  %v2217 = vmax.f32 %v2167, 0.0
  %v2218 = vmax.f32 %v2168, 0.0
  %v2219 = vmax.f32 %v2169, 0.0
  %v2220 = vmax.f32 %v2170, 0.0
  %v2221 = vmax.f32 %v2171, 0.0
  %v2222 = vpack.c.bf16 %v2173, %v2172
  %v2223 = vpack.c.bf16 %v2175, %v2174
  %v2224 = vpack.c.bf16 %v2177, %v2176
  %v2225 = vpack.c.bf16 %v2179, %v2178
  %v2226 = vpack.c.bf16 %v2181, %v2180
  %v2227 = vpack.c.bf16 %v2183, %v2182
  %v2228 = vpack.c.bf16 %v2185, %v2184
  %v2229 = vpack.c.bf16 %v2187, %v2186
  %v2230 = vpack.c.bf16 %v2189, %v2188
  %v2231 = vpack.c.bf16 %v2191, %v2190
  %v2232 = vpack.c.bf16 %v2193, %v2192
  %v2233 = vpack.c.bf16 %v2195, %v2194
  %v2234 = vpack.c.bf16 %v2197, %v2196
  %v2235 = vpack.c.bf16 %v2199, %v2198
  %v2236 = vpack.c.bf16 %v2201, %v2200
  %v2237 = vpack.c.bf16 %v2203, %v2202
  %v2238 = vpack.c.bf16 %v2205, %v2204
  %v2239 = vpack.c.bf16 %v2207, %v2206
  %v2240 = vpack.c.bf16 %v2209, %v2208
  %v2241 = vpack.c.bf16 %v2211, %v2210
  %v2242 = vpack.c.bf16 %v2213, %v2212
  %v2243 = vpack.c.bf16 %v2215, %v2214
  %v2244 = vpack.c.bf16 %v2217, %v2216
  %v2245 = vpack.c.bf16 %v2219, %v2218
  %v2246 = vpack.c.bf16 %v2221, %v2220
  %v2272 = vunpack.c.l.b16 %v2222
  %v2273 = vunpack.c.h.b16 %v2222
  %v2274 = vunpack.c.l.b16 %v2223
  %v2275 = vunpack.c.h.b16 %v2223
  %v2276 = vunpack.c.l.b16 %v2224
  %v2277 = vunpack.c.h.b16 %v2224
  %v2278 = vunpack.c.l.b16 %v2225
  %v2279 = vunpack.c.h.b16 %v2225
  %v2280 = vunpack.c.l.b16 %v2226
  %v2281 = vunpack.c.h.b16 %v2226
  %v2282 = vunpack.c.l.b16 %v2227
  %v2283 = vunpack.c.h.b16 %v2227
  %v2284 = vunpack.c.l.b16 %v2228
  %v2285 = vunpack.c.h.b16 %v2228
  %v2286 = vunpack.c.l.b16 %v2229
  %v2287 = vunpack.c.h.b16 %v2229
  %v2288 = vunpack.c.l.b16 %v2230
  %v2289 = vunpack.c.h.b16 %v2230
  %v2290 = vunpack.c.l.b16 %v2231
  %v2291 = vunpack.c.h.b16 %v2231
  %v2292 = vunpack.c.l.b16 %v2232
  %v2293 = vunpack.c.h.b16 %v2232
  %v2294 = vunpack.c.l.b16 %v2233
  %v2295 = vunpack.c.h.b16 %v2233
  %v2296 = vunpack.c.l.b16 %v2234
  %v2297 = vunpack.c.h.b16 %v2234
  %v2298 = vunpack.c.l.b16 %v2235
  %v2299 = vunpack.c.h.b16 %v2235
  %v2300 = vunpack.c.l.b16 %v2236
  %v2301 = vunpack.c.h.b16 %v2236
  %v2302 = vunpack.c.l.b16 %v2237
  %v2303 = vunpack.c.h.b16 %v2237
  %v2304 = vunpack.c.l.b16 %v2238
  %v2305 = vunpack.c.h.b16 %v2238
  %v2306 = vunpack.c.l.b16 %v2239
  %v2307 = vunpack.c.h.b16 %v2239
  %v2308 = vunpack.c.l.b16 %v2240
  %v2309 = vunpack.c.h.b16 %v2240
  %v2310 = vunpack.c.l.b16 %v2241
  %v2311 = vunpack.c.h.b16 %v2241
  %v2312 = vunpack.c.l.b16 %v2242
  %v2313 = vunpack.c.h.b16 %v2242
  %v2314 = vunpack.c.l.b16 %v2243
  %v2315 = vunpack.c.h.b16 %v2243
  %v2316 = vunpack.c.l.b16 %v2244
  %v2317 = vunpack.c.h.b16 %v2244
  %v2318 = vunpack.c.l.b16 %v2245
  %v2319 = vunpack.c.h.b16 %v2245
  %v2320 = vunpack.c.l.b16 %v2246
  %v2321 = vunpack.c.h.b16 %v2246
  %v2322 = vpack.c.b16 %v2272, %v2272
  %v2323 = vpack.c.b16 %v2273, %v2273
  %v2324 = vpack.c.b16 %v2274, %v2274
  %v2325 = vpack.c.b16 %v2275, %v2275
  %v2326 = vpack.c.b16 %v2276, %v2276
  %v2327 = vpack.c.b16 %v2277, %v2277
  %v2328 = vpack.c.b16 %v2278, %v2278
  %v2329 = vpack.c.b16 %v2279, %v2279
  %v2330 = vpack.c.b16 %v2280, %v2280
  %v2331 = vpack.c.b16 %v2281, %v2281
  %v2332 = vpack.c.b16 %v2282, %v2282
  %v2333 = vpack.c.b16 %v2283, %v2283
  %v2334 = vpack.c.b16 %v2284, %v2284
  %v2335 = vpack.c.b16 %v2285, %v2285
  %v2336 = vpack.c.b16 %v2286, %v2286
  %v2337 = vpack.c.b16 %v2287, %v2287
  %v2338 = vpack.c.b16 %v2288, %v2288
  %v2339 = vpack.c.b16 %v2289, %v2289
  %v2340 = vpack.c.b16 %v2290, %v2290
  %v2341 = vpack.c.b16 %v2291, %v2291
  %v2342 = vpack.c.b16 %v2292, %v2292
  %v2343 = vpack.c.b16 %v2293, %v2293
  %v2344 = vpack.c.b16 %v2294, %v2294
  %v2345 = vpack.c.b16 %v2295, %v2295
  %v2346 = vpack.c.b16 %v2296, %v2296
  %v2347 = vpack.c.b16 %v2297, %v2297
  %v2348 = vpack.c.b16 %v2298, %v2298
  %v2349 = vpack.c.b16 %v2299, %v2299
  %v2350 = vpack.c.b16 %v2300, %v2300
  %v2351 = vpack.c.b16 %v2301, %v2301
  %v2352 = vpack.c.b16 %v2302, %v2302
  %v2353 = vpack.c.b16 %v2303, %v2303
  %v2354 = vpack.c.b16 %v2304, %v2304
  %v2355 = vpack.c.b16 %v2305, %v2305
  %v2356 = vpack.c.b16 %v2306, %v2306
  %v2357 = vpack.c.b16 %v2307, %v2307
  %v2358 = vpack.c.b16 %v2308, %v2308
  %v2359 = vpack.c.b16 %v2309, %v2309
  %v2360 = vpack.c.b16 %v2310, %v2310
  %v2361 = vpack.c.b16 %v2311, %v2311
  %v2362 = vpack.c.b16 %v2312, %v2312
  %v2363 = vpack.c.b16 %v2313, %v2313
  %v2364 = vpack.c.b16 %v2314, %v2314
  %v2365 = vpack.c.b16 %v2315, %v2315
  %v2366 = vpack.c.b16 %v2316, %v2316
  %v2367 = vpack.c.b16 %v2317, %v2317
  %v2368 = vpack.c.b16 %v2318, %v2318
  %v2369 = vpack.c.b16 %v2319, %v2319
  %v2370 = vpack.c.b16 %v2320, %v2320
  %v2371 = vpack.c.b16 %v2321, %v2321
  %2422 = vst [vmem:[%s3] sm:$0xf] %v2322
  %2423 = vst [vmem:[%s3 + $0x4] sm:$0xf] %v2323
  %2424 = vst [vmem:[%s3 + $0x8] sm:$0xf] %v2324
  %2425 = vst [vmem:[%s3 + $0xc] sm:$0xf] %v2325
  %2426 = vst [vmem:[%s3 + $0x10] sm:$0xf] %v2326
  %2427 = vst [vmem:[%s3 + $0x14] sm:$0xf] %v2327
  %2428 = vst [vmem:[%s3 + $0x18] sm:$0xf] %v2328
  %2429 = vst [vmem:[%s3 + $0x1c] sm:$0xf] %v2329
  %2430 = vst [vmem:[%s3 + $0x20] sm:$0xf] %v2330
  %2431 = vst [vmem:[%s3 + $0x24] sm:$0xf] %v2331
  %2432 = vst [vmem:[%s3 + $0x28] sm:$0xf] %v2332
  %2433 = vst [vmem:[%s3 + $0x2c] sm:$0xf] %v2333
  %2434 = vst [vmem:[%s3 + $0x30] sm:$0xf] %v2334
  %2435 = vst [vmem:[%s3 + $0x34] sm:$0xf] %v2335
  %2436 = vst [vmem:[%s3 + $0x38] sm:$0xf] %v2336
  %2437 = vst [vmem:[%s3 + $0x3c] sm:$0xf] %v2337
  %2438 = vst [vmem:[%s3 + $0x40] sm:$0xf] %v2338
  %2439 = vst [vmem:[%s3 + $0x44] sm:$0xf] %v2339
  %2440 = vst [vmem:[%s3 + $0x48] sm:$0xf] %v2340
  %2441 = vst [vmem:[%s3 + $0x4c] sm:$0xf] %v2341
  %2442 = vst [vmem:[%s3 + $0x50] sm:$0xf] %v2342
  %2443 = vst [vmem:[%s3 + $0x54] sm:$0xf] %v2343
  %2444 = vst [vmem:[%s3 + $0x58] sm:$0xf] %v2344
  %2445 = vst [vmem:[%s3 + $0x5c] sm:$0xf] %v2345
  %2446 = vst [vmem:[%s3 + $0x60] sm:$0xf] %v2346
  %2447 = vst [vmem:[%s3 + $0x64] sm:$0xf] %v2347
  %2448 = vst [vmem:[%s3 + $0x68] sm:$0xf] %v2348
  %2449 = vst [vmem:[%s3 + $0x6c] sm:$0xf] %v2349
  %2450 = vst [vmem:[%s3 + $0x70] sm:$0xf] %v2350
  %2451 = vst [vmem:[%s3 + $0x74] sm:$0xf] %v2351
  %2452 = vst [vmem:[%s3 + $0x78] sm:$0xf] %v2352
  %2453 = vst [vmem:[%s3 + $0x7c] sm:$0xf] %v2353
  %2454 = vst [vmem:[%s3 + $0x80] sm:$0xf] %v2354
  %2455 = vst [vmem:[%s3 + $0x84] sm:$0xf] %v2355
  %2456 = vst [vmem:[%s3 + $0x88] sm:$0xf] %v2356
  %2457 = vst [vmem:[%s3 + $0x8c] sm:$0xf] %v2357
  %2458 = vst [vmem:[%s3 + $0x90] sm:$0xf] %v2358
  %2459 = vst [vmem:[%s3 + $0x94] sm:$0xf] %v2359
  %2460 = vst [vmem:[%s3 + $0x98] sm:$0xf] %v2360
  %2461 = vst [vmem:[%s3 + $0x9c] sm:$0xf] %v2361
  %2462 = vst [vmem:[%s3 + $0xa0] sm:$0xf] %v2362
  %2463 = vst [vmem:[%s3 + $0xa4] sm:$0xf] %v2363
  %2464 = vst [vmem:[%s3 + $0xa8] sm:$0xf] %v2364
  %2465 = vst [vmem:[%s3 + $0xac] sm:$0xf] %v2365
  %2466 = vst [vmem:[%s3 + $0xb0] sm:$0xf] %v2366
  %2467 = vst [vmem:[%s3 + $0xb4] sm:$0xf] %v2367
  %2468 = vst [vmem:[%s3 + $0xb8] sm:$0xf] %v2368
  %2469 = vst [vmem:[%s3 + $0xbc] sm:$0xf] %v2369
  %2470 = vst [vmem:[%s3 + $0xc0] sm:$0xf] %v2370
  %2471 = vst [vmem:[%s3 + $0xc4] sm:$0xf] %v2371
  // Predicated region
  $region14: #{cnn_forward.3} parent=0 // pred_check
    _
  $region15: #{cnn_forward.3} parent=0 // pred_check_branch
    %2473 = sbr.rel (0) target = $region17
  $region16: #{cnn_forward.3} parent=0 // pred_region
    _
  $region17: #{cnn_forward.3} parent=0 // pred_fallthru
    _
  // Predicated region
  $region18: #{cnn_forward.3} parent=0 // pred_check
    _
  $region19: #{cnn_forward.3} parent=0 // pred_check_branch
    %2475 = sbr.rel (0) target = $region21
  $region20: #{cnn_forward.3} parent=0 // pred_region
    _
  $region21: #{cnn_forward.3} parent=0 // pred_fallthru
    _

// kernel: cnn_forward.5
$region0: #{cnn_forward.5}
  #allocation0 [shape = 'u32[]', space=smem, size = 0x4, offset = 0x4, fixed_abs, tag = 'smem constant byte address 0x4 - core index']
  #allocation1 [shape = 'u32[144,128]{1,0:T(1,128)}', space=vmem, size = 0x12000, scoped, tag = 'internal scratch']
  %s0 = inlined_call_operand.vmem [shape: bf16[16,3136], index: 0, kind: input, shape index: {}]
  %s1 = inlined_call_operand.vmem [shape: bf16[3136,128], index: 1, kind: input, shape index: {}]
  %s2 = inlined_call_operand.vmem [shape: f32[1,128], index: 2, kind: input, shape index: {}]
  %s3 = inlined_call_operand.vmem [shape: bf16[128,128], index: 3, kind: input, shape index: {}]
  %s4 = inlined_call_operand.vmem [shape: f32[1,128], index: 4, kind: input, shape index: {}]
  %s5 = inlined_call_operand.vmem [shape: f32[16,128], index: 5, kind: output, shape index: {}]
  %s6 = sld [smem:[#allocation0]]
  $region30: #{cnn_forward.5} parent=0
    _
  %s8 = ssub.s32 1, %s6
  %s9 = scalar_select 0, %s8, %s6
  // Predicated region
  $region2: #{cnn_forward.5} parent=0 // pred_check
    _
  $region3: #{cnn_forward.5} parent=0 // pred_check_branch
    %11 = sbr.rel (0) target = $region5
  $region4: #{cnn_forward.5} parent=0 // pred_region
    _
  $region5: #{cnn_forward.5} parent=0 // pred_fallthru
    _
  // Predicated region
  $region6: #{cnn_forward.5} parent=0 // pred_check
    _
  $region7: #{cnn_forward.5} parent=0 // pred_check_branch
    %13 = sbr.rel (0) target = $region9
  $region8: #{cnn_forward.5} parent=0 // pred_region
    _
  $region9: #{cnn_forward.5} parent=0 // pred_fallthru
    _
  // Predicated region
  $region10: #{cnn_forward.5} parent=0 // pred_check
    _
  $region11: #{cnn_forward.5} parent=0 // pred_check_branch
    %15 = sbr.rel (0) target = $region13
  $region12: #{cnn_forward.5} parent=0 // pred_region
    _
  $region13: #{cnn_forward.5} parent=0 // pred_fallthru
    _
  // Predicated region
  $region14: #{cnn_forward.5} parent=0 // pred_check
    _
  $region15: #{cnn_forward.5} parent=0 // pred_check_branch
    %17 = sbr.rel (0) target = $region17
  $region16: #{cnn_forward.5} parent=0 // pred_region
    _
  $region17: #{cnn_forward.5} parent=0 // pred_fallthru
    _
  // Predicated region
  $region18: #{cnn_forward.5} parent=0 // pred_check
    _
  $region19: #{cnn_forward.5} parent=0 // pred_check_branch
    %19 = sbr.rel (0) target = $region21
  $region20: #{cnn_forward.5} parent=0 // pred_region
    _
  $region21: #{cnn_forward.5} parent=0 // pred_fallthru
    _
  %v21 = vld [vmem:[%s0] sm:$0xff]
  %v22 = vld [vmem:[%s0 + $0x8] sm:$0xff]
  %v23 = vld [vmem:[%s0 + $0x10] sm:$0xff]
  %v24 = vld [vmem:[%s0 + $0x18] sm:$0xff]
  %v25 = vld [vmem:[%s0 + $0x20] sm:$0xff]
  %v26 = vld [vmem:[%s0 + $0x28] sm:$0xff]
  %v27 = vld [vmem:[%s0 + $0x30] sm:$0xff]
  %v28 = vld [vmem:[%s0 + $0x38] sm:$0xff]
  %v29 = vld [vmem:[%s0 + $0x40] sm:$0xff]
  %v30 = vld [vmem:[%s0 + $0x48] sm:$0xff]
  %v31 = vld [vmem:[%s0 + $0x50] sm:$0xff]
  %v32 = vld [vmem:[%s0 + $0x58] sm:$0xff]
  %v33 = vld [vmem:[%s0 + $0x60] sm:$0xf]
  %v34 = vld [vmem:[%s0 + $0x64] sm:$0xff]
  %v35 = vld [vmem:[%s0 + $0x6c] sm:$0xff]
  %v36 = vld [vmem:[%s0 + $0x74] sm:$0xff]
  %v37 = vld [vmem:[%s0 + $0x7c] sm:$0xff]
  %v38 = vld [vmem:[%s0 + $0x84] sm:$0xff]
  %v39 = vld [vmem:[%s0 + $0x8c] sm:$0xff]
  %v40 = vld [vmem:[%s0 + $0x94] sm:$0xff]
  %v41 = vld [vmem:[%s0 + $0x9c] sm:$0xff]
  %v42 = vld [vmem:[%s0 + $0xa4] sm:$0xff]
  %v43 = vld [vmem:[%s0 + $0xac] sm:$0xff]
  %v44 = vld [vmem:[%s0 + $0xb4] sm:$0xff]
  %v45 = vld [vmem:[%s0 + $0xbc] sm:$0xff]
  %v46 = vld [vmem:[%s0 + $0xc4] sm:$0xf]
  %v47 = vld [vmem:[%s1] sm:$0xf]
  %v48 = vld [vmem:[%s1 + $0x4] sm:$0xf]
  %v49 = vld [vmem:[%s1 + $0x8] sm:$0xf]
  %v50 = vld [vmem:[%s1 + $0xc] sm:$0xf]
  %v51 = vld [vmem:[%s1 + $0x10] sm:$0xf]
  %v52 = vld [vmem:[%s1 + $0x14] sm:$0xf]
  %v53 = vld [vmem:[%s1 + $0x18] sm:$0xf]
  %v54 = vld [vmem:[%s1 + $0x1c] sm:$0xf]
  %v55 = vld [vmem:[%s1 + $0x20] sm:$0xf]
  %v56 = vld [vmem:[%s1 + $0x24] sm:$0xf]
  %v57 = vld [vmem:[%s1 + $0x28] sm:$0xf]
  %v58 = vld [vmem:[%s1 + $0x2c] sm:$0xf]
  %v59 = vld [vmem:[%s1 + $0x30] sm:$0xf]
  %v60 = vld [vmem:[%s1 + $0x34] sm:$0xf]
  %v61 = vld [vmem:[%s1 + $0x38] sm:$0xf]
  %v62 = vld [vmem:[%s1 + $0x3c] sm:$0xf]
  %v63 = vld [vmem:[%s1 + $0x40] sm:$0xf]
  %v64 = vld [vmem:[%s1 + $0x44] sm:$0xf]
  %v65 = vld [vmem:[%s1 + $0x48] sm:$0xf]
  %v66 = vld [vmem:[%s1 + $0x4c] sm:$0xf]
  %v67 = vld [vmem:[%s1 + $0x50] sm:$0xf]
  %v68 = vld [vmem:[%s1 + $0x54] sm:$0xf]
  %v69 = vld [vmem:[%s1 + $0x58] sm:$0xf]
  %v70 = vld [vmem:[%s1 + $0x5c] sm:$0xf]
  %v71 = vld [vmem:[%s1 + $0x60] sm:$0xf]
  %v72 = vld [vmem:[%s1 + $0x64] sm:$0xf]
  %v73 = vld [vmem:[%s1 + $0x68] sm:$0xf]
  %v74 = vld [vmem:[%s1 + $0x6c] sm:$0xf]
  %v75 = vld [vmem:[%s1 + $0x70] sm:$0xf]
  %v76 = vld [vmem:[%s1 + $0x74] sm:$0xf]
  %v77 = vld [vmem:[%s1 + $0x78] sm:$0xf]
  %v78 = vld [vmem:[%s1 + $0x7c] sm:$0xf]
  %v79 = vld [vmem:[%s1 + $0x80] sm:$0xf]
  %v80 = vld [vmem:[%s1 + $0x84] sm:$0xf]
  %v81 = vld [vmem:[%s1 + $0x88] sm:$0xf]
  %v82 = vld [vmem:[%s1 + $0x8c] sm:$0xf]
  %v83 = vld [vmem:[%s1 + $0x90] sm:$0xf]
  %v84 = vld [vmem:[%s1 + $0x94] sm:$0xf]
  %v85 = vld [vmem:[%s1 + $0x98] sm:$0xf]
  %v86 = vld [vmem:[%s1 + $0x9c] sm:$0xf]
  %v87 = vld [vmem:[%s1 + $0xa0] sm:$0xf]
  %v88 = vld [vmem:[%s1 + $0xa4] sm:$0xf]
  %v89 = vld [vmem:[%s1 + $0xa8] sm:$0xf]
  %v90 = vld [vmem:[%s1 + $0xac] sm:$0xf]
  %v91 = vld [vmem:[%s1 + $0xb0] sm:$0xf]
  %v92 = vld [vmem:[%s1 + $0xb4] sm:$0xf]
  %v93 = vld [vmem:[%s1 + $0xb8] sm:$0xf]
  %v94 = vld [vmem:[%s1 + $0xbc] sm:$0xf]
  %v95 = vld [vmem:[%s1 + $0xc0] sm:$0xf]
  %v96 = vld [vmem:[%s1 + $0xc4] sm:$0xf]
  %v97 = vld [vmem:[%s1 + $0xc8] sm:$0xf]
  %v98 = vld [vmem:[%s1 + $0xcc] sm:$0xf]
  %v99 = vld [vmem:[%s1 + $0xd0] sm:$0xf]
  %v100 = vld [vmem:[%s1 + $0xd4] sm:$0xf]
  %v101 = vld [vmem:[%s1 + $0xd8] sm:$0xf]
  %v102 = vld [vmem:[%s1 + $0xdc] sm:$0xf]
  %v103 = vld [vmem:[%s1 + $0xe0] sm:$0xf]
  %v104 = vld [vmem:[%s1 + $0xe4] sm:$0xf]
  %v105 = vld [vmem:[%s1 + $0xe8] sm:$0xf]
  %v106 = vld [vmem:[%s1 + $0xec] sm:$0xf]
  %v107 = vld [vmem:[%s1 + $0xf0] sm:$0xf]
  %v108 = vld [vmem:[%s1 + $0xf4] sm:$0xf]
  %v109 = vld [vmem:[%s1 + $0xf8] sm:$0xf]
  %v110 = vld [vmem:[%s1 + $0xfc] sm:$0xf]
  %v111 = vld [vmem:[%s1 + $0x100] sm:$0xf]
  %v112 = vld [vmem:[%s1 + $0x104] sm:$0xf]
  %v113 = vld [vmem:[%s1 + $0x108] sm:$0xf]
  %v114 = vld [vmem:[%s1 + $0x10c] sm:$0xf]
  %v115 = vld [vmem:[%s1 + $0x110] sm:$0xf]
  %v116 = vld [vmem:[%s1 + $0x114] sm:$0xf]
  %v117 = vld [vmem:[%s1 + $0x118] sm:$0xf]
  %v118 = vld [vmem:[%s1 + $0x11c] sm:$0xf]
  %v119 = vld [vmem:[%s1 + $0x120] sm:$0xf]
  %v120 = vld [vmem:[%s1 + $0x124] sm:$0xf]
  %v121 = vld [vmem:[%s1 + $0x128] sm:$0xf]
  %v122 = vld [vmem:[%s1 + $0x12c] sm:$0xf]
  %v123 = vld [vmem:[%s1 + $0x130] sm:$0xf]
  %v124 = vld [vmem:[%s1 + $0x134] sm:$0xf]
  %v125 = vld [vmem:[%s1 + $0x138] sm:$0xf]
  %v126 = vld [vmem:[%s1 + $0x13c] sm:$0xf]
  %v127 = vld [vmem:[%s1 + $0x140] sm:$0xf]
  %v128 = vld [vmem:[%s1 + $0x144] sm:$0xf]
  %v129 = vld [vmem:[%s1 + $0x148] sm:$0xf]
  %v130 = vld [vmem:[%s1 + $0x14c] sm:$0xf]
  %v131 = vld [vmem:[%s1 + $0x150] sm:$0xf]
  %v132 = vld [vmem:[%s1 + $0x154] sm:$0xf]
  %v133 = vld [vmem:[%s1 + $0x158] sm:$0xf]
  %v134 = vld [vmem:[%s1 + $0x15c] sm:$0xf]
  %v135 = vld [vmem:[%s1 + $0x160] sm:$0xf]
  %v136 = vld [vmem:[%s1 + $0x164] sm:$0xf]
  %v137 = vld [vmem:[%s1 + $0x168] sm:$0xf]
  %v138 = vld [vmem:[%s1 + $0x16c] sm:$0xf]
  %v139 = vld [vmem:[%s1 + $0x170] sm:$0xf]
  %v140 = vld [vmem:[%s1 + $0x174] sm:$0xf]
  %v141 = vld [vmem:[%s1 + $0x178] sm:$0xf]
  %v142 = vld [vmem:[%s1 + $0x17c] sm:$0xf]
  %v143 = vld [vmem:[%s1 + $0x180] sm:$0xf]
  %v144 = vld [vmem:[%s1 + $0x184] sm:$0xf]
  %v145 = vld [vmem:[%s1 + $0x188] sm:$0xf]
  %v146 = vld [vmem:[%s1 + $0x18c] sm:$0xf]
  %v147 = vld [vmem:[%s1 + $0x190] sm:$0xf]
  %v148 = vld [vmem:[%s1 + $0x194] sm:$0xf]
  %v149 = vld [vmem:[%s1 + $0x198] sm:$0xf]
  %v150 = vld [vmem:[%s1 + $0x19c] sm:$0xf]
  %v151 = vld [vmem:[%s1 + $0x1a0] sm:$0xf]
  %v152 = vld [vmem:[%s1 + $0x1a4] sm:$0xf]
  %v153 = vld [vmem:[%s1 + $0x1a8] sm:$0xf]
  %v154 = vld [vmem:[%s1 + $0x1ac] sm:$0xf]
  %v155 = vld [vmem:[%s1 + $0x1b0] sm:$0xf]
  %v156 = vld [vmem:[%s1 + $0x1b4] sm:$0xf]
  %v157 = vld [vmem:[%s1 + $0x1b8] sm:$0xf]
  %v158 = vld [vmem:[%s1 + $0x1bc] sm:$0xf]
  %v159 = vld [vmem:[%s1 + $0x1c0] sm:$0xf]
  %v160 = vld [vmem:[%s1 + $0x1c4] sm:$0xf]
  %v161 = vld [vmem:[%s1 + $0x1c8] sm:$0xf]
  %v162 = vld [vmem:[%s1 + $0x1cc] sm:$0xf]
  %v163 = vld [vmem:[%s1 + $0x1d0] sm:$0xf]
  %v164 = vld [vmem:[%s1 + $0x1d4] sm:$0xf]
  %v165 = vld [vmem:[%s1 + $0x1d8] sm:$0xf]
  %v166 = vld [vmem:[%s1 + $0x1dc] sm:$0xf]
  %v167 = vld [vmem:[%s1 + $0x1e0] sm:$0xf]
  %v168 = vld [vmem:[%s1 + $0x1e4] sm:$0xf]
  %v169 = vld [vmem:[%s1 + $0x1e8] sm:$0xf]
  %v170 = vld [vmem:[%s1 + $0x1ec] sm:$0xf]
  %v171 = vld [vmem:[%s1 + $0x1f0] sm:$0xf]
  %v172 = vld [vmem:[%s1 + $0x1f4] sm:$0xf]
  %v173 = vld [vmem:[%s1 + $0x1f8] sm:$0xf]
  %v174 = vld [vmem:[%s1 + $0x1fc] sm:$0xf]
  %v175 = vld [vmem:[%s1 + $0x200] sm:$0xf]
  %v176 = vld [vmem:[%s1 + $0x204] sm:$0xf]
  %v177 = vld [vmem:[%s1 + $0x208] sm:$0xf]
  %v178 = vld [vmem:[%s1 + $0x20c] sm:$0xf]
  %v179 = vld [vmem:[%s1 + $0x210] sm:$0xf]
  %v180 = vld [vmem:[%s1 + $0x214] sm:$0xf]
  %v181 = vld [vmem:[%s1 + $0x218] sm:$0xf]
  %v182 = vld [vmem:[%s1 + $0x21c] sm:$0xf]
  %v183 = vld [vmem:[%s1 + $0x220] sm:$0xf]
  %v184 = vld [vmem:[%s1 + $0x224] sm:$0xf]
  %v185 = vld [vmem:[%s1 + $0x228] sm:$0xf]
  %v186 = vld [vmem:[%s1 + $0x22c] sm:$0xf]
  %v187 = vld [vmem:[%s1 + $0x230] sm:$0xf]
  %v188 = vld [vmem:[%s1 + $0x234] sm:$0xf]
  %v189 = vld [vmem:[%s1 + $0x238] sm:$0xf]
  %v190 = vld [vmem:[%s1 + $0x23c] sm:$0xf]
  %v191 = vld [vmem:[%s1 + $0x240] sm:$0xf]
  %v192 = vld [vmem:[%s1 + $0x244] sm:$0xf]
  %v193 = vld [vmem:[%s1 + $0x248] sm:$0xf]
  %v194 = vld [vmem:[%s1 + $0x24c] sm:$0xf]
  %v195 = vld [vmem:[%s1 + $0x250] sm:$0xf]
  %v196 = vld [vmem:[%s1 + $0x254] sm:$0xf]
  %v197 = vld [vmem:[%s1 + $0x258] sm:$0xf]
  %v198 = vld [vmem:[%s1 + $0x25c] sm:$0xf]
  %v199 = vld [vmem:[%s1 + $0x260] sm:$0xf]
  %v200 = vld [vmem:[%s1 + $0x264] sm:$0xf]
  %v201 = vld [vmem:[%s1 + $0x268] sm:$0xf]
  %v202 = vld [vmem:[%s1 + $0x26c] sm:$0xf]
  %v203 = vld [vmem:[%s1 + $0x270] sm:$0xf]
  %v204 = vld [vmem:[%s1 + $0x274] sm:$0xf]
  %v205 = vld [vmem:[%s1 + $0x278] sm:$0xf]
  %v206 = vld [vmem:[%s1 + $0x27c] sm:$0xf]
  %v207 = vld [vmem:[%s1 + $0x280] sm:$0xf]
  %v208 = vld [vmem:[%s1 + $0x284] sm:$0xf]
  %v209 = vld [vmem:[%s1 + $0x288] sm:$0xf]
  %v210 = vld [vmem:[%s1 + $0x28c] sm:$0xf]
  %v211 = vld [vmem:[%s1 + $0x290] sm:$0xf]
  %v212 = vld [vmem:[%s1 + $0x294] sm:$0xf]
  %v213 = vld [vmem:[%s1 + $0x298] sm:$0xf]
  %v214 = vld [vmem:[%s1 + $0x29c] sm:$0xf]
  %v215 = vld [vmem:[%s1 + $0x2a0] sm:$0xf]
  %v216 = vld [vmem:[%s1 + $0x2a4] sm:$0xf]
  %v217 = vld [vmem:[%s1 + $0x2a8] sm:$0xf]
  %v218 = vld [vmem:[%s1 + $0x2ac] sm:$0xf]
  %v219 = vld [vmem:[%s1 + $0x2b0] sm:$0xf]
  %v220 = vld [vmem:[%s1 + $0x2b4] sm:$0xf]
  %v221 = vld [vmem:[%s1 + $0x2b8] sm:$0xf]
  %v222 = vld [vmem:[%s1 + $0x2bc] sm:$0xf]
  %v223 = vld [vmem:[%s1 + $0x2c0] sm:$0xf]
  %v224 = vld [vmem:[%s1 + $0x2c4] sm:$0xf]
  %v225 = vld [vmem:[%s1 + $0x2c8] sm:$0xf]
  %v226 = vld [vmem:[%s1 + $0x2cc] sm:$0xf]
  %v227 = vld [vmem:[%s1 + $0x2d0] sm:$0xf]
  %v228 = vld [vmem:[%s1 + $0x2d4] sm:$0xf]
  %v229 = vld [vmem:[%s1 + $0x2d8] sm:$0xf]
  %v230 = vld [vmem:[%s1 + $0x2dc] sm:$0xf]
  %v231 = vld [vmem:[%s1 + $0x2e0] sm:$0xf]
  %v232 = vld [vmem:[%s1 + $0x2e4] sm:$0xf]
  %v233 = vld [vmem:[%s1 + $0x2e8] sm:$0xf]
  %v234 = vld [vmem:[%s1 + $0x2ec] sm:$0xf]
  %v235 = vld [vmem:[%s1 + $0x2f0] sm:$0xf]
  %v236 = vld [vmem:[%s1 + $0x2f4] sm:$0xf]
  %v237 = vld [vmem:[%s1 + $0x2f8] sm:$0xf]
  %v238 = vld [vmem:[%s1 + $0x2fc] sm:$0xf]
  %v239 = vld [vmem:[%s1 + $0x300] sm:$0xf]
  %v240 = vld [vmem:[%s1 + $0x304] sm:$0xf]
  %v241 = vld [vmem:[%s1 + $0x308] sm:$0xf]
  %v242 = vld [vmem:[%s1 + $0x30c] sm:$0xf]
  %v243 = vld [vmem:[%s1 + $0x310] sm:$0xf]
  %v244 = vld [vmem:[%s1 + $0x314] sm:$0xf]
  %v245 = vld [vmem:[%s1 + $0x318] sm:$0xf]
  %v246 = vld [vmem:[%s1 + $0x31c] sm:$0xf]
  %v247 = vld [vmem:[%s1 + $0x320] sm:$0xf]
  %v248 = vld [vmem:[%s1 + $0x324] sm:$0xf]
  %v249 = vld [vmem:[%s1 + $0x328] sm:$0xf]
  %v250 = vld [vmem:[%s1 + $0x32c] sm:$0xf]
  %v251 = vld [vmem:[%s1 + $0x330] sm:$0xf]
  %v252 = vld [vmem:[%s1 + $0x334] sm:$0xf]
  %v253 = vld [vmem:[%s1 + $0x338] sm:$0xf]
  %v254 = vld [vmem:[%s1 + $0x33c] sm:$0xf]
  %v255 = vld [vmem:[%s1 + $0x340] sm:$0xf]
  %v256 = vld [vmem:[%s1 + $0x344] sm:$0xf]
  %v257 = vld [vmem:[%s1 + $0x348] sm:$0xf]
  %v258 = vld [vmem:[%s1 + $0x34c] sm:$0xf]
  %v259 = vld [vmem:[%s1 + $0x350] sm:$0xf]
  %v260 = vld [vmem:[%s1 + $0x354] sm:$0xf]
  %v261 = vld [vmem:[%s1 + $0x358] sm:$0xf]
  %v262 = vld [vmem:[%s1 + $0x35c] sm:$0xf]
  %v263 = vld [vmem:[%s1 + $0x360] sm:$0xf]
  %v264 = vld [vmem:[%s1 + $0x364] sm:$0xf]
  %v265 = vld [vmem:[%s1 + $0x368] sm:$0xf]
  %v266 = vld [vmem:[%s1 + $0x36c] sm:$0xf]
  %v267 = vld [vmem:[%s1 + $0x370] sm:$0xf]
  %v268 = vld [vmem:[%s1 + $0x374] sm:$0xf]
  %v269 = vld [vmem:[%s1 + $0x378] sm:$0xf]
  %v270 = vld [vmem:[%s1 + $0x37c] sm:$0xf]
  %v271 = vld [vmem:[%s1 + $0x380] sm:$0xf]
  %v272 = vld [vmem:[%s1 + $0x384] sm:$0xf]
  %v273 = vld [vmem:[%s1 + $0x388] sm:$0xf]
  %v274 = vld [vmem:[%s1 + $0x38c] sm:$0xf]
  %v275 = vld [vmem:[%s1 + $0x390] sm:$0xf]
  %v276 = vld [vmem:[%s1 + $0x394] sm:$0xf]
  %v277 = vld [vmem:[%s1 + $0x398] sm:$0xf]
  %v278 = vld [vmem:[%s1 + $0x39c] sm:$0xf]
  %v279 = vld [vmem:[%s1 + $0x3a0] sm:$0xf]
  %v280 = vld [vmem:[%s1 + $0x3a4] sm:$0xf]
  %v281 = vld [vmem:[%s1 + $0x3a8] sm:$0xf]
  %v282 = vld [vmem:[%s1 + $0x3ac] sm:$0xf]
  %v283 = vld [vmem:[%s1 + $0x3b0] sm:$0xf]
  %v284 = vld [vmem:[%s1 + $0x3b4] sm:$0xf]
  %v285 = vld [vmem:[%s1 + $0x3b8] sm:$0xf]
  %v286 = vld [vmem:[%s1 + $0x3bc] sm:$0xf]
  %v287 = vld [vmem:[%s1 + $0x3c0] sm:$0xf]
  %v288 = vld [vmem:[%s1 + $0x3c4] sm:$0xf]
  %v289 = vld [vmem:[%s1 + $0x3c8] sm:$0xf]
  %v290 = vld [vmem:[%s1 + $0x3cc] sm:$0xf]
  %v291 = vld [vmem:[%s1 + $0x3d0] sm:$0xf]
  %v292 = vld [vmem:[%s1 + $0x3d4] sm:$0xf]
  %v293 = vld [vmem:[%s1 + $0x3d8] sm:$0xf]
  %v294 = vld [vmem:[%s1 + $0x3dc] sm:$0xf]
  %v295 = vld [vmem:[%s1 + $0x3e0] sm:$0xf]
  %v296 = vld [vmem:[%s1 + $0x3e4] sm:$0xf]
  %v297 = vld [vmem:[%s1 + $0x3e8] sm:$0xf]
  %v298 = vld [vmem:[%s1 + $0x3ec] sm:$0xf]
  %v299 = vld [vmem:[%s1 + $0x3f0] sm:$0xf]
  %v300 = vld [vmem:[%s1 + $0x3f4] sm:$0xf]
  %v301 = vld [vmem:[%s1 + $0x3f8] sm:$0xf]
  %v302 = vld [vmem:[%s1 + $0x3fc] sm:$0xf]
  %v303 = vld [vmem:[%s1 + $0x400] sm:$0xf]
  %v304 = vld [vmem:[%s1 + $0x404] sm:$0xf]
  %v305 = vld [vmem:[%s1 + $0x408] sm:$0xf]
  %v306 = vld [vmem:[%s1 + $0x40c] sm:$0xf]
  %v307 = vld [vmem:[%s1 + $0x410] sm:$0xf]
  %v308 = vld [vmem:[%s1 + $0x414] sm:$0xf]
  %v309 = vld [vmem:[%s1 + $0x418] sm:$0xf]
  %v310 = vld [vmem:[%s1 + $0x41c] sm:$0xf]
  %v311 = vld [vmem:[%s1 + $0x420] sm:$0xf]
  %v312 = vld [vmem:[%s1 + $0x424] sm:$0xf]
  %v313 = vld [vmem:[%s1 + $0x428] sm:$0xf]
  %v314 = vld [vmem:[%s1 + $0x42c] sm:$0xf]
  %v315 = vld [vmem:[%s1 + $0x430] sm:$0xf]
  %v316 = vld [vmem:[%s1 + $0x434] sm:$0xf]
  %v317 = vld [vmem:[%s1 + $0x438] sm:$0xf]
  %v318 = vld [vmem:[%s1 + $0x43c] sm:$0xf]
  %v319 = vld [vmem:[%s1 + $0x440] sm:$0xf]
  %v320 = vld [vmem:[%s1 + $0x444] sm:$0xf]
  %v321 = vld [vmem:[%s1 + $0x448] sm:$0xf]
  %v322 = vld [vmem:[%s1 + $0x44c] sm:$0xf]
  %v323 = vld [vmem:[%s1 + $0x450] sm:$0xf]
  %v324 = vld [vmem:[%s1 + $0x454] sm:$0xf]
  %v325 = vld [vmem:[%s1 + $0x458] sm:$0xf]
  %v326 = vld [vmem:[%s1 + $0x45c] sm:$0xf]
  %v327 = vld [vmem:[%s1 + $0x460] sm:$0xf]
  %v328 = vld [vmem:[%s1 + $0x464] sm:$0xf]
  %v329 = vld [vmem:[%s1 + $0x468] sm:$0xf]
  %v330 = vld [vmem:[%s1 + $0x46c] sm:$0xf]
  %v331 = vld [vmem:[%s1 + $0x470] sm:$0xf]
  %v332 = vld [vmem:[%s1 + $0x474] sm:$0xf]
  %v333 = vld [vmem:[%s1 + $0x478] sm:$0xf]
  %v334 = vld [vmem:[%s1 + $0x47c] sm:$0xf]
  %v335 = vld [vmem:[%s1 + $0x480] sm:$0xf]
  %v336 = vld [vmem:[%s1 + $0x484] sm:$0xf]
  %v337 = vld [vmem:[%s1 + $0x488] sm:$0xf]
  %v338 = vld [vmem:[%s1 + $0x48c] sm:$0xf]
  %v339 = vld [vmem:[%s1 + $0x490] sm:$0xf]
  %v340 = vld [vmem:[%s1 + $0x494] sm:$0xf]
  %v341 = vld [vmem:[%s1 + $0x498] sm:$0xf]
  %v342 = vld [vmem:[%s1 + $0x49c] sm:$0xf]
  %v343 = vld [vmem:[%s1 + $0x4a0] sm:$0xf]
  %v344 = vld [vmem:[%s1 + $0x4a4] sm:$0xf]
  %v345 = vld [vmem:[%s1 + $0x4a8] sm:$0xf]
  %v346 = vld [vmem:[%s1 + $0x4ac] sm:$0xf]
  %v347 = vld [vmem:[%s1 + $0x4b0] sm:$0xf]
  %v348 = vld [vmem:[%s1 + $0x4b4] sm:$0xf]
  %v349 = vld [vmem:[%s1 + $0x4b8] sm:$0xf]
  %v350 = vld [vmem:[%s1 + $0x4bc] sm:$0xf]
  %v351 = vld [vmem:[%s1 + $0x4c0] sm:$0xf]
  %v352 = vld [vmem:[%s1 + $0x4c4] sm:$0xf]
  %v353 = vld [vmem:[%s1 + $0x4c8] sm:$0xf]
  %v354 = vld [vmem:[%s1 + $0x4cc] sm:$0xf]
  %v355 = vld [vmem:[%s1 + $0x4d0] sm:$0xf]
  %v356 = vld [vmem:[%s1 + $0x4d4] sm:$0xf]
  %v357 = vld [vmem:[%s1 + $0x4d8] sm:$0xf]
  %v358 = vld [vmem:[%s1 + $0x4dc] sm:$0xf]
  %v359 = vld [vmem:[%s1 + $0x4e0] sm:$0xf]
  %v360 = vld [vmem:[%s1 + $0x4e4] sm:$0xf]
  %v361 = vld [vmem:[%s1 + $0x4e8] sm:$0xf]
  %v362 = vld [vmem:[%s1 + $0x4ec] sm:$0xf]
  %v363 = vld [vmem:[%s1 + $0x4f0] sm:$0xf]
  %v364 = vld [vmem:[%s1 + $0x4f4] sm:$0xf]
  %v365 = vld [vmem:[%s1 + $0x4f8] sm:$0xf]
  %v366 = vld [vmem:[%s1 + $0x4fc] sm:$0xf]
  %v367 = vld [vmem:[%s1 + $0x500] sm:$0xf]
  %v368 = vld [vmem:[%s1 + $0x504] sm:$0xf]
  %v369 = vld [vmem:[%s1 + $0x508] sm:$0xf]
  %v370 = vld [vmem:[%s1 + $0x50c] sm:$0xf]
  %v371 = vld [vmem:[%s1 + $0x510] sm:$0xf]
  %v372 = vld [vmem:[%s1 + $0x514] sm:$0xf]
  %v373 = vld [vmem:[%s1 + $0x518] sm:$0xf]
  %v374 = vld [vmem:[%s1 + $0x51c] sm:$0xf]
  %v375 = vld [vmem:[%s1 + $0x520] sm:$0xf]
  %v376 = vld [vmem:[%s1 + $0x524] sm:$0xf]
  %v377 = vld [vmem:[%s1 + $0x528] sm:$0xf]
  %v378 = vld [vmem:[%s1 + $0x52c] sm:$0xf]
  %v379 = vld [vmem:[%s1 + $0x530] sm:$0xf]
  %v380 = vld [vmem:[%s1 + $0x534] sm:$0xf]
  %v381 = vld [vmem:[%s1 + $0x538] sm:$0xf]
  %v382 = vld [vmem:[%s1 + $0x53c] sm:$0xf]
  %v383 = vld [vmem:[%s1 + $0x540] sm:$0xf]
  %v384 = vld [vmem:[%s1 + $0x544] sm:$0xf]
  %v385 = vld [vmem:[%s1 + $0x548] sm:$0xf]
  %v386 = vld [vmem:[%s1 + $0x54c] sm:$0xf]
  %v387 = vld [vmem:[%s1 + $0x550] sm:$0xf]
  %v388 = vld [vmem:[%s1 + $0x554] sm:$0xf]
  %v389 = vld [vmem:[%s1 + $0x558] sm:$0xf]
  %v390 = vld [vmem:[%s1 + $0x55c] sm:$0xf]
  %v391 = vld [vmem:[%s1 + $0x560] sm:$0xf]
  %v392 = vld [vmem:[%s1 + $0x564] sm:$0xf]
  %v393 = vld [vmem:[%s1 + $0x568] sm:$0xf]
  %v394 = vld [vmem:[%s1 + $0x56c] sm:$0xf]
  %v395 = vld [vmem:[%s1 + $0x570] sm:$0xf]
  %v396 = vld [vmem:[%s1 + $0x574] sm:$0xf]
  %v397 = vld [vmem:[%s1 + $0x578] sm:$0xf]
  %v398 = vld [vmem:[%s1 + $0x57c] sm:$0xf]
  %v399 = vld [vmem:[%s1 + $0x580] sm:$0xf]
  %v400 = vld [vmem:[%s1 + $0x584] sm:$0xf]
  %v401 = vld [vmem:[%s1 + $0x588] sm:$0xf]
  %v402 = vld [vmem:[%s1 + $0x58c] sm:$0xf]
  %v403 = vld [vmem:[%s1 + $0x590] sm:$0xf]
  %v404 = vld [vmem:[%s1 + $0x594] sm:$0xf]
  %v405 = vld [vmem:[%s1 + $0x598] sm:$0xf]
  %v406 = vld [vmem:[%s1 + $0x59c] sm:$0xf]
  %v407 = vld [vmem:[%s1 + $0x5a0] sm:$0xf]
  %v408 = vld [vmem:[%s1 + $0x5a4] sm:$0xf]
  %v409 = vld [vmem:[%s1 + $0x5a8] sm:$0xf]
  %v410 = vld [vmem:[%s1 + $0x5ac] sm:$0xf]
  %v411 = vld [vmem:[%s1 + $0x5b0] sm:$0xf]
  %v412 = vld [vmem:[%s1 + $0x5b4] sm:$0xf]
  %v413 = vld [vmem:[%s1 + $0x5b8] sm:$0xf]
  %v414 = vld [vmem:[%s1 + $0x5bc] sm:$0xf]
  %v415 = vld [vmem:[%s1 + $0x5c0] sm:$0xf]
  %v416 = vld [vmem:[%s1 + $0x5c4] sm:$0xf]
  %v417 = vld [vmem:[%s1 + $0x5c8] sm:$0xf]
  %v418 = vld [vmem:[%s1 + $0x5cc] sm:$0xf]
  %v419 = vld [vmem:[%s1 + $0x5d0] sm:$0xf]
  %v420 = vld [vmem:[%s1 + $0x5d4] sm:$0xf]
  %v421 = vld [vmem:[%s1 + $0x5d8] sm:$0xf]
  %v422 = vld [vmem:[%s1 + $0x5dc] sm:$0xf]
  %v423 = vld [vmem:[%s1 + $0x5e0] sm:$0xf]
  %v424 = vld [vmem:[%s1 + $0x5e4] sm:$0xf]
  %v425 = vld [vmem:[%s1 + $0x5e8] sm:$0xf]
  %v426 = vld [vmem:[%s1 + $0x5ec] sm:$0xf]
  %v427 = vld [vmem:[%s1 + $0x5f0] sm:$0xf]
  %v428 = vld [vmem:[%s1 + $0x5f4] sm:$0xf]
  %v429 = vld [vmem:[%s1 + $0x5f8] sm:$0xf]
  %v430 = vld [vmem:[%s1 + $0x5fc] sm:$0xf]
  %v431 = vld [vmem:[%s1 + $0x600] sm:$0xf]
  %v432 = vld [vmem:[%s1 + $0x604] sm:$0xf]
  %v433 = vld [vmem:[%s1 + $0x608] sm:$0xf]
  %v434 = vld [vmem:[%s1 + $0x60c] sm:$0xf]
  %v435 = vld [vmem:[%s1 + $0x610] sm:$0xf]
  %v436 = vld [vmem:[%s1 + $0x614] sm:$0xf]
  %v437 = vld [vmem:[%s1 + $0x618] sm:$0xf]
  %v438 = vld [vmem:[%s1 + $0x61c] sm:$0xf]
  %v439 = vld [vmem:[%s2] sm:$0x1]
  %v441 = vlaneseq
  %v442 = vshrl.u32 %v441, 7
  %v443 = vsub.s32 0, %v442
  %v444 = vrot.slane %v439, %v443
  %v472 = vunpack.c.l.b16 %v21
  %v473 = vunpack.c.h.b16 %v21
  %v474 = vunpack.c.l.b16 %v22
  %v475 = vunpack.c.h.b16 %v22
  %v476 = vunpack.c.l.b16 %v23
  %v477 = vunpack.c.h.b16 %v23
  %v478 = vunpack.c.l.b16 %v24
  %v479 = vunpack.c.h.b16 %v24
  %v480 = vunpack.c.l.b16 %v25
  %v481 = vunpack.c.h.b16 %v25
  %v482 = vunpack.c.l.b16 %v26
  %v483 = vunpack.c.h.b16 %v26
  %v484 = vunpack.c.l.b16 %v27
  %v485 = vunpack.c.h.b16 %v27
  %v486 = vunpack.c.l.b16 %v28
  %v487 = vunpack.c.h.b16 %v28
  %v488 = vunpack.c.l.b16 %v29
  %v489 = vunpack.c.h.b16 %v29
  %v490 = vunpack.c.l.b16 %v30
  %v491 = vunpack.c.h.b16 %v30
  %v492 = vunpack.c.l.b16 %v31
  %v493 = vunpack.c.h.b16 %v31
  %v494 = vunpack.c.l.b16 %v32
  %v495 = vunpack.c.h.b16 %v32
  %v496 = vunpack.c.l.b16 %v33
  %v497 = vunpack.c.l.b16 %v34
  %v498 = vunpack.c.h.b16 %v34
  %v499 = vunpack.c.l.b16 %v35
  %v500 = vunpack.c.h.b16 %v35
  %v501 = vunpack.c.l.b16 %v36
  %v502 = vunpack.c.h.b16 %v36
  %v503 = vunpack.c.l.b16 %v37
  %v504 = vunpack.c.h.b16 %v37
  %v505 = vunpack.c.l.b16 %v38
  %v506 = vunpack.c.h.b16 %v38
  %v507 = vunpack.c.l.b16 %v39
  %v508 = vunpack.c.h.b16 %v39
  %v509 = vunpack.c.l.b16 %v40
  %v510 = vunpack.c.h.b16 %v40
  %v511 = vunpack.c.l.b16 %v41
  %v512 = vunpack.c.h.b16 %v41
  %v513 = vunpack.c.l.b16 %v42
  %v514 = vunpack.c.h.b16 %v42
  %v515 = vunpack.c.l.b16 %v43
  %v516 = vunpack.c.h.b16 %v43
  %v517 = vunpack.c.l.b16 %v44
  %v518 = vunpack.c.h.b16 %v44
  %v519 = vunpack.c.l.b16 %v45
  %v520 = vunpack.c.h.b16 %v45
  %v521 = vunpack.c.l.b16 %v46
  %v522 = vpack.c.b16 %v497, %v472
  %v523 = vpack.c.b16 %v498, %v473
  %v524 = vpack.c.b16 %v499, %v474
  %v525 = vpack.c.b16 %v500, %v475
  %v526 = vpack.c.b16 %v501, %v476
  %v527 = vpack.c.b16 %v502, %v477
  %v528 = vpack.c.b16 %v503, %v478
  %v529 = vpack.c.b16 %v504, %v479
  %v530 = vpack.c.b16 %v505, %v480
  %v531 = vpack.c.b16 %v506, %v481
  %v532 = vpack.c.b16 %v507, %v482
  %v533 = vpack.c.b16 %v508, %v483
  %v534 = vpack.c.b16 %v509, %v484
  %v535 = vpack.c.b16 %v510, %v485
  %v536 = vpack.c.b16 %v511, %v486
  %v537 = vpack.c.b16 %v512, %v487
  %v538 = vpack.c.b16 %v513, %v488
  %v539 = vpack.c.b16 %v514, %v489
  %v540 = vpack.c.b16 %v515, %v490
  %v541 = vpack.c.b16 %v516, %v491
  %v542 = vpack.c.b16 %v517, %v492
  %v543 = vpack.c.b16 %v518, %v493
  %v544 = vpack.c.b16 %v519, %v494
  %v545 = vpack.c.b16 %v520, %v495
  %v546 = vpack.c.b16 %v521, %v496
  %v963 = vunpack.c.l.b16 %v47
  %v964 = vunpack.c.l.b16 %v48
  %v965 = vunpack.c.l.b16 %v49
  %v966 = vunpack.c.l.b16 %v50
  %v967 = vunpack.c.l.b16 %v51
  %v968 = vunpack.c.l.b16 %v52
  %v969 = vunpack.c.l.b16 %v53
  %v970 = vunpack.c.l.b16 %v54
  %v971 = vunpack.c.l.b16 %v55
  %v972 = vunpack.c.l.b16 %v56
  %v973 = vunpack.c.l.b16 %v57
  %v974 = vunpack.c.l.b16 %v58
  %v975 = vunpack.c.l.b16 %v59
  %v976 = vunpack.c.l.b16 %v60
  %v977 = vunpack.c.l.b16 %v61
  %v978 = vunpack.c.l.b16 %v62
  %v979 = vunpack.c.l.b16 %v63
  %v980 = vunpack.c.l.b16 %v64
  %v981 = vunpack.c.l.b16 %v65
  %v982 = vunpack.c.l.b16 %v66
  %v983 = vunpack.c.l.b16 %v67
  %v984 = vunpack.c.l.b16 %v68
  %v985 = vunpack.c.l.b16 %v69
  %v986 = vunpack.c.l.b16 %v70
  %v987 = vunpack.c.l.b16 %v71
  %v988 = vunpack.c.l.b16 %v72
  %v989 = vunpack.c.l.b16 %v73
  %v990 = vunpack.c.l.b16 %v74
  %v991 = vunpack.c.l.b16 %v75
  %v992 = vunpack.c.l.b16 %v76
  %v993 = vunpack.c.l.b16 %v77
  %v994 = vunpack.c.l.b16 %v78
  %v995 = vunpack.c.l.b16 %v79
  %v996 = vunpack.c.l.b16 %v80
  %v997 = vunpack.c.l.b16 %v81
  %v998 = vunpack.c.l.b16 %v82
  %v999 = vunpack.c.l.b16 %v83
  %v1000 = vunpack.c.l.b16 %v84
  %v1001 = vunpack.c.l.b16 %v85
  %v1002 = vunpack.c.l.b16 %v86
  %v1003 = vunpack.c.l.b16 %v87
  %v1004 = vunpack.c.l.b16 %v88
  %v1005 = vunpack.c.l.b16 %v89
  %v1006 = vunpack.c.l.b16 %v90
  %v1007 = vunpack.c.l.b16 %v91
  %v1008 = vunpack.c.l.b16 %v92
  %v1009 = vunpack.c.l.b16 %v93
  %v1010 = vunpack.c.l.b16 %v94
  %v1011 = vunpack.c.l.b16 %v95
  %v1012 = vunpack.c.l.b16 %v96
  %v1013 = vunpack.c.l.b16 %v97
  %v1014 = vunpack.c.l.b16 %v98
  %v1015 = vunpack.c.l.b16 %v99
  %v1016 = vunpack.c.l.b16 %v100
  %v1017 = vunpack.c.l.b16 %v101
  %v1018 = vunpack.c.l.b16 %v102
  %v1019 = vunpack.c.l.b16 %v103
  %v1020 = vunpack.c.l.b16 %v104
  %v1021 = vunpack.c.l.b16 %v105
  %v1022 = vunpack.c.l.b16 %v106
  %v1023 = vunpack.c.l.b16 %v107
  %v1024 = vunpack.c.l.b16 %v108
  %v1025 = vunpack.c.l.b16 %v109
  %v1026 = vunpack.c.l.b16 %v110
  %v1027 = vunpack.c.l.b16 %v111
  %v1028 = vunpack.c.l.b16 %v112
  %v1029 = vunpack.c.l.b16 %v113
  %v1030 = vunpack.c.l.b16 %v114
  %v1031 = vunpack.c.l.b16 %v115
  %v1032 = vunpack.c.l.b16 %v116
  %v1033 = vunpack.c.l.b16 %v117
  %v1034 = vunpack.c.l.b16 %v118
  %v1035 = vunpack.c.l.b16 %v119
  %v1036 = vunpack.c.l.b16 %v120
  %v1037 = vunpack.c.l.b16 %v121
  %v1038 = vunpack.c.l.b16 %v122
  %v1039 = vunpack.c.l.b16 %v123
  %v1040 = vunpack.c.l.b16 %v124
  %v1041 = vunpack.c.l.b16 %v125
  %v1042 = vunpack.c.l.b16 %v126
  %v1043 = vunpack.c.l.b16 %v127
  %v1044 = vunpack.c.l.b16 %v128
  %v1045 = vunpack.c.l.b16 %v129
  %v1046 = vunpack.c.l.b16 %v130
  %v1047 = vunpack.c.l.b16 %v131
  %v1048 = vunpack.c.l.b16 %v132
  %v1049 = vunpack.c.l.b16 %v133
  %v1050 = vunpack.c.l.b16 %v134
  %v1051 = vunpack.c.l.b16 %v135
  %v1052 = vunpack.c.l.b16 %v136
  %v1053 = vunpack.c.l.b16 %v137
  %v1054 = vunpack.c.l.b16 %v138
  %v1055 = vunpack.c.l.b16 %v139
  %v1056 = vunpack.c.l.b16 %v140
  %v1057 = vunpack.c.l.b16 %v141
  %v1058 = vunpack.c.l.b16 %v142
  %v1059 = vunpack.c.l.b16 %v143
  %v1060 = vunpack.c.l.b16 %v144
  %v1061 = vunpack.c.l.b16 %v145
  %v1062 = vunpack.c.l.b16 %v146
  %v1063 = vunpack.c.l.b16 %v147
  %v1064 = vunpack.c.l.b16 %v148
  %v1065 = vunpack.c.l.b16 %v149
  %v1066 = vunpack.c.l.b16 %v150
  %v1067 = vunpack.c.l.b16 %v151
  %v1068 = vunpack.c.l.b16 %v152
  %v1069 = vunpack.c.l.b16 %v153
  %v1070 = vunpack.c.l.b16 %v154
  %v1071 = vunpack.c.l.b16 %v155
  %v1072 = vunpack.c.l.b16 %v156
  %v1073 = vunpack.c.l.b16 %v157
  %v1074 = vunpack.c.l.b16 %v158
  %v1075 = vunpack.c.l.b16 %v159
  %v1076 = vunpack.c.l.b16 %v160
  %v1077 = vunpack.c.l.b16 %v161
  %v1078 = vunpack.c.l.b16 %v162
  %v1079 = vunpack.c.l.b16 %v163
  %v1080 = vunpack.c.l.b16 %v164
  %v1081 = vunpack.c.l.b16 %v165
  %v1082 = vunpack.c.l.b16 %v166
  %v1083 = vunpack.c.l.b16 %v167
  %v1084 = vunpack.c.l.b16 %v168
  %v1085 = vunpack.c.l.b16 %v169
  %v1086 = vunpack.c.l.b16 %v170
  %v1087 = vunpack.c.l.b16 %v171
  %v1088 = vunpack.c.l.b16 %v172
  %v1089 = vunpack.c.l.b16 %v173
  %v1090 = vunpack.c.l.b16 %v174
  %v1091 = vunpack.c.l.b16 %v175
  %v1092 = vunpack.c.l.b16 %v176
  %v1093 = vunpack.c.l.b16 %v177
  %v1094 = vunpack.c.l.b16 %v178
  %v1095 = vunpack.c.l.b16 %v179
  %v1096 = vunpack.c.l.b16 %v180
  %v1097 = vunpack.c.l.b16 %v181
  %v1098 = vunpack.c.l.b16 %v182
  %v1099 = vunpack.c.l.b16 %v183
  %v1100 = vunpack.c.l.b16 %v184
  %v1101 = vunpack.c.l.b16 %v185
  %v1102 = vunpack.c.l.b16 %v186
  %v1103 = vunpack.c.l.b16 %v187
  %v1104 = vunpack.c.l.b16 %v188
  %v1105 = vunpack.c.l.b16 %v189
  %v1106 = vunpack.c.l.b16 %v190
  %v1107 = vunpack.c.l.b16 %v191
  %v1108 = vunpack.c.l.b16 %v192
  %v1109 = vunpack.c.l.b16 %v193
  %v1110 = vunpack.c.l.b16 %v194
  %v1111 = vunpack.c.l.b16 %v195
  %v1112 = vunpack.c.l.b16 %v196
  %v1113 = vunpack.c.l.b16 %v197
  %v1114 = vunpack.c.l.b16 %v198
  %v1115 = vunpack.c.l.b16 %v199
  %v1116 = vunpack.c.l.b16 %v200
  %v1117 = vunpack.c.l.b16 %v201
  %v1118 = vunpack.c.l.b16 %v202
  %v1119 = vunpack.c.l.b16 %v203
  %v1120 = vunpack.c.l.b16 %v204
  %v1121 = vunpack.c.l.b16 %v205
  %v1122 = vunpack.c.l.b16 %v206
  %v1123 = vunpack.c.l.b16 %v207
  %v1124 = vunpack.c.l.b16 %v208
  %v1125 = vunpack.c.l.b16 %v209
  %v1126 = vunpack.c.l.b16 %v210
  %v1127 = vunpack.c.l.b16 %v211
  %v1128 = vunpack.c.l.b16 %v212
  %v1129 = vunpack.c.l.b16 %v213
  %v1130 = vunpack.c.l.b16 %v214
  %v1131 = vunpack.c.l.b16 %v215
  %v1132 = vunpack.c.l.b16 %v216
  %v1133 = vunpack.c.l.b16 %v217
  %v1134 = vunpack.c.l.b16 %v218
  %v1135 = vunpack.c.l.b16 %v219
  %v1136 = vunpack.c.l.b16 %v220
  %v1137 = vunpack.c.l.b16 %v221
  %v1138 = vunpack.c.l.b16 %v222
  %v1139 = vunpack.c.l.b16 %v223
  %v1140 = vunpack.c.l.b16 %v224
  %v1141 = vunpack.c.l.b16 %v225
  %v1142 = vunpack.c.l.b16 %v226
  %v1143 = vunpack.c.l.b16 %v227
  %v1144 = vunpack.c.l.b16 %v228
  %v1145 = vunpack.c.l.b16 %v229
  %v1146 = vunpack.c.l.b16 %v230
  %v1147 = vunpack.c.l.b16 %v231
  %v1148 = vunpack.c.l.b16 %v232
  %v1149 = vunpack.c.l.b16 %v233
  %v1150 = vunpack.c.l.b16 %v234
  %v1151 = vunpack.c.l.b16 %v235
  %v1152 = vunpack.c.l.b16 %v236
  %v1153 = vunpack.c.l.b16 %v237
  %v1154 = vunpack.c.l.b16 %v238
  %v1155 = vunpack.c.l.b16 %v239
  %v1156 = vunpack.c.l.b16 %v240
  %v1157 = vunpack.c.l.b16 %v241
  %v1158 = vunpack.c.l.b16 %v242
  %v1159 = vunpack.c.l.b16 %v243
  %v1160 = vunpack.c.l.b16 %v244
  %v1161 = vunpack.c.l.b16 %v245
  %v1162 = vunpack.c.l.b16 %v246
  %v1163 = vunpack.c.l.b16 %v247
  %v1164 = vunpack.c.l.b16 %v248
  %v1165 = vunpack.c.l.b16 %v249
  %v1166 = vunpack.c.l.b16 %v250
  %v1167 = vunpack.c.l.b16 %v251
  %v1168 = vunpack.c.l.b16 %v252
  %v1169 = vunpack.c.l.b16 %v253
  %v1170 = vunpack.c.l.b16 %v254
  %v1171 = vunpack.c.l.b16 %v255
  %v1172 = vunpack.c.l.b16 %v256
  %v1173 = vunpack.c.l.b16 %v257
  %v1174 = vunpack.c.l.b16 %v258
  %v1175 = vunpack.c.l.b16 %v259
  %v1176 = vunpack.c.l.b16 %v260
  %v1177 = vunpack.c.l.b16 %v261
  %v1178 = vunpack.c.l.b16 %v262
  %v1179 = vunpack.c.l.b16 %v263
  %v1180 = vunpack.c.l.b16 %v264
  %v1181 = vunpack.c.l.b16 %v265
  %v1182 = vunpack.c.l.b16 %v266
  %v1183 = vunpack.c.l.b16 %v267
  %v1184 = vunpack.c.l.b16 %v268
  %v1185 = vunpack.c.l.b16 %v269
  %v1186 = vunpack.c.l.b16 %v270
  %v1187 = vunpack.c.l.b16 %v271
  %v1188 = vunpack.c.l.b16 %v272
  %v1189 = vunpack.c.l.b16 %v273
  %v1190 = vunpack.c.l.b16 %v274
  %v1191 = vunpack.c.l.b16 %v275
  %v1192 = vunpack.c.l.b16 %v276
  %v1193 = vunpack.c.l.b16 %v277
  %v1194 = vunpack.c.l.b16 %v278
  %v1195 = vunpack.c.l.b16 %v279
  %v1196 = vunpack.c.l.b16 %v280
  %v1197 = vunpack.c.l.b16 %v281
  %v1198 = vunpack.c.l.b16 %v282
  %v1199 = vunpack.c.l.b16 %v283
  %v1200 = vunpack.c.l.b16 %v284
  %v1201 = vunpack.c.l.b16 %v285
  %v1202 = vunpack.c.l.b16 %v286
  %v1203 = vunpack.c.l.b16 %v287
  %v1204 = vunpack.c.l.b16 %v288
  %v1205 = vunpack.c.l.b16 %v289
  %v1206 = vunpack.c.l.b16 %v290
  %v1207 = vunpack.c.l.b16 %v291
  %v1208 = vunpack.c.l.b16 %v292
  %v1209 = vunpack.c.l.b16 %v293
  %v1210 = vunpack.c.l.b16 %v294
  %v1211 = vunpack.c.l.b16 %v295
  %v1212 = vunpack.c.l.b16 %v296
  %v1213 = vunpack.c.l.b16 %v297
  %v1214 = vunpack.c.l.b16 %v298
  %v1215 = vunpack.c.l.b16 %v299
  %v1216 = vunpack.c.l.b16 %v300
  %v1217 = vunpack.c.l.b16 %v301
  %v1218 = vunpack.c.l.b16 %v302
  %v1219 = vunpack.c.l.b16 %v303
  %v1220 = vunpack.c.l.b16 %v304
  %v1221 = vunpack.c.l.b16 %v305
  %v1222 = vunpack.c.l.b16 %v306
  %v1223 = vunpack.c.l.b16 %v307
  %v1224 = vunpack.c.l.b16 %v308
  %v1225 = vunpack.c.l.b16 %v309
  %v1226 = vunpack.c.l.b16 %v310
  %v1227 = vunpack.c.l.b16 %v311
  %v1228 = vunpack.c.l.b16 %v312
  %v1229 = vunpack.c.l.b16 %v313
  %v1230 = vunpack.c.l.b16 %v314
  %v1231 = vunpack.c.l.b16 %v315
  %v1232 = vunpack.c.l.b16 %v316
  %v1233 = vunpack.c.l.b16 %v317
  %v1234 = vunpack.c.l.b16 %v318
  %v1235 = vunpack.c.l.b16 %v319
  %v1236 = vunpack.c.l.b16 %v320
  %v1237 = vunpack.c.l.b16 %v321
  %v1238 = vunpack.c.l.b16 %v322
  %v1239 = vunpack.c.l.b16 %v323
  %v1240 = vunpack.c.l.b16 %v324
  %v1241 = vunpack.c.l.b16 %v325
  %v1242 = vunpack.c.l.b16 %v326
  %v1243 = vunpack.c.l.b16 %v327
  %v1244 = vunpack.c.l.b16 %v328
  %v1245 = vunpack.c.l.b16 %v329
  %v1246 = vunpack.c.l.b16 %v330
  %v1247 = vunpack.c.l.b16 %v331
  %v1248 = vunpack.c.l.b16 %v332
  %v1249 = vunpack.c.l.b16 %v333
  %v1250 = vunpack.c.l.b16 %v334
  %v1251 = vunpack.c.l.b16 %v335
  %v1252 = vunpack.c.l.b16 %v336
  %v1253 = vunpack.c.l.b16 %v337
  %v1254 = vunpack.c.l.b16 %v338
  %v1255 = vunpack.c.l.b16 %v339
  %v1256 = vunpack.c.l.b16 %v340
  %v1257 = vunpack.c.l.b16 %v341
  %v1258 = vunpack.c.l.b16 %v342
  %v1259 = vunpack.c.l.b16 %v343
  %v1260 = vunpack.c.l.b16 %v344
  %v1261 = vunpack.c.l.b16 %v345
  %v1262 = vunpack.c.l.b16 %v346
  %v1263 = vunpack.c.l.b16 %v347
  %v1264 = vunpack.c.l.b16 %v348
  %v1265 = vunpack.c.l.b16 %v349
  %v1266 = vunpack.c.l.b16 %v350
  %v1267 = vunpack.c.l.b16 %v351
  %v1268 = vunpack.c.l.b16 %v352
  %v1269 = vunpack.c.l.b16 %v353
  %v1270 = vunpack.c.l.b16 %v354
  %v1271 = vunpack.c.l.b16 %v355
  %v1272 = vunpack.c.l.b16 %v356
  %v1273 = vunpack.c.l.b16 %v357
  %v1274 = vunpack.c.l.b16 %v358
  %v1275 = vunpack.c.l.b16 %v359
  %v1276 = vunpack.c.l.b16 %v360
  %v1277 = vunpack.c.l.b16 %v361
  %v1278 = vunpack.c.l.b16 %v362
  %v1279 = vunpack.c.l.b16 %v363
  %v1280 = vunpack.c.l.b16 %v364
  %v1281 = vunpack.c.l.b16 %v365
  %v1282 = vunpack.c.l.b16 %v366
  %v1283 = vunpack.c.l.b16 %v367
  %v1284 = vunpack.c.l.b16 %v368
  %v1285 = vunpack.c.l.b16 %v369
  %v1286 = vunpack.c.l.b16 %v370
  %v1287 = vunpack.c.l.b16 %v371
  %v1288 = vunpack.c.l.b16 %v372
  %v1289 = vunpack.c.l.b16 %v373
  %v1290 = vunpack.c.l.b16 %v374
  %v1291 = vunpack.c.l.b16 %v375
  %v1292 = vunpack.c.l.b16 %v376
  %v1293 = vunpack.c.l.b16 %v377
  %v1294 = vunpack.c.l.b16 %v378
  %v1295 = vunpack.c.l.b16 %v379
  %v1296 = vunpack.c.l.b16 %v380
  %v1297 = vunpack.c.l.b16 %v381
  %v1298 = vunpack.c.l.b16 %v382
  %v1299 = vunpack.c.l.b16 %v383
  %v1300 = vunpack.c.l.b16 %v384
  %v1301 = vunpack.c.l.b16 %v385
  %v1302 = vunpack.c.l.b16 %v386
  %v1303 = vunpack.c.l.b16 %v387
  %v1304 = vunpack.c.l.b16 %v388
  %v1305 = vunpack.c.l.b16 %v389
  %v1306 = vunpack.c.l.b16 %v390
  %v1307 = vunpack.c.l.b16 %v391
  %v1308 = vunpack.c.l.b16 %v392
  %v1309 = vunpack.c.l.b16 %v393
  %v1310 = vunpack.c.l.b16 %v394
  %v1311 = vunpack.c.l.b16 %v395
  %v1312 = vunpack.c.l.b16 %v396
  %v1313 = vunpack.c.l.b16 %v397
  %v1314 = vunpack.c.l.b16 %v398
  %v1315 = vunpack.c.l.b16 %v399
  %v1316 = vunpack.c.l.b16 %v400
  %v1317 = vunpack.c.l.b16 %v401
  %v1318 = vunpack.c.l.b16 %v402
  %v1319 = vunpack.c.l.b16 %v403
  %v1320 = vunpack.c.l.b16 %v404
  %v1321 = vunpack.c.l.b16 %v405
  %v1322 = vunpack.c.l.b16 %v406
  %v1323 = vunpack.c.l.b16 %v407
  %v1324 = vunpack.c.l.b16 %v408
  %v1325 = vunpack.c.l.b16 %v409
  %v1326 = vunpack.c.l.b16 %v410
  %v1327 = vunpack.c.l.b16 %v411
  %v1328 = vunpack.c.l.b16 %v412
  %v1329 = vunpack.c.l.b16 %v413
  %v1330 = vunpack.c.l.b16 %v414
  %v1331 = vunpack.c.l.b16 %v415
  %v1332 = vunpack.c.l.b16 %v416
  %v1333 = vunpack.c.l.b16 %v417
  %v1334 = vunpack.c.l.b16 %v418
  %v1335 = vunpack.c.l.b16 %v419
  %v1336 = vunpack.c.l.b16 %v420
  %v1337 = vunpack.c.l.b16 %v421
  %v1338 = vunpack.c.l.b16 %v422
  %v1339 = vunpack.c.l.b16 %v423
  %v1340 = vunpack.c.l.b16 %v424
  %v1341 = vunpack.c.l.b16 %v425
  %v1342 = vunpack.c.l.b16 %v426
  %v1343 = vunpack.c.l.b16 %v427
  %v1344 = vunpack.c.l.b16 %v428
  %v1345 = vunpack.c.l.b16 %v429
  %v1346 = vunpack.c.l.b16 %v430
  %v1347 = vunpack.c.l.b16 %v431
  %v1348 = vunpack.c.l.b16 %v432
  %v1349 = vunpack.c.l.b16 %v433
  %v1350 = vunpack.c.l.b16 %v434
  %v1351 = vunpack.c.l.b16 %v435
  %v1352 = vunpack.c.l.b16 %v436
  %v1353 = vunpack.c.l.b16 %v437
  %v1354 = vunpack.c.l.b16 %v438
  %v1355 = vpack.c.b16 %v964, %v963
  %v1356 = vpack.c.b16 %v966, %v965
  %v1357 = vpack.c.b16 %v968, %v967
  %v1358 = vpack.c.b16 %v970, %v969
  %v1359 = vpack.c.b16 %v972, %v971
  %v1360 = vpack.c.b16 %v974, %v973
  %v1361 = vpack.c.b16 %v976, %v975
  %v1362 = vpack.c.b16 %v978, %v977
  %v1363 = vpack.c.b16 %v980, %v979
  %v1364 = vpack.c.b16 %v982, %v981
  %v1365 = vpack.c.b16 %v984, %v983
  %v1366 = vpack.c.b16 %v986, %v985
  %v1367 = vpack.c.b16 %v988, %v987
  %v1368 = vpack.c.b16 %v990, %v989
  %v1369 = vpack.c.b16 %v992, %v991
  %v1370 = vpack.c.b16 %v994, %v993
  %v1371 = vpack.c.b16 %v996, %v995
  %v1372 = vpack.c.b16 %v998, %v997
  %v1373 = vpack.c.b16 %v1000, %v999
  %v1374 = vpack.c.b16 %v1002, %v1001
  %v1375 = vpack.c.b16 %v1004, %v1003
  %v1376 = vpack.c.b16 %v1006, %v1005
  %v1377 = vpack.c.b16 %v1008, %v1007
  %v1378 = vpack.c.b16 %v1010, %v1009
  %v1379 = vpack.c.b16 %v1012, %v1011
  %v1380 = vpack.c.b16 %v1014, %v1013
  %v1381 = vpack.c.b16 %v1016, %v1015
  %v1382 = vpack.c.b16 %v1018, %v1017
  %v1383 = vpack.c.b16 %v1020, %v1019
  %v1384 = vpack.c.b16 %v1022, %v1021
  %v1385 = vpack.c.b16 %v1024, %v1023
  %v1386 = vpack.c.b16 %v1026, %v1025
  %v1387 = vpack.c.b16 %v1028, %v1027
  %v1388 = vpack.c.b16 %v1030, %v1029
  %v1389 = vpack.c.b16 %v1032, %v1031
  %v1390 = vpack.c.b16 %v1034, %v1033
  %v1391 = vpack.c.b16 %v1036, %v1035
  %v1392 = vpack.c.b16 %v1038, %v1037
  %v1393 = vpack.c.b16 %v1040, %v1039
  %v1394 = vpack.c.b16 %v1042, %v1041
  %v1395 = vpack.c.b16 %v1044, %v1043
  %v1396 = vpack.c.b16 %v1046, %v1045
  %v1397 = vpack.c.b16 %v1048, %v1047
  %v1398 = vpack.c.b16 %v1050, %v1049
  %v1399 = vpack.c.b16 %v1052, %v1051
  %v1400 = vpack.c.b16 %v1054, %v1053
  %v1401 = vpack.c.b16 %v1056, %v1055
  %v1402 = vpack.c.b16 %v1058, %v1057
  %v1403 = vpack.c.b16 %v1060, %v1059
  %v1404 = vpack.c.b16 %v1062, %v1061
  %v1405 = vpack.c.b16 %v1064, %v1063
  %v1406 = vpack.c.b16 %v1066, %v1065
  %v1407 = vpack.c.b16 %v1068, %v1067
  %v1408 = vpack.c.b16 %v1070, %v1069
  %v1409 = vpack.c.b16 %v1072, %v1071
  %v1410 = vpack.c.b16 %v1074, %v1073
  %v1411 = vpack.c.b16 %v1076, %v1075
  %v1412 = vpack.c.b16 %v1078, %v1077
  %v1413 = vpack.c.b16 %v1080, %v1079
  %v1414 = vpack.c.b16 %v1082, %v1081
  %v1415 = vpack.c.b16 %v1084, %v1083
  %v1416 = vpack.c.b16 %v1086, %v1085
  %v1417 = vpack.c.b16 %v1088, %v1087
  %v1418 = vpack.c.b16 %v1090, %v1089
  %v1419 = vpack.c.b16 %v1092, %v1091
  %v1420 = vpack.c.b16 %v1094, %v1093
  %v1421 = vpack.c.b16 %v1096, %v1095
  %v1422 = vpack.c.b16 %v1098, %v1097
  %v1423 = vpack.c.b16 %v1100, %v1099
  %v1424 = vpack.c.b16 %v1102, %v1101
  %v1425 = vpack.c.b16 %v1104, %v1103
  %v1426 = vpack.c.b16 %v1106, %v1105
  %v1427 = vpack.c.b16 %v1108, %v1107
  %v1428 = vpack.c.b16 %v1110, %v1109
  %v1429 = vpack.c.b16 %v1112, %v1111
  %v1430 = vpack.c.b16 %v1114, %v1113
  %v1431 = vpack.c.b16 %v1116, %v1115
  %v1432 = vpack.c.b16 %v1118, %v1117
  %v1433 = vpack.c.b16 %v1120, %v1119
  %v1434 = vpack.c.b16 %v1122, %v1121
  %v1435 = vpack.c.b16 %v1124, %v1123
  %v1436 = vpack.c.b16 %v1126, %v1125
  %v1437 = vpack.c.b16 %v1128, %v1127
  %v1438 = vpack.c.b16 %v1130, %v1129
  %v1439 = vpack.c.b16 %v1132, %v1131
  %v1440 = vpack.c.b16 %v1134, %v1133
  %v1441 = vpack.c.b16 %v1136, %v1135
  %v1442 = vpack.c.b16 %v1138, %v1137
  %v1443 = vpack.c.b16 %v1140, %v1139
  %v1444 = vpack.c.b16 %v1142, %v1141
  %v1445 = vpack.c.b16 %v1144, %v1143
  %v1446 = vpack.c.b16 %v1146, %v1145
  %v1447 = vpack.c.b16 %v1148, %v1147
  %v1448 = vpack.c.b16 %v1150, %v1149
  %v1449 = vpack.c.b16 %v1152, %v1151
  %v1450 = vpack.c.b16 %v1154, %v1153
  %v1451 = vpack.c.b16 %v1156, %v1155
  %v1452 = vpack.c.b16 %v1158, %v1157
  %v1453 = vpack.c.b16 %v1160, %v1159
  %v1454 = vpack.c.b16 %v1162, %v1161
  %v1455 = vpack.c.b16 %v1164, %v1163
  %v1456 = vpack.c.b16 %v1166, %v1165
  %v1457 = vpack.c.b16 %v1168, %v1167
  %v1458 = vpack.c.b16 %v1170, %v1169
  %v1459 = vpack.c.b16 %v1172, %v1171
  %v1460 = vpack.c.b16 %v1174, %v1173
  %v1461 = vpack.c.b16 %v1176, %v1175
  %v1462 = vpack.c.b16 %v1178, %v1177
  %v1463 = vpack.c.b16 %v1180, %v1179
  %v1464 = vpack.c.b16 %v1182, %v1181
  %v1465 = vpack.c.b16 %v1184, %v1183
  %v1466 = vpack.c.b16 %v1186, %v1185
  %v1467 = vpack.c.b16 %v1188, %v1187
  %v1468 = vpack.c.b16 %v1190, %v1189
  %v1469 = vpack.c.b16 %v1192, %v1191
  %v1470 = vpack.c.b16 %v1194, %v1193
  %v1471 = vpack.c.b16 %v1196, %v1195
  %v1472 = vpack.c.b16 %v1198, %v1197
  %v1473 = vpack.c.b16 %v1200, %v1199
  %v1474 = vpack.c.b16 %v1202, %v1201
  %v1475 = vpack.c.b16 %v1204, %v1203
  %v1476 = vpack.c.b16 %v1206, %v1205
  %v1477 = vpack.c.b16 %v1208, %v1207
  %v1478 = vpack.c.b16 %v1210, %v1209
  %v1479 = vpack.c.b16 %v1212, %v1211
  %v1480 = vpack.c.b16 %v1214, %v1213
  %v1481 = vpack.c.b16 %v1216, %v1215
  %v1482 = vpack.c.b16 %v1218, %v1217
  %v1483 = vpack.c.b16 %v1220, %v1219
  %v1484 = vpack.c.b16 %v1222, %v1221
  %v1485 = vpack.c.b16 %v1224, %v1223
  %v1486 = vpack.c.b16 %v1226, %v1225
  %v1487 = vpack.c.b16 %v1228, %v1227
  %v1488 = vpack.c.b16 %v1230, %v1229
  %v1489 = vpack.c.b16 %v1232, %v1231
  %v1490 = vpack.c.b16 %v1234, %v1233
  %v1491 = vpack.c.b16 %v1236, %v1235
  %v1492 = vpack.c.b16 %v1238, %v1237
  %v1493 = vpack.c.b16 %v1240, %v1239
  %v1494 = vpack.c.b16 %v1242, %v1241
  %v1495 = vpack.c.b16 %v1244, %v1243
  %v1496 = vpack.c.b16 %v1246, %v1245
  %v1497 = vpack.c.b16 %v1248, %v1247
  %v1498 = vpack.c.b16 %v1250, %v1249
  %v1499 = vpack.c.b16 %v1252, %v1251
  %v1500 = vpack.c.b16 %v1254, %v1253
  %v1501 = vpack.c.b16 %v1256, %v1255
  %v1502 = vpack.c.b16 %v1258, %v1257
  %v1503 = vpack.c.b16 %v1260, %v1259
  %v1504 = vpack.c.b16 %v1262, %v1261
  %v1505 = vpack.c.b16 %v1264, %v1263
  %v1506 = vpack.c.b16 %v1266, %v1265
  %v1507 = vpack.c.b16 %v1268, %v1267
  %v1508 = vpack.c.b16 %v1270, %v1269
  %v1509 = vpack.c.b16 %v1272, %v1271
  %v1510 = vpack.c.b16 %v1274, %v1273
  %v1511 = vpack.c.b16 %v1276, %v1275
  %v1512 = vpack.c.b16 %v1278, %v1277
  %v1513 = vpack.c.b16 %v1280, %v1279
  %v1514 = vpack.c.b16 %v1282, %v1281
  %v1515 = vpack.c.b16 %v1284, %v1283
  %v1516 = vpack.c.b16 %v1286, %v1285
  %v1517 = vpack.c.b16 %v1288, %v1287
  %v1518 = vpack.c.b16 %v1290, %v1289
  %v1519 = vpack.c.b16 %v1292, %v1291
  %v1520 = vpack.c.b16 %v1294, %v1293
  %v1521 = vpack.c.b16 %v1296, %v1295
  %v1522 = vpack.c.b16 %v1298, %v1297
  %v1523 = vpack.c.b16 %v1300, %v1299
  %v1524 = vpack.c.b16 %v1302, %v1301
  %v1525 = vpack.c.b16 %v1304, %v1303
  %v1526 = vpack.c.b16 %v1306, %v1305
  %v1527 = vpack.c.b16 %v1308, %v1307
  %v1528 = vpack.c.b16 %v1310, %v1309
  %v1529 = vpack.c.b16 %v1312, %v1311
  %v1530 = vpack.c.b16 %v1314, %v1313
  %v1531 = vpack.c.b16 %v1316, %v1315
  %v1532 = vpack.c.b16 %v1318, %v1317
  %v1533 = vpack.c.b16 %v1320, %v1319
  %v1534 = vpack.c.b16 %v1322, %v1321
  %v1535 = vpack.c.b16 %v1324, %v1323
  %v1536 = vpack.c.b16 %v1326, %v1325
  %v1537 = vpack.c.b16 %v1328, %v1327
  %v1538 = vpack.c.b16 %v1330, %v1329
  %v1539 = vpack.c.b16 %v1332, %v1331
  %v1540 = vpack.c.b16 %v1334, %v1333
  %v1541 = vpack.c.b16 %v1336, %v1335
  %v1542 = vpack.c.b16 %v1338, %v1337
  %v1543 = vpack.c.b16 %v1340, %v1339
  %v1544 = vpack.c.b16 %v1342, %v1341
  %v1545 = vpack.c.b16 %v1344, %v1343
  %v1546 = vpack.c.b16 %v1346, %v1345
  %v1547 = vpack.c.b16 %v1348, %v1347
  %v1548 = vpack.c.b16 %v1350, %v1349
  %v1549 = vpack.c.b16 %v1352, %v1351
  %v1550 = vpack.c.b16 %v1354, %v1353
  %vm1747 = vcmask 523264
  %v1749 = vsel %vm1747, %v546, 0
  %1751 = vmatprep.subr.bf16.mxu0 0
  %1752 = vmatpush1.bf16.msra.mxu0 %v1355
  %1753 = vmatprep.subr.bf16.mxu0 0
  %1754 = vmatpush1.bf16.msra.mxu0 %v1356
  %1755 = vmatprep.subr.bf16.mxu0 0
  %1756 = vmatpush1.bf16.msra.mxu0 %v1357
  %1757 = vmatprep.subr.bf16.mxu0 0
  %1758 = vmatpush1.bf16.msra.mxu0 %v1358
  %1759 = vmatprep.subr.bf16.mxu0 0
  %1760 = vmatpush1.bf16.msra.mxu0 %v1359
  %1761 = vmatprep.subr.bf16.mxu0 0
  %1762 = vmatpush1.bf16.msra.mxu0 %v1360
  %1763 = vmatprep.subr.bf16.mxu0 0
  %1764 = vmatpush1.bf16.msra.mxu0 %v1361
  %1765 = vmatprep.subr.bf16.mxu0 0
  %1766 = vmatpush1.bf16.msra.mxu0 %v1362
  %1767 = vmatprep.subr.bf16.mxu0 0
  %1768 = vmatpush1.bf16.msra.mxu0 %v1363
  %1769 = vmatprep.subr.bf16.mxu0 0
  %1770 = vmatpush1.bf16.msra.mxu0 %v1364
  %1771 = vmatprep.subr.bf16.mxu0 0
  %1772 = vmatpush1.bf16.msra.mxu0 %v1365
  %1773 = vmatprep.subr.bf16.mxu0 0
  %1774 = vmatpush1.bf16.msra.mxu0 %v1366
  %1775 = vmatprep.subr.bf16.mxu0 0
  %1776 = vmatpush1.bf16.msra.mxu0 %v1367
  %1777 = vmatprep.subr.bf16.mxu0 0
  %1778 = vmatpush1.bf16.msra.mxu0 %v1368
  %1779 = vmatprep.subr.bf16.mxu0 0
  %1780 = vmatpush1.bf16.msra.mxu0 %v1369
  %1781 = vmatprep.subr.bf16.mxu0 0
  %1782 = vmatpush1.bf16.msra.mxu0 %v1370
  %1783 = vmatprep.mubr.bf16.mxu0 %v523
  %1784 = vmatmul.mubr.bf16.gmra.mrb[0].mxu0 %v522
  %v1785 = vpop.f32.mrb[0].mxu0
  %v1786 = vadd.f32 %v444, %v1785
  %v1787 = vpop.f32.mrb[0].mxu0
  %v1788 = vpop.f32.mrb[0].mxu0
  %v1789 = vadd.f32 %v444, %v1788
  %v1790 = vpop.f32.mrb[0].mxu0
  %1791 = vdwg.mxu0
  %1792 = vmatprep.subr.bf16.mxu0 0
  %1793 = vmatpush1.bf16.msra.mxu0 %v1371
  %1794 = vmatprep.subr.bf16.mxu0 0
  %1795 = vmatpush1.bf16.msra.mxu0 %v1372
  %1796 = vmatprep.subr.bf16.mxu0 0
  %1797 = vmatpush1.bf16.msra.mxu0 %v1373
  %1798 = vmatprep.subr.bf16.mxu0 0
  %1799 = vmatpush1.bf16.msra.mxu0 %v1374
  %1800 = vmatprep.subr.bf16.mxu0 0
  %1801 = vmatpush1.bf16.msra.mxu0 %v1375
  %1802 = vmatprep.subr.bf16.mxu0 0
  %1803 = vmatpush1.bf16.msra.mxu0 %v1376
  %1804 = vmatprep.subr.bf16.mxu0 0
  %1805 = vmatpush1.bf16.msra.mxu0 %v1377
  %1806 = vmatprep.subr.bf16.mxu0 0
  %1807 = vmatpush1.bf16.msra.mxu0 %v1378
  %1808 = vmatprep.subr.bf16.mxu0 0
  %1809 = vmatpush1.bf16.msra.mxu0 %v1379
  %1810 = vmatprep.subr.bf16.mxu0 0
  %1811 = vmatpush1.bf16.msra.mxu0 %v1380
  %1812 = vmatprep.subr.bf16.mxu0 0
  %1813 = vmatpush1.bf16.msra.mxu0 %v1381
  %1814 = vmatprep.subr.bf16.mxu0 0
  %1815 = vmatpush1.bf16.msra.mxu0 %v1382
  %1816 = vmatprep.subr.bf16.mxu0 0
  %1817 = vmatpush1.bf16.msra.mxu0 %v1383
  %1818 = vmatprep.subr.bf16.mxu0 0
  %1819 = vmatpush1.bf16.msra.mxu0 %v1384
  %1820 = vmatprep.subr.bf16.mxu0 0
  %1821 = vmatpush1.bf16.msra.mxu0 %v1385
  %1822 = vmatprep.subr.bf16.mxu0 0
  %1823 = vmatpush1.bf16.msra.mxu0 %v1386
  %1824 = vmatprep.mubr.bf16.mxu0 %v525
  %1825 = vmatmul.mubr.bf16.gmra.mrb[0].mxu0 %v524
  %v1826 = vpop.f32.mrb[0].mxu0
  %v1827 = vadd.f32 %v1786, %v1826
  %v1828 = vpop.f32.mrb[0].mxu0
  %v1829 = vpop.f32.mrb[0].mxu0
  %v1830 = vadd.f32 %v1789, %v1829
  %v1831 = vpop.f32.mrb[0].mxu0
  %1832 = vdwg.mxu0
  %1833 = vmatprep.subr.bf16.mxu0 0
  %1834 = vmatpush1.bf16.msra.mxu0 %v1387
  %1835 = vmatprep.subr.bf16.mxu0 0
  %1836 = vmatpush1.bf16.msra.mxu0 %v1388
  %1837 = vmatprep.subr.bf16.mxu0 0
  %1838 = vmatpush1.bf16.msra.mxu0 %v1389
  %1839 = vmatprep.subr.bf16.mxu0 0
  %1840 = vmatpush1.bf16.msra.mxu0 %v1390
  %1841 = vmatprep.subr.bf16.mxu0 0
  %1842 = vmatpush1.bf16.msra.mxu0 %v1391
  %1843 = vmatprep.subr.bf16.mxu0 0
  %1844 = vmatpush1.bf16.msra.mxu0 %v1392
  %1845 = vmatprep.subr.bf16.mxu0 0
  %1846 = vmatpush1.bf16.msra.mxu0 %v1393
  %1847 = vmatprep.subr.bf16.mxu0 0
  %1848 = vmatpush1.bf16.msra.mxu0 %v1394
  %1849 = vmatprep.subr.bf16.mxu0 0
  %1850 = vmatpush1.bf16.msra.mxu0 %v1395
  %1851 = vmatprep.subr.bf16.mxu0 0
  %1852 = vmatpush1.bf16.msra.mxu0 %v1396
  %1853 = vmatprep.subr.bf16.mxu0 0
  %1854 = vmatpush1.bf16.msra.mxu0 %v1397
  %1855 = vmatprep.subr.bf16.mxu0 0
  %1856 = vmatpush1.bf16.msra.mxu0 %v1398
  %1857 = vmatprep.subr.bf16.mxu0 0
  %1858 = vmatpush1.bf16.msra.mxu0 %v1399
  %1859 = vmatprep.subr.bf16.mxu0 0
  %1860 = vmatpush1.bf16.msra.mxu0 %v1400
  %1861 = vmatprep.subr.bf16.mxu0 0
  %1862 = vmatpush1.bf16.msra.mxu0 %v1401
  %1863 = vmatprep.subr.bf16.mxu0 0
  %1864 = vmatpush1.bf16.msra.mxu0 %v1402
  %1865 = vmatprep.mubr.bf16.mxu0 %v527
  %1866 = vmatmul.mubr.bf16.gmra.mrb[0].mxu0 %v526
  %v1867 = vpop.f32.mrb[0].mxu0
  %v1868 = vadd.f32 %v1827, %v1867
  %v1869 = vpop.f32.mrb[0].mxu0
  %v1870 = vpop.f32.mrb[0].mxu0
  %v1871 = vadd.f32 %v1830, %v1870
  %v1872 = vpop.f32.mrb[0].mxu0
  %1873 = vdwg.mxu0
  %1874 = vmatprep.subr.bf16.mxu0 0
  %1875 = vmatpush1.bf16.msra.mxu0 %v1403
  %1876 = vmatprep.subr.bf16.mxu0 0
  %1877 = vmatpush1.bf16.msra.mxu0 %v1404
  %1878 = vmatprep.subr.bf16.mxu0 0
  %1879 = vmatpush1.bf16.msra.mxu0 %v1405
  %1880 = vmatprep.subr.bf16.mxu0 0
  %1881 = vmatpush1.bf16.msra.mxu0 %v1406
  %1882 = vmatprep.subr.bf16.mxu0 0
  %1883 = vmatpush1.bf16.msra.mxu0 %v1407
  %1884 = vmatprep.subr.bf16.mxu0 0
  %1885 = vmatpush1.bf16.msra.mxu0 %v1408
  %1886 = vmatprep.subr.bf16.mxu0 0
  %1887 = vmatpush1.bf16.msra.mxu0 %v1409
  %1888 = vmatprep.subr.bf16.mxu0 0
  %1889 = vmatpush1.bf16.msra.mxu0 %v1410
  %1890 = vmatprep.subr.bf16.mxu0 0
  %1891 = vmatpush1.bf16.msra.mxu0 %v1411
  %1892 = vmatprep.subr.bf16.mxu0 0
  %1893 = vmatpush1.bf16.msra.mxu0 %v1412
  %1894 = vmatprep.subr.bf16.mxu0 0
  %1895 = vmatpush1.bf16.msra.mxu0 %v1413
  %1896 = vmatprep.subr.bf16.mxu0 0
  %1897 = vmatpush1.bf16.msra.mxu0 %v1414
  %1898 = vmatprep.subr.bf16.mxu0 0
  %1899 = vmatpush1.bf16.msra.mxu0 %v1415
  %1900 = vmatprep.subr.bf16.mxu0 0
  %1901 = vmatpush1.bf16.msra.mxu0 %v1416
  %1902 = vmatprep.subr.bf16.mxu0 0
  %1903 = vmatpush1.bf16.msra.mxu0 %v1417
  %1904 = vmatprep.subr.bf16.mxu0 0
  %1905 = vmatpush1.bf16.msra.mxu0 %v1418
  %1906 = vmatprep.mubr.bf16.mxu0 %v529
  %1907 = vmatmul.mubr.bf16.gmra.mrb[0].mxu0 %v528
  %v1908 = vpop.f32.mrb[0].mxu0
  %v1909 = vadd.f32 %v1868, %v1908
  %v1910 = vpop.f32.mrb[0].mxu0
  %v1911 = vpop.f32.mrb[0].mxu0
  %v1912 = vadd.f32 %v1871, %v1911
  %v1913 = vpop.f32.mrb[0].mxu0
  %1914 = vdwg.mxu0
  %1915 = vmatprep.subr.bf16.mxu0 0
  %1916 = vmatpush1.bf16.msra.mxu0 %v1419
  %1917 = vmatprep.subr.bf16.mxu0 0
  %1918 = vmatpush1.bf16.msra.mxu0 %v1420
  %1919 = vmatprep.subr.bf16.mxu0 0
  %1920 = vmatpush1.bf16.msra.mxu0 %v1421
  %1921 = vmatprep.subr.bf16.mxu0 0
  %1922 = vmatpush1.bf16.msra.mxu0 %v1422
  %1923 = vmatprep.subr.bf16.mxu0 0
  %1924 = vmatpush1.bf16.msra.mxu0 %v1423
  %1925 = vmatprep.subr.bf16.mxu0 0
  %1926 = vmatpush1.bf16.msra.mxu0 %v1424
  %1927 = vmatprep.subr.bf16.mxu0 0
  %1928 = vmatpush1.bf16.msra.mxu0 %v1425
  %1929 = vmatprep.subr.bf16.mxu0 0
  %1930 = vmatpush1.bf16.msra.mxu0 %v1426
  %1931 = vmatprep.subr.bf16.mxu0 0
  %1932 = vmatpush1.bf16.msra.mxu0 %v1427
  %1933 = vmatprep.subr.bf16.mxu0 0
  %1934 = vmatpush1.bf16.msra.mxu0 %v1428
  %1935 = vmatprep.subr.bf16.mxu0 0
  %1936 = vmatpush1.bf16.msra.mxu0 %v1429
  %1937 = vmatprep.subr.bf16.mxu0 0
  %1938 = vmatpush1.bf16.msra.mxu0 %v1430
  %1939 = vmatprep.subr.bf16.mxu0 0
  %1940 = vmatpush1.bf16.msra.mxu0 %v1431
  %1941 = vmatprep.subr.bf16.mxu0 0
  %1942 = vmatpush1.bf16.msra.mxu0 %v1432
  %1943 = vmatprep.subr.bf16.mxu0 0
  %1944 = vmatpush1.bf16.msra.mxu0 %v1433
  %1945 = vmatprep.subr.bf16.mxu0 0
  %1946 = vmatpush1.bf16.msra.mxu0 %v1434
  %1947 = vmatprep.mubr.bf16.mxu0 %v531
  %1948 = vmatmul.mubr.bf16.gmra.mrb[0].mxu0 %v530
  %v1949 = vpop.f32.mrb[0].mxu0
  %v1950 = vadd.f32 %v1909, %v1949
  %v1951 = vpop.f32.mrb[0].mxu0
  %v1952 = vpop.f32.mrb[0].mxu0
  %v1953 = vadd.f32 %v1912, %v1952
  %v1954 = vpop.f32.mrb[0].mxu0
  %1955 = vdwg.mxu0
  %1956 = vmatprep.subr.bf16.mxu0 0
  %1957 = vmatpush1.bf16.msra.mxu0 %v1435
  %1958 = vmatprep.subr.bf16.mxu0 0
  %1959 = vmatpush1.bf16.msra.mxu0 %v1436
  %1960 = vmatprep.subr.bf16.mxu0 0
  %1961 = vmatpush1.bf16.msra.mxu0 %v1437
  %1962 = vmatprep.subr.bf16.mxu0 0
  %1963 = vmatpush1.bf16.msra.mxu0 %v1438
  %1964 = vmatprep.subr.bf16.mxu0 0
  %1965 = vmatpush1.bf16.msra.mxu0 %v1439
  %1966 = vmatprep.subr.bf16.mxu0 0
  %1967 = vmatpush1.bf16.msra.mxu0 %v1440
  %1968 = vmatprep.subr.bf16.mxu0 0
  %1969 = vmatpush1.bf16.msra.mxu0 %v1441
  %1970 = vmatprep.subr.bf16.mxu0 0
  %1971 = vmatpush1.bf16.msra.mxu0 %v1442
  %1972 = vmatprep.subr.bf16.mxu0 0
  %1973 = vmatpush1.bf16.msra.mxu0 %v1443
  %1974 = vmatprep.subr.bf16.mxu0 0
  %1975 = vmatpush1.bf16.msra.mxu0 %v1444
  %1976 = vmatprep.subr.bf16.mxu0 0
  %1977 = vmatpush1.bf16.msra.mxu0 %v1445
  %1978 = vmatprep.subr.bf16.mxu0 0
  %1979 = vmatpush1.bf16.msra.mxu0 %v1446
  %1980 = vmatprep.subr.bf16.mxu0 0
  %1981 = vmatpush1.bf16.msra.mxu0 %v1447
  %1982 = vmatprep.subr.bf16.mxu0 0
  %1983 = vmatpush1.bf16.msra.mxu0 %v1448
  %1984 = vmatprep.subr.bf16.mxu0 0
  %1985 = vmatpush1.bf16.msra.mxu0 %v1449
  %1986 = vmatprep.subr.bf16.mxu0 0
  %1987 = vmatpush1.bf16.msra.mxu0 %v1450
  %1988 = vmatprep.mubr.bf16.mxu0 %v533
  %1989 = vmatmul.mubr.bf16.gmra.mrb[0].mxu0 %v532
  %v1990 = vpop.f32.mrb[0].mxu0
  %v1991 = vadd.f32 %v1950, %v1990
  %v1992 = vpop.f32.mrb[0].mxu0
  %v1993 = vpop.f32.mrb[0].mxu0
  %v1994 = vadd.f32 %v1953, %v1993
  %v1995 = vpop.f32.mrb[0].mxu0
  %1996 = vdwg.mxu0
  %1997 = vmatprep.subr.bf16.mxu0 0
  %1998 = vmatpush1.bf16.msra.mxu0 %v1451
  %1999 = vmatprep.subr.bf16.mxu0 0
  %2000 = vmatpush1.bf16.msra.mxu0 %v1452
  %2001 = vmatprep.subr.bf16.mxu0 0
  %2002 = vmatpush1.bf16.msra.mxu0 %v1453
  %2003 = vmatprep.subr.bf16.mxu0 0
  %2004 = vmatpush1.bf16.msra.mxu0 %v1454
  %2005 = vmatprep.subr.bf16.mxu0 0
  %2006 = vmatpush1.bf16.msra.mxu0 %v1455
  %2007 = vmatprep.subr.bf16.mxu0 0
  %2008 = vmatpush1.bf16.msra.mxu0 %v1456
  %2009 = vmatprep.subr.bf16.mxu0 0
  %2010 = vmatpush1.bf16.msra.mxu0 %v1457
  %2011 = vmatprep.subr.bf16.mxu0 0
  %2012 = vmatpush1.bf16.msra.mxu0 %v1458
  %2013 = vmatprep.subr.bf16.mxu0 0
  %2014 = vmatpush1.bf16.msra.mxu0 %v1459
  %2015 = vmatprep.subr.bf16.mxu0 0
  %2016 = vmatpush1.bf16.msra.mxu0 %v1460
  %2017 = vmatprep.subr.bf16.mxu0 0
  %2018 = vmatpush1.bf16.msra.mxu0 %v1461
  %2019 = vmatprep.subr.bf16.mxu0 0
  %2020 = vmatpush1.bf16.msra.mxu0 %v1462
  %2021 = vmatprep.subr.bf16.mxu0 0
  %2022 = vmatpush1.bf16.msra.mxu0 %v1463
  %2023 = vmatprep.subr.bf16.mxu0 0
  %2024 = vmatpush1.bf16.msra.mxu0 %v1464
  %2025 = vmatprep.subr.bf16.mxu0 0
  %2026 = vmatpush1.bf16.msra.mxu0 %v1465
  %2027 = vmatprep.subr.bf16.mxu0 0
  %2028 = vmatpush1.bf16.msra.mxu0 %v1466
  %2029 = vmatprep.mubr.bf16.mxu0 %v535
  %2030 = vmatmul.mubr.bf16.gmra.mrb[0].mxu0 %v534
  %v2031 = vpop.f32.mrb[0].mxu0
  %v2032 = vadd.f32 %v1991, %v2031
  %v2033 = vpop.f32.mrb[0].mxu0
  %v2034 = vpop.f32.mrb[0].mxu0
  %v2035 = vadd.f32 %v1994, %v2034
  %v2036 = vpop.f32.mrb[0].mxu0
  %2037 = vdwg.mxu0
  %2038 = vmatprep.subr.bf16.mxu0 0
  %2039 = vmatpush1.bf16.msra.mxu0 %v1467
  %2040 = vmatprep.subr.bf16.mxu0 0
  %2041 = vmatpush1.bf16.msra.mxu0 %v1468
  %2042 = vmatprep.subr.bf16.mxu0 0
  %2043 = vmatpush1.bf16.msra.mxu0 %v1469
  %2044 = vmatprep.subr.bf16.mxu0 0
  %2045 = vmatpush1.bf16.msra.mxu0 %v1470
  %2046 = vmatprep.subr.bf16.mxu0 0
  %2047 = vmatpush1.bf16.msra.mxu0 %v1471
  %2048 = vmatprep.subr.bf16.mxu0 0
  %2049 = vmatpush1.bf16.msra.mxu0 %v1472
  %2050 = vmatprep.subr.bf16.mxu0 0
  %2051 = vmatpush1.bf16.msra.mxu0 %v1473
  %2052 = vmatprep.subr.bf16.mxu0 0
  %2053 = vmatpush1.bf16.msra.mxu0 %v1474
  %2054 = vmatprep.subr.bf16.mxu0 0
  %2055 = vmatpush1.bf16.msra.mxu0 %v1475
  %2056 = vmatprep.subr.bf16.mxu0 0
  %2057 = vmatpush1.bf16.msra.mxu0 %v1476
  %2058 = vmatprep.subr.bf16.mxu0 0
  %2059 = vmatpush1.bf16.msra.mxu0 %v1477
  %2060 = vmatprep.subr.bf16.mxu0 0
  %2061 = vmatpush1.bf16.msra.mxu0 %v1478
  %2062 = vmatprep.subr.bf16.mxu0 0
  %2063 = vmatpush1.bf16.msra.mxu0 %v1479
  %2064 = vmatprep.subr.bf16.mxu0 0
  %2065 = vmatpush1.bf16.msra.mxu0 %v1480
  %2066 = vmatprep.subr.bf16.mxu0 0
  %2067 = vmatpush1.bf16.msra.mxu0 %v1481
  %2068 = vmatprep.subr.bf16.mxu0 0
  %2069 = vmatpush1.bf16.msra.mxu0 %v1482
  %2070 = vmatprep.mubr.bf16.mxu0 %v537
  %2071 = vmatmul.mubr.bf16.gmra.mrb[0].mxu0 %v536
  %v2072 = vpop.f32.mrb[0].mxu0
  %v2073 = vadd.f32 %v2032, %v2072
  %v2074 = vpop.f32.mrb[0].mxu0
  %v2075 = vpop.f32.mrb[0].mxu0
  %v2076 = vadd.f32 %v2035, %v2075
  %v2077 = vpop.f32.mrb[0].mxu0
  %2078 = vdwg.mxu0
  %2079 = vmatprep.subr.bf16.mxu0 0
  %2080 = vmatpush1.bf16.msra.mxu0 %v1483
  %2081 = vmatprep.subr.bf16.mxu0 0
  %2082 = vmatpush1.bf16.msra.mxu0 %v1484
  %2083 = vmatprep.subr.bf16.mxu0 0
  %2084 = vmatpush1.bf16.msra.mxu0 %v1485
  %2085 = vmatprep.subr.bf16.mxu0 0
  %2086 = vmatpush1.bf16.msra.mxu0 %v1486
  %2087 = vmatprep.subr.bf16.mxu0 0
  %2088 = vmatpush1.bf16.msra.mxu0 %v1487
  %2089 = vmatprep.subr.bf16.mxu0 0
  %2090 = vmatpush1.bf16.msra.mxu0 %v1488
  %2091 = vmatprep.subr.bf16.mxu0 0
  %2092 = vmatpush1.bf16.msra.mxu0 %v1489
  %2093 = vmatprep.subr.bf16.mxu0 0
  %2094 = vmatpush1.bf16.msra.mxu0 %v1490
  %2095 = vmatprep.subr.bf16.mxu0 0
  %2096 = vmatpush1.bf16.msra.mxu0 %v1491
  %2097 = vmatprep.subr.bf16.mxu0 0
  %2098 = vmatpush1.bf16.msra.mxu0 %v1492
  %2099 = vmatprep.subr.bf16.mxu0 0
  %2100 = vmatpush1.bf16.msra.mxu0 %v1493
  %2101 = vmatprep.subr.bf16.mxu0 0
  %2102 = vmatpush1.bf16.msra.mxu0 %v1494
  %2103 = vmatprep.subr.bf16.mxu0 0
  %2104 = vmatpush1.bf16.msra.mxu0 %v1495
  %2105 = vmatprep.subr.bf16.mxu0 0
  %2106 = vmatpush1.bf16.msra.mxu0 %v1496
  %2107 = vmatprep.subr.bf16.mxu0 0
  %2108 = vmatpush1.bf16.msra.mxu0 %v1497
  %2109 = vmatprep.subr.bf16.mxu0 0
  %2110 = vmatpush1.bf16.msra.mxu0 %v1498
  %2111 = vmatprep.mubr.bf16.mxu0 %v539
  %2112 = vmatmul.mubr.bf16.gmra.mrb[0].mxu0 %v538
  %v2113 = vpop.f32.mrb[0].mxu0
  %v2114 = vadd.f32 %v2073, %v2113
  %v2115 = vpop.f32.mrb[0].mxu0
  %v2116 = vpop.f32.mrb[0].mxu0
  %v2117 = vadd.f32 %v2076, %v2116
  %v2118 = vpop.f32.mrb[0].mxu0
  %2119 = vdwg.mxu0
  %2120 = vmatprep.subr.bf16.mxu0 0
  %2121 = vmatpush1.bf16.msra.mxu0 %v1499
  %2122 = vmatprep.subr.bf16.mxu0 0
  %2123 = vmatpush1.bf16.msra.mxu0 %v1500
  %2124 = vmatprep.subr.bf16.mxu0 0
  %2125 = vmatpush1.bf16.msra.mxu0 %v1501
  %2126 = vmatprep.subr.bf16.mxu0 0
  %2127 = vmatpush1.bf16.msra.mxu0 %v1502
  %2128 = vmatprep.subr.bf16.mxu0 0
  %2129 = vmatpush1.bf16.msra.mxu0 %v1503
  %2130 = vmatprep.subr.bf16.mxu0 0
  %2131 = vmatpush1.bf16.msra.mxu0 %v1504
  %2132 = vmatprep.subr.bf16.mxu0 0
  %2133 = vmatpush1.bf16.msra.mxu0 %v1505
  %2134 = vmatprep.subr.bf16.mxu0 0
  %2135 = vmatpush1.bf16.msra.mxu0 %v1506
  %2136 = vmatprep.subr.bf16.mxu0 0
  %2137 = vmatpush1.bf16.msra.mxu0 %v1507
  %2138 = vmatprep.subr.bf16.mxu0 0
  %2139 = vmatpush1.bf16.msra.mxu0 %v1508
  %2140 = vmatprep.subr.bf16.mxu0 0
  %2141 = vmatpush1.bf16.msra.mxu0 %v1509
  %2142 = vmatprep.subr.bf16.mxu0 0
  %2143 = vmatpush1.bf16.msra.mxu0 %v1510
  %2144 = vmatprep.subr.bf16.mxu0 0
  %2145 = vmatpush1.bf16.msra.mxu0 %v1511
  %2146 = vmatprep.subr.bf16.mxu0 0
  %2147 = vmatpush1.bf16.msra.mxu0 %v1512
  %2148 = vmatprep.subr.bf16.mxu0 0
  %2149 = vmatpush1.bf16.msra.mxu0 %v1513
  %2150 = vmatprep.subr.bf16.mxu0 0
  %2151 = vmatpush1.bf16.msra.mxu0 %v1514
  %2152 = vmatprep.mubr.bf16.mxu0 %v541
  %2153 = vmatmul.mubr.bf16.gmra.mrb[0].mxu0 %v540
  %v2154 = vpop.f32.mrb[0].mxu0
  %v2155 = vadd.f32 %v2114, %v2154
  %v2156 = vpop.f32.mrb[0].mxu0
  %v2157 = vpop.f32.mrb[0].mxu0
  %v2158 = vadd.f32 %v2117, %v2157
  %v2159 = vpop.f32.mrb[0].mxu0
  %2160 = vdwg.mxu0
  %2161 = vmatprep.subr.bf16.mxu0 0
  %2162 = vmatpush1.bf16.msra.mxu0 %v1515
  %2163 = vmatprep.subr.bf16.mxu0 0
  %2164 = vmatpush1.bf16.msra.mxu0 %v1516
  %2165 = vmatprep.subr.bf16.mxu0 0
  %2166 = vmatpush1.bf16.msra.mxu0 %v1517
  %2167 = vmatprep.subr.bf16.mxu0 0
  %2168 = vmatpush1.bf16.msra.mxu0 %v1518
  %2169 = vmatprep.subr.bf16.mxu0 0
  %2170 = vmatpush1.bf16.msra.mxu0 %v1519
  %2171 = vmatprep.subr.bf16.mxu0 0
  %2172 = vmatpush1.bf16.msra.mxu0 %v1520
  %2173 = vmatprep.subr.bf16.mxu0 0
  %2174 = vmatpush1.bf16.msra.mxu0 %v1521
  %2175 = vmatprep.subr.bf16.mxu0 0
  %2176 = vmatpush1.bf16.msra.mxu0 %v1522
  %2177 = vmatprep.subr.bf16.mxu0 0
  %2178 = vmatpush1.bf16.msra.mxu0 %v1523
  %2179 = vmatprep.subr.bf16.mxu0 0
  %2180 = vmatpush1.bf16.msra.mxu0 %v1524
  %2181 = vmatprep.subr.bf16.mxu0 0
  %2182 = vmatpush1.bf16.msra.mxu0 %v1525
  %2183 = vmatprep.subr.bf16.mxu0 0
  %2184 = vmatpush1.bf16.msra.mxu0 %v1526
  %2185 = vmatprep.subr.bf16.mxu0 0
  %2186 = vmatpush1.bf16.msra.mxu0 %v1527
  %2187 = vmatprep.subr.bf16.mxu0 0
  %2188 = vmatpush1.bf16.msra.mxu0 %v1528
  %2189 = vmatprep.subr.bf16.mxu0 0
  %2190 = vmatpush1.bf16.msra.mxu0 %v1529
  %2191 = vmatprep.subr.bf16.mxu0 0
  %2192 = vmatpush1.bf16.msra.mxu0 %v1530
  %2193 = vmatprep.mubr.bf16.mxu0 %v543
  %2194 = vmatmul.mubr.bf16.gmra.mrb[0].mxu0 %v542
  %v2195 = vpop.f32.mrb[0].mxu0
  %v2196 = vadd.f32 %v2155, %v2195
  %v2197 = vpop.f32.mrb[0].mxu0
  %v2198 = vpop.f32.mrb[0].mxu0
  %v2199 = vadd.f32 %v2158, %v2198
  %v2200 = vpop.f32.mrb[0].mxu0
  %2201 = vdwg.mxu0
  %2202 = vmatprep.subr.bf16.mxu0 0
  %2203 = vmatpush1.bf16.msra.mxu0 %v1531
  %2204 = vmatprep.subr.bf16.mxu0 0
  %2205 = vmatpush1.bf16.msra.mxu0 %v1532
  %2206 = vmatprep.subr.bf16.mxu0 0
  %2207 = vmatpush1.bf16.msra.mxu0 %v1533
  %2208 = vmatprep.subr.bf16.mxu0 0
  %2209 = vmatpush1.bf16.msra.mxu0 %v1534
  %2210 = vmatprep.subr.bf16.mxu0 0
  %2211 = vmatpush1.bf16.msra.mxu0 %v1535
  %2212 = vmatprep.subr.bf16.mxu0 0
  %2213 = vmatpush1.bf16.msra.mxu0 %v1536
  %2214 = vmatprep.subr.bf16.mxu0 0
  %2215 = vmatpush1.bf16.msra.mxu0 %v1537
  %2216 = vmatprep.subr.bf16.mxu0 0
  %2217 = vmatpush1.bf16.msra.mxu0 %v1538
  %2218 = vmatprep.subr.bf16.mxu0 0
  %2219 = vmatpush1.bf16.msra.mxu0 %v1539
  %2220 = vmatprep.subr.bf16.mxu0 0
  %2221 = vmatpush1.bf16.msra.mxu0 %v1540
  %2222 = vmatprep.subr.bf16.mxu0 0
  %2223 = vmatpush1.bf16.msra.mxu0 %v1541
  %2224 = vmatprep.subr.bf16.mxu0 0
  %2225 = vmatpush1.bf16.msra.mxu0 %v1542
  %2226 = vmatprep.subr.bf16.mxu0 0
  %2227 = vmatpush1.bf16.msra.mxu0 %v1543
  %2228 = vmatprep.subr.bf16.mxu0 0
  %2229 = vmatpush1.bf16.msra.mxu0 %v1544
  %2230 = vmatprep.subr.bf16.mxu0 0
  %2231 = vmatpush1.bf16.msra.mxu0 %v1545
  %2232 = vmatprep.subr.bf16.mxu0 0
  %2233 = vmatpush1.bf16.msra.mxu0 %v1546
  %2234 = vmatprep.mubr.bf16.mxu0 %v545
  %2235 = vmatmul.mubr.bf16.gmra.mrb[0].mxu0 %v544
  %v2236 = vpop.f32.mrb[0].mxu0
  %v2237 = vadd.f32 %v2196, %v2236
  %v2238 = vpop.f32.mrb[0].mxu0
  %v2239 = vpop.f32.mrb[0].mxu0
  %v2240 = vadd.f32 %v2199, %v2239
  %v2241 = vpop.f32.mrb[0].mxu0
  %2242 = vdwg.mxu0
  %2243 = vmatprep.subr.bf16.mxu0 0
  %2244 = vmatpush1.bf16.msra.mxu0 %v1547
  %2245 = vmatprep.subr.bf16.mxu0 0
  %2246 = vmatpush1.bf16.msra.mxu0 %v1548
  %2247 = vmatprep.subr.bf16.mxu0 0
  %2248 = vmatpush1.bf16.msra.mxu0 %v1549
  %2249 = vmatprep.subr.bf16.mxu0 0
  %2250 = vmatpush1.bf16.msra.mxu0 %v1550
  %2251 = vmatprep.subr.bf16.mxu0 0
  %2252 = vmatpush1.bf16.msra.mxu0 0
  %2253 = vmatprep.subr.bf16.mxu0 0
  %2254 = vmatpush1.bf16.msra.mxu0 0
  %2255 = vmatprep.subr.bf16.mxu0 0
  %2256 = vmatpush1.bf16.msra.mxu0 0
  %2257 = vmatprep.subr.bf16.mxu0 0
  %2258 = vmatpush1.bf16.msra.mxu0 0
  %2259 = vmatprep.subr.bf16.mxu0 0
  %2260 = vmatpush1.bf16.msra.mxu0 0
  %2261 = vmatprep.subr.bf16.mxu0 0
  %2262 = vmatpush1.bf16.msra.mxu0 0
  %2263 = vmatprep.subr.bf16.mxu0 0
  %2264 = vmatpush1.bf16.msra.mxu0 0
  %2265 = vmatprep.subr.bf16.mxu0 0
  %2266 = vmatpush1.bf16.msra.mxu0 0
  %2267 = vmatprep.subr.bf16.mxu0 0
  %2268 = vmatpush1.bf16.msra.mxu0 0
  %2269 = vmatprep.subr.bf16.mxu0 0
  %2270 = vmatpush1.bf16.msra.mxu0 0
  %2271 = vmatprep.subr.bf16.mxu0 0
  %2272 = vmatpush1.bf16.msra.mxu0 0
  %2273 = vmatprep.subr.bf16.mxu0 0
  %2274 = vmatpush1.bf16.msra.mxu0 0
  %2275 = vmatprep.mubr.bf16.mxu0 0
  %2276 = vmatmul.mubr.bf16.gmra.mrb[0].mxu0 %v1749
  %v2277 = vpop.f32.mrb[0].mxu0
  %v2278 = vadd.f32 %v2237, %v2277
  %v2279 = vpop.f32.mrb[0].mxu0
  %v2280 = vpop.f32.mrb[0].mxu0
  %v2281 = vadd.f32 %v2240, %v2280
  %v2282 = vpop.f32.mrb[0].mxu0
  %2283 = vdwg.mxu0
  %v2284 = vmax.f32 %v2278, 0.0
  %v2285 = vmax.f32 %v2281, 0.0
  %v2286 = vpack.c.bf16 %v2285, %v2284
  %v2287 = vld [vmem:[%s3] sm:$0xf]
  %v2288 = vld [vmem:[%s3 + $0x4] sm:$0xf]
  %v2289 = vld [vmem:[%s3 + $0x8] sm:$0xf]
  %v2290 = vld [vmem:[%s3 + $0xc] sm:$0xf]
  %v2291 = vld [vmem:[%s3 + $0x10] sm:$0xf]
  %v2292 = vld [vmem:[%s3 + $0x14] sm:$0xf]
  %v2293 = vld [vmem:[%s3 + $0x18] sm:$0xf]
  %v2294 = vld [vmem:[%s3 + $0x1c] sm:$0xf]
  %v2295 = vld [vmem:[%s3 + $0x20] sm:$0xf]
  %v2296 = vld [vmem:[%s3 + $0x24] sm:$0xf]
  %v2297 = vld [vmem:[%s3 + $0x28] sm:$0xf]
  %v2298 = vld [vmem:[%s3 + $0x2c] sm:$0xf]
  %v2299 = vld [vmem:[%s3 + $0x30] sm:$0xf]
  %v2300 = vld [vmem:[%s3 + $0x34] sm:$0xf]
  %v2301 = vld [vmem:[%s3 + $0x38] sm:$0xf]
  %v2302 = vld [vmem:[%s3 + $0x3c] sm:$0xf]
  %v2303 = vld [vmem:[%s4] sm:$0x1]
  %v2305 = vlaneseq
  %v2306 = vshrl.u32 %v2305, 7
  %v2307 = vsub.s32 0, %v2306
  %v2308 = vrot.slane %v2303, %v2307
  %v2326 = vunpack.c.l.b16 %v2287
  %v2327 = vunpack.c.l.b16 %v2288
  %v2328 = vunpack.c.l.b16 %v2289
  %v2329 = vunpack.c.l.b16 %v2290
  %v2330 = vunpack.c.l.b16 %v2291
  %v2331 = vunpack.c.l.b16 %v2292
  %v2332 = vunpack.c.l.b16 %v2293
  %v2333 = vunpack.c.l.b16 %v2294
  %v2334 = vunpack.c.l.b16 %v2295
  %v2335 = vunpack.c.l.b16 %v2296
  %v2336 = vunpack.c.l.b16 %v2297
  %v2337 = vunpack.c.l.b16 %v2298
  %v2338 = vunpack.c.l.b16 %v2299
  %v2339 = vunpack.c.l.b16 %v2300
  %v2340 = vunpack.c.l.b16 %v2301
  %v2341 = vunpack.c.l.b16 %v2302
  %v2342 = vpack.c.b16 %v2327, %v2326
  %v2343 = vpack.c.b16 %v2329, %v2328
  %v2344 = vpack.c.b16 %v2331, %v2330
  %v2345 = vpack.c.b16 %v2333, %v2332
  %v2346 = vpack.c.b16 %v2335, %v2334
  %v2347 = vpack.c.b16 %v2337, %v2336
  %v2348 = vpack.c.b16 %v2339, %v2338
  %v2349 = vpack.c.b16 %v2341, %v2340
  %2358 = vmatprep.subr.bf16.mxu0 0
  %2359 = vmatpush1.bf16.msra.mxu0 %v2342
  %2360 = vmatprep.subr.bf16.mxu0 0
  %2361 = vmatpush1.bf16.msra.mxu0 %v2343
  %2362 = vmatprep.subr.bf16.mxu0 0
  %2363 = vmatpush1.bf16.msra.mxu0 %v2344
  %2364 = vmatprep.subr.bf16.mxu0 0
  %2365 = vmatpush1.bf16.msra.mxu0 %v2345
  %2366 = vmatprep.subr.bf16.mxu0 0
  %2367 = vmatpush1.bf16.msra.mxu0 %v2346
  %2368 = vmatprep.subr.bf16.mxu0 0
  %2369 = vmatpush1.bf16.msra.mxu0 %v2347
  %2370 = vmatprep.subr.bf16.mxu0 0
  %2371 = vmatpush1.bf16.msra.mxu0 %v2348
  %2372 = vmatprep.subr.bf16.mxu0 0
  %2373 = vmatpush1.bf16.msra.mxu0 %v2349
  %2374 = vmatprep.subr.bf16.mxu0 0
  %2375 = vmatpush1.bf16.msra.mxu0 0
  %2376 = vmatprep.subr.bf16.mxu0 0
  %2377 = vmatpush1.bf16.msra.mxu0 0
  %2378 = vmatprep.subr.bf16.mxu0 0
  %2379 = vmatpush1.bf16.msra.mxu0 0
  %2380 = vmatprep.subr.bf16.mxu0 0
  %2381 = vmatpush1.bf16.msra.mxu0 0
  %2382 = vmatprep.subr.bf16.mxu0 0
  %2383 = vmatpush1.bf16.msra.mxu0 0
  %2384 = vmatprep.subr.bf16.mxu0 0
  %2385 = vmatpush1.bf16.msra.mxu0 0
  %2386 = vmatprep.subr.bf16.mxu0 0
  %2387 = vmatpush1.bf16.msra.mxu0 0
  %2388 = vmatprep.subr.bf16.mxu0 0
  %2389 = vmatpush1.bf16.msra.mxu0 0
  %2390 = vmatprep.mubr.bf16.mxu0 0
  %2391 = vmatmul.mubr.bf16.gmra.mrb[0].mxu0 %v2286
  %v2392 = vpop.f32.mrb[0].mxu0
  %v2393 = vadd.f32 %v2308, %v2392
  %v2394 = vpop.f32.mrb[0].mxu0
  %v2395 = vpop.f32.mrb[0].mxu0
  %v2396 = vadd.f32 %v2308, %v2395
  %v2397 = vpop.f32.mrb[0].mxu0
  %2398 = vdwg.mxu0
  %2399 = vst [vmem:[%s5] sm:$0xff] %v2393
  %2400 = vst [vmem:[%s5 + $0x8] sm:$0xff] %v2396
  // Predicated region
  $region22: #{cnn_forward.5} parent=0 // pred_check
    _
  $region23: #{cnn_forward.5} parent=0 // pred_check_branch
    %2402 = sbr.rel (0) target = $region25
  $region24: #{cnn_forward.5} parent=0 // pred_region
    _
  $region25: #{cnn_forward.5} parent=0 // pred_fallthru
    _
  // Predicated region
  $region26: #{cnn_forward.5} parent=0 // pred_check
    _
  $region27: #{cnn_forward.5} parent=0 // pred_check_branch
    %2404 = sbr.rel (0) target = $region29
  $region28: #{cnn_forward.5} parent=0 // pred_region
    _
  $region29: #{cnn_forward.5} parent=0 // pred_fallthru
    _

// kernel: cnn_forward.4
$region0: #{cnn_forward.4}
  #allocation0 [shape = 'u32[]', space=smem, size = 0x4, offset = 0x4, fixed_abs, tag = 'smem constant byte address 0x4 - core index']
  #allocation1 [shape = 'u32[144,128]{1,0:T(1,128)}', space=vmem, size = 0x12000, scoped, tag = 'internal scratch']
  %s0 = inlined_call_operand.vmem [shape: bf16[4,112,1152], index: 0, kind: input, shape index: {}]
  %s1 = inlined_call_operand.vmem [shape: bf16[1152,128], index: 1, kind: input, shape index: {}]
  %s2 = inlined_call_operand.vmem [shape: f32[1,128], index: 2, kind: input, shape index: {}]
  %s3 = inlined_call_operand.vmem [shape: bf16[112,128], index: 3, kind: output, shape index: {}]
  %s4 = sld [smem:[#allocation0]]
  $region22: #{cnn_forward.4} parent=0
    _
  %s6 = ssub.s32 1, %s4
  %s7 = scalar_select 0, %s6, %s4
  // Predicated region
  $region2: #{cnn_forward.4} parent=0 // pred_check
    _
  $region3: #{cnn_forward.4} parent=0 // pred_check_branch
    %9 = sbr.rel (0) target = $region5
  $region4: #{cnn_forward.4} parent=0 // pred_region
    _
  $region5: #{cnn_forward.4} parent=0 // pred_fallthru
    _
  // Predicated region
  $region6: #{cnn_forward.4} parent=0 // pred_check
    _
  $region7: #{cnn_forward.4} parent=0 // pred_check_branch
    %11 = sbr.rel (0) target = $region9
  $region8: #{cnn_forward.4} parent=0 // pred_region
    _
  $region9: #{cnn_forward.4} parent=0 // pred_fallthru
    _
  // Predicated region
  $region10: #{cnn_forward.4} parent=0 // pred_check
    _
  $region11: #{cnn_forward.4} parent=0 // pred_check_branch
    %13 = sbr.rel (0) target = $region13
  $region12: #{cnn_forward.4} parent=0 // pred_region
    _
  $region13: #{cnn_forward.4} parent=0 // pred_fallthru
    _
  %v15 = vld [vmem:[%s1] sm:$0xf]
  %v16 = vld [vmem:[%s1 + $0x4] sm:$0xf]
  %v17 = vld [vmem:[%s1 + $0x8] sm:$0xf]
  %v18 = vld [vmem:[%s1 + $0xc] sm:$0xf]
  %v19 = vld [vmem:[%s1 + $0x10] sm:$0xf]
  %v20 = vld [vmem:[%s1 + $0x14] sm:$0xf]
  %v21 = vld [vmem:[%s1 + $0x18] sm:$0xf]
  %v22 = vld [vmem:[%s1 + $0x1c] sm:$0xf]
  %v23 = vld [vmem:[%s1 + $0x20] sm:$0xf]
  %v24 = vld [vmem:[%s1 + $0x24] sm:$0xf]
  %v25 = vld [vmem:[%s1 + $0x28] sm:$0xf]
  %v26 = vld [vmem:[%s1 + $0x2c] sm:$0xf]
  %v27 = vld [vmem:[%s1 + $0x30] sm:$0xf]
  %v28 = vld [vmem:[%s1 + $0x34] sm:$0xf]
  %v29 = vld [vmem:[%s1 + $0x38] sm:$0xf]
  %v30 = vld [vmem:[%s1 + $0x3c] sm:$0xf]
  %v31 = vld [vmem:[%s1 + $0x40] sm:$0xf]
  %v32 = vld [vmem:[%s1 + $0x44] sm:$0xf]
  %v33 = vld [vmem:[%s1 + $0x48] sm:$0xf]
  %v34 = vld [vmem:[%s1 + $0x4c] sm:$0xf]
  %v35 = vld [vmem:[%s1 + $0x50] sm:$0xf]
  %v36 = vld [vmem:[%s1 + $0x54] sm:$0xf]
  %v37 = vld [vmem:[%s1 + $0x58] sm:$0xf]
  %v38 = vld [vmem:[%s1 + $0x5c] sm:$0xf]
  %v39 = vld [vmem:[%s1 + $0x60] sm:$0xf]
  %v40 = vld [vmem:[%s1 + $0x64] sm:$0xf]
  %v41 = vld [vmem:[%s1 + $0x68] sm:$0xf]
  %v42 = vld [vmem:[%s1 + $0x6c] sm:$0xf]
  %v43 = vld [vmem:[%s1 + $0x70] sm:$0xf]
  %v44 = vld [vmem:[%s1 + $0x74] sm:$0xf]
  %v45 = vld [vmem:[%s1 + $0x78] sm:$0xf]
  %v46 = vld [vmem:[%s1 + $0x7c] sm:$0xf]
  %v47 = vld [vmem:[%s1 + $0x80] sm:$0xf]
  %v48 = vld [vmem:[%s1 + $0x84] sm:$0xf]
  %v49 = vld [vmem:[%s1 + $0x88] sm:$0xf]
  %v50 = vld [vmem:[%s1 + $0x8c] sm:$0xf]
  %v51 = vld [vmem:[%s1 + $0x90] sm:$0xf]
  %v52 = vld [vmem:[%s1 + $0x94] sm:$0xf]
  %v53 = vld [vmem:[%s1 + $0x98] sm:$0xf]
  %v54 = vld [vmem:[%s1 + $0x9c] sm:$0xf]
  %v55 = vld [vmem:[%s1 + $0xa0] sm:$0xf]
  %v56 = vld [vmem:[%s1 + $0xa4] sm:$0xf]
  %v57 = vld [vmem:[%s1 + $0xa8] sm:$0xf]
  %v58 = vld [vmem:[%s1 + $0xac] sm:$0xf]
  %v59 = vld [vmem:[%s1 + $0xb0] sm:$0xf]
  %v60 = vld [vmem:[%s1 + $0xb4] sm:$0xf]
  %v61 = vld [vmem:[%s1 + $0xb8] sm:$0xf]
  %v62 = vld [vmem:[%s1 + $0xbc] sm:$0xf]
  %v63 = vld [vmem:[%s1 + $0xc0] sm:$0xf]
  %v64 = vld [vmem:[%s1 + $0xc4] sm:$0xf]
  %v65 = vld [vmem:[%s1 + $0xc8] sm:$0xf]
  %v66 = vld [vmem:[%s1 + $0xcc] sm:$0xf]
  %v67 = vld [vmem:[%s1 + $0xd0] sm:$0xf]
  %v68 = vld [vmem:[%s1 + $0xd4] sm:$0xf]
  %v69 = vld [vmem:[%s1 + $0xd8] sm:$0xf]
  %v70 = vld [vmem:[%s1 + $0xdc] sm:$0xf]
  %v71 = vld [vmem:[%s1 + $0xe0] sm:$0xf]
  %v72 = vld [vmem:[%s1 + $0xe4] sm:$0xf]
  %v73 = vld [vmem:[%s1 + $0xe8] sm:$0xf]
  %v74 = vld [vmem:[%s1 + $0xec] sm:$0xf]
  %v75 = vld [vmem:[%s1 + $0xf0] sm:$0xf]
  %v76 = vld [vmem:[%s1 + $0xf4] sm:$0xf]
  %v77 = vld [vmem:[%s1 + $0xf8] sm:$0xf]
  %v78 = vld [vmem:[%s1 + $0xfc] sm:$0xf]
  %v79 = vld [vmem:[%s1 + $0x100] sm:$0xf]
  %v80 = vld [vmem:[%s1 + $0x104] sm:$0xf]
  %v81 = vld [vmem:[%s1 + $0x108] sm:$0xf]
  %v82 = vld [vmem:[%s1 + $0x10c] sm:$0xf]
  %v83 = vld [vmem:[%s1 + $0x110] sm:$0xf]
  %v84 = vld [vmem:[%s1 + $0x114] sm:$0xf]
  %v85 = vld [vmem:[%s1 + $0x118] sm:$0xf]
  %v86 = vld [vmem:[%s1 + $0x11c] sm:$0xf]
  %v87 = vld [vmem:[%s1 + $0x120] sm:$0xf]
  %v88 = vld [vmem:[%s1 + $0x124] sm:$0xf]
  %v89 = vld [vmem:[%s1 + $0x128] sm:$0xf]
  %v90 = vld [vmem:[%s1 + $0x12c] sm:$0xf]
  %v91 = vld [vmem:[%s1 + $0x130] sm:$0xf]
  %v92 = vld [vmem:[%s1 + $0x134] sm:$0xf]
  %v93 = vld [vmem:[%s1 + $0x138] sm:$0xf]
  %v94 = vld [vmem:[%s1 + $0x13c] sm:$0xf]
  %v95 = vld [vmem:[%s1 + $0x140] sm:$0xf]
  %v96 = vld [vmem:[%s1 + $0x144] sm:$0xf]
  %v97 = vld [vmem:[%s1 + $0x148] sm:$0xf]
  %v98 = vld [vmem:[%s1 + $0x14c] sm:$0xf]
  %v99 = vld [vmem:[%s1 + $0x150] sm:$0xf]
  %v100 = vld [vmem:[%s1 + $0x154] sm:$0xf]
  %v101 = vld [vmem:[%s1 + $0x158] sm:$0xf]
  %v102 = vld [vmem:[%s1 + $0x15c] sm:$0xf]
  %v103 = vld [vmem:[%s1 + $0x160] sm:$0xf]
  %v104 = vld [vmem:[%s1 + $0x164] sm:$0xf]
  %v105 = vld [vmem:[%s1 + $0x168] sm:$0xf]
  %v106 = vld [vmem:[%s1 + $0x16c] sm:$0xf]
  %v107 = vld [vmem:[%s1 + $0x170] sm:$0xf]
  %v108 = vld [vmem:[%s1 + $0x174] sm:$0xf]
  %v109 = vld [vmem:[%s1 + $0x178] sm:$0xf]
  %v110 = vld [vmem:[%s1 + $0x17c] sm:$0xf]
  %v111 = vld [vmem:[%s1 + $0x180] sm:$0xf]
  %v112 = vld [vmem:[%s1 + $0x184] sm:$0xf]
  %v113 = vld [vmem:[%s1 + $0x188] sm:$0xf]
  %v114 = vld [vmem:[%s1 + $0x18c] sm:$0xf]
  %v115 = vld [vmem:[%s1 + $0x190] sm:$0xf]
  %v116 = vld [vmem:[%s1 + $0x194] sm:$0xf]
  %v117 = vld [vmem:[%s1 + $0x198] sm:$0xf]
  %v118 = vld [vmem:[%s1 + $0x19c] sm:$0xf]
  %v119 = vld [vmem:[%s1 + $0x1a0] sm:$0xf]
  %v120 = vld [vmem:[%s1 + $0x1a4] sm:$0xf]
  %v121 = vld [vmem:[%s1 + $0x1a8] sm:$0xf]
  %v122 = vld [vmem:[%s1 + $0x1ac] sm:$0xf]
  %v123 = vld [vmem:[%s1 + $0x1b0] sm:$0xf]
  %v124 = vld [vmem:[%s1 + $0x1b4] sm:$0xf]
  %v125 = vld [vmem:[%s1 + $0x1b8] sm:$0xf]
  %v126 = vld [vmem:[%s1 + $0x1bc] sm:$0xf]
  %v127 = vld [vmem:[%s1 + $0x1c0] sm:$0xf]
  %v128 = vld [vmem:[%s1 + $0x1c4] sm:$0xf]
  %v129 = vld [vmem:[%s1 + $0x1c8] sm:$0xf]
  %v130 = vld [vmem:[%s1 + $0x1cc] sm:$0xf]
  %v131 = vld [vmem:[%s1 + $0x1d0] sm:$0xf]
  %v132 = vld [vmem:[%s1 + $0x1d4] sm:$0xf]
  %v133 = vld [vmem:[%s1 + $0x1d8] sm:$0xf]
  %v134 = vld [vmem:[%s1 + $0x1dc] sm:$0xf]
  %v135 = vld [vmem:[%s1 + $0x1e0] sm:$0xf]
  %v136 = vld [vmem:[%s1 + $0x1e4] sm:$0xf]
  %v137 = vld [vmem:[%s1 + $0x1e8] sm:$0xf]
  %v138 = vld [vmem:[%s1 + $0x1ec] sm:$0xf]
  %v139 = vld [vmem:[%s1 + $0x1f0] sm:$0xf]
  %v140 = vld [vmem:[%s1 + $0x1f4] sm:$0xf]
  %v141 = vld [vmem:[%s1 + $0x1f8] sm:$0xf]
  %v142 = vld [vmem:[%s1 + $0x1fc] sm:$0xf]
  %v143 = vld [vmem:[%s1 + $0x200] sm:$0xf]
  %v144 = vld [vmem:[%s1 + $0x204] sm:$0xf]
  %v145 = vld [vmem:[%s1 + $0x208] sm:$0xf]
  %v146 = vld [vmem:[%s1 + $0x20c] sm:$0xf]
  %v147 = vld [vmem:[%s1 + $0x210] sm:$0xf]
  %v148 = vld [vmem:[%s1 + $0x214] sm:$0xf]
  %v149 = vld [vmem:[%s1 + $0x218] sm:$0xf]
  %v150 = vld [vmem:[%s1 + $0x21c] sm:$0xf]
  %v151 = vld [vmem:[%s1 + $0x220] sm:$0xf]
  %v152 = vld [vmem:[%s1 + $0x224] sm:$0xf]
  %v153 = vld [vmem:[%s1 + $0x228] sm:$0xf]
  %v154 = vld [vmem:[%s1 + $0x22c] sm:$0xf]
  %v155 = vld [vmem:[%s1 + $0x230] sm:$0xf]
  %v156 = vld [vmem:[%s1 + $0x234] sm:$0xf]
  %v157 = vld [vmem:[%s1 + $0x238] sm:$0xf]
  %v158 = vld [vmem:[%s1 + $0x23c] sm:$0xf]
  %v159 = vld [vmem:[%s0] sm:$0xff]
  %v160 = vld [vmem:[%s0 + $0x8] sm:$0xff]
  %v161 = vld [vmem:[%s0 + $0x10] sm:$0xff]
  %v162 = vld [vmem:[%s0 + $0x18] sm:$0xff]
  %v163 = vld [vmem:[%s0 + $0x20] sm:$0xf]
  %v164 = vld [vmem:[%s0 + $0x24] sm:$0xff]
  %v165 = vld [vmem:[%s0 + $0x2c] sm:$0xff]
  %v166 = vld [vmem:[%s0 + $0x34] sm:$0xff]
  %v167 = vld [vmem:[%s0 + $0x3c] sm:$0xff]
  %v168 = vld [vmem:[%s0 + $0x44] sm:$0xf]
  %v169 = vld [vmem:[%s0 + $0x48] sm:$0xff]
  %v170 = vld [vmem:[%s0 + $0x50] sm:$0xff]
  %v171 = vld [vmem:[%s0 + $0x58] sm:$0xff]
  %v172 = vld [vmem:[%s0 + $0x60] sm:$0xff]
  %v173 = vld [vmem:[%s0 + $0x68] sm:$0xf]
  %v174 = vld [vmem:[%s0 + $0x6c] sm:$0xff]
  %v175 = vld [vmem:[%s0 + $0x74] sm:$0xff]
  %v176 = vld [vmem:[%s0 + $0x7c] sm:$0xff]
  %v177 = vld [vmem:[%s0 + $0x84] sm:$0xff]
  %v178 = vld [vmem:[%s0 + $0x8c] sm:$0xf]
  %v179 = vld [vmem:[%s0 + $0x90] sm:$0xff]
  %v180 = vld [vmem:[%s0 + $0x98] sm:$0xff]
  %v181 = vld [vmem:[%s0 + $0xa0] sm:$0xff]
  %v182 = vld [vmem:[%s0 + $0xa8] sm:$0xff]
  %v183 = vld [vmem:[%s0 + $0xb0] sm:$0xf]
  %v184 = vld [vmem:[%s0 + $0xb4] sm:$0xff]
  %v185 = vld [vmem:[%s0 + $0xbc] sm:$0xff]
  %v186 = vld [vmem:[%s0 + $0xc4] sm:$0xff]
  %v187 = vld [vmem:[%s0 + $0xcc] sm:$0xff]
  %v188 = vld [vmem:[%s0 + $0xd4] sm:$0xf]
  %v189 = vld [vmem:[%s0 + $0xd8] sm:$0xff]
  %v190 = vld [vmem:[%s0 + $0xe0] sm:$0xff]
  %v191 = vld [vmem:[%s0 + $0xe8] sm:$0xff]
  %v192 = vld [vmem:[%s0 + $0xf0] sm:$0xff]
  %v193 = vld [vmem:[%s0 + $0xf8] sm:$0xf]
  %v194 = vld [vmem:[%s0 + $0xfc] sm:$0xff]
  %v195 = vld [vmem:[%s0 + $0x104] sm:$0xff]
  %v196 = vld [vmem:[%s0 + $0x10c] sm:$0xff]
  %v197 = vld [vmem:[%s0 + $0x114] sm:$0xff]
  %v198 = vld [vmem:[%s0 + $0x11c] sm:$0xf]
  %v199 = vld [vmem:[%s0 + $0x120] sm:$0xff]
  %v200 = vld [vmem:[%s0 + $0x128] sm:$0xff]
  %v201 = vld [vmem:[%s0 + $0x130] sm:$0xff]
  %v202 = vld [vmem:[%s0 + $0x138] sm:$0xff]
  %v203 = vld [vmem:[%s0 + $0x140] sm:$0xf]
  %v204 = vld [vmem:[%s0 + $0x144] sm:$0xff]
  %v205 = vld [vmem:[%s0 + $0x14c] sm:$0xff]
  %v206 = vld [vmem:[%s0 + $0x154] sm:$0xff]
  %v207 = vld [vmem:[%s0 + $0x15c] sm:$0xff]
  %v208 = vld [vmem:[%s0 + $0x164] sm:$0xf]
  %v209 = vld [vmem:[%s0 + $0x168] sm:$0xff]
  %v210 = vld [vmem:[%s0 + $0x170] sm:$0xff]
  %v211 = vld [vmem:[%s0 + $0x178] sm:$0xff]
  %v212 = vld [vmem:[%s0 + $0x180] sm:$0xff]
  %v213 = vld [vmem:[%s0 + $0x188] sm:$0xf]
  %v214 = vld [vmem:[%s0 + $0x18c] sm:$0xff]
  %v215 = vld [vmem:[%s0 + $0x194] sm:$0xff]
  %v216 = vld [vmem:[%s0 + $0x19c] sm:$0xff]
  %v217 = vld [vmem:[%s0 + $0x1a4] sm:$0xff]
  %v218 = vld [vmem:[%s0 + $0x1ac] sm:$0xf]
  %v219 = vld [vmem:[%s0 + $0x1b0] sm:$0xff]
  %v220 = vld [vmem:[%s0 + $0x1b8] sm:$0xff]
  %v221 = vld [vmem:[%s0 + $0x1c0] sm:$0xff]
  %v222 = vld [vmem:[%s0 + $0x1c8] sm:$0xff]
  %v223 = vld [vmem:[%s0 + $0x1d0] sm:$0xf]
  %v224 = vld [vmem:[%s0 + $0x1d4] sm:$0xff]
  %v225 = vld [vmem:[%s0 + $0x1dc] sm:$0xff]
  %v226 = vld [vmem:[%s0 + $0x1e4] sm:$0xff]
  %v227 = vld [vmem:[%s0 + $0x1ec] sm:$0xff]
  %v228 = vld [vmem:[%s0 + $0x1f4] sm:$0xf]
  %v299 = vunpack.c.l.b16 %v159
  %v300 = vunpack.c.h.b16 %v159
  %v301 = vunpack.c.l.b16 %v160
  %v302 = vunpack.c.h.b16 %v160
  %v303 = vunpack.c.l.b16 %v161
  %v304 = vunpack.c.h.b16 %v161
  %v305 = vunpack.c.l.b16 %v162
  %v306 = vunpack.c.h.b16 %v162
  %v307 = vunpack.c.l.b16 %v163
  %v308 = vunpack.c.l.b16 %v164
  %v309 = vunpack.c.h.b16 %v164
  %v310 = vunpack.c.l.b16 %v165
  %v311 = vunpack.c.h.b16 %v165
  %v312 = vunpack.c.l.b16 %v166
  %v313 = vunpack.c.h.b16 %v166
  %v314 = vunpack.c.l.b16 %v167
  %v315 = vunpack.c.h.b16 %v167
  %v316 = vunpack.c.l.b16 %v168
  %v317 = vunpack.c.l.b16 %v169
  %v318 = vunpack.c.h.b16 %v169
  %v319 = vunpack.c.l.b16 %v170
  %v320 = vunpack.c.h.b16 %v170
  %v321 = vunpack.c.l.b16 %v171
  %v322 = vunpack.c.h.b16 %v171
  %v323 = vunpack.c.l.b16 %v172
  %v324 = vunpack.c.h.b16 %v172
  %v325 = vunpack.c.l.b16 %v173
  %v326 = vunpack.c.l.b16 %v174
  %v327 = vunpack.c.h.b16 %v174
  %v328 = vunpack.c.l.b16 %v175
  %v329 = vunpack.c.h.b16 %v175
  %v330 = vunpack.c.l.b16 %v176
  %v331 = vunpack.c.h.b16 %v176
  %v332 = vunpack.c.l.b16 %v177
  %v333 = vunpack.c.h.b16 %v177
  %v334 = vunpack.c.l.b16 %v178
  %v335 = vunpack.c.l.b16 %v179
  %v336 = vunpack.c.h.b16 %v179
  %v337 = vunpack.c.l.b16 %v180
  %v338 = vunpack.c.h.b16 %v180
  %v339 = vunpack.c.l.b16 %v181
  %v340 = vunpack.c.h.b16 %v181
  %v341 = vunpack.c.l.b16 %v182
  %v342 = vunpack.c.h.b16 %v182
  %v343 = vunpack.c.l.b16 %v183
  %v344 = vunpack.c.l.b16 %v184
  %v345 = vunpack.c.h.b16 %v184
  %v346 = vunpack.c.l.b16 %v185
  %v347 = vunpack.c.h.b16 %v185
  %v348 = vunpack.c.l.b16 %v186
  %v349 = vunpack.c.h.b16 %v186
  %v350 = vunpack.c.l.b16 %v187
  %v351 = vunpack.c.h.b16 %v187
  %v352 = vunpack.c.l.b16 %v188
  %v353 = vunpack.c.l.b16 %v189
  %v354 = vunpack.c.h.b16 %v189
  %v355 = vunpack.c.l.b16 %v190
  %v356 = vunpack.c.h.b16 %v190
  %v357 = vunpack.c.l.b16 %v191
  %v358 = vunpack.c.h.b16 %v191
  %v359 = vunpack.c.l.b16 %v192
  %v360 = vunpack.c.h.b16 %v192
  %v361 = vunpack.c.l.b16 %v193
  %v362 = vunpack.c.l.b16 %v194
  %v363 = vunpack.c.h.b16 %v194
  %v364 = vunpack.c.l.b16 %v195
  %v365 = vunpack.c.h.b16 %v195
  %v366 = vunpack.c.l.b16 %v196
  %v367 = vunpack.c.h.b16 %v196
  %v368 = vunpack.c.l.b16 %v197
  %v369 = vunpack.c.h.b16 %v197
  %v370 = vunpack.c.l.b16 %v198
  %v371 = vunpack.c.l.b16 %v199
  %v372 = vunpack.c.h.b16 %v199
  %v373 = vunpack.c.l.b16 %v200
  %v374 = vunpack.c.h.b16 %v200
  %v375 = vunpack.c.l.b16 %v201
  %v376 = vunpack.c.h.b16 %v201
  %v377 = vunpack.c.l.b16 %v202
  %v378 = vunpack.c.h.b16 %v202
  %v379 = vunpack.c.l.b16 %v203
  %v380 = vunpack.c.l.b16 %v204
  %v381 = vunpack.c.h.b16 %v204
  %v382 = vunpack.c.l.b16 %v205
  %v383 = vunpack.c.h.b16 %v205
  %v384 = vunpack.c.l.b16 %v206
  %v385 = vunpack.c.h.b16 %v206
  %v386 = vunpack.c.l.b16 %v207
  %v387 = vunpack.c.h.b16 %v207
  %v388 = vunpack.c.l.b16 %v208
  %v389 = vunpack.c.l.b16 %v209
  %v390 = vunpack.c.h.b16 %v209
  %v391 = vunpack.c.l.b16 %v210
  %v392 = vunpack.c.h.b16 %v210
  %v393 = vunpack.c.l.b16 %v211
  %v394 = vunpack.c.h.b16 %v211
  %v395 = vunpack.c.l.b16 %v212
  %v396 = vunpack.c.h.b16 %v212
  %v397 = vunpack.c.l.b16 %v213
  %v398 = vunpack.c.l.b16 %v214
  %v399 = vunpack.c.h.b16 %v214
  %v400 = vunpack.c.l.b16 %v215
  %v401 = vunpack.c.h.b16 %v215
  %v402 = vunpack.c.l.b16 %v216
  %v403 = vunpack.c.h.b16 %v216
  %v404 = vunpack.c.l.b16 %v217
  %v405 = vunpack.c.h.b16 %v217
  %v406 = vunpack.c.l.b16 %v218
  %v407 = vunpack.c.l.b16 %v219
  %v408 = vunpack.c.h.b16 %v219
  %v409 = vunpack.c.l.b16 %v220
  %v410 = vunpack.c.h.b16 %v220
  %v411 = vunpack.c.l.b16 %v221
  %v412 = vunpack.c.h.b16 %v221
  %v413 = vunpack.c.l.b16 %v222
  %v414 = vunpack.c.h.b16 %v222
  %v415 = vunpack.c.l.b16 %v223
  %v416 = vunpack.c.l.b16 %v224
  %v417 = vunpack.c.h.b16 %v224
  %v418 = vunpack.c.l.b16 %v225
  %v419 = vunpack.c.h.b16 %v225
  %v420 = vunpack.c.l.b16 %v226
  %v421 = vunpack.c.h.b16 %v226
  %v422 = vunpack.c.l.b16 %v227
  %v423 = vunpack.c.h.b16 %v227
  %v424 = vunpack.c.l.b16 %v228
  %v425 = vpack.c.b16 %v308, %v299
  %v426 = vpack.c.b16 %v309, %v300
  %v427 = vpack.c.b16 %v310, %v301
  %v428 = vpack.c.b16 %v311, %v302
  %v429 = vpack.c.b16 %v312, %v303
  %v430 = vpack.c.b16 %v313, %v304
  %v431 = vpack.c.b16 %v314, %v305
  %v432 = vpack.c.b16 %v315, %v306
  %v433 = vpack.c.b16 %v316, %v307
  %v434 = vpack.c.b16 %v326, %v317
  %v435 = vpack.c.b16 %v327, %v318
  %v436 = vpack.c.b16 %v328, %v319
  %v437 = vpack.c.b16 %v329, %v320
  %v438 = vpack.c.b16 %v330, %v321
  %v439 = vpack.c.b16 %v331, %v322
  %v440 = vpack.c.b16 %v332, %v323
  %v441 = vpack.c.b16 %v333, %v324
  %v442 = vpack.c.b16 %v334, %v325
  %v443 = vpack.c.b16 %v344, %v335
  %v444 = vpack.c.b16 %v345, %v336
  %v445 = vpack.c.b16 %v346, %v337
  %v446 = vpack.c.b16 %v347, %v338
  %v447 = vpack.c.b16 %v348, %v339
  %v448 = vpack.c.b16 %v349, %v340
  %v449 = vpack.c.b16 %v350, %v341
  %v450 = vpack.c.b16 %v351, %v342
  %v451 = vpack.c.b16 %v352, %v343
  %v452 = vpack.c.b16 %v362, %v353
  %v453 = vpack.c.b16 %v363, %v354
  %v454 = vpack.c.b16 %v364, %v355
  %v455 = vpack.c.b16 %v365, %v356
  %v456 = vpack.c.b16 %v366, %v357
  %v457 = vpack.c.b16 %v367, %v358
  %v458 = vpack.c.b16 %v368, %v359
  %v459 = vpack.c.b16 %v369, %v360
  %v460 = vpack.c.b16 %v370, %v361
  %v461 = vpack.c.b16 %v380, %v371
  %v462 = vpack.c.b16 %v381, %v372
  %v463 = vpack.c.b16 %v382, %v373
  %v464 = vpack.c.b16 %v383, %v374
  %v465 = vpack.c.b16 %v384, %v375
  %v466 = vpack.c.b16 %v385, %v376
  %v467 = vpack.c.b16 %v386, %v377
  %v468 = vpack.c.b16 %v387, %v378
  %v469 = vpack.c.b16 %v388, %v379
  %v470 = vpack.c.b16 %v398, %v389
  %v471 = vpack.c.b16 %v399, %v390
  %v472 = vpack.c.b16 %v400, %v391
  %v473 = vpack.c.b16 %v401, %v392
  %v474 = vpack.c.b16 %v402, %v393
  %v475 = vpack.c.b16 %v403, %v394
  %v476 = vpack.c.b16 %v404, %v395
  %v477 = vpack.c.b16 %v405, %v396
  %v478 = vpack.c.b16 %v406, %v397
  %v479 = vpack.c.b16 %v416, %v407
  %v480 = vpack.c.b16 %v417, %v408
  %v481 = vpack.c.b16 %v418, %v409
  %v482 = vpack.c.b16 %v419, %v410
  %v483 = vpack.c.b16 %v420, %v411
  %v484 = vpack.c.b16 %v421, %v412
  %v485 = vpack.c.b16 %v422, %v413
  %v486 = vpack.c.b16 %v423, %v414
  %v487 = vpack.c.b16 %v424, %v415
  %v695 = vunpack.c.l.b16 %v15
  %v696 = vunpack.c.l.b16 %v16
  %v697 = vunpack.c.l.b16 %v17
  %v698 = vunpack.c.l.b16 %v18
  %v699 = vunpack.c.l.b16 %v19
  %v700 = vunpack.c.l.b16 %v20
  %v701 = vunpack.c.l.b16 %v21
  %v702 = vunpack.c.l.b16 %v22
  %v703 = vunpack.c.l.b16 %v23
  %v704 = vunpack.c.l.b16 %v24
  %v705 = vunpack.c.l.b16 %v25
  %v706 = vunpack.c.l.b16 %v26
  %v707 = vunpack.c.l.b16 %v27
  %v708 = vunpack.c.l.b16 %v28
  %v709 = vunpack.c.l.b16 %v29
  %v710 = vunpack.c.l.b16 %v30
  %v711 = vunpack.c.l.b16 %v31
  %v712 = vunpack.c.l.b16 %v32
  %v713 = vunpack.c.l.b16 %v33
  %v714 = vunpack.c.l.b16 %v34
  %v715 = vunpack.c.l.b16 %v35
  %v716 = vunpack.c.l.b16 %v36
  %v717 = vunpack.c.l.b16 %v37
  %v718 = vunpack.c.l.b16 %v38
  %v719 = vunpack.c.l.b16 %v39
  %v720 = vunpack.c.l.b16 %v40
  %v721 = vunpack.c.l.b16 %v41
  %v722 = vunpack.c.l.b16 %v42
  %v723 = vunpack.c.l.b16 %v43
  %v724 = vunpack.c.l.b16 %v44
  %v725 = vunpack.c.l.b16 %v45
  %v726 = vunpack.c.l.b16 %v46
  %v727 = vunpack.c.l.b16 %v47
  %v728 = vunpack.c.l.b16 %v48
  %v729 = vunpack.c.l.b16 %v49
  %v730 = vunpack.c.l.b16 %v50
  %v731 = vunpack.c.l.b16 %v51
  %v732 = vunpack.c.l.b16 %v52
  %v733 = vunpack.c.l.b16 %v53
  %v734 = vunpack.c.l.b16 %v54
  %v735 = vunpack.c.l.b16 %v55
  %v736 = vunpack.c.l.b16 %v56
  %v737 = vunpack.c.l.b16 %v57
  %v738 = vunpack.c.l.b16 %v58
  %v739 = vunpack.c.l.b16 %v59
  %v740 = vunpack.c.l.b16 %v60
  %v741 = vunpack.c.l.b16 %v61
  %v742 = vunpack.c.l.b16 %v62
  %v743 = vunpack.c.l.b16 %v63
  %v744 = vunpack.c.l.b16 %v64
  %v745 = vunpack.c.l.b16 %v65
  %v746 = vunpack.c.l.b16 %v66
  %v747 = vunpack.c.l.b16 %v67
  %v748 = vunpack.c.l.b16 %v68
  %v749 = vunpack.c.l.b16 %v69
  %v750 = vunpack.c.l.b16 %v70
  %v751 = vunpack.c.l.b16 %v71
  %v752 = vunpack.c.l.b16 %v72
  %v753 = vunpack.c.l.b16 %v73
  %v754 = vunpack.c.l.b16 %v74
  %v755 = vunpack.c.l.b16 %v75
  %v756 = vunpack.c.l.b16 %v76
  %v757 = vunpack.c.l.b16 %v77
  %v758 = vunpack.c.l.b16 %v78
  %v759 = vunpack.c.l.b16 %v79
  %v760 = vunpack.c.l.b16 %v80
  %v761 = vunpack.c.l.b16 %v81
  %v762 = vunpack.c.l.b16 %v82
  %v763 = vunpack.c.l.b16 %v83
  %v764 = vunpack.c.l.b16 %v84
  %v765 = vunpack.c.l.b16 %v85
  %v766 = vunpack.c.l.b16 %v86
  %v767 = vunpack.c.l.b16 %v87
  %v768 = vunpack.c.l.b16 %v88
  %v769 = vunpack.c.l.b16 %v89
  %v770 = vunpack.c.l.b16 %v90
  %v771 = vunpack.c.l.b16 %v91
  %v772 = vunpack.c.l.b16 %v92
  %v773 = vunpack.c.l.b16 %v93
  %v774 = vunpack.c.l.b16 %v94
  %v775 = vunpack.c.l.b16 %v95
  %v776 = vunpack.c.l.b16 %v96
  %v777 = vunpack.c.l.b16 %v97
  %v778 = vunpack.c.l.b16 %v98
  %v779 = vunpack.c.l.b16 %v99
  %v780 = vunpack.c.l.b16 %v100
  %v781 = vunpack.c.l.b16 %v101
  %v782 = vunpack.c.l.b16 %v102
  %v783 = vunpack.c.l.b16 %v103
  %v784 = vunpack.c.l.b16 %v104
  %v785 = vunpack.c.l.b16 %v105
  %v786 = vunpack.c.l.b16 %v106
  %v787 = vunpack.c.l.b16 %v107
  %v788 = vunpack.c.l.b16 %v108
  %v789 = vunpack.c.l.b16 %v109
  %v790 = vunpack.c.l.b16 %v110
  %v791 = vunpack.c.l.b16 %v111
  %v792 = vunpack.c.l.b16 %v112
  %v793 = vunpack.c.l.b16 %v113
  %v794 = vunpack.c.l.b16 %v114
  %v795 = vunpack.c.l.b16 %v115
  %v796 = vunpack.c.l.b16 %v116
  %v797 = vunpack.c.l.b16 %v117
  %v798 = vunpack.c.l.b16 %v118
  %v799 = vunpack.c.l.b16 %v119
  %v800 = vunpack.c.l.b16 %v120
  %v801 = vunpack.c.l.b16 %v121
  %v802 = vunpack.c.l.b16 %v122
  %v803 = vunpack.c.l.b16 %v123
  %v804 = vunpack.c.l.b16 %v124
  %v805 = vunpack.c.l.b16 %v125
  %v806 = vunpack.c.l.b16 %v126
  %v807 = vunpack.c.l.b16 %v127
  %v808 = vunpack.c.l.b16 %v128
  %v809 = vunpack.c.l.b16 %v129
  %v810 = vunpack.c.l.b16 %v130
  %v811 = vunpack.c.l.b16 %v131
  %v812 = vunpack.c.l.b16 %v132
  %v813 = vunpack.c.l.b16 %v133
  %v814 = vunpack.c.l.b16 %v134
  %v815 = vunpack.c.l.b16 %v135
  %v816 = vunpack.c.l.b16 %v136
  %v817 = vunpack.c.l.b16 %v137
  %v818 = vunpack.c.l.b16 %v138
  %v819 = vunpack.c.l.b16 %v139
  %v820 = vunpack.c.l.b16 %v140
  %v821 = vunpack.c.l.b16 %v141
  %v822 = vunpack.c.l.b16 %v142
  %v823 = vunpack.c.l.b16 %v143
  %v824 = vunpack.c.l.b16 %v144
  %v825 = vunpack.c.l.b16 %v145
  %v826 = vunpack.c.l.b16 %v146
  %v827 = vunpack.c.l.b16 %v147
  %v828 = vunpack.c.l.b16 %v148
  %v829 = vunpack.c.l.b16 %v149
  %v830 = vunpack.c.l.b16 %v150
  %v831 = vunpack.c.l.b16 %v151
  %v832 = vunpack.c.l.b16 %v152
  %v833 = vunpack.c.l.b16 %v153
  %v834 = vunpack.c.l.b16 %v154
  %v835 = vunpack.c.l.b16 %v155
  %v836 = vunpack.c.l.b16 %v156
  %v837 = vunpack.c.l.b16 %v157
  %v838 = vunpack.c.l.b16 %v158
  %v839 = vpack.c.b16 %v696, %v695
  %v840 = vpack.c.b16 %v698, %v697
  %v841 = vpack.c.b16 %v700, %v699
  %v842 = vpack.c.b16 %v702, %v701
  %v843 = vpack.c.b16 %v704, %v703
  %v844 = vpack.c.b16 %v706, %v705
  %v845 = vpack.c.b16 %v708, %v707
  %v846 = vpack.c.b16 %v710, %v709
  %v847 = vpack.c.b16 %v712, %v711
  %v848 = vpack.c.b16 %v714, %v713
  %v849 = vpack.c.b16 %v716, %v715
  %v850 = vpack.c.b16 %v718, %v717
  %v851 = vpack.c.b16 %v720, %v719
  %v852 = vpack.c.b16 %v722, %v721
  %v853 = vpack.c.b16 %v724, %v723
  %v854 = vpack.c.b16 %v726, %v725
  %v855 = vpack.c.b16 %v728, %v727
  %v856 = vpack.c.b16 %v730, %v729
  %v857 = vpack.c.b16 %v732, %v731
  %v858 = vpack.c.b16 %v734, %v733
  %v859 = vpack.c.b16 %v736, %v735
  %v860 = vpack.c.b16 %v738, %v737
  %v861 = vpack.c.b16 %v740, %v739
  %v862 = vpack.c.b16 %v742, %v741
  %v863 = vpack.c.b16 %v744, %v743
  %v864 = vpack.c.b16 %v746, %v745
  %v865 = vpack.c.b16 %v748, %v747
  %v866 = vpack.c.b16 %v750, %v749
  %v867 = vpack.c.b16 %v752, %v751
  %v868 = vpack.c.b16 %v754, %v753
  %v869 = vpack.c.b16 %v756, %v755
  %v870 = vpack.c.b16 %v758, %v757
  %v871 = vpack.c.b16 %v760, %v759
  %v872 = vpack.c.b16 %v762, %v761
  %v873 = vpack.c.b16 %v764, %v763
  %v874 = vpack.c.b16 %v766, %v765
  %v875 = vpack.c.b16 %v768, %v767
  %v876 = vpack.c.b16 %v770, %v769
  %v877 = vpack.c.b16 %v772, %v771
  %v878 = vpack.c.b16 %v774, %v773
  %v879 = vpack.c.b16 %v776, %v775
  %v880 = vpack.c.b16 %v778, %v777
  %v881 = vpack.c.b16 %v780, %v779
  %v882 = vpack.c.b16 %v782, %v781
  %v883 = vpack.c.b16 %v784, %v783
  %v884 = vpack.c.b16 %v786, %v785
  %v885 = vpack.c.b16 %v788, %v787
  %v886 = vpack.c.b16 %v790, %v789
  %v887 = vpack.c.b16 %v792, %v791
  %v888 = vpack.c.b16 %v794, %v793
  %v889 = vpack.c.b16 %v796, %v795
  %v890 = vpack.c.b16 %v798, %v797
  %v891 = vpack.c.b16 %v800, %v799
  %v892 = vpack.c.b16 %v802, %v801
  %v893 = vpack.c.b16 %v804, %v803
  %v894 = vpack.c.b16 %v806, %v805
  %v895 = vpack.c.b16 %v808, %v807
  %v896 = vpack.c.b16 %v810, %v809
  %v897 = vpack.c.b16 %v812, %v811
  %v898 = vpack.c.b16 %v814, %v813
  %v899 = vpack.c.b16 %v816, %v815
  %v900 = vpack.c.b16 %v818, %v817
  %v901 = vpack.c.b16 %v820, %v819
  %v902 = vpack.c.b16 %v822, %v821
  %v903 = vpack.c.b16 %v824, %v823
  %v904 = vpack.c.b16 %v826, %v825
  %v905 = vpack.c.b16 %v828, %v827
  %v906 = vpack.c.b16 %v830, %v829
  %v907 = vpack.c.b16 %v832, %v831
  %v908 = vpack.c.b16 %v834, %v833
  %v909 = vpack.c.b16 %v836, %v835
  %v910 = vpack.c.b16 %v838, %v837
  %983 = vmatprep.subr.bf16.mxu0 0
  %984 = vmatpush1.bf16.msra.mxu0 %v839
  %985 = vmatprep.subr.bf16.mxu0 0
  %986 = vmatpush1.bf16.msra.mxu0 %v840
  %987 = vmatprep.subr.bf16.mxu0 0
  %988 = vmatpush1.bf16.msra.mxu0 %v841
  %989 = vmatprep.subr.bf16.mxu0 0
  %990 = vmatpush1.bf16.msra.mxu0 %v842
  %991 = vmatprep.subr.bf16.mxu0 0
  %992 = vmatpush1.bf16.msra.mxu0 %v843
  %993 = vmatprep.subr.bf16.mxu0 0
  %994 = vmatpush1.bf16.msra.mxu0 %v844
  %995 = vmatprep.subr.bf16.mxu0 0
  %996 = vmatpush1.bf16.msra.mxu0 %v845
  %997 = vmatprep.subr.bf16.mxu0 0
  %998 = vmatpush1.bf16.msra.mxu0 %v846
  %999 = vmatprep.subr.bf16.mxu0 0
  %1000 = vmatpush1.bf16.msra.mxu0 %v847
  %1001 = vmatprep.subr.bf16.mxu0 0
  %1002 = vmatpush1.bf16.msra.mxu0 %v848
  %1003 = vmatprep.subr.bf16.mxu0 0
  %1004 = vmatpush1.bf16.msra.mxu0 %v849
  %1005 = vmatprep.subr.bf16.mxu0 0
  %1006 = vmatpush1.bf16.msra.mxu0 %v850
  %1007 = vmatprep.subr.bf16.mxu0 0
  %1008 = vmatpush1.bf16.msra.mxu0 %v851
  %1009 = vmatprep.subr.bf16.mxu0 0
  %1010 = vmatpush1.bf16.msra.mxu0 %v852
  %1011 = vmatprep.subr.bf16.mxu0 0
  %1012 = vmatpush1.bf16.msra.mxu0 %v853
  %1013 = vmatprep.subr.bf16.mxu0 0
  %1014 = vmatpush1.bf16.msra.mxu0 %v854
  %1015 = vmatprep.mubr.bf16.mxu0 %v426
  %1016 = vmatmul.mubr.bf16.gmra.mrb[0].mxu0 %v425
  %v1017 = vpop.f32.mrb[0].mxu0
  %v1018 = vadd.f32 0.0, %v1017
  %v1019 = vpop.f32.mrb[0].mxu0
  %v1020 = vpop.f32.mrb[0].mxu0
  %v1021 = vadd.f32 0.0, %v1020
  %v1022 = vpop.f32.mrb[0].mxu0
  %1023 = vmatprep.mubr.bf16.mxu0 %v435
  %1024 = vmatmul.mubr.bf16.gmra.mrb[0].mxu0 %v434
  %v1025 = vpop.f32.mrb[0].mxu0
  %v1026 = vadd.f32 0.0, %v1025
  %v1027 = vpop.f32.mrb[0].mxu0
  %v1028 = vpop.f32.mrb[0].mxu0
  %v1029 = vadd.f32 0.0, %v1028
  %v1030 = vpop.f32.mrb[0].mxu0
  %1031 = vmatprep.mubr.bf16.mxu0 %v444
  %1032 = vmatmul.mubr.bf16.gmra.mrb[0].mxu0 %v443
  %v1033 = vpop.f32.mrb[0].mxu0
  %v1034 = vadd.f32 0.0, %v1033
  %v1035 = vpop.f32.mrb[0].mxu0
  %v1036 = vpop.f32.mrb[0].mxu0
  %v1037 = vadd.f32 0.0, %v1036
  %v1038 = vpop.f32.mrb[0].mxu0
  %1039 = vmatprep.mubr.bf16.mxu0 %v453
  %1040 = vmatmul.mubr.bf16.gmra.mrb[0].mxu0 %v452
  %v1041 = vpop.f32.mrb[0].mxu0
  %v1042 = vadd.f32 0.0, %v1041
  %v1043 = vpop.f32.mrb[0].mxu0
  %v1044 = vpop.f32.mrb[0].mxu0
  %v1045 = vadd.f32 0.0, %v1044
  %v1046 = vpop.f32.mrb[0].mxu0
  %1047 = vmatprep.mubr.bf16.mxu0 %v462
  %1048 = vmatmul.mubr.bf16.gmra.mrb[0].mxu0 %v461
  %v1049 = vpop.f32.mrb[0].mxu0
  %v1050 = vadd.f32 0.0, %v1049
  %v1051 = vpop.f32.mrb[0].mxu0
  %v1052 = vpop.f32.mrb[0].mxu0
  %v1053 = vadd.f32 0.0, %v1052
  %v1054 = vpop.f32.mrb[0].mxu0
  %1055 = vmatprep.mubr.bf16.mxu0 %v471
  %1056 = vmatmul.mubr.bf16.gmra.mrb[0].mxu0 %v470
  %v1057 = vpop.f32.mrb[0].mxu0
  %v1058 = vadd.f32 0.0, %v1057
  %v1059 = vpop.f32.mrb[0].mxu0
  %v1060 = vpop.f32.mrb[0].mxu0
  %v1061 = vadd.f32 0.0, %v1060
  %v1062 = vpop.f32.mrb[0].mxu0
  %1063 = vmatprep.mubr.bf16.mxu0 %v480
  %1064 = vmatmul.mubr.bf16.gmra.mrb[0].mxu0 %v479
  %v1065 = vpop.f32.mrb[0].mxu0
  %v1066 = vadd.f32 0.0, %v1065
  %v1067 = vpop.f32.mrb[0].mxu0
  %v1068 = vpop.f32.mrb[0].mxu0
  %v1069 = vadd.f32 0.0, %v1068
  %v1070 = vpop.f32.mrb[0].mxu0
  %1071 = vdwg.mxu0
  %1072 = vmatprep.subr.bf16.mxu0 0
  %1073 = vmatpush1.bf16.msra.mxu0 %v855
  %1074 = vmatprep.subr.bf16.mxu0 0
  %1075 = vmatpush1.bf16.msra.mxu0 %v856
  %1076 = vmatprep.subr.bf16.mxu0 0
  %1077 = vmatpush1.bf16.msra.mxu0 %v857
  %1078 = vmatprep.subr.bf16.mxu0 0
  %1079 = vmatpush1.bf16.msra.mxu0 %v858
  %1080 = vmatprep.subr.bf16.mxu0 0
  %1081 = vmatpush1.bf16.msra.mxu0 %v859
  %1082 = vmatprep.subr.bf16.mxu0 0
  %1083 = vmatpush1.bf16.msra.mxu0 %v860
  %1084 = vmatprep.subr.bf16.mxu0 0
  %1085 = vmatpush1.bf16.msra.mxu0 %v861
  %1086 = vmatprep.subr.bf16.mxu0 0
  %1087 = vmatpush1.bf16.msra.mxu0 %v862
  %1088 = vmatprep.subr.bf16.mxu0 0
  %1089 = vmatpush1.bf16.msra.mxu0 %v863
  %1090 = vmatprep.subr.bf16.mxu0 0
  %1091 = vmatpush1.bf16.msra.mxu0 %v864
  %1092 = vmatprep.subr.bf16.mxu0 0
  %1093 = vmatpush1.bf16.msra.mxu0 %v865
  %1094 = vmatprep.subr.bf16.mxu0 0
  %1095 = vmatpush1.bf16.msra.mxu0 %v866
  %1096 = vmatprep.subr.bf16.mxu0 0
  %1097 = vmatpush1.bf16.msra.mxu0 %v867
  %1098 = vmatprep.subr.bf16.mxu0 0
  %1099 = vmatpush1.bf16.msra.mxu0 %v868
  %1100 = vmatprep.subr.bf16.mxu0 0
  %1101 = vmatpush1.bf16.msra.mxu0 %v869
  %1102 = vmatprep.subr.bf16.mxu0 0
  %1103 = vmatpush1.bf16.msra.mxu0 %v870
  %1104 = vmatprep.mubr.bf16.mxu0 %v428
  %1105 = vmatmul.mubr.bf16.gmra.mrb[0].mxu0 %v427
  %v1106 = vpop.f32.mrb[0].mxu0
  %v1107 = vadd.f32 %v1018, %v1106
  %v1108 = vpop.f32.mrb[0].mxu0
  %v1109 = vpop.f32.mrb[0].mxu0
  %v1110 = vadd.f32 %v1021, %v1109
  %v1111 = vpop.f32.mrb[0].mxu0
  %1112 = vmatprep.mubr.bf16.mxu0 %v437
  %1113 = vmatmul.mubr.bf16.gmra.mrb[0].mxu0 %v436
  %v1114 = vpop.f32.mrb[0].mxu0
  %v1115 = vadd.f32 %v1026, %v1114
  %v1116 = vpop.f32.mrb[0].mxu0
  %v1117 = vpop.f32.mrb[0].mxu0
  %v1118 = vadd.f32 %v1029, %v1117
  %v1119 = vpop.f32.mrb[0].mxu0
  %1120 = vmatprep.mubr.bf16.mxu0 %v446
  %1121 = vmatmul.mubr.bf16.gmra.mrb[0].mxu0 %v445
  %v1122 = vpop.f32.mrb[0].mxu0
  %v1123 = vadd.f32 %v1034, %v1122
  %v1124 = vpop.f32.mrb[0].mxu0
  %v1125 = vpop.f32.mrb[0].mxu0
  %v1126 = vadd.f32 %v1037, %v1125
  %v1127 = vpop.f32.mrb[0].mxu0
  %1128 = vmatprep.mubr.bf16.mxu0 %v455
  %1129 = vmatmul.mubr.bf16.gmra.mrb[0].mxu0 %v454
  %v1130 = vpop.f32.mrb[0].mxu0
  %v1131 = vadd.f32 %v1042, %v1130
  %v1132 = vpop.f32.mrb[0].mxu0
  %v1133 = vpop.f32.mrb[0].mxu0
  %v1134 = vadd.f32 %v1045, %v1133
  %v1135 = vpop.f32.mrb[0].mxu0
  %1136 = vmatprep.mubr.bf16.mxu0 %v464
  %1137 = vmatmul.mubr.bf16.gmra.mrb[0].mxu0 %v463
  %v1138 = vpop.f32.mrb[0].mxu0
  %v1139 = vadd.f32 %v1050, %v1138
  %v1140 = vpop.f32.mrb[0].mxu0
  %v1141 = vpop.f32.mrb[0].mxu0
  %v1142 = vadd.f32 %v1053, %v1141
  %v1143 = vpop.f32.mrb[0].mxu0
  %1144 = vmatprep.mubr.bf16.mxu0 %v473
  %1145 = vmatmul.mubr.bf16.gmra.mrb[0].mxu0 %v472
  %v1146 = vpop.f32.mrb[0].mxu0
  %v1147 = vadd.f32 %v1058, %v1146
  %v1148 = vpop.f32.mrb[0].mxu0
  %v1149 = vpop.f32.mrb[0].mxu0
  %v1150 = vadd.f32 %v1061, %v1149
  %v1151 = vpop.f32.mrb[0].mxu0
  %1152 = vmatprep.mubr.bf16.mxu0 %v482
  %1153 = vmatmul.mubr.bf16.gmra.mrb[0].mxu0 %v481
  %v1154 = vpop.f32.mrb[0].mxu0
  %v1155 = vadd.f32 %v1066, %v1154
  %v1156 = vpop.f32.mrb[0].mxu0
  %v1157 = vpop.f32.mrb[0].mxu0
  %v1158 = vadd.f32 %v1069, %v1157
  %v1159 = vpop.f32.mrb[0].mxu0
  %1160 = vdwg.mxu0
  %1161 = vmatprep.subr.bf16.mxu0 0
  %1162 = vmatpush1.bf16.msra.mxu0 %v871
  %1163 = vmatprep.subr.bf16.mxu0 0
  %1164 = vmatpush1.bf16.msra.mxu0 %v872
  %1165 = vmatprep.subr.bf16.mxu0 0
  %1166 = vmatpush1.bf16.msra.mxu0 %v873
  %1167 = vmatprep.subr.bf16.mxu0 0
  %1168 = vmatpush1.bf16.msra.mxu0 %v874
  %1169 = vmatprep.subr.bf16.mxu0 0
  %1170 = vmatpush1.bf16.msra.mxu0 %v875
  %1171 = vmatprep.subr.bf16.mxu0 0
  %1172 = vmatpush1.bf16.msra.mxu0 %v876
  %1173 = vmatprep.subr.bf16.mxu0 0
  %1174 = vmatpush1.bf16.msra.mxu0 %v877
  %1175 = vmatprep.subr.bf16.mxu0 0
  %1176 = vmatpush1.bf16.msra.mxu0 %v878
  %1177 = vmatprep.subr.bf16.mxu0 0
  %1178 = vmatpush1.bf16.msra.mxu0 %v879
  %1179 = vmatprep.subr.bf16.mxu0 0
  %1180 = vmatpush1.bf16.msra.mxu0 %v880
  %1181 = vmatprep.subr.bf16.mxu0 0
  %1182 = vmatpush1.bf16.msra.mxu0 %v881
  %1183 = vmatprep.subr.bf16.mxu0 0
  %1184 = vmatpush1.bf16.msra.mxu0 %v882
  %1185 = vmatprep.subr.bf16.mxu0 0
  %1186 = vmatpush1.bf16.msra.mxu0 %v883
  %1187 = vmatprep.subr.bf16.mxu0 0
  %1188 = vmatpush1.bf16.msra.mxu0 %v884
  %1189 = vmatprep.subr.bf16.mxu0 0
  %1190 = vmatpush1.bf16.msra.mxu0 %v885
  %1191 = vmatprep.subr.bf16.mxu0 0
  %1192 = vmatpush1.bf16.msra.mxu0 %v886
  %1193 = vmatprep.mubr.bf16.mxu0 %v430
  %1194 = vmatmul.mubr.bf16.gmra.mrb[0].mxu0 %v429
  %v1195 = vpop.f32.mrb[0].mxu0
  %v1196 = vadd.f32 %v1107, %v1195
  %v1197 = vpop.f32.mrb[0].mxu0
  %v1198 = vpop.f32.mrb[0].mxu0
  %v1199 = vadd.f32 %v1110, %v1198
  %v1200 = vpop.f32.mrb[0].mxu0
  %1201 = vmatprep.mubr.bf16.mxu0 %v439
  %1202 = vmatmul.mubr.bf16.gmra.mrb[0].mxu0 %v438
  %v1203 = vpop.f32.mrb[0].mxu0
  %v1204 = vadd.f32 %v1115, %v1203
  %v1205 = vpop.f32.mrb[0].mxu0
  %v1206 = vpop.f32.mrb[0].mxu0
  %v1207 = vadd.f32 %v1118, %v1206
  %v1208 = vpop.f32.mrb[0].mxu0
  %1209 = vmatprep.mubr.bf16.mxu0 %v448
  %1210 = vmatmul.mubr.bf16.gmra.mrb[0].mxu0 %v447
  %v1211 = vpop.f32.mrb[0].mxu0
  %v1212 = vadd.f32 %v1123, %v1211
  %v1213 = vpop.f32.mrb[0].mxu0
  %v1214 = vpop.f32.mrb[0].mxu0
  %v1215 = vadd.f32 %v1126, %v1214
  %v1216 = vpop.f32.mrb[0].mxu0
  %1217 = vmatprep.mubr.bf16.mxu0 %v457
  %1218 = vmatmul.mubr.bf16.gmra.mrb[0].mxu0 %v456
  %v1219 = vpop.f32.mrb[0].mxu0
  %v1220 = vadd.f32 %v1131, %v1219
  %v1221 = vpop.f32.mrb[0].mxu0
  %v1222 = vpop.f32.mrb[0].mxu0
  %v1223 = vadd.f32 %v1134, %v1222
  %v1224 = vpop.f32.mrb[0].mxu0
  %1225 = vmatprep.mubr.bf16.mxu0 %v466
  %1226 = vmatmul.mubr.bf16.gmra.mrb[0].mxu0 %v465
  %v1227 = vpop.f32.mrb[0].mxu0
  %v1228 = vadd.f32 %v1139, %v1227
  %v1229 = vpop.f32.mrb[0].mxu0
  %v1230 = vpop.f32.mrb[0].mxu0
  %v1231 = vadd.f32 %v1142, %v1230
  %v1232 = vpop.f32.mrb[0].mxu0
  %1233 = vmatprep.mubr.bf16.mxu0 %v475
  %1234 = vmatmul.mubr.bf16.gmra.mrb[0].mxu0 %v474
  %v1235 = vpop.f32.mrb[0].mxu0
  %v1236 = vadd.f32 %v1147, %v1235
  %v1237 = vpop.f32.mrb[0].mxu0
  %v1238 = vpop.f32.mrb[0].mxu0
  %v1239 = vadd.f32 %v1150, %v1238
  %v1240 = vpop.f32.mrb[0].mxu0
  %1241 = vmatprep.mubr.bf16.mxu0 %v484
  %1242 = vmatmul.mubr.bf16.gmra.mrb[0].mxu0 %v483
  %v1243 = vpop.f32.mrb[0].mxu0
  %v1244 = vadd.f32 %v1155, %v1243
  %v1245 = vpop.f32.mrb[0].mxu0
  %v1246 = vpop.f32.mrb[0].mxu0
  %v1247 = vadd.f32 %v1158, %v1246
  %v1248 = vpop.f32.mrb[0].mxu0
  %1249 = vdwg.mxu0
  %1250 = vmatprep.subr.bf16.mxu0 0
  %1251 = vmatpush1.bf16.msra.mxu0 %v887
  %1252 = vmatprep.subr.bf16.mxu0 0
  %1253 = vmatpush1.bf16.msra.mxu0 %v888
  %1254 = vmatprep.subr.bf16.mxu0 0
  %1255 = vmatpush1.bf16.msra.mxu0 %v889
  %1256 = vmatprep.subr.bf16.mxu0 0
  %1257 = vmatpush1.bf16.msra.mxu0 %v890
  %1258 = vmatprep.subr.bf16.mxu0 0
  %1259 = vmatpush1.bf16.msra.mxu0 %v891
  %1260 = vmatprep.subr.bf16.mxu0 0
  %1261 = vmatpush1.bf16.msra.mxu0 %v892
  %1262 = vmatprep.subr.bf16.mxu0 0
  %1263 = vmatpush1.bf16.msra.mxu0 %v893
  %1264 = vmatprep.subr.bf16.mxu0 0
  %1265 = vmatpush1.bf16.msra.mxu0 %v894
  %1266 = vmatprep.subr.bf16.mxu0 0
  %1267 = vmatpush1.bf16.msra.mxu0 %v895
  %1268 = vmatprep.subr.bf16.mxu0 0
  %1269 = vmatpush1.bf16.msra.mxu0 %v896
  %1270 = vmatprep.subr.bf16.mxu0 0
  %1271 = vmatpush1.bf16.msra.mxu0 %v897
  %1272 = vmatprep.subr.bf16.mxu0 0
  %1273 = vmatpush1.bf16.msra.mxu0 %v898
  %1274 = vmatprep.subr.bf16.mxu0 0
  %1275 = vmatpush1.bf16.msra.mxu0 %v899
  %1276 = vmatprep.subr.bf16.mxu0 0
  %1277 = vmatpush1.bf16.msra.mxu0 %v900
  %1278 = vmatprep.subr.bf16.mxu0 0
  %1279 = vmatpush1.bf16.msra.mxu0 %v901
  %1280 = vmatprep.subr.bf16.mxu0 0
  %1281 = vmatpush1.bf16.msra.mxu0 %v902
  %1282 = vmatprep.mubr.bf16.mxu0 %v432
  %1283 = vmatmul.mubr.bf16.gmra.mrb[0].mxu0 %v431
  %v1284 = vpop.f32.mrb[0].mxu0
  %v1285 = vadd.f32 %v1196, %v1284
  %v1286 = vpop.f32.mrb[0].mxu0
  %v1287 = vpop.f32.mrb[0].mxu0
  %v1288 = vadd.f32 %v1199, %v1287
  %v1289 = vpop.f32.mrb[0].mxu0
  %1290 = vmatprep.mubr.bf16.mxu0 %v441
  %1291 = vmatmul.mubr.bf16.gmra.mrb[0].mxu0 %v440
  %v1292 = vpop.f32.mrb[0].mxu0
  %v1293 = vadd.f32 %v1204, %v1292
  %v1294 = vpop.f32.mrb[0].mxu0
  %v1295 = vpop.f32.mrb[0].mxu0
  %v1296 = vadd.f32 %v1207, %v1295
  %v1297 = vpop.f32.mrb[0].mxu0
  %1298 = vmatprep.mubr.bf16.mxu0 %v450
  %1299 = vmatmul.mubr.bf16.gmra.mrb[0].mxu0 %v449
  %v1300 = vpop.f32.mrb[0].mxu0
  %v1301 = vadd.f32 %v1212, %v1300
  %v1302 = vpop.f32.mrb[0].mxu0
  %v1303 = vpop.f32.mrb[0].mxu0
  %v1304 = vadd.f32 %v1215, %v1303
  %v1305 = vpop.f32.mrb[0].mxu0
  %1306 = vmatprep.mubr.bf16.mxu0 %v459
  %1307 = vmatmul.mubr.bf16.gmra.mrb[0].mxu0 %v458
  %v1308 = vpop.f32.mrb[0].mxu0
  %v1309 = vadd.f32 %v1220, %v1308
  %v1310 = vpop.f32.mrb[0].mxu0
  %v1311 = vpop.f32.mrb[0].mxu0
  %v1312 = vadd.f32 %v1223, %v1311
  %v1313 = vpop.f32.mrb[0].mxu0
  %1314 = vmatprep.mubr.bf16.mxu0 %v468
  %1315 = vmatmul.mubr.bf16.gmra.mrb[0].mxu0 %v467
  %v1316 = vpop.f32.mrb[0].mxu0
  %v1317 = vadd.f32 %v1228, %v1316
  %v1318 = vpop.f32.mrb[0].mxu0
  %v1319 = vpop.f32.mrb[0].mxu0
  %v1320 = vadd.f32 %v1231, %v1319
  %v1321 = vpop.f32.mrb[0].mxu0
  %1322 = vmatprep.mubr.bf16.mxu0 %v477
  %1323 = vmatmul.mubr.bf16.gmra.mrb[0].mxu0 %v476
  %v1324 = vpop.f32.mrb[0].mxu0
  %v1325 = vadd.f32 %v1236, %v1324
  %v1326 = vpop.f32.mrb[0].mxu0
  %v1327 = vpop.f32.mrb[0].mxu0
  %v1328 = vadd.f32 %v1239, %v1327
  %v1329 = vpop.f32.mrb[0].mxu0
  %1330 = vmatprep.mubr.bf16.mxu0 %v486
  %1331 = vmatmul.mubr.bf16.gmra.mrb[0].mxu0 %v485
  %v1332 = vpop.f32.mrb[0].mxu0
  %v1333 = vadd.f32 %v1244, %v1332
  %v1334 = vpop.f32.mrb[0].mxu0
  %v1335 = vpop.f32.mrb[0].mxu0
  %v1336 = vadd.f32 %v1247, %v1335
  %v1337 = vpop.f32.mrb[0].mxu0
  %1338 = vdwg.mxu0
  %1339 = vmatprep.subr.bf16.mxu0 0
  %1340 = vmatpush1.bf16.msra.mxu0 %v903
  %1341 = vmatprep.subr.bf16.mxu0 0
  %1342 = vmatpush1.bf16.msra.mxu0 %v904
  %1343 = vmatprep.subr.bf16.mxu0 0
  %1344 = vmatpush1.bf16.msra.mxu0 %v905
  %1345 = vmatprep.subr.bf16.mxu0 0
  %1346 = vmatpush1.bf16.msra.mxu0 %v906
  %1347 = vmatprep.subr.bf16.mxu0 0
  %1348 = vmatpush1.bf16.msra.mxu0 %v907
  %1349 = vmatprep.subr.bf16.mxu0 0
  %1350 = vmatpush1.bf16.msra.mxu0 %v908
  %1351 = vmatprep.subr.bf16.mxu0 0
  %1352 = vmatpush1.bf16.msra.mxu0 %v909
  %1353 = vmatprep.subr.bf16.mxu0 0
  %1354 = vmatpush1.bf16.msra.mxu0 %v910
  %1355 = vmatprep.subr.bf16.mxu0 0
  %1356 = vmatpush1.bf16.msra.mxu0 0
  %1357 = vmatprep.subr.bf16.mxu0 0
  %1358 = vmatpush1.bf16.msra.mxu0 0
  %1359 = vmatprep.subr.bf16.mxu0 0
  %1360 = vmatpush1.bf16.msra.mxu0 0
  %1361 = vmatprep.subr.bf16.mxu0 0
  %1362 = vmatpush1.bf16.msra.mxu0 0
  %1363 = vmatprep.subr.bf16.mxu0 0
  %1364 = vmatpush1.bf16.msra.mxu0 0
  %1365 = vmatprep.subr.bf16.mxu0 0
  %1366 = vmatpush1.bf16.msra.mxu0 0
  %1367 = vmatprep.subr.bf16.mxu0 0
  %1368 = vmatpush1.bf16.msra.mxu0 0
  %1369 = vmatprep.subr.bf16.mxu0 0
  %1370 = vmatpush1.bf16.msra.mxu0 0
  %1371 = vmatprep.mubr.bf16.mxu0 0
  %1372 = vmatmul.mubr.bf16.gmra.mrb[0].mxu0 %v433
  %v1373 = vpop.f32.mrb[0].mxu0
  %v1374 = vadd.f32 %v1285, %v1373
  %v1375 = vpop.f32.mrb[0].mxu0
  %v1376 = vpop.f32.mrb[0].mxu0
  %v1377 = vadd.f32 %v1288, %v1376
  %v1378 = vpop.f32.mrb[0].mxu0
  %1379 = vmatprep.mubr.bf16.mxu0 0
  %1380 = vmatmul.mubr.bf16.gmra.mrb[0].mxu0 %v442
  %v1381 = vpop.f32.mrb[0].mxu0
  %v1382 = vadd.f32 %v1293, %v1381
  %v1383 = vpop.f32.mrb[0].mxu0
  %v1384 = vpop.f32.mrb[0].mxu0
  %v1385 = vadd.f32 %v1296, %v1384
  %v1386 = vpop.f32.mrb[0].mxu0
  %1387 = vmatprep.mubr.bf16.mxu0 0
  %1388 = vmatmul.mubr.bf16.gmra.mrb[0].mxu0 %v451
  %v1389 = vpop.f32.mrb[0].mxu0
  %v1390 = vadd.f32 %v1301, %v1389
  %v1391 = vpop.f32.mrb[0].mxu0
  %v1392 = vpop.f32.mrb[0].mxu0
  %v1393 = vadd.f32 %v1304, %v1392
  %v1394 = vpop.f32.mrb[0].mxu0
  %1395 = vmatprep.mubr.bf16.mxu0 0
  %1396 = vmatmul.mubr.bf16.gmra.mrb[0].mxu0 %v460
  %v1397 = vpop.f32.mrb[0].mxu0
  %v1398 = vadd.f32 %v1309, %v1397
  %v1399 = vpop.f32.mrb[0].mxu0
  %v1400 = vpop.f32.mrb[0].mxu0
  %v1401 = vadd.f32 %v1312, %v1400
  %v1402 = vpop.f32.mrb[0].mxu0
  %1403 = vmatprep.mubr.bf16.mxu0 0
  %1404 = vmatmul.mubr.bf16.gmra.mrb[0].mxu0 %v469
  %v1405 = vpop.f32.mrb[0].mxu0
  %v1406 = vadd.f32 %v1317, %v1405
  %v1407 = vpop.f32.mrb[0].mxu0
  %v1408 = vpop.f32.mrb[0].mxu0
  %v1409 = vadd.f32 %v1320, %v1408
  %v1410 = vpop.f32.mrb[0].mxu0
  %1411 = vmatprep.mubr.bf16.mxu0 0
  %1412 = vmatmul.mubr.bf16.gmra.mrb[0].mxu0 %v478
  %v1413 = vpop.f32.mrb[0].mxu0
  %v1414 = vadd.f32 %v1325, %v1413
  %v1415 = vpop.f32.mrb[0].mxu0
  %v1416 = vpop.f32.mrb[0].mxu0
  %v1417 = vadd.f32 %v1328, %v1416
  %v1418 = vpop.f32.mrb[0].mxu0
  %1419 = vmatprep.mubr.bf16.mxu0 0
  %1420 = vmatmul.mubr.bf16.gmra.mrb[0].mxu0 %v487
  %v1421 = vpop.f32.mrb[0].mxu0
  %v1422 = vadd.f32 %v1333, %v1421
  %v1423 = vpop.f32.mrb[0].mxu0
  %v1424 = vpop.f32.mrb[0].mxu0
  %v1425 = vadd.f32 %v1336, %v1424
  %v1426 = vpop.f32.mrb[0].mxu0
  %1427 = vdwg.mxu0
  %s1428 = scalar_lea.vmem %s0, 504
  %v1429 = vld [vmem:[%s1428] sm:$0xff]
  %v1430 = vld [vmem:[%s1428 + $0x8] sm:$0xff]
  %v1431 = vld [vmem:[%s1428 + $0x10] sm:$0xff]
  %v1432 = vld [vmem:[%s1428 + $0x18] sm:$0xff]
  %v1433 = vld [vmem:[%s1428 + $0x20] sm:$0xf]
  %v1434 = vld [vmem:[%s1428 + $0x24] sm:$0xff]
  %v1435 = vld [vmem:[%s1428 + $0x2c] sm:$0xff]
  %v1436 = vld [vmem:[%s1428 + $0x34] sm:$0xff]
  %v1437 = vld [vmem:[%s1428 + $0x3c] sm:$0xff]
  %v1438 = vld [vmem:[%s1428 + $0x44] sm:$0xf]
  %v1439 = vld [vmem:[%s1428 + $0x48] sm:$0xff]
  %v1440 = vld [vmem:[%s1428 + $0x50] sm:$0xff]
  %v1441 = vld [vmem:[%s1428 + $0x58] sm:$0xff]
  %v1442 = vld [vmem:[%s1428 + $0x60] sm:$0xff]
  %v1443 = vld [vmem:[%s1428 + $0x68] sm:$0xf]
  %v1444 = vld [vmem:[%s1428 + $0x6c] sm:$0xff]
  %v1445 = vld [vmem:[%s1428 + $0x74] sm:$0xff]
  %v1446 = vld [vmem:[%s1428 + $0x7c] sm:$0xff]
  %v1447 = vld [vmem:[%s1428 + $0x84] sm:$0xff]
  %v1448 = vld [vmem:[%s1428 + $0x8c] sm:$0xf]
  %v1449 = vld [vmem:[%s1428 + $0x90] sm:$0xff]
  %v1450 = vld [vmem:[%s1428 + $0x98] sm:$0xff]
  %v1451 = vld [vmem:[%s1428 + $0xa0] sm:$0xff]
  %v1452 = vld [vmem:[%s1428 + $0xa8] sm:$0xff]
  %v1453 = vld [vmem:[%s1428 + $0xb0] sm:$0xf]
  %v1454 = vld [vmem:[%s1428 + $0xb4] sm:$0xff]
  %v1455 = vld [vmem:[%s1428 + $0xbc] sm:$0xff]
  %v1456 = vld [vmem:[%s1428 + $0xc4] sm:$0xff]
  %v1457 = vld [vmem:[%s1428 + $0xcc] sm:$0xff]
  %v1458 = vld [vmem:[%s1428 + $0xd4] sm:$0xf]
  %v1459 = vld [vmem:[%s1428 + $0xd8] sm:$0xff]
  %v1460 = vld [vmem:[%s1428 + $0xe0] sm:$0xff]
  %v1461 = vld [vmem:[%s1428 + $0xe8] sm:$0xff]
  %v1462 = vld [vmem:[%s1428 + $0xf0] sm:$0xff]
  %v1463 = vld [vmem:[%s1428 + $0xf8] sm:$0xf]
  %v1464 = vld [vmem:[%s1428 + $0xfc] sm:$0xff]
  %v1465 = vld [vmem:[%s1428 + $0x104] sm:$0xff]
  %v1466 = vld [vmem:[%s1428 + $0x10c] sm:$0xff]
  %v1467 = vld [vmem:[%s1428 + $0x114] sm:$0xff]
  %v1468 = vld [vmem:[%s1428 + $0x11c] sm:$0xf]
  %v1469 = vld [vmem:[%s1428 + $0x120] sm:$0xff]
  %v1470 = vld [vmem:[%s1428 + $0x128] sm:$0xff]
  %v1471 = vld [vmem:[%s1428 + $0x130] sm:$0xff]
  %v1472 = vld [vmem:[%s1428 + $0x138] sm:$0xff]
  %v1473 = vld [vmem:[%s1428 + $0x140] sm:$0xf]
  %v1474 = vld [vmem:[%s1428 + $0x144] sm:$0xff]
  %v1475 = vld [vmem:[%s1428 + $0x14c] sm:$0xff]
  %v1476 = vld [vmem:[%s1428 + $0x154] sm:$0xff]
  %v1477 = vld [vmem:[%s1428 + $0x15c] sm:$0xff]
  %v1478 = vld [vmem:[%s1428 + $0x164] sm:$0xf]
  %v1479 = vld [vmem:[%s1428 + $0x168] sm:$0xff]
  %v1480 = vld [vmem:[%s1428 + $0x170] sm:$0xff]
  %v1481 = vld [vmem:[%s1428 + $0x178] sm:$0xff]
  %v1482 = vld [vmem:[%s1428 + $0x180] sm:$0xff]
  %v1483 = vld [vmem:[%s1428 + $0x188] sm:$0xf]
  %v1484 = vld [vmem:[%s1428 + $0x18c] sm:$0xff]
  %v1485 = vld [vmem:[%s1428 + $0x194] sm:$0xff]
  %v1486 = vld [vmem:[%s1428 + $0x19c] sm:$0xff]
  %v1487 = vld [vmem:[%s1428 + $0x1a4] sm:$0xff]
  %v1488 = vld [vmem:[%s1428 + $0x1ac] sm:$0xf]
  %v1489 = vld [vmem:[%s1428 + $0x1b0] sm:$0xff]
  %v1490 = vld [vmem:[%s1428 + $0x1b8] sm:$0xff]
  %v1491 = vld [vmem:[%s1428 + $0x1c0] sm:$0xff]
  %v1492 = vld [vmem:[%s1428 + $0x1c8] sm:$0xff]
  %v1493 = vld [vmem:[%s1428 + $0x1d0] sm:$0xf]
  %v1494 = vld [vmem:[%s1428 + $0x1d4] sm:$0xff]
  %v1495 = vld [vmem:[%s1428 + $0x1dc] sm:$0xff]
  %v1496 = vld [vmem:[%s1428 + $0x1e4] sm:$0xff]
  %v1497 = vld [vmem:[%s1428 + $0x1ec] sm:$0xff]
  %v1498 = vld [vmem:[%s1428 + $0x1f4] sm:$0xf]
  %v1569 = vunpack.c.l.b16 %v1429
  %v1570 = vunpack.c.h.b16 %v1429
  %v1571 = vunpack.c.l.b16 %v1430
  %v1572 = vunpack.c.h.b16 %v1430
  %v1573 = vunpack.c.l.b16 %v1431
  %v1574 = vunpack.c.h.b16 %v1431
  %v1575 = vunpack.c.l.b16 %v1432
  %v1576 = vunpack.c.h.b16 %v1432
  %v1577 = vunpack.c.l.b16 %v1433
  %v1578 = vunpack.c.l.b16 %v1434
  %v1579 = vunpack.c.h.b16 %v1434
  %v1580 = vunpack.c.l.b16 %v1435
  %v1581 = vunpack.c.h.b16 %v1435
  %v1582 = vunpack.c.l.b16 %v1436
  %v1583 = vunpack.c.h.b16 %v1436
  %v1584 = vunpack.c.l.b16 %v1437
  %v1585 = vunpack.c.h.b16 %v1437
  %v1586 = vunpack.c.l.b16 %v1438
  %v1587 = vunpack.c.l.b16 %v1439
  %v1588 = vunpack.c.h.b16 %v1439
  %v1589 = vunpack.c.l.b16 %v1440
  %v1590 = vunpack.c.h.b16 %v1440
  %v1591 = vunpack.c.l.b16 %v1441
  %v1592 = vunpack.c.h.b16 %v1441
  %v1593 = vunpack.c.l.b16 %v1442
  %v1594 = vunpack.c.h.b16 %v1442
  %v1595 = vunpack.c.l.b16 %v1443
  %v1596 = vunpack.c.l.b16 %v1444
  %v1597 = vunpack.c.h.b16 %v1444
  %v1598 = vunpack.c.l.b16 %v1445
  %v1599 = vunpack.c.h.b16 %v1445
  %v1600 = vunpack.c.l.b16 %v1446
  %v1601 = vunpack.c.h.b16 %v1446
  %v1602 = vunpack.c.l.b16 %v1447
  %v1603 = vunpack.c.h.b16 %v1447
  %v1604 = vunpack.c.l.b16 %v1448
  %v1605 = vunpack.c.l.b16 %v1449
  %v1606 = vunpack.c.h.b16 %v1449
  %v1607 = vunpack.c.l.b16 %v1450
  %v1608 = vunpack.c.h.b16 %v1450
  %v1609 = vunpack.c.l.b16 %v1451
  %v1610 = vunpack.c.h.b16 %v1451
  %v1611 = vunpack.c.l.b16 %v1452
  %v1612 = vunpack.c.h.b16 %v1452
  %v1613 = vunpack.c.l.b16 %v1453
  %v1614 = vunpack.c.l.b16 %v1454
  %v1615 = vunpack.c.h.b16 %v1454
  %v1616 = vunpack.c.l.b16 %v1455
  %v1617 = vunpack.c.h.b16 %v1455
  %v1618 = vunpack.c.l.b16 %v1456
  %v1619 = vunpack.c.h.b16 %v1456
  %v1620 = vunpack.c.l.b16 %v1457
  %v1621 = vunpack.c.h.b16 %v1457
  %v1622 = vunpack.c.l.b16 %v1458
  %v1623 = vunpack.c.l.b16 %v1459
  %v1624 = vunpack.c.h.b16 %v1459
  %v1625 = vunpack.c.l.b16 %v1460
  %v1626 = vunpack.c.h.b16 %v1460
  %v1627 = vunpack.c.l.b16 %v1461
  %v1628 = vunpack.c.h.b16 %v1461
  %v1629 = vunpack.c.l.b16 %v1462
  %v1630 = vunpack.c.h.b16 %v1462
  %v1631 = vunpack.c.l.b16 %v1463
  %v1632 = vunpack.c.l.b16 %v1464
  %v1633 = vunpack.c.h.b16 %v1464
  %v1634 = vunpack.c.l.b16 %v1465
  %v1635 = vunpack.c.h.b16 %v1465
  %v1636 = vunpack.c.l.b16 %v1466
  %v1637 = vunpack.c.h.b16 %v1466
  %v1638 = vunpack.c.l.b16 %v1467
  %v1639 = vunpack.c.h.b16 %v1467
  %v1640 = vunpack.c.l.b16 %v1468
  %v1641 = vunpack.c.l.b16 %v1469
  %v1642 = vunpack.c.h.b16 %v1469
  %v1643 = vunpack.c.l.b16 %v1470
  %v1644 = vunpack.c.h.b16 %v1470
  %v1645 = vunpack.c.l.b16 %v1471
  %v1646 = vunpack.c.h.b16 %v1471
  %v1647 = vunpack.c.l.b16 %v1472
  %v1648 = vunpack.c.h.b16 %v1472
  %v1649 = vunpack.c.l.b16 %v1473
  %v1650 = vunpack.c.l.b16 %v1474
  %v1651 = vunpack.c.h.b16 %v1474
  %v1652 = vunpack.c.l.b16 %v1475
  %v1653 = vunpack.c.h.b16 %v1475
  %v1654 = vunpack.c.l.b16 %v1476
  %v1655 = vunpack.c.h.b16 %v1476
  %v1656 = vunpack.c.l.b16 %v1477
  %v1657 = vunpack.c.h.b16 %v1477
  %v1658 = vunpack.c.l.b16 %v1478
  %v1659 = vunpack.c.l.b16 %v1479
  %v1660 = vunpack.c.h.b16 %v1479
  %v1661 = vunpack.c.l.b16 %v1480
  %v1662 = vunpack.c.h.b16 %v1480
  %v1663 = vunpack.c.l.b16 %v1481
  %v1664 = vunpack.c.h.b16 %v1481
  %v1665 = vunpack.c.l.b16 %v1482
  %v1666 = vunpack.c.h.b16 %v1482
  %v1667 = vunpack.c.l.b16 %v1483
  %v1668 = vunpack.c.l.b16 %v1484
  %v1669 = vunpack.c.h.b16 %v1484
  %v1670 = vunpack.c.l.b16 %v1485
  %v1671 = vunpack.c.h.b16 %v1485
  %v1672 = vunpack.c.l.b16 %v1486
  %v1673 = vunpack.c.h.b16 %v1486
  %v1674 = vunpack.c.l.b16 %v1487
  %v1675 = vunpack.c.h.b16 %v1487
  %v1676 = vunpack.c.l.b16 %v1488
  %v1677 = vunpack.c.l.b16 %v1489
  %v1678 = vunpack.c.h.b16 %v1489
  %v1679 = vunpack.c.l.b16 %v1490
  %v1680 = vunpack.c.h.b16 %v1490
  %v1681 = vunpack.c.l.b16 %v1491
  %v1682 = vunpack.c.h.b16 %v1491
  %v1683 = vunpack.c.l.b16 %v1492
  %v1684 = vunpack.c.h.b16 %v1492
  %v1685 = vunpack.c.l.b16 %v1493
  %v1686 = vunpack.c.l.b16 %v1494
  %v1687 = vunpack.c.h.b16 %v1494
  %v1688 = vunpack.c.l.b16 %v1495
  %v1689 = vunpack.c.h.b16 %v1495
  %v1690 = vunpack.c.l.b16 %v1496
  %v1691 = vunpack.c.h.b16 %v1496
  %v1692 = vunpack.c.l.b16 %v1497
  %v1693 = vunpack.c.h.b16 %v1497
  %v1694 = vunpack.c.l.b16 %v1498
  %v1695 = vpack.c.b16 %v1578, %v1569
  %v1696 = vpack.c.b16 %v1579, %v1570
  %v1697 = vpack.c.b16 %v1580, %v1571
  %v1698 = vpack.c.b16 %v1581, %v1572
  %v1699 = vpack.c.b16 %v1582, %v1573
  %v1700 = vpack.c.b16 %v1583, %v1574
  %v1701 = vpack.c.b16 %v1584, %v1575
  %v1702 = vpack.c.b16 %v1585, %v1576
  %v1703 = vpack.c.b16 %v1586, %v1577
  %v1704 = vpack.c.b16 %v1596, %v1587
  %v1705 = vpack.c.b16 %v1597, %v1588
  %v1706 = vpack.c.b16 %v1598, %v1589
  %v1707 = vpack.c.b16 %v1599, %v1590
  %v1708 = vpack.c.b16 %v1600, %v1591
  %v1709 = vpack.c.b16 %v1601, %v1592
  %v1710 = vpack.c.b16 %v1602, %v1593
  %v1711 = vpack.c.b16 %v1603, %v1594
  %v1712 = vpack.c.b16 %v1604, %v1595
  %v1713 = vpack.c.b16 %v1614, %v1605
  %v1714 = vpack.c.b16 %v1615, %v1606
  %v1715 = vpack.c.b16 %v1616, %v1607
  %v1716 = vpack.c.b16 %v1617, %v1608
  %v1717 = vpack.c.b16 %v1618, %v1609
  %v1718 = vpack.c.b16 %v1619, %v1610
  %v1719 = vpack.c.b16 %v1620, %v1611
  %v1720 = vpack.c.b16 %v1621, %v1612
  %v1721 = vpack.c.b16 %v1622, %v1613
  %v1722 = vpack.c.b16 %v1632, %v1623
  %v1723 = vpack.c.b16 %v1633, %v1624
  %v1724 = vpack.c.b16 %v1634, %v1625
  %v1725 = vpack.c.b16 %v1635, %v1626
  %v1726 = vpack.c.b16 %v1636, %v1627
  %v1727 = vpack.c.b16 %v1637, %v1628
  %v1728 = vpack.c.b16 %v1638, %v1629
  %v1729 = vpack.c.b16 %v1639, %v1630
  %v1730 = vpack.c.b16 %v1640, %v1631
  %v1731 = vpack.c.b16 %v1650, %v1641
  %v1732 = vpack.c.b16 %v1651, %v1642
  %v1733 = vpack.c.b16 %v1652, %v1643
  %v1734 = vpack.c.b16 %v1653, %v1644
  %v1735 = vpack.c.b16 %v1654, %v1645
  %v1736 = vpack.c.b16 %v1655, %v1646
  %v1737 = vpack.c.b16 %v1656, %v1647
  %v1738 = vpack.c.b16 %v1657, %v1648
  %v1739 = vpack.c.b16 %v1658, %v1649
  %v1740 = vpack.c.b16 %v1668, %v1659
  %v1741 = vpack.c.b16 %v1669, %v1660
  %v1742 = vpack.c.b16 %v1670, %v1661
  %v1743 = vpack.c.b16 %v1671, %v1662
  %v1744 = vpack.c.b16 %v1672, %v1663
  %v1745 = vpack.c.b16 %v1673, %v1664
  %v1746 = vpack.c.b16 %v1674, %v1665
  %v1747 = vpack.c.b16 %v1675, %v1666
  %v1748 = vpack.c.b16 %v1676, %v1667
  %v1749 = vpack.c.b16 %v1686, %v1677
  %v1750 = vpack.c.b16 %v1687, %v1678
  %v1751 = vpack.c.b16 %v1688, %v1679
  %v1752 = vpack.c.b16 %v1689, %v1680
  %v1753 = vpack.c.b16 %v1690, %v1681
  %v1754 = vpack.c.b16 %v1691, %v1682
  %v1755 = vpack.c.b16 %v1692, %v1683
  %v1756 = vpack.c.b16 %v1693, %v1684
  %v1757 = vpack.c.b16 %v1694, %v1685
  %1821 = vmatprep.subr.bf16.mxu0 0
  %1822 = vmatpush1.bf16.msra.mxu0 %v839
  %1823 = vmatprep.subr.bf16.mxu0 0
  %1824 = vmatpush1.bf16.msra.mxu0 %v840
  %1825 = vmatprep.subr.bf16.mxu0 0
  %1826 = vmatpush1.bf16.msra.mxu0 %v841
  %1827 = vmatprep.subr.bf16.mxu0 0
  %1828 = vmatpush1.bf16.msra.mxu0 %v842
  %1829 = vmatprep.subr.bf16.mxu0 0
  %1830 = vmatpush1.bf16.msra.mxu0 %v843
  %1831 = vmatprep.subr.bf16.mxu0 0
  %1832 = vmatpush1.bf16.msra.mxu0 %v844
  %1833 = vmatprep.subr.bf16.mxu0 0
  %1834 = vmatpush1.bf16.msra.mxu0 %v845
  %1835 = vmatprep.subr.bf16.mxu0 0
  %1836 = vmatpush1.bf16.msra.mxu0 %v846
  %1837 = vmatprep.subr.bf16.mxu0 0
  %1838 = vmatpush1.bf16.msra.mxu0 %v847
  %1839 = vmatprep.subr.bf16.mxu0 0
  %1840 = vmatpush1.bf16.msra.mxu0 %v848
  %1841 = vmatprep.subr.bf16.mxu0 0
  %1842 = vmatpush1.bf16.msra.mxu0 %v849
  %1843 = vmatprep.subr.bf16.mxu0 0
  %1844 = vmatpush1.bf16.msra.mxu0 %v850
  %1845 = vmatprep.subr.bf16.mxu0 0
  %1846 = vmatpush1.bf16.msra.mxu0 %v851
  %1847 = vmatprep.subr.bf16.mxu0 0
  %1848 = vmatpush1.bf16.msra.mxu0 %v852
  %1849 = vmatprep.subr.bf16.mxu0 0
  %1850 = vmatpush1.bf16.msra.mxu0 %v853
  %1851 = vmatprep.subr.bf16.mxu0 0
  %1852 = vmatpush1.bf16.msra.mxu0 %v854
  %1853 = vmatprep.mubr.bf16.mxu0 %v1696
  %1854 = vmatmul.mubr.bf16.gmra.mrb[0].mxu0 %v1695
  %v1855 = vpop.f32.mrb[0].mxu0
  %v1856 = vadd.f32 0.0, %v1855
  %v1857 = vpop.f32.mrb[0].mxu0
  %v1858 = vpop.f32.mrb[0].mxu0
  %v1859 = vadd.f32 0.0, %v1858
  %v1860 = vpop.f32.mrb[0].mxu0
  %1861 = vmatprep.mubr.bf16.mxu0 %v1705
  %1862 = vmatmul.mubr.bf16.gmra.mrb[0].mxu0 %v1704
  %v1863 = vpop.f32.mrb[0].mxu0
  %v1864 = vadd.f32 0.0, %v1863
  %v1865 = vpop.f32.mrb[0].mxu0
  %v1866 = vpop.f32.mrb[0].mxu0
  %v1867 = vadd.f32 0.0, %v1866
  %v1868 = vpop.f32.mrb[0].mxu0
  %1869 = vmatprep.mubr.bf16.mxu0 %v1714
  %1870 = vmatmul.mubr.bf16.gmra.mrb[0].mxu0 %v1713
  %v1871 = vpop.f32.mrb[0].mxu0
  %v1872 = vadd.f32 0.0, %v1871
  %v1873 = vpop.f32.mrb[0].mxu0
  %v1874 = vpop.f32.mrb[0].mxu0
  %v1875 = vadd.f32 0.0, %v1874
  %v1876 = vpop.f32.mrb[0].mxu0
  %1877 = vmatprep.mubr.bf16.mxu0 %v1723
  %1878 = vmatmul.mubr.bf16.gmra.mrb[0].mxu0 %v1722
  %v1879 = vpop.f32.mrb[0].mxu0
  %v1880 = vadd.f32 0.0, %v1879
  %v1881 = vpop.f32.mrb[0].mxu0
  %v1882 = vpop.f32.mrb[0].mxu0
  %v1883 = vadd.f32 0.0, %v1882
  %v1884 = vpop.f32.mrb[0].mxu0
  %1885 = vmatprep.mubr.bf16.mxu0 %v1732
  %1886 = vmatmul.mubr.bf16.gmra.mrb[0].mxu0 %v1731
  %v1887 = vpop.f32.mrb[0].mxu0
  %v1888 = vadd.f32 0.0, %v1887
  %v1889 = vpop.f32.mrb[0].mxu0
  %v1890 = vpop.f32.mrb[0].mxu0
  %v1891 = vadd.f32 0.0, %v1890
  %v1892 = vpop.f32.mrb[0].mxu0
  %1893 = vmatprep.mubr.bf16.mxu0 %v1741
  %1894 = vmatmul.mubr.bf16.gmra.mrb[0].mxu0 %v1740
  %v1895 = vpop.f32.mrb[0].mxu0
  %v1896 = vadd.f32 0.0, %v1895
  %v1897 = vpop.f32.mrb[0].mxu0
  %v1898 = vpop.f32.mrb[0].mxu0
  %v1899 = vadd.f32 0.0, %v1898
  %v1900 = vpop.f32.mrb[0].mxu0
  %1901 = vmatprep.mubr.bf16.mxu0 %v1750
  %1902 = vmatmul.mubr.bf16.gmra.mrb[0].mxu0 %v1749
  %v1903 = vpop.f32.mrb[0].mxu0
  %v1904 = vadd.f32 0.0, %v1903
  %v1905 = vpop.f32.mrb[0].mxu0
  %v1906 = vpop.f32.mrb[0].mxu0
  %v1907 = vadd.f32 0.0, %v1906
  %v1908 = vpop.f32.mrb[0].mxu0
  %1909 = vdwg.mxu0
  %1910 = vmatprep.subr.bf16.mxu0 0
  %1911 = vmatpush1.bf16.msra.mxu0 %v855
  %1912 = vmatprep.subr.bf16.mxu0 0
  %1913 = vmatpush1.bf16.msra.mxu0 %v856
  %1914 = vmatprep.subr.bf16.mxu0 0
  %1915 = vmatpush1.bf16.msra.mxu0 %v857
  %1916 = vmatprep.subr.bf16.mxu0 0
  %1917 = vmatpush1.bf16.msra.mxu0 %v858
  %1918 = vmatprep.subr.bf16.mxu0 0
  %1919 = vmatpush1.bf16.msra.mxu0 %v859
  %1920 = vmatprep.subr.bf16.mxu0 0
  %1921 = vmatpush1.bf16.msra.mxu0 %v860
  %1922 = vmatprep.subr.bf16.mxu0 0
  %1923 = vmatpush1.bf16.msra.mxu0 %v861
  %1924 = vmatprep.subr.bf16.mxu0 0
  %1925 = vmatpush1.bf16.msra.mxu0 %v862
  %1926 = vmatprep.subr.bf16.mxu0 0
  %1927 = vmatpush1.bf16.msra.mxu0 %v863
  %1928 = vmatprep.subr.bf16.mxu0 0
  %1929 = vmatpush1.bf16.msra.mxu0 %v864
  %1930 = vmatprep.subr.bf16.mxu0 0
  %1931 = vmatpush1.bf16.msra.mxu0 %v865
  %1932 = vmatprep.subr.bf16.mxu0 0
  %1933 = vmatpush1.bf16.msra.mxu0 %v866
  %1934 = vmatprep.subr.bf16.mxu0 0
  %1935 = vmatpush1.bf16.msra.mxu0 %v867
  %1936 = vmatprep.subr.bf16.mxu0 0
  %1937 = vmatpush1.bf16.msra.mxu0 %v868
  %1938 = vmatprep.subr.bf16.mxu0 0
  %1939 = vmatpush1.bf16.msra.mxu0 %v869
  %1940 = vmatprep.subr.bf16.mxu0 0
  %1941 = vmatpush1.bf16.msra.mxu0 %v870
  %1942 = vmatprep.mubr.bf16.mxu0 %v1698
  %1943 = vmatmul.mubr.bf16.gmra.mrb[0].mxu0 %v1697
  %v1944 = vpop.f32.mrb[0].mxu0
  %v1945 = vadd.f32 %v1856, %v1944
  %v1946 = vpop.f32.mrb[0].mxu0
  %v1947 = vpop.f32.mrb[0].mxu0
  %v1948 = vadd.f32 %v1859, %v1947
  %v1949 = vpop.f32.mrb[0].mxu0
  %1950 = vmatprep.mubr.bf16.mxu0 %v1707
  %1951 = vmatmul.mubr.bf16.gmra.mrb[0].mxu0 %v1706
  %v1952 = vpop.f32.mrb[0].mxu0
  %v1953 = vadd.f32 %v1864, %v1952
  %v1954 = vpop.f32.mrb[0].mxu0
  %v1955 = vpop.f32.mrb[0].mxu0
  %v1956 = vadd.f32 %v1867, %v1955
  %v1957 = vpop.f32.mrb[0].mxu0
  %1958 = vmatprep.mubr.bf16.mxu0 %v1716
  %1959 = vmatmul.mubr.bf16.gmra.mrb[0].mxu0 %v1715
  %v1960 = vpop.f32.mrb[0].mxu0
  %v1961 = vadd.f32 %v1872, %v1960
  %v1962 = vpop.f32.mrb[0].mxu0
  %v1963 = vpop.f32.mrb[0].mxu0
  %v1964 = vadd.f32 %v1875, %v1963
  %v1965 = vpop.f32.mrb[0].mxu0
  %1966 = vmatprep.mubr.bf16.mxu0 %v1725
  %1967 = vmatmul.mubr.bf16.gmra.mrb[0].mxu0 %v1724
  %v1968 = vpop.f32.mrb[0].mxu0
  %v1969 = vadd.f32 %v1880, %v1968
  %v1970 = vpop.f32.mrb[0].mxu0
  %v1971 = vpop.f32.mrb[0].mxu0
  %v1972 = vadd.f32 %v1883, %v1971
  %v1973 = vpop.f32.mrb[0].mxu0
  %1974 = vmatprep.mubr.bf16.mxu0 %v1734
  %1975 = vmatmul.mubr.bf16.gmra.mrb[0].mxu0 %v1733
  %v1976 = vpop.f32.mrb[0].mxu0
  %v1977 = vadd.f32 %v1888, %v1976
  %v1978 = vpop.f32.mrb[0].mxu0
  %v1979 = vpop.f32.mrb[0].mxu0
  %v1980 = vadd.f32 %v1891, %v1979
  %v1981 = vpop.f32.mrb[0].mxu0
  %1982 = vmatprep.mubr.bf16.mxu0 %v1743
  %1983 = vmatmul.mubr.bf16.gmra.mrb[0].mxu0 %v1742
  %v1984 = vpop.f32.mrb[0].mxu0
  %v1985 = vadd.f32 %v1896, %v1984
  %v1986 = vpop.f32.mrb[0].mxu0
  %v1987 = vpop.f32.mrb[0].mxu0
  %v1988 = vadd.f32 %v1899, %v1987
  %v1989 = vpop.f32.mrb[0].mxu0
  %1990 = vmatprep.mubr.bf16.mxu0 %v1752
  %1991 = vmatmul.mubr.bf16.gmra.mrb[0].mxu0 %v1751
  %v1992 = vpop.f32.mrb[0].mxu0
  %v1993 = vadd.f32 %v1904, %v1992
  %v1994 = vpop.f32.mrb[0].mxu0
  %v1995 = vpop.f32.mrb[0].mxu0
  %v1996 = vadd.f32 %v1907, %v1995
  %v1997 = vpop.f32.mrb[0].mxu0
  %1998 = vdwg.mxu0
  %1999 = vmatprep.subr.bf16.mxu0 0
  %2000 = vmatpush1.bf16.msra.mxu0 %v871
  %2001 = vmatprep.subr.bf16.mxu0 0
  %2002 = vmatpush1.bf16.msra.mxu0 %v872
  %2003 = vmatprep.subr.bf16.mxu0 0
  %2004 = vmatpush1.bf16.msra.mxu0 %v873
  %2005 = vmatprep.subr.bf16.mxu0 0
  %2006 = vmatpush1.bf16.msra.mxu0 %v874
  %2007 = vmatprep.subr.bf16.mxu0 0
  %2008 = vmatpush1.bf16.msra.mxu0 %v875
  %2009 = vmatprep.subr.bf16.mxu0 0
  %2010 = vmatpush1.bf16.msra.mxu0 %v876
  %2011 = vmatprep.subr.bf16.mxu0 0
  %2012 = vmatpush1.bf16.msra.mxu0 %v877
  %2013 = vmatprep.subr.bf16.mxu0 0
  %2014 = vmatpush1.bf16.msra.mxu0 %v878
  %2015 = vmatprep.subr.bf16.mxu0 0
  %2016 = vmatpush1.bf16.msra.mxu0 %v879
  %2017 = vmatprep.subr.bf16.mxu0 0
  %2018 = vmatpush1.bf16.msra.mxu0 %v880
  %2019 = vmatprep.subr.bf16.mxu0 0
  %2020 = vmatpush1.bf16.msra.mxu0 %v881
  %2021 = vmatprep.subr.bf16.mxu0 0
  %2022 = vmatpush1.bf16.msra.mxu0 %v882
  %2023 = vmatprep.subr.bf16.mxu0 0
  %2024 = vmatpush1.bf16.msra.mxu0 %v883
  %2025 = vmatprep.subr.bf16.mxu0 0
  %2026 = vmatpush1.bf16.msra.mxu0 %v884
  %2027 = vmatprep.subr.bf16.mxu0 0
  %2028 = vmatpush1.bf16.msra.mxu0 %v885
  %2029 = vmatprep.subr.bf16.mxu0 0
  %2030 = vmatpush1.bf16.msra.mxu0 %v886
  %2031 = vmatprep.mubr.bf16.mxu0 %v1700
  %2032 = vmatmul.mubr.bf16.gmra.mrb[0].mxu0 %v1699
  %v2033 = vpop.f32.mrb[0].mxu0
  %v2034 = vadd.f32 %v1945, %v2033
  %v2035 = vpop.f32.mrb[0].mxu0
  %v2036 = vpop.f32.mrb[0].mxu0
  %v2037 = vadd.f32 %v1948, %v2036
  %v2038 = vpop.f32.mrb[0].mxu0
  %2039 = vmatprep.mubr.bf16.mxu0 %v1709
  %2040 = vmatmul.mubr.bf16.gmra.mrb[0].mxu0 %v1708
  %v2041 = vpop.f32.mrb[0].mxu0
  %v2042 = vadd.f32 %v1953, %v2041
  %v2043 = vpop.f32.mrb[0].mxu0
  %v2044 = vpop.f32.mrb[0].mxu0
  %v2045 = vadd.f32 %v1956, %v2044
  %v2046 = vpop.f32.mrb[0].mxu0
  %2047 = vmatprep.mubr.bf16.mxu0 %v1718
  %2048 = vmatmul.mubr.bf16.gmra.mrb[0].mxu0 %v1717
  %v2049 = vpop.f32.mrb[0].mxu0
  %v2050 = vadd.f32 %v1961, %v2049
  %v2051 = vpop.f32.mrb[0].mxu0
  %v2052 = vpop.f32.mrb[0].mxu0
  %v2053 = vadd.f32 %v1964, %v2052
  %v2054 = vpop.f32.mrb[0].mxu0
  %2055 = vmatprep.mubr.bf16.mxu0 %v1727
  %2056 = vmatmul.mubr.bf16.gmra.mrb[0].mxu0 %v1726
  %v2057 = vpop.f32.mrb[0].mxu0
  %v2058 = vadd.f32 %v1969, %v2057
  %v2059 = vpop.f32.mrb[0].mxu0
  %v2060 = vpop.f32.mrb[0].mxu0
  %v2061 = vadd.f32 %v1972, %v2060
  %v2062 = vpop.f32.mrb[0].mxu0
  %2063 = vmatprep.mubr.bf16.mxu0 %v1736
  %2064 = vmatmul.mubr.bf16.gmra.mrb[0].mxu0 %v1735
  %v2065 = vpop.f32.mrb[0].mxu0
  %v2066 = vadd.f32 %v1977, %v2065
  %v2067 = vpop.f32.mrb[0].mxu0
  %v2068 = vpop.f32.mrb[0].mxu0
  %v2069 = vadd.f32 %v1980, %v2068
  %v2070 = vpop.f32.mrb[0].mxu0
  %2071 = vmatprep.mubr.bf16.mxu0 %v1745
  %2072 = vmatmul.mubr.bf16.gmra.mrb[0].mxu0 %v1744
  %v2073 = vpop.f32.mrb[0].mxu0
  %v2074 = vadd.f32 %v1985, %v2073
  %v2075 = vpop.f32.mrb[0].mxu0
  %v2076 = vpop.f32.mrb[0].mxu0
  %v2077 = vadd.f32 %v1988, %v2076
  %v2078 = vpop.f32.mrb[0].mxu0
  %2079 = vmatprep.mubr.bf16.mxu0 %v1754
  %2080 = vmatmul.mubr.bf16.gmra.mrb[0].mxu0 %v1753
  %v2081 = vpop.f32.mrb[0].mxu0
  %v2082 = vadd.f32 %v1993, %v2081
  %v2083 = vpop.f32.mrb[0].mxu0
  %v2084 = vpop.f32.mrb[0].mxu0
  %v2085 = vadd.f32 %v1996, %v2084
  %v2086 = vpop.f32.mrb[0].mxu0
  %2087 = vdwg.mxu0
  %2088 = vmatprep.subr.bf16.mxu0 0
  %2089 = vmatpush1.bf16.msra.mxu0 %v887
  %2090 = vmatprep.subr.bf16.mxu0 0
  %2091 = vmatpush1.bf16.msra.mxu0 %v888
  %2092 = vmatprep.subr.bf16.mxu0 0
  %2093 = vmatpush1.bf16.msra.mxu0 %v889
  %2094 = vmatprep.subr.bf16.mxu0 0
  %2095 = vmatpush1.bf16.msra.mxu0 %v890
  %2096 = vmatprep.subr.bf16.mxu0 0
  %2097 = vmatpush1.bf16.msra.mxu0 %v891
  %2098 = vmatprep.subr.bf16.mxu0 0
  %2099 = vmatpush1.bf16.msra.mxu0 %v892
  %2100 = vmatprep.subr.bf16.mxu0 0
  %2101 = vmatpush1.bf16.msra.mxu0 %v893
  %2102 = vmatprep.subr.bf16.mxu0 0
  %2103 = vmatpush1.bf16.msra.mxu0 %v894
  %2104 = vmatprep.subr.bf16.mxu0 0
  %2105 = vmatpush1.bf16.msra.mxu0 %v895
  %2106 = vmatprep.subr.bf16.mxu0 0
  %2107 = vmatpush1.bf16.msra.mxu0 %v896
  %2108 = vmatprep.subr.bf16.mxu0 0
  %2109 = vmatpush1.bf16.msra.mxu0 %v897
  %2110 = vmatprep.subr.bf16.mxu0 0
  %2111 = vmatpush1.bf16.msra.mxu0 %v898
  %2112 = vmatprep.subr.bf16.mxu0 0
  %2113 = vmatpush1.bf16.msra.mxu0 %v899
  %2114 = vmatprep.subr.bf16.mxu0 0
  %2115 = vmatpush1.bf16.msra.mxu0 %v900
  %2116 = vmatprep.subr.bf16.mxu0 0
  %2117 = vmatpush1.bf16.msra.mxu0 %v901
  %2118 = vmatprep.subr.bf16.mxu0 0
  %2119 = vmatpush1.bf16.msra.mxu0 %v902
  %2120 = vmatprep.mubr.bf16.mxu0 %v1702
  %2121 = vmatmul.mubr.bf16.gmra.mrb[0].mxu0 %v1701
  %v2122 = vpop.f32.mrb[0].mxu0
  %v2123 = vadd.f32 %v2034, %v2122
  %v2124 = vpop.f32.mrb[0].mxu0
  %v2125 = vpop.f32.mrb[0].mxu0
  %v2126 = vadd.f32 %v2037, %v2125
  %v2127 = vpop.f32.mrb[0].mxu0
  %2128 = vmatprep.mubr.bf16.mxu0 %v1711
  %2129 = vmatmul.mubr.bf16.gmra.mrb[0].mxu0 %v1710
  %v2130 = vpop.f32.mrb[0].mxu0
  %v2131 = vadd.f32 %v2042, %v2130
  %v2132 = vpop.f32.mrb[0].mxu0
  %v2133 = vpop.f32.mrb[0].mxu0
  %v2134 = vadd.f32 %v2045, %v2133
  %v2135 = vpop.f32.mrb[0].mxu0
  %2136 = vmatprep.mubr.bf16.mxu0 %v1720
  %2137 = vmatmul.mubr.bf16.gmra.mrb[0].mxu0 %v1719
  %v2138 = vpop.f32.mrb[0].mxu0
  %v2139 = vadd.f32 %v2050, %v2138
  %v2140 = vpop.f32.mrb[0].mxu0
  %v2141 = vpop.f32.mrb[0].mxu0
  %v2142 = vadd.f32 %v2053, %v2141
  %v2143 = vpop.f32.mrb[0].mxu0
  %2144 = vmatprep.mubr.bf16.mxu0 %v1729
  %2145 = vmatmul.mubr.bf16.gmra.mrb[0].mxu0 %v1728
  %v2146 = vpop.f32.mrb[0].mxu0
  %v2147 = vadd.f32 %v2058, %v2146
  %v2148 = vpop.f32.mrb[0].mxu0
  %v2149 = vpop.f32.mrb[0].mxu0
  %v2150 = vadd.f32 %v2061, %v2149
  %v2151 = vpop.f32.mrb[0].mxu0
  %2152 = vmatprep.mubr.bf16.mxu0 %v1738
  %2153 = vmatmul.mubr.bf16.gmra.mrb[0].mxu0 %v1737
  %v2154 = vpop.f32.mrb[0].mxu0
  %v2155 = vadd.f32 %v2066, %v2154
  %v2156 = vpop.f32.mrb[0].mxu0
  %v2157 = vpop.f32.mrb[0].mxu0
  %v2158 = vadd.f32 %v2069, %v2157
  %v2159 = vpop.f32.mrb[0].mxu0
  %2160 = vmatprep.mubr.bf16.mxu0 %v1747
  %2161 = vmatmul.mubr.bf16.gmra.mrb[0].mxu0 %v1746
  %v2162 = vpop.f32.mrb[0].mxu0
  %v2163 = vadd.f32 %v2074, %v2162
  %v2164 = vpop.f32.mrb[0].mxu0
  %v2165 = vpop.f32.mrb[0].mxu0
  %v2166 = vadd.f32 %v2077, %v2165
  %v2167 = vpop.f32.mrb[0].mxu0
  %2168 = vmatprep.mubr.bf16.mxu0 %v1756
  %2169 = vmatmul.mubr.bf16.gmra.mrb[0].mxu0 %v1755
  %v2170 = vpop.f32.mrb[0].mxu0
  %v2171 = vadd.f32 %v2082, %v2170
  %v2172 = vpop.f32.mrb[0].mxu0
  %v2173 = vpop.f32.mrb[0].mxu0
  %v2174 = vadd.f32 %v2085, %v2173
  %v2175 = vpop.f32.mrb[0].mxu0
  %2176 = vdwg.mxu0
  %2177 = vmatprep.subr.bf16.mxu0 0
  %2178 = vmatpush1.bf16.msra.mxu0 %v903
  %2179 = vmatprep.subr.bf16.mxu0 0
  %2180 = vmatpush1.bf16.msra.mxu0 %v904
  %2181 = vmatprep.subr.bf16.mxu0 0
  %2182 = vmatpush1.bf16.msra.mxu0 %v905
  %2183 = vmatprep.subr.bf16.mxu0 0
  %2184 = vmatpush1.bf16.msra.mxu0 %v906
  %2185 = vmatprep.subr.bf16.mxu0 0
  %2186 = vmatpush1.bf16.msra.mxu0 %v907
  %2187 = vmatprep.subr.bf16.mxu0 0
  %2188 = vmatpush1.bf16.msra.mxu0 %v908
  %2189 = vmatprep.subr.bf16.mxu0 0
  %2190 = vmatpush1.bf16.msra.mxu0 %v909
  %2191 = vmatprep.subr.bf16.mxu0 0
  %2192 = vmatpush1.bf16.msra.mxu0 %v910
  %2193 = vmatprep.subr.bf16.mxu0 0
  %2194 = vmatpush1.bf16.msra.mxu0 0
  %2195 = vmatprep.subr.bf16.mxu0 0
  %2196 = vmatpush1.bf16.msra.mxu0 0
  %2197 = vmatprep.subr.bf16.mxu0 0
  %2198 = vmatpush1.bf16.msra.mxu0 0
  %2199 = vmatprep.subr.bf16.mxu0 0
  %2200 = vmatpush1.bf16.msra.mxu0 0
  %2201 = vmatprep.subr.bf16.mxu0 0
  %2202 = vmatpush1.bf16.msra.mxu0 0
  %2203 = vmatprep.subr.bf16.mxu0 0
  %2204 = vmatpush1.bf16.msra.mxu0 0
  %2205 = vmatprep.subr.bf16.mxu0 0
  %2206 = vmatpush1.bf16.msra.mxu0 0
  %2207 = vmatprep.subr.bf16.mxu0 0
  %2208 = vmatpush1.bf16.msra.mxu0 0
  %2209 = vmatprep.mubr.bf16.mxu0 0
  %2210 = vmatmul.mubr.bf16.gmra.mrb[0].mxu0 %v1703
  %v2211 = vpop.f32.mrb[0].mxu0
  %v2212 = vadd.f32 %v2123, %v2211
  %v2213 = vpop.f32.mrb[0].mxu0
  %v2214 = vpop.f32.mrb[0].mxu0
  %v2215 = vadd.f32 %v2126, %v2214
  %v2216 = vpop.f32.mrb[0].mxu0
  %2217 = vmatprep.mubr.bf16.mxu0 0
  %2218 = vmatmul.mubr.bf16.gmra.mrb[0].mxu0 %v1712
  %v2219 = vpop.f32.mrb[0].mxu0
  %v2220 = vadd.f32 %v2131, %v2219
  %v2221 = vpop.f32.mrb[0].mxu0
  %v2222 = vpop.f32.mrb[0].mxu0
  %v2223 = vadd.f32 %v2134, %v2222
  %v2224 = vpop.f32.mrb[0].mxu0
  %2225 = vmatprep.mubr.bf16.mxu0 0
  %2226 = vmatmul.mubr.bf16.gmra.mrb[0].mxu0 %v1721
  %v2227 = vpop.f32.mrb[0].mxu0
  %v2228 = vadd.f32 %v2139, %v2227
  %v2229 = vpop.f32.mrb[0].mxu0
  %v2230 = vpop.f32.mrb[0].mxu0
  %v2231 = vadd.f32 %v2142, %v2230
  %v2232 = vpop.f32.mrb[0].mxu0
  %2233 = vmatprep.mubr.bf16.mxu0 0
  %2234 = vmatmul.mubr.bf16.gmra.mrb[0].mxu0 %v1730
  %v2235 = vpop.f32.mrb[0].mxu0
  %v2236 = vadd.f32 %v2147, %v2235
  %v2237 = vpop.f32.mrb[0].mxu0
  %v2238 = vpop.f32.mrb[0].mxu0
  %v2239 = vadd.f32 %v2150, %v2238
  %v2240 = vpop.f32.mrb[0].mxu0
  %2241 = vmatprep.mubr.bf16.mxu0 0
  %2242 = vmatmul.mubr.bf16.gmra.mrb[0].mxu0 %v1739
  %v2243 = vpop.f32.mrb[0].mxu0
  %v2244 = vadd.f32 %v2155, %v2243
  %v2245 = vpop.f32.mrb[0].mxu0
  %v2246 = vpop.f32.mrb[0].mxu0
  %v2247 = vadd.f32 %v2158, %v2246
  %v2248 = vpop.f32.mrb[0].mxu0
  %2249 = vmatprep.mubr.bf16.mxu0 0
  %2250 = vmatmul.mubr.bf16.gmra.mrb[0].mxu0 %v1748
  %v2251 = vpop.f32.mrb[0].mxu0
  %v2252 = vadd.f32 %v2163, %v2251
  %v2253 = vpop.f32.mrb[0].mxu0
  %v2254 = vpop.f32.mrb[0].mxu0
  %v2255 = vadd.f32 %v2166, %v2254
  %v2256 = vpop.f32.mrb[0].mxu0
  %2257 = vmatprep.mubr.bf16.mxu0 0
  %2258 = vmatmul.mubr.bf16.gmra.mrb[0].mxu0 %v1757
  %v2259 = vpop.f32.mrb[0].mxu0
  %v2260 = vadd.f32 %v2171, %v2259
  %v2261 = vpop.f32.mrb[0].mxu0
  %v2262 = vpop.f32.mrb[0].mxu0
  %v2263 = vadd.f32 %v2174, %v2262
  %v2264 = vpop.f32.mrb[0].mxu0
  %2265 = vdwg.mxu0
  %v2266 = vmax.f32 %v1374, %v2212
  %v2267 = vmax.f32 %v1377, %v2215
  %v2268 = vmax.f32 %v1382, %v2220
  %v2269 = vmax.f32 %v1385, %v2223
  %v2270 = vmax.f32 %v1390, %v2228
  %v2271 = vmax.f32 %v1393, %v2231
  %v2272 = vmax.f32 %v1398, %v2236
  %v2273 = vmax.f32 %v1401, %v2239
  %v2274 = vmax.f32 %v1406, %v2244
  %v2275 = vmax.f32 %v1409, %v2247
  %v2276 = vmax.f32 %v1414, %v2252
  %v2277 = vmax.f32 %v1417, %v2255
  %v2278 = vmax.f32 %v1422, %v2260
  %v2279 = vmax.f32 %v1425, %v2263
  %s2280 = scalar_lea.vmem %s0, 1008
  %v2281 = vld [vmem:[%s2280] sm:$0xff]
  %v2282 = vld [vmem:[%s2280 + $0x8] sm:$0xff]
  %v2283 = vld [vmem:[%s2280 + $0x10] sm:$0xff]
  %v2284 = vld [vmem:[%s2280 + $0x18] sm:$0xff]
  %v2285 = vld [vmem:[%s2280 + $0x20] sm:$0xf]
  %v2286 = vld [vmem:[%s2280 + $0x24] sm:$0xff]
  %v2287 = vld [vmem:[%s2280 + $0x2c] sm:$0xff]
  %v2288 = vld [vmem:[%s2280 + $0x34] sm:$0xff]
  %v2289 = vld [vmem:[%s2280 + $0x3c] sm:$0xff]
  %v2290 = vld [vmem:[%s2280 + $0x44] sm:$0xf]
  %v2291 = vld [vmem:[%s2280 + $0x48] sm:$0xff]
  %v2292 = vld [vmem:[%s2280 + $0x50] sm:$0xff]
  %v2293 = vld [vmem:[%s2280 + $0x58] sm:$0xff]
  %v2294 = vld [vmem:[%s2280 + $0x60] sm:$0xff]
  %v2295 = vld [vmem:[%s2280 + $0x68] sm:$0xf]
  %v2296 = vld [vmem:[%s2280 + $0x6c] sm:$0xff]
  %v2297 = vld [vmem:[%s2280 + $0x74] sm:$0xff]
  %v2298 = vld [vmem:[%s2280 + $0x7c] sm:$0xff]
  %v2299 = vld [vmem:[%s2280 + $0x84] sm:$0xff]
  %v2300 = vld [vmem:[%s2280 + $0x8c] sm:$0xf]
  %v2301 = vld [vmem:[%s2280 + $0x90] sm:$0xff]
  %v2302 = vld [vmem:[%s2280 + $0x98] sm:$0xff]
  %v2303 = vld [vmem:[%s2280 + $0xa0] sm:$0xff]
  %v2304 = vld [vmem:[%s2280 + $0xa8] sm:$0xff]
  %v2305 = vld [vmem:[%s2280 + $0xb0] sm:$0xf]
  %v2306 = vld [vmem:[%s2280 + $0xb4] sm:$0xff]
  %v2307 = vld [vmem:[%s2280 + $0xbc] sm:$0xff]
  %v2308 = vld [vmem:[%s2280 + $0xc4] sm:$0xff]
  %v2309 = vld [vmem:[%s2280 + $0xcc] sm:$0xff]
  %v2310 = vld [vmem:[%s2280 + $0xd4] sm:$0xf]
  %v2311 = vld [vmem:[%s2280 + $0xd8] sm:$0xff]
  %v2312 = vld [vmem:[%s2280 + $0xe0] sm:$0xff]
  %v2313 = vld [vmem:[%s2280 + $0xe8] sm:$0xff]
  %v2314 = vld [vmem:[%s2280 + $0xf0] sm:$0xff]
  %v2315 = vld [vmem:[%s2280 + $0xf8] sm:$0xf]
  %v2316 = vld [vmem:[%s2280 + $0xfc] sm:$0xff]
  %v2317 = vld [vmem:[%s2280 + $0x104] sm:$0xff]
  %v2318 = vld [vmem:[%s2280 + $0x10c] sm:$0xff]
  %v2319 = vld [vmem:[%s2280 + $0x114] sm:$0xff]
  %v2320 = vld [vmem:[%s2280 + $0x11c] sm:$0xf]
  %v2321 = vld [vmem:[%s2280 + $0x120] sm:$0xff]
  %v2322 = vld [vmem:[%s2280 + $0x128] sm:$0xff]
  %v2323 = vld [vmem:[%s2280 + $0x130] sm:$0xff]
  %v2324 = vld [vmem:[%s2280 + $0x138] sm:$0xff]
  %v2325 = vld [vmem:[%s2280 + $0x140] sm:$0xf]
  %v2326 = vld [vmem:[%s2280 + $0x144] sm:$0xff]
  %v2327 = vld [vmem:[%s2280 + $0x14c] sm:$0xff]
  %v2328 = vld [vmem:[%s2280 + $0x154] sm:$0xff]
  %v2329 = vld [vmem:[%s2280 + $0x15c] sm:$0xff]
  %v2330 = vld [vmem:[%s2280 + $0x164] sm:$0xf]
  %v2331 = vld [vmem:[%s2280 + $0x168] sm:$0xff]
  %v2332 = vld [vmem:[%s2280 + $0x170] sm:$0xff]
  %v2333 = vld [vmem:[%s2280 + $0x178] sm:$0xff]
  %v2334 = vld [vmem:[%s2280 + $0x180] sm:$0xff]
  %v2335 = vld [vmem:[%s2280 + $0x188] sm:$0xf]
  %v2336 = vld [vmem:[%s2280 + $0x18c] sm:$0xff]
  %v2337 = vld [vmem:[%s2280 + $0x194] sm:$0xff]
  %v2338 = vld [vmem:[%s2280 + $0x19c] sm:$0xff]
  %v2339 = vld [vmem:[%s2280 + $0x1a4] sm:$0xff]
  %v2340 = vld [vmem:[%s2280 + $0x1ac] sm:$0xf]
  %v2341 = vld [vmem:[%s2280 + $0x1b0] sm:$0xff]
  %v2342 = vld [vmem:[%s2280 + $0x1b8] sm:$0xff]
  %v2343 = vld [vmem:[%s2280 + $0x1c0] sm:$0xff]
  %v2344 = vld [vmem:[%s2280 + $0x1c8] sm:$0xff]
  %v2345 = vld [vmem:[%s2280 + $0x1d0] sm:$0xf]
  %v2346 = vld [vmem:[%s2280 + $0x1d4] sm:$0xff]
  %v2347 = vld [vmem:[%s2280 + $0x1dc] sm:$0xff]
  %v2348 = vld [vmem:[%s2280 + $0x1e4] sm:$0xff]
  %v2349 = vld [vmem:[%s2280 + $0x1ec] sm:$0xff]
  %v2350 = vld [vmem:[%s2280 + $0x1f4] sm:$0xf]
  %v2421 = vunpack.c.l.b16 %v2281
  %v2422 = vunpack.c.h.b16 %v2281
  %v2423 = vunpack.c.l.b16 %v2282
  %v2424 = vunpack.c.h.b16 %v2282
  %v2425 = vunpack.c.l.b16 %v2283
  %v2426 = vunpack.c.h.b16 %v2283
  %v2427 = vunpack.c.l.b16 %v2284
  %v2428 = vunpack.c.h.b16 %v2284
  %v2429 = vunpack.c.l.b16 %v2285
  %v2430 = vunpack.c.l.b16 %v2286
  %v2431 = vunpack.c.h.b16 %v2286
  %v2432 = vunpack.c.l.b16 %v2287
  %v2433 = vunpack.c.h.b16 %v2287
  %v2434 = vunpack.c.l.b16 %v2288
  %v2435 = vunpack.c.h.b16 %v2288
  %v2436 = vunpack.c.l.b16 %v2289
  %v2437 = vunpack.c.h.b16 %v2289
  %v2438 = vunpack.c.l.b16 %v2290
  %v2439 = vunpack.c.l.b16 %v2291
  %v2440 = vunpack.c.h.b16 %v2291
  %v2441 = vunpack.c.l.b16 %v2292
  %v2442 = vunpack.c.h.b16 %v2292
  %v2443 = vunpack.c.l.b16 %v2293
  %v2444 = vunpack.c.h.b16 %v2293
  %v2445 = vunpack.c.l.b16 %v2294
  %v2446 = vunpack.c.h.b16 %v2294
  %v2447 = vunpack.c.l.b16 %v2295
  %v2448 = vunpack.c.l.b16 %v2296
  %v2449 = vunpack.c.h.b16 %v2296
  %v2450 = vunpack.c.l.b16 %v2297
  %v2451 = vunpack.c.h.b16 %v2297
  %v2452 = vunpack.c.l.b16 %v2298
  %v2453 = vunpack.c.h.b16 %v2298
  %v2454 = vunpack.c.l.b16 %v2299
  %v2455 = vunpack.c.h.b16 %v2299
  %v2456 = vunpack.c.l.b16 %v2300
  %v2457 = vunpack.c.l.b16 %v2301
  %v2458 = vunpack.c.h.b16 %v2301
  %v2459 = vunpack.c.l.b16 %v2302
  %v2460 = vunpack.c.h.b16 %v2302
  %v2461 = vunpack.c.l.b16 %v2303
  %v2462 = vunpack.c.h.b16 %v2303
  %v2463 = vunpack.c.l.b16 %v2304
  %v2464 = vunpack.c.h.b16 %v2304
  %v2465 = vunpack.c.l.b16 %v2305
  %v2466 = vunpack.c.l.b16 %v2306
  %v2467 = vunpack.c.h.b16 %v2306
  %v2468 = vunpack.c.l.b16 %v2307
  %v2469 = vunpack.c.h.b16 %v2307
  %v2470 = vunpack.c.l.b16 %v2308
  %v2471 = vunpack.c.h.b16 %v2308
  %v2472 = vunpack.c.l.b16 %v2309
  %v2473 = vunpack.c.h.b16 %v2309
  %v2474 = vunpack.c.l.b16 %v2310
  %v2475 = vunpack.c.l.b16 %v2311
  %v2476 = vunpack.c.h.b16 %v2311
  %v2477 = vunpack.c.l.b16 %v2312
  %v2478 = vunpack.c.h.b16 %v2312
  %v2479 = vunpack.c.l.b16 %v2313
  %v2480 = vunpack.c.h.b16 %v2313
  %v2481 = vunpack.c.l.b16 %v2314
  %v2482 = vunpack.c.h.b16 %v2314
  %v2483 = vunpack.c.l.b16 %v2315
  %v2484 = vunpack.c.l.b16 %v2316
  %v2485 = vunpack.c.h.b16 %v2316
  %v2486 = vunpack.c.l.b16 %v2317
  %v2487 = vunpack.c.h.b16 %v2317
  %v2488 = vunpack.c.l.b16 %v2318
  %v2489 = vunpack.c.h.b16 %v2318
  %v2490 = vunpack.c.l.b16 %v2319
  %v2491 = vunpack.c.h.b16 %v2319
  %v2492 = vunpack.c.l.b16 %v2320
  %v2493 = vunpack.c.l.b16 %v2321
  %v2494 = vunpack.c.h.b16 %v2321
  %v2495 = vunpack.c.l.b16 %v2322
  %v2496 = vunpack.c.h.b16 %v2322
  %v2497 = vunpack.c.l.b16 %v2323
  %v2498 = vunpack.c.h.b16 %v2323
  %v2499 = vunpack.c.l.b16 %v2324
  %v2500 = vunpack.c.h.b16 %v2324
  %v2501 = vunpack.c.l.b16 %v2325
  %v2502 = vunpack.c.l.b16 %v2326
  %v2503 = vunpack.c.h.b16 %v2326
  %v2504 = vunpack.c.l.b16 %v2327
  %v2505 = vunpack.c.h.b16 %v2327
  %v2506 = vunpack.c.l.b16 %v2328
  %v2507 = vunpack.c.h.b16 %v2328
  %v2508 = vunpack.c.l.b16 %v2329
  %v2509 = vunpack.c.h.b16 %v2329
  %v2510 = vunpack.c.l.b16 %v2330
  %v2511 = vunpack.c.l.b16 %v2331
  %v2512 = vunpack.c.h.b16 %v2331
  %v2513 = vunpack.c.l.b16 %v2332
  %v2514 = vunpack.c.h.b16 %v2332
  %v2515 = vunpack.c.l.b16 %v2333
  %v2516 = vunpack.c.h.b16 %v2333
  %v2517 = vunpack.c.l.b16 %v2334
  %v2518 = vunpack.c.h.b16 %v2334
  %v2519 = vunpack.c.l.b16 %v2335
  %v2520 = vunpack.c.l.b16 %v2336
  %v2521 = vunpack.c.h.b16 %v2336
  %v2522 = vunpack.c.l.b16 %v2337
  %v2523 = vunpack.c.h.b16 %v2337
  %v2524 = vunpack.c.l.b16 %v2338
  %v2525 = vunpack.c.h.b16 %v2338
  %v2526 = vunpack.c.l.b16 %v2339
  %v2527 = vunpack.c.h.b16 %v2339
  %v2528 = vunpack.c.l.b16 %v2340
  %v2529 = vunpack.c.l.b16 %v2341
  %v2530 = vunpack.c.h.b16 %v2341
  %v2531 = vunpack.c.l.b16 %v2342
  %v2532 = vunpack.c.h.b16 %v2342
  %v2533 = vunpack.c.l.b16 %v2343
  %v2534 = vunpack.c.h.b16 %v2343
  %v2535 = vunpack.c.l.b16 %v2344
  %v2536 = vunpack.c.h.b16 %v2344
  %v2537 = vunpack.c.l.b16 %v2345
  %v2538 = vunpack.c.l.b16 %v2346
  %v2539 = vunpack.c.h.b16 %v2346
  %v2540 = vunpack.c.l.b16 %v2347
  %v2541 = vunpack.c.h.b16 %v2347
  %v2542 = vunpack.c.l.b16 %v2348
  %v2543 = vunpack.c.h.b16 %v2348
  %v2544 = vunpack.c.l.b16 %v2349
  %v2545 = vunpack.c.h.b16 %v2349
  %v2546 = vunpack.c.l.b16 %v2350
  %v2547 = vpack.c.b16 %v2430, %v2421
  %v2548 = vpack.c.b16 %v2431, %v2422
  %v2549 = vpack.c.b16 %v2432, %v2423
  %v2550 = vpack.c.b16 %v2433, %v2424
  %v2551 = vpack.c.b16 %v2434, %v2425
  %v2552 = vpack.c.b16 %v2435, %v2426
  %v2553 = vpack.c.b16 %v2436, %v2427
  %v2554 = vpack.c.b16 %v2437, %v2428
  %v2555 = vpack.c.b16 %v2438, %v2429
  %v2556 = vpack.c.b16 %v2448, %v2439
  %v2557 = vpack.c.b16 %v2449, %v2440
  %v2558 = vpack.c.b16 %v2450, %v2441
  %v2559 = vpack.c.b16 %v2451, %v2442
  %v2560 = vpack.c.b16 %v2452, %v2443
  %v2561 = vpack.c.b16 %v2453, %v2444
  %v2562 = vpack.c.b16 %v2454, %v2445
  %v2563 = vpack.c.b16 %v2455, %v2446
  %v2564 = vpack.c.b16 %v2456, %v2447
  %v2565 = vpack.c.b16 %v2466, %v2457
  %v2566 = vpack.c.b16 %v2467, %v2458
  %v2567 = vpack.c.b16 %v2468, %v2459
  %v2568 = vpack.c.b16 %v2469, %v2460
  %v2569 = vpack.c.b16 %v2470, %v2461
  %v2570 = vpack.c.b16 %v2471, %v2462
  %v2571 = vpack.c.b16 %v2472, %v2463
  %v2572 = vpack.c.b16 %v2473, %v2464
  %v2573 = vpack.c.b16 %v2474, %v2465
  %v2574 = vpack.c.b16 %v2484, %v2475
  %v2575 = vpack.c.b16 %v2485, %v2476
  %v2576 = vpack.c.b16 %v2486, %v2477
  %v2577 = vpack.c.b16 %v2487, %v2478
  %v2578 = vpack.c.b16 %v2488, %v2479
  %v2579 = vpack.c.b16 %v2489, %v2480
  %v2580 = vpack.c.b16 %v2490, %v2481
  %v2581 = vpack.c.b16 %v2491, %v2482
  %v2582 = vpack.c.b16 %v2492, %v2483
  %v2583 = vpack.c.b16 %v2502, %v2493
  %v2584 = vpack.c.b16 %v2503, %v2494
  %v2585 = vpack.c.b16 %v2504, %v2495
  %v2586 = vpack.c.b16 %v2505, %v2496
  %v2587 = vpack.c.b16 %v2506, %v2497
  %v2588 = vpack.c.b16 %v2507, %v2498
  %v2589 = vpack.c.b16 %v2508, %v2499
  %v2590 = vpack.c.b16 %v2509, %v2500
  %v2591 = vpack.c.b16 %v2510, %v2501
  %v2592 = vpack.c.b16 %v2520, %v2511
  %v2593 = vpack.c.b16 %v2521, %v2512
  %v2594 = vpack.c.b16 %v2522, %v2513
  %v2595 = vpack.c.b16 %v2523, %v2514
  %v2596 = vpack.c.b16 %v2524, %v2515
  %v2597 = vpack.c.b16 %v2525, %v2516
  %v2598 = vpack.c.b16 %v2526, %v2517
  %v2599 = vpack.c.b16 %v2527, %v2518
  %v2600 = vpack.c.b16 %v2528, %v2519
  %v2601 = vpack.c.b16 %v2538, %v2529
  %v2602 = vpack.c.b16 %v2539, %v2530
  %v2603 = vpack.c.b16 %v2540, %v2531
  %v2604 = vpack.c.b16 %v2541, %v2532
  %v2605 = vpack.c.b16 %v2542, %v2533
  %v2606 = vpack.c.b16 %v2543, %v2534
  %v2607 = vpack.c.b16 %v2544, %v2535
  %v2608 = vpack.c.b16 %v2545, %v2536
  %v2609 = vpack.c.b16 %v2546, %v2537
  %2673 = vmatprep.subr.bf16.mxu0 0
  %2674 = vmatpush1.bf16.msra.mxu0 %v839
  %2675 = vmatprep.subr.bf16.mxu0 0
  %2676 = vmatpush1.bf16.msra.mxu0 %v840
  %2677 = vmatprep.subr.bf16.mxu0 0
  %2678 = vmatpush1.bf16.msra.mxu0 %v841
  %2679 = vmatprep.subr.bf16.mxu0 0
  %2680 = vmatpush1.bf16.msra.mxu0 %v842
  %2681 = vmatprep.subr.bf16.mxu0 0
  %2682 = vmatpush1.bf16.msra.mxu0 %v843
  %2683 = vmatprep.subr.bf16.mxu0 0
  %2684 = vmatpush1.bf16.msra.mxu0 %v844
  %2685 = vmatprep.subr.bf16.mxu0 0
  %2686 = vmatpush1.bf16.msra.mxu0 %v845
  %2687 = vmatprep.subr.bf16.mxu0 0
  %2688 = vmatpush1.bf16.msra.mxu0 %v846
  %2689 = vmatprep.subr.bf16.mxu0 0
  %2690 = vmatpush1.bf16.msra.mxu0 %v847
  %2691 = vmatprep.subr.bf16.mxu0 0
  %2692 = vmatpush1.bf16.msra.mxu0 %v848
  %2693 = vmatprep.subr.bf16.mxu0 0
  %2694 = vmatpush1.bf16.msra.mxu0 %v849
  %2695 = vmatprep.subr.bf16.mxu0 0
  %2696 = vmatpush1.bf16.msra.mxu0 %v850
  %2697 = vmatprep.subr.bf16.mxu0 0
  %2698 = vmatpush1.bf16.msra.mxu0 %v851
  %2699 = vmatprep.subr.bf16.mxu0 0
  %2700 = vmatpush1.bf16.msra.mxu0 %v852
  %2701 = vmatprep.subr.bf16.mxu0 0
  %2702 = vmatpush1.bf16.msra.mxu0 %v853
  %2703 = vmatprep.subr.bf16.mxu0 0
  %2704 = vmatpush1.bf16.msra.mxu0 %v854
  %2705 = vmatprep.mubr.bf16.mxu0 %v2548
  %2706 = vmatmul.mubr.bf16.gmra.mrb[0].mxu0 %v2547
  %v2707 = vpop.f32.mrb[0].mxu0
  %v2708 = vadd.f32 0.0, %v2707
  %v2709 = vpop.f32.mrb[0].mxu0
  %v2710 = vpop.f32.mrb[0].mxu0
  %v2711 = vadd.f32 0.0, %v2710
  %v2712 = vpop.f32.mrb[0].mxu0
  %2713 = vmatprep.mubr.bf16.mxu0 %v2557
  %2714 = vmatmul.mubr.bf16.gmra.mrb[0].mxu0 %v2556
  %v2715 = vpop.f32.mrb[0].mxu0
  %v2716 = vadd.f32 0.0, %v2715
  %v2717 = vpop.f32.mrb[0].mxu0
  %v2718 = vpop.f32.mrb[0].mxu0
  %v2719 = vadd.f32 0.0, %v2718
  %v2720 = vpop.f32.mrb[0].mxu0
  %2721 = vmatprep.mubr.bf16.mxu0 %v2566
  %2722 = vmatmul.mubr.bf16.gmra.mrb[0].mxu0 %v2565
  %v2723 = vpop.f32.mrb[0].mxu0
  %v2724 = vadd.f32 0.0, %v2723
  %v2725 = vpop.f32.mrb[0].mxu0
  %v2726 = vpop.f32.mrb[0].mxu0
  %v2727 = vadd.f32 0.0, %v2726
  %v2728 = vpop.f32.mrb[0].mxu0
  %2729 = vmatprep.mubr.bf16.mxu0 %v2575
  %2730 = vmatmul.mubr.bf16.gmra.mrb[0].mxu0 %v2574
  %v2731 = vpop.f32.mrb[0].mxu0
  %v2732 = vadd.f32 0.0, %v2731
  %v2733 = vpop.f32.mrb[0].mxu0
  %v2734 = vpop.f32.mrb[0].mxu0
  %v2735 = vadd.f32 0.0, %v2734
  %v2736 = vpop.f32.mrb[0].mxu0
  %2737 = vmatprep.mubr.bf16.mxu0 %v2584
  %2738 = vmatmul.mubr.bf16.gmra.mrb[0].mxu0 %v2583
  %v2739 = vpop.f32.mrb[0].mxu0
  %v2740 = vadd.f32 0.0, %v2739
  %v2741 = vpop.f32.mrb[0].mxu0
  %v2742 = vpop.f32.mrb[0].mxu0
  %v2743 = vadd.f32 0.0, %v2742
  %v2744 = vpop.f32.mrb[0].mxu0
  %2745 = vmatprep.mubr.bf16.mxu0 %v2593
  %2746 = vmatmul.mubr.bf16.gmra.mrb[0].mxu0 %v2592
  %v2747 = vpop.f32.mrb[0].mxu0
  %v2748 = vadd.f32 0.0, %v2747
  %v2749 = vpop.f32.mrb[0].mxu0
  %v2750 = vpop.f32.mrb[0].mxu0
  %v2751 = vadd.f32 0.0, %v2750
  %v2752 = vpop.f32.mrb[0].mxu0
  %2753 = vmatprep.mubr.bf16.mxu0 %v2602
  %2754 = vmatmul.mubr.bf16.gmra.mrb[0].mxu0 %v2601
  %v2755 = vpop.f32.mrb[0].mxu0
  %v2756 = vadd.f32 0.0, %v2755
  %v2757 = vpop.f32.mrb[0].mxu0
  %v2758 = vpop.f32.mrb[0].mxu0
  %v2759 = vadd.f32 0.0, %v2758
  %v2760 = vpop.f32.mrb[0].mxu0
  %2761 = vdwg.mxu0
  %2762 = vmatprep.subr.bf16.mxu0 0
  %2763 = vmatpush1.bf16.msra.mxu0 %v855
  %2764 = vmatprep.subr.bf16.mxu0 0
  %2765 = vmatpush1.bf16.msra.mxu0 %v856
  %2766 = vmatprep.subr.bf16.mxu0 0
  %2767 = vmatpush1.bf16.msra.mxu0 %v857
  %2768 = vmatprep.subr.bf16.mxu0 0
  %2769 = vmatpush1.bf16.msra.mxu0 %v858
  %2770 = vmatprep.subr.bf16.mxu0 0
  %2771 = vmatpush1.bf16.msra.mxu0 %v859
  %2772 = vmatprep.subr.bf16.mxu0 0
  %2773 = vmatpush1.bf16.msra.mxu0 %v860
  %2774 = vmatprep.subr.bf16.mxu0 0
  %2775 = vmatpush1.bf16.msra.mxu0 %v861
  %2776 = vmatprep.subr.bf16.mxu0 0
  %2777 = vmatpush1.bf16.msra.mxu0 %v862
  %2778 = vmatprep.subr.bf16.mxu0 0
  %2779 = vmatpush1.bf16.msra.mxu0 %v863
  %2780 = vmatprep.subr.bf16.mxu0 0
  %2781 = vmatpush1.bf16.msra.mxu0 %v864
  %2782 = vmatprep.subr.bf16.mxu0 0
  %2783 = vmatpush1.bf16.msra.mxu0 %v865
  %2784 = vmatprep.subr.bf16.mxu0 0
  %2785 = vmatpush1.bf16.msra.mxu0 %v866
  %2786 = vmatprep.subr.bf16.mxu0 0
  %2787 = vmatpush1.bf16.msra.mxu0 %v867
  %2788 = vmatprep.subr.bf16.mxu0 0
  %2789 = vmatpush1.bf16.msra.mxu0 %v868
  %2790 = vmatprep.subr.bf16.mxu0 0
  %2791 = vmatpush1.bf16.msra.mxu0 %v869
  %2792 = vmatprep.subr.bf16.mxu0 0
  %2793 = vmatpush1.bf16.msra.mxu0 %v870
  %2794 = vmatprep.mubr.bf16.mxu0 %v2550
  %2795 = vmatmul.mubr.bf16.gmra.mrb[0].mxu0 %v2549
  %v2796 = vpop.f32.mrb[0].mxu0
  %v2797 = vadd.f32 %v2708, %v2796
  %v2798 = vpop.f32.mrb[0].mxu0
  %v2799 = vpop.f32.mrb[0].mxu0
  %v2800 = vadd.f32 %v2711, %v2799
  %v2801 = vpop.f32.mrb[0].mxu0
  %2802 = vmatprep.mubr.bf16.mxu0 %v2559
  %2803 = vmatmul.mubr.bf16.gmra.mrb[0].mxu0 %v2558
  %v2804 = vpop.f32.mrb[0].mxu0
  %v2805 = vadd.f32 %v2716, %v2804
  %v2806 = vpop.f32.mrb[0].mxu0
  %v2807 = vpop.f32.mrb[0].mxu0
  %v2808 = vadd.f32 %v2719, %v2807
  %v2809 = vpop.f32.mrb[0].mxu0
  %2810 = vmatprep.mubr.bf16.mxu0 %v2568
  %2811 = vmatmul.mubr.bf16.gmra.mrb[0].mxu0 %v2567
  %v2812 = vpop.f32.mrb[0].mxu0
  %v2813 = vadd.f32 %v2724, %v2812
  %v2814 = vpop.f32.mrb[0].mxu0
  %v2815 = vpop.f32.mrb[0].mxu0
  %v2816 = vadd.f32 %v2727, %v2815
  %v2817 = vpop.f32.mrb[0].mxu0
  %2818 = vmatprep.mubr.bf16.mxu0 %v2577
  %2819 = vmatmul.mubr.bf16.gmra.mrb[0].mxu0 %v2576
  %v2820 = vpop.f32.mrb[0].mxu0
  %v2821 = vadd.f32 %v2732, %v2820
  %v2822 = vpop.f32.mrb[0].mxu0
  %v2823 = vpop.f32.mrb[0].mxu0
  %v2824 = vadd.f32 %v2735, %v2823
  %v2825 = vpop.f32.mrb[0].mxu0
  %2826 = vmatprep.mubr.bf16.mxu0 %v2586
  %2827 = vmatmul.mubr.bf16.gmra.mrb[0].mxu0 %v2585
  %v2828 = vpop.f32.mrb[0].mxu0
  %v2829 = vadd.f32 %v2740, %v2828
  %v2830 = vpop.f32.mrb[0].mxu0
  %v2831 = vpop.f32.mrb[0].mxu0
  %v2832 = vadd.f32 %v2743, %v2831
  %v2833 = vpop.f32.mrb[0].mxu0
  %2834 = vmatprep.mubr.bf16.mxu0 %v2595
  %2835 = vmatmul.mubr.bf16.gmra.mrb[0].mxu0 %v2594
  %v2836 = vpop.f32.mrb[0].mxu0
  %v2837 = vadd.f32 %v2748, %v2836
  %v2838 = vpop.f32.mrb[0].mxu0
  %v2839 = vpop.f32.mrb[0].mxu0
  %v2840 = vadd.f32 %v2751, %v2839
  %v2841 = vpop.f32.mrb[0].mxu0
  %2842 = vmatprep.mubr.bf16.mxu0 %v2604
  %2843 = vmatmul.mubr.bf16.gmra.mrb[0].mxu0 %v2603
  %v2844 = vpop.f32.mrb[0].mxu0
  %v2845 = vadd.f32 %v2756, %v2844
  %v2846 = vpop.f32.mrb[0].mxu0
  %v2847 = vpop.f32.mrb[0].mxu0
  %v2848 = vadd.f32 %v2759, %v2847
  %v2849 = vpop.f32.mrb[0].mxu0
  %2850 = vdwg.mxu0
  %2851 = vmatprep.subr.bf16.mxu0 0
  %2852 = vmatpush1.bf16.msra.mxu0 %v871
  %2853 = vmatprep.subr.bf16.mxu0 0
  %2854 = vmatpush1.bf16.msra.mxu0 %v872
  %2855 = vmatprep.subr.bf16.mxu0 0
  %2856 = vmatpush1.bf16.msra.mxu0 %v873
  %2857 = vmatprep.subr.bf16.mxu0 0
  %2858 = vmatpush1.bf16.msra.mxu0 %v874
  %2859 = vmatprep.subr.bf16.mxu0 0
  %2860 = vmatpush1.bf16.msra.mxu0 %v875
  %2861 = vmatprep.subr.bf16.mxu0 0
  %2862 = vmatpush1.bf16.msra.mxu0 %v876
  %2863 = vmatprep.subr.bf16.mxu0 0
  %2864 = vmatpush1.bf16.msra.mxu0 %v877
  %2865 = vmatprep.subr.bf16.mxu0 0
  %2866 = vmatpush1.bf16.msra.mxu0 %v878
  %2867 = vmatprep.subr.bf16.mxu0 0
  %2868 = vmatpush1.bf16.msra.mxu0 %v879
  %2869 = vmatprep.subr.bf16.mxu0 0
  %2870 = vmatpush1.bf16.msra.mxu0 %v880
  %2871 = vmatprep.subr.bf16.mxu0 0
  %2872 = vmatpush1.bf16.msra.mxu0 %v881
  %2873 = vmatprep.subr.bf16.mxu0 0
  %2874 = vmatpush1.bf16.msra.mxu0 %v882
  %2875 = vmatprep.subr.bf16.mxu0 0
  %2876 = vmatpush1.bf16.msra.mxu0 %v883
  %2877 = vmatprep.subr.bf16.mxu0 0
  %2878 = vmatpush1.bf16.msra.mxu0 %v884
  %2879 = vmatprep.subr.bf16.mxu0 0
  %2880 = vmatpush1.bf16.msra.mxu0 %v885
  %2881 = vmatprep.subr.bf16.mxu0 0
  %2882 = vmatpush1.bf16.msra.mxu0 %v886
  %2883 = vmatprep.mubr.bf16.mxu0 %v2552
  %2884 = vmatmul.mubr.bf16.gmra.mrb[0].mxu0 %v2551
  %v2885 = vpop.f32.mrb[0].mxu0
  %v2886 = vadd.f32 %v2797, %v2885
  %v2887 = vpop.f32.mrb[0].mxu0
  %v2888 = vpop.f32.mrb[0].mxu0
  %v2889 = vadd.f32 %v2800, %v2888
  %v2890 = vpop.f32.mrb[0].mxu0
  %2891 = vmatprep.mubr.bf16.mxu0 %v2561
  %2892 = vmatmul.mubr.bf16.gmra.mrb[0].mxu0 %v2560
  %v2893 = vpop.f32.mrb[0].mxu0
  %v2894 = vadd.f32 %v2805, %v2893
  %v2895 = vpop.f32.mrb[0].mxu0
  %v2896 = vpop.f32.mrb[0].mxu0
  %v2897 = vadd.f32 %v2808, %v2896
  %v2898 = vpop.f32.mrb[0].mxu0
  %2899 = vmatprep.mubr.bf16.mxu0 %v2570
  %2900 = vmatmul.mubr.bf16.gmra.mrb[0].mxu0 %v2569
  %v2901 = vpop.f32.mrb[0].mxu0
  %v2902 = vadd.f32 %v2813, %v2901
  %v2903 = vpop.f32.mrb[0].mxu0
  %v2904 = vpop.f32.mrb[0].mxu0
  %v2905 = vadd.f32 %v2816, %v2904
  %v2906 = vpop.f32.mrb[0].mxu0
  %2907 = vmatprep.mubr.bf16.mxu0 %v2579
  %2908 = vmatmul.mubr.bf16.gmra.mrb[0].mxu0 %v2578
  %v2909 = vpop.f32.mrb[0].mxu0
  %v2910 = vadd.f32 %v2821, %v2909
  %v2911 = vpop.f32.mrb[0].mxu0
  %v2912 = vpop.f32.mrb[0].mxu0
  %v2913 = vadd.f32 %v2824, %v2912
  %v2914 = vpop.f32.mrb[0].mxu0
  %2915 = vmatprep.mubr.bf16.mxu0 %v2588
  %2916 = vmatmul.mubr.bf16.gmra.mrb[0].mxu0 %v2587
  %v2917 = vpop.f32.mrb[0].mxu0
  %v2918 = vadd.f32 %v2829, %v2917
  %v2919 = vpop.f32.mrb[0].mxu0
  %v2920 = vpop.f32.mrb[0].mxu0
  %v2921 = vadd.f32 %v2832, %v2920
  %v2922 = vpop.f32.mrb[0].mxu0
  %2923 = vmatprep.mubr.bf16.mxu0 %v2597
  %2924 = vmatmul.mubr.bf16.gmra.mrb[0].mxu0 %v2596
  %v2925 = vpop.f32.mrb[0].mxu0
  %v2926 = vadd.f32 %v2837, %v2925
  %v2927 = vpop.f32.mrb[0].mxu0
  %v2928 = vpop.f32.mrb[0].mxu0
  %v2929 = vadd.f32 %v2840, %v2928
  %v2930 = vpop.f32.mrb[0].mxu0
  %2931 = vmatprep.mubr.bf16.mxu0 %v2606
  %2932 = vmatmul.mubr.bf16.gmra.mrb[0].mxu0 %v2605
  %v2933 = vpop.f32.mrb[0].mxu0
  %v2934 = vadd.f32 %v2845, %v2933
  %v2935 = vpop.f32.mrb[0].mxu0
  %v2936 = vpop.f32.mrb[0].mxu0
  %v2937 = vadd.f32 %v2848, %v2936
  %v2938 = vpop.f32.mrb[0].mxu0
  %2939 = vdwg.mxu0
  %2940 = vmatprep.subr.bf16.mxu0 0
  %2941 = vmatpush1.bf16.msra.mxu0 %v887
  %2942 = vmatprep.subr.bf16.mxu0 0
  %2943 = vmatpush1.bf16.msra.mxu0 %v888
  %2944 = vmatprep.subr.bf16.mxu0 0
  %2945 = vmatpush1.bf16.msra.mxu0 %v889
  %2946 = vmatprep.subr.bf16.mxu0 0
  %2947 = vmatpush1.bf16.msra.mxu0 %v890
  %2948 = vmatprep.subr.bf16.mxu0 0
  %2949 = vmatpush1.bf16.msra.mxu0 %v891
  %2950 = vmatprep.subr.bf16.mxu0 0
  %2951 = vmatpush1.bf16.msra.mxu0 %v892
  %2952 = vmatprep.subr.bf16.mxu0 0
  %2953 = vmatpush1.bf16.msra.mxu0 %v893
  %2954 = vmatprep.subr.bf16.mxu0 0
  %2955 = vmatpush1.bf16.msra.mxu0 %v894
  %2956 = vmatprep.subr.bf16.mxu0 0
  %2957 = vmatpush1.bf16.msra.mxu0 %v895
  %2958 = vmatprep.subr.bf16.mxu0 0
  %2959 = vmatpush1.bf16.msra.mxu0 %v896
  %2960 = vmatprep.subr.bf16.mxu0 0
  %2961 = vmatpush1.bf16.msra.mxu0 %v897
  %2962 = vmatprep.subr.bf16.mxu0 0
  %2963 = vmatpush1.bf16.msra.mxu0 %v898
  %2964 = vmatprep.subr.bf16.mxu0 0
  %2965 = vmatpush1.bf16.msra.mxu0 %v899
  %2966 = vmatprep.subr.bf16.mxu0 0
  %2967 = vmatpush1.bf16.msra.mxu0 %v900
  %2968 = vmatprep.subr.bf16.mxu0 0
  %2969 = vmatpush1.bf16.msra.mxu0 %v901
  %2970 = vmatprep.subr.bf16.mxu0 0
  %2971 = vmatpush1.bf16.msra.mxu0 %v902
  %2972 = vmatprep.mubr.bf16.mxu0 %v2554
  %2973 = vmatmul.mubr.bf16.gmra.mrb[0].mxu0 %v2553
  %v2974 = vpop.f32.mrb[0].mxu0
  %v2975 = vadd.f32 %v2886, %v2974
  %v2976 = vpop.f32.mrb[0].mxu0
  %v2977 = vpop.f32.mrb[0].mxu0
  %v2978 = vadd.f32 %v2889, %v2977
  %v2979 = vpop.f32.mrb[0].mxu0
  %2980 = vmatprep.mubr.bf16.mxu0 %v2563
  %2981 = vmatmul.mubr.bf16.gmra.mrb[0].mxu0 %v2562
  %v2982 = vpop.f32.mrb[0].mxu0
  %v2983 = vadd.f32 %v2894, %v2982
  %v2984 = vpop.f32.mrb[0].mxu0
  %v2985 = vpop.f32.mrb[0].mxu0
  %v2986 = vadd.f32 %v2897, %v2985
  %v2987 = vpop.f32.mrb[0].mxu0
  %2988 = vmatprep.mubr.bf16.mxu0 %v2572
  %2989 = vmatmul.mubr.bf16.gmra.mrb[0].mxu0 %v2571
  %v2990 = vpop.f32.mrb[0].mxu0
  %v2991 = vadd.f32 %v2902, %v2990
  %v2992 = vpop.f32.mrb[0].mxu0
  %v2993 = vpop.f32.mrb[0].mxu0
  %v2994 = vadd.f32 %v2905, %v2993
  %v2995 = vpop.f32.mrb[0].mxu0
  %2996 = vmatprep.mubr.bf16.mxu0 %v2581
  %2997 = vmatmul.mubr.bf16.gmra.mrb[0].mxu0 %v2580
  %v2998 = vpop.f32.mrb[0].mxu0
  %v2999 = vadd.f32 %v2910, %v2998
  %v3000 = vpop.f32.mrb[0].mxu0
  %v3001 = vpop.f32.mrb[0].mxu0
  %v3002 = vadd.f32 %v2913, %v3001
  %v3003 = vpop.f32.mrb[0].mxu0
  %3004 = vmatprep.mubr.bf16.mxu0 %v2590
  %3005 = vmatmul.mubr.bf16.gmra.mrb[0].mxu0 %v2589
  %v3006 = vpop.f32.mrb[0].mxu0
  %v3007 = vadd.f32 %v2918, %v3006
  %v3008 = vpop.f32.mrb[0].mxu0
  %v3009 = vpop.f32.mrb[0].mxu0
  %v3010 = vadd.f32 %v2921, %v3009
  %v3011 = vpop.f32.mrb[0].mxu0
  %3012 = vmatprep.mubr.bf16.mxu0 %v2599
  %3013 = vmatmul.mubr.bf16.gmra.mrb[0].mxu0 %v2598
  %v3014 = vpop.f32.mrb[0].mxu0
  %v3015 = vadd.f32 %v2926, %v3014
  %v3016 = vpop.f32.mrb[0].mxu0
  %v3017 = vpop.f32.mrb[0].mxu0
  %v3018 = vadd.f32 %v2929, %v3017
  %v3019 = vpop.f32.mrb[0].mxu0
  %3020 = vmatprep.mubr.bf16.mxu0 %v2608
  %3021 = vmatmul.mubr.bf16.gmra.mrb[0].mxu0 %v2607
  %v3022 = vpop.f32.mrb[0].mxu0
  %v3023 = vadd.f32 %v2934, %v3022
  %v3024 = vpop.f32.mrb[0].mxu0
  %v3025 = vpop.f32.mrb[0].mxu0
  %v3026 = vadd.f32 %v2937, %v3025
  %v3027 = vpop.f32.mrb[0].mxu0
  %3028 = vdwg.mxu0
  %3029 = vmatprep.subr.bf16.mxu0 0
  %3030 = vmatpush1.bf16.msra.mxu0 %v903
  %3031 = vmatprep.subr.bf16.mxu0 0
  %3032 = vmatpush1.bf16.msra.mxu0 %v904
  %3033 = vmatprep.subr.bf16.mxu0 0
  %3034 = vmatpush1.bf16.msra.mxu0 %v905
  %3035 = vmatprep.subr.bf16.mxu0 0
  %3036 = vmatpush1.bf16.msra.mxu0 %v906
  %3037 = vmatprep.subr.bf16.mxu0 0
  %3038 = vmatpush1.bf16.msra.mxu0 %v907
  %3039 = vmatprep.subr.bf16.mxu0 0
  %3040 = vmatpush1.bf16.msra.mxu0 %v908
  %3041 = vmatprep.subr.bf16.mxu0 0
  %3042 = vmatpush1.bf16.msra.mxu0 %v909
  %3043 = vmatprep.subr.bf16.mxu0 0
  %3044 = vmatpush1.bf16.msra.mxu0 %v910
  %3045 = vmatprep.subr.bf16.mxu0 0
  %3046 = vmatpush1.bf16.msra.mxu0 0
  %3047 = vmatprep.subr.bf16.mxu0 0
  %3048 = vmatpush1.bf16.msra.mxu0 0
  %3049 = vmatprep.subr.bf16.mxu0 0
  %3050 = vmatpush1.bf16.msra.mxu0 0
  %3051 = vmatprep.subr.bf16.mxu0 0
  %3052 = vmatpush1.bf16.msra.mxu0 0
  %3053 = vmatprep.subr.bf16.mxu0 0
  %3054 = vmatpush1.bf16.msra.mxu0 0
  %3055 = vmatprep.subr.bf16.mxu0 0
  %3056 = vmatpush1.bf16.msra.mxu0 0
  %3057 = vmatprep.subr.bf16.mxu0 0
  %3058 = vmatpush1.bf16.msra.mxu0 0
  %3059 = vmatprep.subr.bf16.mxu0 0
  %3060 = vmatpush1.bf16.msra.mxu0 0
  %3061 = vmatprep.mubr.bf16.mxu0 0
  %3062 = vmatmul.mubr.bf16.gmra.mrb[0].mxu0 %v2555
  %v3063 = vpop.f32.mrb[0].mxu0
  %v3064 = vadd.f32 %v2975, %v3063
  %v3065 = vpop.f32.mrb[0].mxu0
  %v3066 = vpop.f32.mrb[0].mxu0
  %v3067 = vadd.f32 %v2978, %v3066
  %v3068 = vpop.f32.mrb[0].mxu0
  %3069 = vmatprep.mubr.bf16.mxu0 0
  %3070 = vmatmul.mubr.bf16.gmra.mrb[0].mxu0 %v2564
  %v3071 = vpop.f32.mrb[0].mxu0
  %v3072 = vadd.f32 %v2983, %v3071
  %v3073 = vpop.f32.mrb[0].mxu0
  %v3074 = vpop.f32.mrb[0].mxu0
  %v3075 = vadd.f32 %v2986, %v3074
  %v3076 = vpop.f32.mrb[0].mxu0
  %3077 = vmatprep.mubr.bf16.mxu0 0
  %3078 = vmatmul.mubr.bf16.gmra.mrb[0].mxu0 %v2573
  %v3079 = vpop.f32.mrb[0].mxu0
  %v3080 = vadd.f32 %v2991, %v3079
  %v3081 = vpop.f32.mrb[0].mxu0
  %v3082 = vpop.f32.mrb[0].mxu0
  %v3083 = vadd.f32 %v2994, %v3082
  %v3084 = vpop.f32.mrb[0].mxu0
  %3085 = vmatprep.mubr.bf16.mxu0 0
  %3086 = vmatmul.mubr.bf16.gmra.mrb[0].mxu0 %v2582
  %v3087 = vpop.f32.mrb[0].mxu0
  %v3088 = vadd.f32 %v2999, %v3087
  %v3089 = vpop.f32.mrb[0].mxu0
  %v3090 = vpop.f32.mrb[0].mxu0
  %v3091 = vadd.f32 %v3002, %v3090
  %v3092 = vpop.f32.mrb[0].mxu0
  %3093 = vmatprep.mubr.bf16.mxu0 0
  %3094 = vmatmul.mubr.bf16.gmra.mrb[0].mxu0 %v2591
  %v3095 = vpop.f32.mrb[0].mxu0
  %v3096 = vadd.f32 %v3007, %v3095
  %v3097 = vpop.f32.mrb[0].mxu0
  %v3098 = vpop.f32.mrb[0].mxu0
  %v3099 = vadd.f32 %v3010, %v3098
  %v3100 = vpop.f32.mrb[0].mxu0
  %3101 = vmatprep.mubr.bf16.mxu0 0
  %3102 = vmatmul.mubr.bf16.gmra.mrb[0].mxu0 %v2600
  %v3103 = vpop.f32.mrb[0].mxu0
  %v3104 = vadd.f32 %v3015, %v3103
  %v3105 = vpop.f32.mrb[0].mxu0
  %v3106 = vpop.f32.mrb[0].mxu0
  %v3107 = vadd.f32 %v3018, %v3106
  %v3108 = vpop.f32.mrb[0].mxu0
  %3109 = vmatprep.mubr.bf16.mxu0 0
  %3110 = vmatmul.mubr.bf16.gmra.mrb[0].mxu0 %v2609
  %v3111 = vpop.f32.mrb[0].mxu0
  %v3112 = vadd.f32 %v3023, %v3111
  %v3113 = vpop.f32.mrb[0].mxu0
  %v3114 = vpop.f32.mrb[0].mxu0
  %v3115 = vadd.f32 %v3026, %v3114
  %v3116 = vpop.f32.mrb[0].mxu0
  %3117 = vdwg.mxu0
  %v3118 = vmax.f32 %v2266, %v3064
  %v3119 = vmax.f32 %v2267, %v3067
  %v3120 = vmax.f32 %v2268, %v3072
  %v3121 = vmax.f32 %v2269, %v3075
  %v3122 = vmax.f32 %v2270, %v3080
  %v3123 = vmax.f32 %v2271, %v3083
  %v3124 = vmax.f32 %v2272, %v3088
  %v3125 = vmax.f32 %v2273, %v3091
  %v3126 = vmax.f32 %v2274, %v3096
  %v3127 = vmax.f32 %v2275, %v3099
  %v3128 = vmax.f32 %v2276, %v3104
  %v3129 = vmax.f32 %v2277, %v3107
  %v3130 = vmax.f32 %v2278, %v3112
  %v3131 = vmax.f32 %v2279, %v3115
  %s3132 = scalar_lea.vmem %s0, 1512
  %v3133 = vld [vmem:[%s3132] sm:$0xff]
  %v3134 = vld [vmem:[%s3132 + $0x8] sm:$0xff]
  %v3135 = vld [vmem:[%s3132 + $0x10] sm:$0xff]
  %v3136 = vld [vmem:[%s3132 + $0x18] sm:$0xff]
  %v3137 = vld [vmem:[%s3132 + $0x20] sm:$0xf]
  %v3138 = vld [vmem:[%s3132 + $0x24] sm:$0xff]
  %v3139 = vld [vmem:[%s3132 + $0x2c] sm:$0xff]
  %v3140 = vld [vmem:[%s3132 + $0x34] sm:$0xff]
  %v3141 = vld [vmem:[%s3132 + $0x3c] sm:$0xff]
  %v3142 = vld [vmem:[%s3132 + $0x44] sm:$0xf]
  %v3143 = vld [vmem:[%s3132 + $0x48] sm:$0xff]
  %v3144 = vld [vmem:[%s3132 + $0x50] sm:$0xff]
  %v3145 = vld [vmem:[%s3132 + $0x58] sm:$0xff]
  %v3146 = vld [vmem:[%s3132 + $0x60] sm:$0xff]
  %v3147 = vld [vmem:[%s3132 + $0x68] sm:$0xf]
  %v3148 = vld [vmem:[%s3132 + $0x6c] sm:$0xff]
  %v3149 = vld [vmem:[%s3132 + $0x74] sm:$0xff]
  %v3150 = vld [vmem:[%s3132 + $0x7c] sm:$0xff]
  %v3151 = vld [vmem:[%s3132 + $0x84] sm:$0xff]
  %v3152 = vld [vmem:[%s3132 + $0x8c] sm:$0xf]
  %v3153 = vld [vmem:[%s3132 + $0x90] sm:$0xff]
  %v3154 = vld [vmem:[%s3132 + $0x98] sm:$0xff]
  %v3155 = vld [vmem:[%s3132 + $0xa0] sm:$0xff]
  %v3156 = vld [vmem:[%s3132 + $0xa8] sm:$0xff]
  %v3157 = vld [vmem:[%s3132 + $0xb0] sm:$0xf]
  %v3158 = vld [vmem:[%s3132 + $0xb4] sm:$0xff]
  %v3159 = vld [vmem:[%s3132 + $0xbc] sm:$0xff]
  %v3160 = vld [vmem:[%s3132 + $0xc4] sm:$0xff]
  %v3161 = vld [vmem:[%s3132 + $0xcc] sm:$0xff]
  %v3162 = vld [vmem:[%s3132 + $0xd4] sm:$0xf]
  %v3163 = vld [vmem:[%s3132 + $0xd8] sm:$0xff]
  %v3164 = vld [vmem:[%s3132 + $0xe0] sm:$0xff]
  %v3165 = vld [vmem:[%s3132 + $0xe8] sm:$0xff]
  %v3166 = vld [vmem:[%s3132 + $0xf0] sm:$0xff]
  %v3167 = vld [vmem:[%s3132 + $0xf8] sm:$0xf]
  %v3168 = vld [vmem:[%s3132 + $0xfc] sm:$0xff]
  %v3169 = vld [vmem:[%s3132 + $0x104] sm:$0xff]
  %v3170 = vld [vmem:[%s3132 + $0x10c] sm:$0xff]
  %v3171 = vld [vmem:[%s3132 + $0x114] sm:$0xff]
  %v3172 = vld [vmem:[%s3132 + $0x11c] sm:$0xf]
  %v3173 = vld [vmem:[%s3132 + $0x120] sm:$0xff]
  %v3174 = vld [vmem:[%s3132 + $0x128] sm:$0xff]
  %v3175 = vld [vmem:[%s3132 + $0x130] sm:$0xff]
  %v3176 = vld [vmem:[%s3132 + $0x138] sm:$0xff]
  %v3177 = vld [vmem:[%s3132 + $0x140] sm:$0xf]
  %v3178 = vld [vmem:[%s3132 + $0x144] sm:$0xff]
  %v3179 = vld [vmem:[%s3132 + $0x14c] sm:$0xff]
  %v3180 = vld [vmem:[%s3132 + $0x154] sm:$0xff]
  %v3181 = vld [vmem:[%s3132 + $0x15c] sm:$0xff]
  %v3182 = vld [vmem:[%s3132 + $0x164] sm:$0xf]
  %v3183 = vld [vmem:[%s3132 + $0x168] sm:$0xff]
  %v3184 = vld [vmem:[%s3132 + $0x170] sm:$0xff]
  %v3185 = vld [vmem:[%s3132 + $0x178] sm:$0xff]
  %v3186 = vld [vmem:[%s3132 + $0x180] sm:$0xff]
  %v3187 = vld [vmem:[%s3132 + $0x188] sm:$0xf]
  %v3188 = vld [vmem:[%s3132 + $0x18c] sm:$0xff]
  %v3189 = vld [vmem:[%s3132 + $0x194] sm:$0xff]
  %v3190 = vld [vmem:[%s3132 + $0x19c] sm:$0xff]
  %v3191 = vld [vmem:[%s3132 + $0x1a4] sm:$0xff]
  %v3192 = vld [vmem:[%s3132 + $0x1ac] sm:$0xf]
  %v3193 = vld [vmem:[%s3132 + $0x1b0] sm:$0xff]
  %v3194 = vld [vmem:[%s3132 + $0x1b8] sm:$0xff]
  %v3195 = vld [vmem:[%s3132 + $0x1c0] sm:$0xff]
  %v3196 = vld [vmem:[%s3132 + $0x1c8] sm:$0xff]
  %v3197 = vld [vmem:[%s3132 + $0x1d0] sm:$0xf]
  %v3198 = vld [vmem:[%s3132 + $0x1d4] sm:$0xff]
  %v3199 = vld [vmem:[%s3132 + $0x1dc] sm:$0xff]
  %v3200 = vld [vmem:[%s3132 + $0x1e4] sm:$0xff]
  %v3201 = vld [vmem:[%s3132 + $0x1ec] sm:$0xff]
  %v3202 = vld [vmem:[%s3132 + $0x1f4] sm:$0xf]
  %v3273 = vunpack.c.l.b16 %v3133
  %v3274 = vunpack.c.h.b16 %v3133
  %v3275 = vunpack.c.l.b16 %v3134
  %v3276 = vunpack.c.h.b16 %v3134
  %v3277 = vunpack.c.l.b16 %v3135
  %v3278 = vunpack.c.h.b16 %v3135
  %v3279 = vunpack.c.l.b16 %v3136
  %v3280 = vunpack.c.h.b16 %v3136
  %v3281 = vunpack.c.l.b16 %v3137
  %v3282 = vunpack.c.l.b16 %v3138
  %v3283 = vunpack.c.h.b16 %v3138
  %v3284 = vunpack.c.l.b16 %v3139
  %v3285 = vunpack.c.h.b16 %v3139
  %v3286 = vunpack.c.l.b16 %v3140
  %v3287 = vunpack.c.h.b16 %v3140
  %v3288 = vunpack.c.l.b16 %v3141
  %v3289 = vunpack.c.h.b16 %v3141
  %v3290 = vunpack.c.l.b16 %v3142
  %v3291 = vunpack.c.l.b16 %v3143
  %v3292 = vunpack.c.h.b16 %v3143
  %v3293 = vunpack.c.l.b16 %v3144
  %v3294 = vunpack.c.h.b16 %v3144
  %v3295 = vunpack.c.l.b16 %v3145
  %v3296 = vunpack.c.h.b16 %v3145
  %v3297 = vunpack.c.l.b16 %v3146
  %v3298 = vunpack.c.h.b16 %v3146
  %v3299 = vunpack.c.l.b16 %v3147
  %v3300 = vunpack.c.l.b16 %v3148
  %v3301 = vunpack.c.h.b16 %v3148
  %v3302 = vunpack.c.l.b16 %v3149
  %v3303 = vunpack.c.h.b16 %v3149
  %v3304 = vunpack.c.l.b16 %v3150
  %v3305 = vunpack.c.h.b16 %v3150
  %v3306 = vunpack.c.l.b16 %v3151
  %v3307 = vunpack.c.h.b16 %v3151
  %v3308 = vunpack.c.l.b16 %v3152
  %v3309 = vunpack.c.l.b16 %v3153
  %v3310 = vunpack.c.h.b16 %v3153
  %v3311 = vunpack.c.l.b16 %v3154
  %v3312 = vunpack.c.h.b16 %v3154
  %v3313 = vunpack.c.l.b16 %v3155
  %v3314 = vunpack.c.h.b16 %v3155
  %v3315 = vunpack.c.l.b16 %v3156
  %v3316 = vunpack.c.h.b16 %v3156
  %v3317 = vunpack.c.l.b16 %v3157
  %v3318 = vunpack.c.l.b16 %v3158
  %v3319 = vunpack.c.h.b16 %v3158
  %v3320 = vunpack.c.l.b16 %v3159
  %v3321 = vunpack.c.h.b16 %v3159
  %v3322 = vunpack.c.l.b16 %v3160
  %v3323 = vunpack.c.h.b16 %v3160
  %v3324 = vunpack.c.l.b16 %v3161
  %v3325 = vunpack.c.h.b16 %v3161
  %v3326 = vunpack.c.l.b16 %v3162
  %v3327 = vunpack.c.l.b16 %v3163
  %v3328 = vunpack.c.h.b16 %v3163
  %v3329 = vunpack.c.l.b16 %v3164
  %v3330 = vunpack.c.h.b16 %v3164
  %v3331 = vunpack.c.l.b16 %v3165
  %v3332 = vunpack.c.h.b16 %v3165
  %v3333 = vunpack.c.l.b16 %v3166
  %v3334 = vunpack.c.h.b16 %v3166
  %v3335 = vunpack.c.l.b16 %v3167
  %v3336 = vunpack.c.l.b16 %v3168
  %v3337 = vunpack.c.h.b16 %v3168
  %v3338 = vunpack.c.l.b16 %v3169
  %v3339 = vunpack.c.h.b16 %v3169
  %v3340 = vunpack.c.l.b16 %v3170
  %v3341 = vunpack.c.h.b16 %v3170
  %v3342 = vunpack.c.l.b16 %v3171
  %v3343 = vunpack.c.h.b16 %v3171
  %v3344 = vunpack.c.l.b16 %v3172
  %v3345 = vunpack.c.l.b16 %v3173
  %v3346 = vunpack.c.h.b16 %v3173
  %v3347 = vunpack.c.l.b16 %v3174
  %v3348 = vunpack.c.h.b16 %v3174
  %v3349 = vunpack.c.l.b16 %v3175
  %v3350 = vunpack.c.h.b16 %v3175
  %v3351 = vunpack.c.l.b16 %v3176
  %v3352 = vunpack.c.h.b16 %v3176
  %v3353 = vunpack.c.l.b16 %v3177
  %v3354 = vunpack.c.l.b16 %v3178
  %v3355 = vunpack.c.h.b16 %v3178
  %v3356 = vunpack.c.l.b16 %v3179
  %v3357 = vunpack.c.h.b16 %v3179
  %v3358 = vunpack.c.l.b16 %v3180
  %v3359 = vunpack.c.h.b16 %v3180
  %v3360 = vunpack.c.l.b16 %v3181
  %v3361 = vunpack.c.h.b16 %v3181
  %v3362 = vunpack.c.l.b16 %v3182
  %v3363 = vunpack.c.l.b16 %v3183
  %v3364 = vunpack.c.h.b16 %v3183
  %v3365 = vunpack.c.l.b16 %v3184
  %v3366 = vunpack.c.h.b16 %v3184
  %v3367 = vunpack.c.l.b16 %v3185
  %v3368 = vunpack.c.h.b16 %v3185
  %v3369 = vunpack.c.l.b16 %v3186
  %v3370 = vunpack.c.h.b16 %v3186
  %v3371 = vunpack.c.l.b16 %v3187
  %v3372 = vunpack.c.l.b16 %v3188
  %v3373 = vunpack.c.h.b16 %v3188
  %v3374 = vunpack.c.l.b16 %v3189
  %v3375 = vunpack.c.h.b16 %v3189
  %v3376 = vunpack.c.l.b16 %v3190
  %v3377 = vunpack.c.h.b16 %v3190
  %v3378 = vunpack.c.l.b16 %v3191
  %v3379 = vunpack.c.h.b16 %v3191
  %v3380 = vunpack.c.l.b16 %v3192
  %v3381 = vunpack.c.l.b16 %v3193
  %v3382 = vunpack.c.h.b16 %v3193
  %v3383 = vunpack.c.l.b16 %v3194
  %v3384 = vunpack.c.h.b16 %v3194
  %v3385 = vunpack.c.l.b16 %v3195
  %v3386 = vunpack.c.h.b16 %v3195
  %v3387 = vunpack.c.l.b16 %v3196
  %v3388 = vunpack.c.h.b16 %v3196
  %v3389 = vunpack.c.l.b16 %v3197
  %v3390 = vunpack.c.l.b16 %v3198
  %v3391 = vunpack.c.h.b16 %v3198
  %v3392 = vunpack.c.l.b16 %v3199
  %v3393 = vunpack.c.h.b16 %v3199
  %v3394 = vunpack.c.l.b16 %v3200
  %v3395 = vunpack.c.h.b16 %v3200
  %v3396 = vunpack.c.l.b16 %v3201
  %v3397 = vunpack.c.h.b16 %v3201
  %v3398 = vunpack.c.l.b16 %v3202
  %v3399 = vpack.c.b16 %v3282, %v3273
  %v3400 = vpack.c.b16 %v3283, %v3274
  %v3401 = vpack.c.b16 %v3284, %v3275
  %v3402 = vpack.c.b16 %v3285, %v3276
  %v3403 = vpack.c.b16 %v3286, %v3277
  %v3404 = vpack.c.b16 %v3287, %v3278
  %v3405 = vpack.c.b16 %v3288, %v3279
  %v3406 = vpack.c.b16 %v3289, %v3280
  %v3407 = vpack.c.b16 %v3290, %v3281
  %v3408 = vpack.c.b16 %v3300, %v3291
  %v3409 = vpack.c.b16 %v3301, %v3292
  %v3410 = vpack.c.b16 %v3302, %v3293
  %v3411 = vpack.c.b16 %v3303, %v3294
  %v3412 = vpack.c.b16 %v3304, %v3295
  %v3413 = vpack.c.b16 %v3305, %v3296
  %v3414 = vpack.c.b16 %v3306, %v3297
  %v3415 = vpack.c.b16 %v3307, %v3298
  %v3416 = vpack.c.b16 %v3308, %v3299
  %v3417 = vpack.c.b16 %v3318, %v3309
  %v3418 = vpack.c.b16 %v3319, %v3310
  %v3419 = vpack.c.b16 %v3320, %v3311
  %v3420 = vpack.c.b16 %v3321, %v3312
  %v3421 = vpack.c.b16 %v3322, %v3313
  %v3422 = vpack.c.b16 %v3323, %v3314
  %v3423 = vpack.c.b16 %v3324, %v3315
  %v3424 = vpack.c.b16 %v3325, %v3316
  %v3425 = vpack.c.b16 %v3326, %v3317
  %v3426 = vpack.c.b16 %v3336, %v3327
  %v3427 = vpack.c.b16 %v3337, %v3328
  %v3428 = vpack.c.b16 %v3338, %v3329
  %v3429 = vpack.c.b16 %v3339, %v3330
  %v3430 = vpack.c.b16 %v3340, %v3331
  %v3431 = vpack.c.b16 %v3341, %v3332
  %v3432 = vpack.c.b16 %v3342, %v3333
  %v3433 = vpack.c.b16 %v3343, %v3334
  %v3434 = vpack.c.b16 %v3344, %v3335
  %v3435 = vpack.c.b16 %v3354, %v3345
  %v3436 = vpack.c.b16 %v3355, %v3346
  %v3437 = vpack.c.b16 %v3356, %v3347
  %v3438 = vpack.c.b16 %v3357, %v3348
  %v3439 = vpack.c.b16 %v3358, %v3349
  %v3440 = vpack.c.b16 %v3359, %v3350
  %v3441 = vpack.c.b16 %v3360, %v3351
  %v3442 = vpack.c.b16 %v3361, %v3352
  %v3443 = vpack.c.b16 %v3362, %v3353
  %v3444 = vpack.c.b16 %v3372, %v3363
  %v3445 = vpack.c.b16 %v3373, %v3364
  %v3446 = vpack.c.b16 %v3374, %v3365
  %v3447 = vpack.c.b16 %v3375, %v3366
  %v3448 = vpack.c.b16 %v3376, %v3367
  %v3449 = vpack.c.b16 %v3377, %v3368
  %v3450 = vpack.c.b16 %v3378, %v3369
  %v3451 = vpack.c.b16 %v3379, %v3370
  %v3452 = vpack.c.b16 %v3380, %v3371
  %v3453 = vpack.c.b16 %v3390, %v3381
  %v3454 = vpack.c.b16 %v3391, %v3382
  %v3455 = vpack.c.b16 %v3392, %v3383
  %v3456 = vpack.c.b16 %v3393, %v3384
  %v3457 = vpack.c.b16 %v3394, %v3385
  %v3458 = vpack.c.b16 %v3395, %v3386
  %v3459 = vpack.c.b16 %v3396, %v3387
  %v3460 = vpack.c.b16 %v3397, %v3388
  %v3461 = vpack.c.b16 %v3398, %v3389
  %3525 = vmatprep.subr.bf16.mxu0 0
  %3526 = vmatpush1.bf16.msra.mxu0 %v839
  %3527 = vmatprep.subr.bf16.mxu0 0
  %3528 = vmatpush1.bf16.msra.mxu0 %v840
  %3529 = vmatprep.subr.bf16.mxu0 0
  %3530 = vmatpush1.bf16.msra.mxu0 %v841
  %3531 = vmatprep.subr.bf16.mxu0 0
  %3532 = vmatpush1.bf16.msra.mxu0 %v842
  %3533 = vmatprep.subr.bf16.mxu0 0
  %3534 = vmatpush1.bf16.msra.mxu0 %v843
  %3535 = vmatprep.subr.bf16.mxu0 0
  %3536 = vmatpush1.bf16.msra.mxu0 %v844
  %3537 = vmatprep.subr.bf16.mxu0 0
  %3538 = vmatpush1.bf16.msra.mxu0 %v845
  %3539 = vmatprep.subr.bf16.mxu0 0
  %3540 = vmatpush1.bf16.msra.mxu0 %v846
  %3541 = vmatprep.subr.bf16.mxu0 0
  %3542 = vmatpush1.bf16.msra.mxu0 %v847
  %3543 = vmatprep.subr.bf16.mxu0 0
  %3544 = vmatpush1.bf16.msra.mxu0 %v848
  %3545 = vmatprep.subr.bf16.mxu0 0
  %3546 = vmatpush1.bf16.msra.mxu0 %v849
  %3547 = vmatprep.subr.bf16.mxu0 0
  %3548 = vmatpush1.bf16.msra.mxu0 %v850
  %3549 = vmatprep.subr.bf16.mxu0 0
  %3550 = vmatpush1.bf16.msra.mxu0 %v851
  %3551 = vmatprep.subr.bf16.mxu0 0
  %3552 = vmatpush1.bf16.msra.mxu0 %v852
  %3553 = vmatprep.subr.bf16.mxu0 0
  %3554 = vmatpush1.bf16.msra.mxu0 %v853
  %3555 = vmatprep.subr.bf16.mxu0 0
  %3556 = vmatpush1.bf16.msra.mxu0 %v854
  %3557 = vmatprep.mubr.bf16.mxu0 %v3400
  %3558 = vmatmul.mubr.bf16.gmra.mrb[0].mxu0 %v3399
  %v3559 = vpop.f32.mrb[0].mxu0
  %v3560 = vadd.f32 0.0, %v3559
  %v3561 = vpop.f32.mrb[0].mxu0
  %v3562 = vpop.f32.mrb[0].mxu0
  %v3563 = vadd.f32 0.0, %v3562
  %v3564 = vpop.f32.mrb[0].mxu0
  %3565 = vmatprep.mubr.bf16.mxu0 %v3409
  %3566 = vmatmul.mubr.bf16.gmra.mrb[0].mxu0 %v3408
  %v3567 = vpop.f32.mrb[0].mxu0
  %v3568 = vadd.f32 0.0, %v3567
  %v3569 = vpop.f32.mrb[0].mxu0
  %v3570 = vpop.f32.mrb[0].mxu0
  %v3571 = vadd.f32 0.0, %v3570
  %v3572 = vpop.f32.mrb[0].mxu0
  %3573 = vmatprep.mubr.bf16.mxu0 %v3418
  %3574 = vmatmul.mubr.bf16.gmra.mrb[0].mxu0 %v3417
  %v3575 = vpop.f32.mrb[0].mxu0
  %v3576 = vadd.f32 0.0, %v3575
  %v3577 = vpop.f32.mrb[0].mxu0
  %v3578 = vpop.f32.mrb[0].mxu0
  %v3579 = vadd.f32 0.0, %v3578
  %v3580 = vpop.f32.mrb[0].mxu0
  %3581 = vmatprep.mubr.bf16.mxu0 %v3427
  %3582 = vmatmul.mubr.bf16.gmra.mrb[0].mxu0 %v3426
  %v3583 = vpop.f32.mrb[0].mxu0
  %v3584 = vadd.f32 0.0, %v3583
  %v3585 = vpop.f32.mrb[0].mxu0
  %v3586 = vpop.f32.mrb[0].mxu0
  %v3587 = vadd.f32 0.0, %v3586
  %v3588 = vpop.f32.mrb[0].mxu0
  %3589 = vmatprep.mubr.bf16.mxu0 %v3436
  %3590 = vmatmul.mubr.bf16.gmra.mrb[0].mxu0 %v3435
  %v3591 = vpop.f32.mrb[0].mxu0
  %v3592 = vadd.f32 0.0, %v3591
  %v3593 = vpop.f32.mrb[0].mxu0
  %v3594 = vpop.f32.mrb[0].mxu0
  %v3595 = vadd.f32 0.0, %v3594
  %v3596 = vpop.f32.mrb[0].mxu0
  %3597 = vmatprep.mubr.bf16.mxu0 %v3445
  %3598 = vmatmul.mubr.bf16.gmra.mrb[0].mxu0 %v3444
  %v3599 = vpop.f32.mrb[0].mxu0
  %v3600 = vadd.f32 0.0, %v3599
  %v3601 = vpop.f32.mrb[0].mxu0
  %v3602 = vpop.f32.mrb[0].mxu0
  %v3603 = vadd.f32 0.0, %v3602
  %v3604 = vpop.f32.mrb[0].mxu0
  %3605 = vmatprep.mubr.bf16.mxu0 %v3454
  %3606 = vmatmul.mubr.bf16.gmra.mrb[0].mxu0 %v3453
  %v3607 = vpop.f32.mrb[0].mxu0
  %v3608 = vadd.f32 0.0, %v3607
  %v3609 = vpop.f32.mrb[0].mxu0
  %v3610 = vpop.f32.mrb[0].mxu0
  %v3611 = vadd.f32 0.0, %v3610
  %v3612 = vpop.f32.mrb[0].mxu0
  %3613 = vdwg.mxu0
  %3614 = vmatprep.subr.bf16.mxu0 0
  %3615 = vmatpush1.bf16.msra.mxu0 %v855
  %3616 = vmatprep.subr.bf16.mxu0 0
  %3617 = vmatpush1.bf16.msra.mxu0 %v856
  %3618 = vmatprep.subr.bf16.mxu0 0
  %3619 = vmatpush1.bf16.msra.mxu0 %v857
  %3620 = vmatprep.subr.bf16.mxu0 0
  %3621 = vmatpush1.bf16.msra.mxu0 %v858
  %3622 = vmatprep.subr.bf16.mxu0 0
  %3623 = vmatpush1.bf16.msra.mxu0 %v859
  %3624 = vmatprep.subr.bf16.mxu0 0
  %3625 = vmatpush1.bf16.msra.mxu0 %v860
  %3626 = vmatprep.subr.bf16.mxu0 0
  %3627 = vmatpush1.bf16.msra.mxu0 %v861
  %3628 = vmatprep.subr.bf16.mxu0 0
  %3629 = vmatpush1.bf16.msra.mxu0 %v862
  %3630 = vmatprep.subr.bf16.mxu0 0
  %3631 = vmatpush1.bf16.msra.mxu0 %v863
  %3632 = vmatprep.subr.bf16.mxu0 0
  %3633 = vmatpush1.bf16.msra.mxu0 %v864
  %3634 = vmatprep.subr.bf16.mxu0 0
  %3635 = vmatpush1.bf16.msra.mxu0 %v865
  %3636 = vmatprep.subr.bf16.mxu0 0
  %3637 = vmatpush1.bf16.msra.mxu0 %v866
  %3638 = vmatprep.subr.bf16.mxu0 0
  %3639 = vmatpush1.bf16.msra.mxu0 %v867
  %3640 = vmatprep.subr.bf16.mxu0 0
  %3641 = vmatpush1.bf16.msra.mxu0 %v868
  %3642 = vmatprep.subr.bf16.mxu0 0
  %3643 = vmatpush1.bf16.msra.mxu0 %v869
  %3644 = vmatprep.subr.bf16.mxu0 0
  %3645 = vmatpush1.bf16.msra.mxu0 %v870
  %3646 = vmatprep.mubr.bf16.mxu0 %v3402
  %3647 = vmatmul.mubr.bf16.gmra.mrb[0].mxu0 %v3401
  %v3648 = vpop.f32.mrb[0].mxu0
  %v3649 = vadd.f32 %v3560, %v3648
  %v3650 = vpop.f32.mrb[0].mxu0
  %v3651 = vpop.f32.mrb[0].mxu0
  %v3652 = vadd.f32 %v3563, %v3651
  %v3653 = vpop.f32.mrb[0].mxu0
  %3654 = vmatprep.mubr.bf16.mxu0 %v3411
  %3655 = vmatmul.mubr.bf16.gmra.mrb[0].mxu0 %v3410
  %v3656 = vpop.f32.mrb[0].mxu0
  %v3657 = vadd.f32 %v3568, %v3656
  %v3658 = vpop.f32.mrb[0].mxu0
  %v3659 = vpop.f32.mrb[0].mxu0
  %v3660 = vadd.f32 %v3571, %v3659
  %v3661 = vpop.f32.mrb[0].mxu0
  %3662 = vmatprep.mubr.bf16.mxu0 %v3420
  %3663 = vmatmul.mubr.bf16.gmra.mrb[0].mxu0 %v3419
  %v3664 = vpop.f32.mrb[0].mxu0
  %v3665 = vadd.f32 %v3576, %v3664
  %v3666 = vpop.f32.mrb[0].mxu0
  %v3667 = vpop.f32.mrb[0].mxu0
  %v3668 = vadd.f32 %v3579, %v3667
  %v3669 = vpop.f32.mrb[0].mxu0
  %3670 = vmatprep.mubr.bf16.mxu0 %v3429
  %3671 = vmatmul.mubr.bf16.gmra.mrb[0].mxu0 %v3428
  %v3672 = vpop.f32.mrb[0].mxu0
  %v3673 = vadd.f32 %v3584, %v3672
  %v3674 = vpop.f32.mrb[0].mxu0
  %v3675 = vpop.f32.mrb[0].mxu0
  %v3676 = vadd.f32 %v3587, %v3675
  %v3677 = vpop.f32.mrb[0].mxu0
  %3678 = vmatprep.mubr.bf16.mxu0 %v3438
  %3679 = vmatmul.mubr.bf16.gmra.mrb[0].mxu0 %v3437
  %v3680 = vpop.f32.mrb[0].mxu0
  %v3681 = vadd.f32 %v3592, %v3680
  %v3682 = vpop.f32.mrb[0].mxu0
  %v3683 = vpop.f32.mrb[0].mxu0
  %v3684 = vadd.f32 %v3595, %v3683
  %v3685 = vpop.f32.mrb[0].mxu0
  %3686 = vmatprep.mubr.bf16.mxu0 %v3447
  %3687 = vmatmul.mubr.bf16.gmra.mrb[0].mxu0 %v3446
  %v3688 = vpop.f32.mrb[0].mxu0
  %v3689 = vadd.f32 %v3600, %v3688
  %v3690 = vpop.f32.mrb[0].mxu0
  %v3691 = vpop.f32.mrb[0].mxu0
  %v3692 = vadd.f32 %v3603, %v3691
  %v3693 = vpop.f32.mrb[0].mxu0
  %3694 = vmatprep.mubr.bf16.mxu0 %v3456
  %3695 = vmatmul.mubr.bf16.gmra.mrb[0].mxu0 %v3455
  %v3696 = vpop.f32.mrb[0].mxu0
  %v3697 = vadd.f32 %v3608, %v3696
  %v3698 = vpop.f32.mrb[0].mxu0
  %v3699 = vpop.f32.mrb[0].mxu0
  %v3700 = vadd.f32 %v3611, %v3699
  %v3701 = vpop.f32.mrb[0].mxu0
  %3702 = vdwg.mxu0
  %3703 = vmatprep.subr.bf16.mxu0 0
  %3704 = vmatpush1.bf16.msra.mxu0 %v871
  %3705 = vmatprep.subr.bf16.mxu0 0
  %3706 = vmatpush1.bf16.msra.mxu0 %v872
  %3707 = vmatprep.subr.bf16.mxu0 0
  %3708 = vmatpush1.bf16.msra.mxu0 %v873
  %3709 = vmatprep.subr.bf16.mxu0 0
  %3710 = vmatpush1.bf16.msra.mxu0 %v874
  %3711 = vmatprep.subr.bf16.mxu0 0
  %3712 = vmatpush1.bf16.msra.mxu0 %v875
  %3713 = vmatprep.subr.bf16.mxu0 0
  %3714 = vmatpush1.bf16.msra.mxu0 %v876
  %3715 = vmatprep.subr.bf16.mxu0 0
  %3716 = vmatpush1.bf16.msra.mxu0 %v877
  %3717 = vmatprep.subr.bf16.mxu0 0
  %3718 = vmatpush1.bf16.msra.mxu0 %v878
  %3719 = vmatprep.subr.bf16.mxu0 0
  %3720 = vmatpush1.bf16.msra.mxu0 %v879
  %3721 = vmatprep.subr.bf16.mxu0 0
  %3722 = vmatpush1.bf16.msra.mxu0 %v880
  %3723 = vmatprep.subr.bf16.mxu0 0
  %3724 = vmatpush1.bf16.msra.mxu0 %v881
  %3725 = vmatprep.subr.bf16.mxu0 0
  %3726 = vmatpush1.bf16.msra.mxu0 %v882
  %3727 = vmatprep.subr.bf16.mxu0 0
  %3728 = vmatpush1.bf16.msra.mxu0 %v883
  %3729 = vmatprep.subr.bf16.mxu0 0
  %3730 = vmatpush1.bf16.msra.mxu0 %v884
  %3731 = vmatprep.subr.bf16.mxu0 0
  %3732 = vmatpush1.bf16.msra.mxu0 %v885
  %3733 = vmatprep.subr.bf16.mxu0 0
  %3734 = vmatpush1.bf16.msra.mxu0 %v886
  %3735 = vmatprep.mubr.bf16.mxu0 %v3404
  %3736 = vmatmul.mubr.bf16.gmra.mrb[0].mxu0 %v3403
  %v3737 = vpop.f32.mrb[0].mxu0
  %v3738 = vadd.f32 %v3649, %v3737
  %v3739 = vpop.f32.mrb[0].mxu0
  %v3740 = vpop.f32.mrb[0].mxu0
  %v3741 = vadd.f32 %v3652, %v3740
  %v3742 = vpop.f32.mrb[0].mxu0
  %3743 = vmatprep.mubr.bf16.mxu0 %v3413
  %3744 = vmatmul.mubr.bf16.gmra.mrb[0].mxu0 %v3412
  %v3745 = vpop.f32.mrb[0].mxu0
  %v3746 = vadd.f32 %v3657, %v3745
  %v3747 = vpop.f32.mrb[0].mxu0
  %v3748 = vpop.f32.mrb[0].mxu0
  %v3749 = vadd.f32 %v3660, %v3748
  %v3750 = vpop.f32.mrb[0].mxu0
  %3751 = vmatprep.mubr.bf16.mxu0 %v3422
  %3752 = vmatmul.mubr.bf16.gmra.mrb[0].mxu0 %v3421
  %v3753 = vpop.f32.mrb[0].mxu0
  %v3754 = vadd.f32 %v3665, %v3753
  %v3755 = vpop.f32.mrb[0].mxu0
  %v3756 = vpop.f32.mrb[0].mxu0
  %v3757 = vadd.f32 %v3668, %v3756
  %v3758 = vpop.f32.mrb[0].mxu0
  %3759 = vmatprep.mubr.bf16.mxu0 %v3431
  %3760 = vmatmul.mubr.bf16.gmra.mrb[0].mxu0 %v3430
  %v3761 = vpop.f32.mrb[0].mxu0
  %v3762 = vadd.f32 %v3673, %v3761
  %v3763 = vpop.f32.mrb[0].mxu0
  %v3764 = vpop.f32.mrb[0].mxu0
  %v3765 = vadd.f32 %v3676, %v3764
  %v3766 = vpop.f32.mrb[0].mxu0
  %3767 = vmatprep.mubr.bf16.mxu0 %v3440
  %3768 = vmatmul.mubr.bf16.gmra.mrb[0].mxu0 %v3439
  %v3769 = vpop.f32.mrb[0].mxu0
  %v3770 = vadd.f32 %v3681, %v3769
  %v3771 = vpop.f32.mrb[0].mxu0
  %v3772 = vpop.f32.mrb[0].mxu0
  %v3773 = vadd.f32 %v3684, %v3772
  %v3774 = vpop.f32.mrb[0].mxu0
  %3775 = vmatprep.mubr.bf16.mxu0 %v3449
  %3776 = vmatmul.mubr.bf16.gmra.mrb[0].mxu0 %v3448
  %v3777 = vpop.f32.mrb[0].mxu0
  %v3778 = vadd.f32 %v3689, %v3777
  %v3779 = vpop.f32.mrb[0].mxu0
  %v3780 = vpop.f32.mrb[0].mxu0
  %v3781 = vadd.f32 %v3692, %v3780
  %v3782 = vpop.f32.mrb[0].mxu0
  %3783 = vmatprep.mubr.bf16.mxu0 %v3458
  %3784 = vmatmul.mubr.bf16.gmra.mrb[0].mxu0 %v3457
  %v3785 = vpop.f32.mrb[0].mxu0
  %v3786 = vadd.f32 %v3697, %v3785
  %v3787 = vpop.f32.mrb[0].mxu0
  %v3788 = vpop.f32.mrb[0].mxu0
  %v3789 = vadd.f32 %v3700, %v3788
  %v3790 = vpop.f32.mrb[0].mxu0
  %3791 = vdwg.mxu0
  %3792 = vmatprep.subr.bf16.mxu0 0
  %3793 = vmatpush1.bf16.msra.mxu0 %v887
  %3794 = vmatprep.subr.bf16.mxu0 0
  %3795 = vmatpush1.bf16.msra.mxu0 %v888
  %3796 = vmatprep.subr.bf16.mxu0 0
  %3797 = vmatpush1.bf16.msra.mxu0 %v889
  %3798 = vmatprep.subr.bf16.mxu0 0
  %3799 = vmatpush1.bf16.msra.mxu0 %v890
  %3800 = vmatprep.subr.bf16.mxu0 0
  %3801 = vmatpush1.bf16.msra.mxu0 %v891
  %3802 = vmatprep.subr.bf16.mxu0 0
  %3803 = vmatpush1.bf16.msra.mxu0 %v892
  %3804 = vmatprep.subr.bf16.mxu0 0
  %3805 = vmatpush1.bf16.msra.mxu0 %v893
  %3806 = vmatprep.subr.bf16.mxu0 0
  %3807 = vmatpush1.bf16.msra.mxu0 %v894
  %3808 = vmatprep.subr.bf16.mxu0 0
  %3809 = vmatpush1.bf16.msra.mxu0 %v895
  %3810 = vmatprep.subr.bf16.mxu0 0
  %3811 = vmatpush1.bf16.msra.mxu0 %v896
  %3812 = vmatprep.subr.bf16.mxu0 0
  %3813 = vmatpush1.bf16.msra.mxu0 %v897
  %3814 = vmatprep.subr.bf16.mxu0 0
  %3815 = vmatpush1.bf16.msra.mxu0 %v898
  %3816 = vmatprep.subr.bf16.mxu0 0
  %3817 = vmatpush1.bf16.msra.mxu0 %v899
  %3818 = vmatprep.subr.bf16.mxu0 0
  %3819 = vmatpush1.bf16.msra.mxu0 %v900
  %3820 = vmatprep.subr.bf16.mxu0 0
  %3821 = vmatpush1.bf16.msra.mxu0 %v901
  %3822 = vmatprep.subr.bf16.mxu0 0
  %3823 = vmatpush1.bf16.msra.mxu0 %v902
  %3824 = vmatprep.mubr.bf16.mxu0 %v3406
  %3825 = vmatmul.mubr.bf16.gmra.mrb[0].mxu0 %v3405
  %v3826 = vpop.f32.mrb[0].mxu0
  %v3827 = vadd.f32 %v3738, %v3826
  %v3828 = vpop.f32.mrb[0].mxu0
  %v3829 = vpop.f32.mrb[0].mxu0
  %v3830 = vadd.f32 %v3741, %v3829
  %v3831 = vpop.f32.mrb[0].mxu0
  %3832 = vmatprep.mubr.bf16.mxu0 %v3415
  %3833 = vmatmul.mubr.bf16.gmra.mrb[0].mxu0 %v3414
  %v3834 = vpop.f32.mrb[0].mxu0
  %v3835 = vadd.f32 %v3746, %v3834
  %v3836 = vpop.f32.mrb[0].mxu0
  %v3837 = vpop.f32.mrb[0].mxu0
  %v3838 = vadd.f32 %v3749, %v3837
  %v3839 = vpop.f32.mrb[0].mxu0
  %3840 = vmatprep.mubr.bf16.mxu0 %v3424
  %3841 = vmatmul.mubr.bf16.gmra.mrb[0].mxu0 %v3423
  %v3842 = vpop.f32.mrb[0].mxu0
  %v3843 = vadd.f32 %v3754, %v3842
  %v3844 = vpop.f32.mrb[0].mxu0
  %v3845 = vpop.f32.mrb[0].mxu0
  %v3846 = vadd.f32 %v3757, %v3845
  %v3847 = vpop.f32.mrb[0].mxu0
  %3848 = vmatprep.mubr.bf16.mxu0 %v3433
  %3849 = vmatmul.mubr.bf16.gmra.mrb[0].mxu0 %v3432
  %v3850 = vpop.f32.mrb[0].mxu0
  %v3851 = vadd.f32 %v3762, %v3850
  %v3852 = vpop.f32.mrb[0].mxu0
  %v3853 = vpop.f32.mrb[0].mxu0
  %v3854 = vadd.f32 %v3765, %v3853
  %v3855 = vpop.f32.mrb[0].mxu0
  %3856 = vmatprep.mubr.bf16.mxu0 %v3442
  %3857 = vmatmul.mubr.bf16.gmra.mrb[0].mxu0 %v3441
  %v3858 = vpop.f32.mrb[0].mxu0
  %v3859 = vadd.f32 %v3770, %v3858
  %v3860 = vpop.f32.mrb[0].mxu0
  %v3861 = vpop.f32.mrb[0].mxu0
  %v3862 = vadd.f32 %v3773, %v3861
  %v3863 = vpop.f32.mrb[0].mxu0
  %3864 = vmatprep.mubr.bf16.mxu0 %v3451
  %3865 = vmatmul.mubr.bf16.gmra.mrb[0].mxu0 %v3450
  %v3866 = vpop.f32.mrb[0].mxu0
  %v3867 = vadd.f32 %v3778, %v3866
  %v3868 = vpop.f32.mrb[0].mxu0
  %v3869 = vpop.f32.mrb[0].mxu0
  %v3870 = vadd.f32 %v3781, %v3869
  %v3871 = vpop.f32.mrb[0].mxu0
  %3872 = vmatprep.mubr.bf16.mxu0 %v3460
  %3873 = vmatmul.mubr.bf16.gmra.mrb[0].mxu0 %v3459
  %v3874 = vpop.f32.mrb[0].mxu0
  %v3875 = vadd.f32 %v3786, %v3874
  %v3876 = vpop.f32.mrb[0].mxu0
  %v3877 = vpop.f32.mrb[0].mxu0
  %v3878 = vadd.f32 %v3789, %v3877
  %v3879 = vpop.f32.mrb[0].mxu0
  %3880 = vdwg.mxu0
  %3881 = vmatprep.subr.bf16.mxu0 0
  %3882 = vmatpush1.bf16.msra.mxu0 %v903
  %3883 = vmatprep.subr.bf16.mxu0 0
  %3884 = vmatpush1.bf16.msra.mxu0 %v904
  %3885 = vmatprep.subr.bf16.mxu0 0
  %3886 = vmatpush1.bf16.msra.mxu0 %v905
  %3887 = vmatprep.subr.bf16.mxu0 0
  %3888 = vmatpush1.bf16.msra.mxu0 %v906
  %3889 = vmatprep.subr.bf16.mxu0 0
  %3890 = vmatpush1.bf16.msra.mxu0 %v907
  %3891 = vmatprep.subr.bf16.mxu0 0
  %3892 = vmatpush1.bf16.msra.mxu0 %v908
  %3893 = vmatprep.subr.bf16.mxu0 0
  %3894 = vmatpush1.bf16.msra.mxu0 %v909
  %3895 = vmatprep.subr.bf16.mxu0 0
  %3896 = vmatpush1.bf16.msra.mxu0 %v910
  %3897 = vmatprep.subr.bf16.mxu0 0
  %3898 = vmatpush1.bf16.msra.mxu0 0
  %3899 = vmatprep.subr.bf16.mxu0 0
  %3900 = vmatpush1.bf16.msra.mxu0 0
  %3901 = vmatprep.subr.bf16.mxu0 0
  %3902 = vmatpush1.bf16.msra.mxu0 0
  %3903 = vmatprep.subr.bf16.mxu0 0
  %3904 = vmatpush1.bf16.msra.mxu0 0
  %3905 = vmatprep.subr.bf16.mxu0 0
  %3906 = vmatpush1.bf16.msra.mxu0 0
  %3907 = vmatprep.subr.bf16.mxu0 0
  %3908 = vmatpush1.bf16.msra.mxu0 0
  %3909 = vmatprep.subr.bf16.mxu0 0
  %3910 = vmatpush1.bf16.msra.mxu0 0
  %3911 = vmatprep.subr.bf16.mxu0 0
  %3912 = vmatpush1.bf16.msra.mxu0 0
  %3913 = vmatprep.mubr.bf16.mxu0 0
  %3914 = vmatmul.mubr.bf16.gmra.mrb[0].mxu0 %v3407
  %v3915 = vpop.f32.mrb[0].mxu0
  %v3916 = vadd.f32 %v3827, %v3915
  %v3917 = vpop.f32.mrb[0].mxu0
  %v3918 = vpop.f32.mrb[0].mxu0
  %v3919 = vadd.f32 %v3830, %v3918
  %v3920 = vpop.f32.mrb[0].mxu0
  %3921 = vmatprep.mubr.bf16.mxu0 0
  %3922 = vmatmul.mubr.bf16.gmra.mrb[0].mxu0 %v3416
  %v3923 = vpop.f32.mrb[0].mxu0
  %v3924 = vadd.f32 %v3835, %v3923
  %v3925 = vpop.f32.mrb[0].mxu0
  %v3926 = vpop.f32.mrb[0].mxu0
  %v3927 = vadd.f32 %v3838, %v3926
  %v3928 = vpop.f32.mrb[0].mxu0
  %3929 = vmatprep.mubr.bf16.mxu0 0
  %3930 = vmatmul.mubr.bf16.gmra.mrb[0].mxu0 %v3425
  %v3931 = vpop.f32.mrb[0].mxu0
  %v3932 = vadd.f32 %v3843, %v3931
  %v3933 = vpop.f32.mrb[0].mxu0
  %v3934 = vpop.f32.mrb[0].mxu0
  %v3935 = vadd.f32 %v3846, %v3934
  %v3936 = vpop.f32.mrb[0].mxu0
  %3937 = vmatprep.mubr.bf16.mxu0 0
  %3938 = vmatmul.mubr.bf16.gmra.mrb[0].mxu0 %v3434
  %v3939 = vpop.f32.mrb[0].mxu0
  %v3940 = vadd.f32 %v3851, %v3939
  %v3941 = vpop.f32.mrb[0].mxu0
  %v3942 = vpop.f32.mrb[0].mxu0
  %v3943 = vadd.f32 %v3854, %v3942
  %v3944 = vpop.f32.mrb[0].mxu0
  %3945 = vmatprep.mubr.bf16.mxu0 0
  %3946 = vmatmul.mubr.bf16.gmra.mrb[0].mxu0 %v3443
  %v3947 = vpop.f32.mrb[0].mxu0
  %v3948 = vadd.f32 %v3859, %v3947
  %v3949 = vpop.f32.mrb[0].mxu0
  %v3950 = vpop.f32.mrb[0].mxu0
  %v3951 = vadd.f32 %v3862, %v3950
  %v3952 = vpop.f32.mrb[0].mxu0
  %3953 = vmatprep.mubr.bf16.mxu0 0
  %3954 = vmatmul.mubr.bf16.gmra.mrb[0].mxu0 %v3452
  %v3955 = vpop.f32.mrb[0].mxu0
  %v3956 = vadd.f32 %v3867, %v3955
  %v3957 = vpop.f32.mrb[0].mxu0
  %v3958 = vpop.f32.mrb[0].mxu0
  %v3959 = vadd.f32 %v3870, %v3958
  %v3960 = vpop.f32.mrb[0].mxu0
  %3961 = vmatprep.mubr.bf16.mxu0 0
  %3962 = vmatmul.mubr.bf16.gmra.mrb[0].mxu0 %v3461
  %v3963 = vpop.f32.mrb[0].mxu0
  %v3964 = vadd.f32 %v3875, %v3963
  %v3965 = vpop.f32.mrb[0].mxu0
  %v3966 = vpop.f32.mrb[0].mxu0
  %v3967 = vadd.f32 %v3878, %v3966
  %v3968 = vpop.f32.mrb[0].mxu0
  %3969 = vdwg.mxu0
  %v3970 = vmax.f32 %v3118, %v3916
  %v3971 = vmax.f32 %v3119, %v3919
  %v3972 = vmax.f32 %v3120, %v3924
  %v3973 = vmax.f32 %v3121, %v3927
  %v3974 = vmax.f32 %v3122, %v3932
  %v3975 = vmax.f32 %v3123, %v3935
  %v3976 = vmax.f32 %v3124, %v3940
  %v3977 = vmax.f32 %v3125, %v3943
  %v3978 = vmax.f32 %v3126, %v3948
  %v3979 = vmax.f32 %v3127, %v3951
  %v3980 = vmax.f32 %v3128, %v3956
  %v3981 = vmax.f32 %v3129, %v3959
  %v3982 = vmax.f32 %v3130, %v3964
  %v3983 = vmax.f32 %v3131, %v3967
  %v3984 = vld [vmem:[%s2] sm:$0x1]
  %v3986 = vlaneseq
  %v3987 = vshrl.u32 %v3986, 7
  %v3988 = vsub.s32 0, %v3987
  %v3989 = vrot.slane %v3984, %v3988
  %v3991 = vadd.f32 %v3970, %v3989
  %v3992 = vadd.f32 %v3971, %v3989
  %v3993 = vadd.f32 %v3972, %v3989
  %v3994 = vadd.f32 %v3973, %v3989
  %v3995 = vadd.f32 %v3974, %v3989
  %v3996 = vadd.f32 %v3975, %v3989
  %v3997 = vadd.f32 %v3976, %v3989
  %v3998 = vadd.f32 %v3977, %v3989
  %v3999 = vadd.f32 %v3978, %v3989
  %v4000 = vadd.f32 %v3979, %v3989
  %v4001 = vadd.f32 %v3980, %v3989
  %v4002 = vadd.f32 %v3981, %v3989
  %v4003 = vadd.f32 %v3982, %v3989
  %v4004 = vadd.f32 %v3983, %v3989
  %v4005 = vmax.f32 %v3991, 0.0
  %v4006 = vmax.f32 %v3992, 0.0
  %v4007 = vmax.f32 %v3993, 0.0
  %v4008 = vmax.f32 %v3994, 0.0
  %v4009 = vmax.f32 %v3995, 0.0
  %v4010 = vmax.f32 %v3996, 0.0
  %v4011 = vmax.f32 %v3997, 0.0
  %v4012 = vmax.f32 %v3998, 0.0
  %v4013 = vmax.f32 %v3999, 0.0
  %v4014 = vmax.f32 %v4000, 0.0
  %v4015 = vmax.f32 %v4001, 0.0
  %v4016 = vmax.f32 %v4002, 0.0
  %v4017 = vmax.f32 %v4003, 0.0
  %v4018 = vmax.f32 %v4004, 0.0
  %v4019 = vpack.c.bf16 %v4006, %v4005
  %v4020 = vpack.c.bf16 %v4008, %v4007
  %v4021 = vpack.c.bf16 %v4010, %v4009
  %v4022 = vpack.c.bf16 %v4012, %v4011
  %v4023 = vpack.c.bf16 %v4014, %v4013
  %v4024 = vpack.c.bf16 %v4016, %v4015
  %v4025 = vpack.c.bf16 %v4018, %v4017
  %v4033 = vunpack.c.l.b16 %v4019
  %v4034 = vunpack.c.h.b16 %v4019
  %v4035 = vunpack.c.l.b16 %v4020
  %v4036 = vunpack.c.h.b16 %v4020
  %v4037 = vunpack.c.l.b16 %v4021
  %v4038 = vunpack.c.h.b16 %v4021
  %v4039 = vunpack.c.l.b16 %v4022
  %v4040 = vunpack.c.h.b16 %v4022
  %v4041 = vunpack.c.l.b16 %v4023
  %v4042 = vunpack.c.h.b16 %v4023
  %v4043 = vunpack.c.l.b16 %v4024
  %v4044 = vunpack.c.h.b16 %v4024
  %v4045 = vunpack.c.l.b16 %v4025
  %v4046 = vunpack.c.h.b16 %v4025
  %v4047 = vpack.c.b16 %v4033, %v4033
  %v4048 = vpack.c.b16 %v4034, %v4034
  %v4049 = vpack.c.b16 %v4035, %v4035
  %v4050 = vpack.c.b16 %v4036, %v4036
  %v4051 = vpack.c.b16 %v4037, %v4037
  %v4052 = vpack.c.b16 %v4038, %v4038
  %v4053 = vpack.c.b16 %v4039, %v4039
  %v4054 = vpack.c.b16 %v4040, %v4040
  %v4055 = vpack.c.b16 %v4041, %v4041
  %v4056 = vpack.c.b16 %v4042, %v4042
  %v4057 = vpack.c.b16 %v4043, %v4043
  %v4058 = vpack.c.b16 %v4044, %v4044
  %v4059 = vpack.c.b16 %v4045, %v4045
  %v4060 = vpack.c.b16 %v4046, %v4046
  %4075 = vst [vmem:[%s3] sm:$0xf] %v4047
  %4076 = vst [vmem:[%s3 + $0x4] sm:$0xf] %v4048
  %4077 = vst [vmem:[%s3 + $0x8] sm:$0xf] %v4049
  %4078 = vst [vmem:[%s3 + $0xc] sm:$0xf] %v4050
  %4079 = vst [vmem:[%s3 + $0x10] sm:$0xf] %v4051
  %4080 = vst [vmem:[%s3 + $0x14] sm:$0xf] %v4052
  %4081 = vst [vmem:[%s3 + $0x18] sm:$0xf] %v4053
  %4082 = vst [vmem:[%s3 + $0x1c] sm:$0xf] %v4054
  %4083 = vst [vmem:[%s3 + $0x20] sm:$0xf] %v4055
  %4084 = vst [vmem:[%s3 + $0x24] sm:$0xf] %v4056
  %4085 = vst [vmem:[%s3 + $0x28] sm:$0xf] %v4057
  %4086 = vst [vmem:[%s3 + $0x2c] sm:$0xf] %v4058
  %4087 = vst [vmem:[%s3 + $0x30] sm:$0xf] %v4059
  %4088 = vst [vmem:[%s3 + $0x34] sm:$0xf] %v4060
  // Predicated region
  $region14: #{cnn_forward.4} parent=0 // pred_check
    _
  $region15: #{cnn_forward.4} parent=0 // pred_check_branch
    %4090 = sbr.rel (0) target = $region17
  $region16: #{cnn_forward.4} parent=0 // pred_region
    _
  $region17: #{cnn_forward.4} parent=0 // pred_fallthru
    _
  // Predicated region
  $region18: #{cnn_forward.4} parent=0 // pred_check
    _
  $region19: #{cnn_forward.4} parent=0 // pred_check_branch
    %4092 = sbr.rel (0) target = $region21
  $region20: #{cnn_forward.4} parent=0 // pred_region
    _
  $region21: #{cnn_forward.4} parent=0 // pred_fallthru
    _

</llo_original>
